<compile_context>
chip_gen: v7x
topology: tpu7x:2x2x1
jax: 0.10.0
libtpu: 0.0.40
codegen_flags: <defaults>
</compile_context>

<pallas_src>
import jax
import jax.numpy as jnp
from jax.experimental import pallas as pl
from jax.experimental.pallas import tpu as pltpu


def _round_up(n, m):
    return ((n + m - 1) // m) * m


# --------------------------------------------------------------------------- #
# kernel
# --------------------------------------------------------------------------- #
def _make_rrrb_kernel(W, TH):
    THW = TH * W

    def kernel(x_ref, halo_ref, we_ref, be_ref, w3_ref, b3_ref, wr_ref,
               br_ref, o_ref):
        Cmp = we_ref.shape[1]
        cdt = we_ref.dtype                       # MXU operand dtype (bf16 / f32)

        # ---- expand 1x1 conv over [top halo row ; tile ; bottom halo row] --
        # (zero halo rows -> be, which is exactly pad_tensor's border value)
        x_ext = jnp.concatenate(
            [halo_ref[pl.ds(0, W), :],
             x_ref[...].astype(cdt),
             halo_ref[pl.ds(W, W), :]], axis=0)                  # ((TH+2)*W, Cp)
        out1_ext = jnp.dot(x_ext, we_ref[...],
                           preferred_element_type=jnp.float32) + be_ref[...]

        out1 = out1_ext[W:W + THW, :]            # (THW, Cmp) f32, aligned slice

        # column coordinate of every tile pixel -> x-border masks
        col = jax.lax.broadcasted_iota(jnp.int32, (THW, 1), 0) % W
        left_edge = col == 0                     # invalid source when sx = -1
        right_edge = col == W - 1                # invalid source when sx = +1
        be = be_ref[...]                         # (1, Cmp) f32

        # ---- 3x3 conv: 9 accumulated matmuls (f32 acc); identity + b3 folded
        acc = out1 + b3_ref[...]
        for sy in (-1, 0, 1):
            base = out1 if sy == 0 else \
                out1_ext[(1 + sy) * W:(1 + sy) * W + THW, :]     # aligned slice
            for sx in (-1, 0, 1):
                if sx == 0:
                    shifted = base
                else:
                    rolled = pltpu.roll(base, (-sx) % THW, axis=0)
                    edge = left_edge if sx < 0 else right_edge
                    shifted = jnp.where(edge, be, rolled)
                tap = (sy + 1) * 3 + (sx + 1)
                acc = acc + jnp.dot(
                    shifted.astype(cdt),
                    w3_ref[tap * Cmp:(tap + 1) * Cmp, :],
                    preferred_element_type=jnp.float32)

        # ---- reduce 1x1 conv + f32 residual --------------------------------
        out3 = jnp.dot(acc.astype(cdt), wr_ref[...],
                       preferred_element_type=jnp.float32) \
            + br_ref[...] + x_ref[...]
        o_ref[...] = out3.astype(o_ref.dtype)

    return kernel


# --------------------------------------------------------------------------- #
# wrapper-side layout helpers (amortize across the FMEN block stack in a model)
# --------------------------------------------------------------------------- #
def pack_rrrb_params(params, n_feats, compute_dtype=jnp.bfloat16):
    """Pack RRRB params into lane-padded kernel operands.

    params: (we (C,Cm), be (1,Cm), w3 (3,3,Cm,Cm) HWIO, b3 (1,Cm),
             wr (Cm,C), br (1,C)).  PyTorch's OIHW / (out,in) layouts are just
    a transpose at this boundary.  `compute_dtype` selects the MXU operand
    dtype; biases stay f32 and accumulation is always f32.
    """
    we, be, w3, b3, wr, br = params
    C = n_feats
    Cm = we.shape[1]
    Cp, Cmp = _round_up(C, 128), _round_up(Cm, 128)
    cdt = compute_dtype

    wep = jnp.zeros((Cp, Cmp), cdt).at[:C, :Cm].set(we.astype(cdt))
    bep = jnp.zeros((1, Cmp), jnp.float32).at[:, :Cm].set(
        be.reshape(1, Cm).astype(jnp.float32))
    w3p = jnp.zeros((3, 3, Cmp, Cmp), cdt).at[:, :, :Cm, :Cm].set(w3.astype(cdt))
    w3mat = w3p.reshape(9 * Cmp, Cmp)            # row = (dy*3+dx)*Cmp + cin
    b3p = jnp.zeros((1, Cmp), jnp.float32).at[:, :Cm].set(
        b3.reshape(1, Cm).astype(jnp.float32))
    wrp = jnp.zeros((Cmp, Cp), cdt).at[:Cm, :C].set(wr.astype(cdt))
    brp = jnp.zeros((1, Cp), jnp.float32).at[:, :C].set(
        br.reshape(1, C).astype(jnp.float32))
    return (wep, bep, w3mat, b3p, wrp, brp)


def pad_activation(x):
    """(B, H, W, C) -> lane-padded, pixel-flattened (B, H*W, Cp) float32."""
    B, H, W, C = x.shape
    Cp = _round_up(C, 128)
    xp = jnp.zeros((B, H * W, Cp), jnp.float32)
    return xp.at[:, :, :C].set(x.reshape(B, H * W, C).astype(jnp.float32))


def unpad_activation(xp, H, W, C):
    B = xp.shape[0]
    return xp[:, :, :C].reshape(B, H, W, C)


def _vmem_estimate(TH, W, Cp, Cmp, itemsize):
    tile = TH * W
    b = 2 * 2 * tile * Cp * 4                        # x-in + out blocks, 2x buffered
    b += 2 * 2 * W * Cp * itemsize                   # halo rows, 2x buffered
    b += 2 * (2 * Cp * Cmp + 9 * Cmp * Cmp) * itemsize + 16 * max(Cp, Cmp)
    b += ((TH + 2) * W + 5 * tile) * Cmp * 4         # in-kernel f32 temporaries (rough)
    return b


def _pick_tile_rows(H, W, Cp, Cmp, itemsize, budget=24 * 1024 * 1024):
    cands = sorted({d for d in range(1, H + 1)
                    if H % d == 0 and ((d * W) % 8 == 0 or d == H)})
    fitting = [d for d in cands if _vmem_estimate(d, W, Cp, Cmp, itemsize) <= budget]
    return max(fitting) if fitting else min(cands)


# --------------------------------------------------------------------------- #
# pallas_call wrapper (persistent lane-padded layout)
# --------------------------------------------------------------------------- #
def rrrb_pallas_padded(xp, packed_params, H, W, *, tile_rows=None):
    """RRRB forward on the persistent (B, H*W, Cp) f32 layout -> same layout."""
    wep, bep, w3mat, b3p, wrp, brp = packed_params
    B, HW, Cp = xp.shape
    assert HW == H * W
    Cmp = wep.shape[1]
    cdt = wep.dtype
    itemsize = jnp.dtype(cdt).itemsize

    TH = _pick_tile_rows(H, W, Cp, Cmp, itemsize) if tile_rows is None else tile_rows
    if H % TH != 0:
        raise ValueError(f"tile_rows={TH} must divide H={H}")
    if TH != H and (TH * W) % 8 != 0:
        raise ValueError("tile_rows * W must be a multiple of 8 (or tile_rows == H)")
    nT = H // TH
    THW = TH * W

    # per-tile 1-row top/bottom x halo (zero rows at the image border)
    xr = xp.reshape(B, H, W, Cp)
    zero_row = jnp.zeros((B, 1, W, Cp), xp.dtype)
    top = jnp.concatenate([zero_row, xr[:, TH - 1::TH][:, :nT - 1]], axis=1)
    bot = jnp.concatenate([xr[:, TH::TH], zero_row], axis=1)
    halo = jnp.stack([top, bot], axis=2).reshape(B * nT, 2 * W, Cp).astype(cdt)

    param_arrays = (wep, bep, w3mat, b3p, wrp, brp)
    kernel = _make_rrrb_kernel(W, TH)

    x_spec = pl.BlockSpec((None, THW, Cp), lambda b, t: (b, t, 0))
    halo_spec = pl.BlockSpec((None, 2 * W, Cp), lambda b, t: (b * nT + t, 0, 0))
    out_spec = pl.BlockSpec((None, THW, Cp), lambda b, t: (b, t, 0))

    def _const_spec(p, single_buffer):
        nd = p.ndim
        idx = lambda b, t, _nd=nd: (0,) * _nd
        if single_buffer:
            return pl.BlockSpec(p.shape, idx, pipeline_mode=pl.Buffered(1))
        return pl.BlockSpec(p.shape, idx)

    cparams = dict(dimension_semantics=("parallel", "parallel"))
    est = _vmem_estimate(TH, W, Cp, Cmp, itemsize)
    if est > 30 * 1024 * 1024:
        # production-size tiles: raise the scoped VMEM limit, staying well
        # under v7x's 64 MiB physical VMEM.
        cparams["vmem_limit_bytes"] = int(min(48 * 1024 * 1024, est * 1.25))

    def _run(single_buffer_weights):
        grid_spec = pltpu.PrefetchScalarGridSpec(
            num_scalar_prefetch=0,
            grid=(B, nT),
            in_specs=[x_spec, halo_spec]
            + [_const_spec(p, single_buffer_weights) for p in param_arrays],
            out_specs=out_spec,
        )
        return pl.pallas_call(
            kernel,
            out_shape=jax.ShapeDtypeStruct((B, HW, Cp), xp.dtype),
            grid_spec=grid_spec,
            compiler_params=pltpu.CompilerParams(**cparams),
        )(xp, halo, *param_arrays)

    try:
        return _run(True)          # single-buffered constant weight specs
    except Exception:
        return _run(False)         # fall back to default double buffering


def rrrb_pallas(x, params, *, compute_dtype=jnp.bfloat16, tile_rows=None):
    """Standalone RRRB forward: NHWC f32 in -> NHWC f32 out.

    NOTE: in a full FMEN model, pad_activation / pack_rrrb_params should be
    done once and the padded layout kept across the stacked RRRB blocks; this
    convenience wrapper pays the pad/slice HBM cost per call for the demo.
    """
    B, H, W, C = x.shape
    packed = pack_rrrb_params(params, C, compute_dtype)
    xp = pad_activation(x)
    op = rrrb_pallas_padded(xp, packed, H, W, tile_rows=tile_rows)
    return unpad_activation(op, H, W, C)


# --------------------------------------------------------------------------- #
# pure-JAX reference (same math, via lax.conv)
# --------------------------------------------------------------------------- #
def _rrrb_ref(x, we, be, w3, b3, wr, br):
    B, H, W, C = x.shape
    Cm = we.shape[1]
    out1 = jnp.einsum('bhwc,cd->bhwd', x, we) + be.reshape(1, 1, 1, Cm)
    pad = jnp.broadcast_to(be.reshape(1, 1, 1, Cm), (B, H + 2, W + 2, Cm))
    pad = pad.at[:, 1:-1, 1:-1, :].set(out1)
    conv = jax.lax.conv_general_dilated(
        pad, w3, (1, 1), 'VALID',
        dimension_numbers=('NHWC', 'HWIO', 'NHWC')) + b3.reshape(1, 1, 1, Cm)
    out2 = conv + out1
    return jnp.einsum('bhwd,dc->bhwc', out2, wr) + br.reshape(1, 1, 1, C) + x


def _make_rrrb_params(key, n_feats, ratio):
    Cm = ratio * n_feats
    ks = jax.random.split(key, 6)
    we = 0.1 * jax.random.normal(ks[0], (n_feats, Cm), jnp.float32)   # 1x1 expand (in,out)
    be = 0.1 * jax.random.normal(ks[1], (1, Cm), jnp.float32)
    w3 = 0.1 * jax.random.normal(ks[2], (3, 3, Cm, Cm), jnp.float32)  # HWIO
    b3 = 0.1 * jax.random.normal(ks[3], (1, Cm), jnp.float32)
    wr = 0.1 * jax.random.normal(ks[4], (Cm, n_feats), jnp.float32)   # 1x1 reduce (in,out)
    br = 0.1 * jax.random.normal(ks[5], (1, n_feats), jnp.float32)
    return (we, be, w3, b3, wr, br)


if __name__ == "__main__":
    B, C, H, W = 2, 4, 16, 16
    ratio = 2

    key = jax.random.PRNGKey(0)
    kx, kp = jax.random.split(key)
    x = jax.random.normal(kx, (B, H, W, C), jnp.float32)    # NHWC
    params = _make_rrrb_params(kp, C, ratio)

    ref = _rrrb_ref(x, *params)

    # exact path: f32 MXU operands, two pixel-row tiles per image (halo path)
    out_f32 = jax.block_until_ready(
        rrrb_pallas(x, params, compute_dtype=jnp.float32, tile_rows=8))
    assert out_f32.shape == (B, H, W, C) and out_f32.dtype == jnp.float32
    err_f32 = float(jnp.max(jnp.abs(out_f32 - ref)))
    assert jnp.allclose(out_f32, ref, atol=1e-4, rtol=1e-4), err_f32

    # default path: bf16 MXU operands, f32 accumulation + exact f32 residual
    out_bf16 = jax.block_until_ready(rrrb_pallas(x, params))
    err_bf16 = float(jnp.max(jnp.abs(out_bf16 - ref)))
    assert jnp.allclose(out_bf16, ref, atol=1e-1, rtol=1e-1), err_bf16

    print("KERNEL_OK")
</pallas_src>

<mosaic_0001>
module attributes {stable_mosaic.version = 11 : i64} {
  func.func @kernel(%arg0: i32, %arg1: i32, %arg2: memref<1x128x128xf32, #tpu.memory_space<vmem>>, %arg3: memref<1x32x128xf32, #tpu.memory_space<vmem>>, %arg4: memref<128x128xf32, #tpu.memory_space<vmem>>, %arg5: memref<1x128xf32, #tpu.memory_space<vmem>>, %arg6: memref<1152x128xf32, #tpu.memory_space<vmem>>, %arg7: memref<1x128xf32, #tpu.memory_space<vmem>>, %arg8: memref<128x128xf32, #tpu.memory_space<vmem>>, %arg9: memref<1x128xf32, #tpu.memory_space<vmem>>, %arg10: memref<1x128x128xf32, #tpu.memory_space<vmem>>) attributes {dimension_semantics = [#tpu.dimension_semantics<parallel>, #tpu.dimension_semantics<parallel>], iteration_bounds = array<i64: 2, 2>, scalar_prefetch = 0 : i64, scratch_operands = 0 : i64, tpu.core_type = #tpu.core_type<tc>, window_params = [{transform_indices = @transform_0, window_bounds = array<i64: 1, 128, 128>}, {transform_indices = @transform_1, window_bounds = array<i64: 1, 32, 128>}, {pipeline_mode = #tpu.pipeline_mode<synchronous>, transform_indices = @transform_2, window_bounds = array<i64: 128, 128>}, {pipeline_mode = #tpu.pipeline_mode<synchronous>, transform_indices = @transform_3, window_bounds = array<i64: 1, 128>}, {pipeline_mode = #tpu.pipeline_mode<synchronous>, transform_indices = @transform_4, window_bounds = array<i64: 1152, 128>}, {pipeline_mode = #tpu.pipeline_mode<synchronous>, transform_indices = @transform_5, window_bounds = array<i64: 1, 128>}, {pipeline_mode = #tpu.pipeline_mode<synchronous>, transform_indices = @transform_6, window_bounds = array<i64: 128, 128>}, {pipeline_mode = #tpu.pipeline_mode<synchronous>, transform_indices = @transform_7, window_bounds = array<i64: 1, 128>}, {transform_indices = @transform_8, window_bounds = array<i64: 1, 128, 128>}]} {
    %c0 = arith.constant 0 : index
    %c0_0 = arith.constant 0 : index
    %c0_1 = arith.constant 0 : index
    %0 = vector.load %arg3[%c0, %c0_0, %c0_1] : memref<1x32x128xf32, #tpu.memory_space<vmem>>, vector<1x16x128xf32>
    %1 = vector.shape_cast %0 : vector<1x16x128xf32> to vector<16x128xf32>
    %c0_2 = arith.constant 0 : index
    %c0_3 = arith.constant 0 : index
    %c0_4 = arith.constant 0 : index
    %2 = vector.load %arg2[%c0_2, %c0_3, %c0_4] : memref<1x128x128xf32, #tpu.memory_space<vmem>>, vector<1x128x128xf32>
    %3 = vector.shape_cast %2 : vector<1x128x128xf32> to vector<128x128xf32>
    %c0_5 = arith.constant 0 : index
    %c16 = arith.constant 16 : index
    %c0_6 = arith.constant 0 : index
    %4 = vector.load %arg3[%c0_5, %c16, %c0_6] : memref<1x32x128xf32, #tpu.memory_space<vmem>>, vector<1x16x128xf32>
    %5 = vector.shape_cast %4 : vector<1x16x128xf32> to vector<16x128xf32>
    %6 = tpu.concatenate %1, %3, %5 in 0 : vector<16x128xf32>, vector<128x128xf32>, vector<16x128xf32> -> vector<160x128xf32>
    %c0_7 = arith.constant 0 : index
    %c0_8 = arith.constant 0 : index
    %7 = vector.load %arg4[%c0_7, %c0_8] : memref<128x128xf32, #tpu.memory_space<vmem>>, vector<128x128xf32>
    %cst = arith.constant dense<0.000000e+00> : vector<160x128xf32>
    %8 = tpu.matmul %6, %7, %cst {dimension_numbers = #tpu.dot_dimension_numbers<[1], [0], [0], [1], [0, 0, 1, 1], [], []>} : vector<160x128xf32>, vector<128x128xf32>, vector<160x128xf32> -> vector<160x128xf32>
    %c0_9 = arith.constant 0 : index
    %c0_10 = arith.constant 0 : index
    %9 = vector.load %arg5[%c0_9, %c0_10] : memref<1x128xf32, #tpu.memory_space<vmem>>, vector<1x128xf32>
    %10 = vector.broadcast %9 : vector<1x128xf32> to vector<160x128xf32>
    %11 = arith.addf %8, %10 : vector<160x128xf32>
    %12 = vector.extract_strided_slice %11 {offsets = [16, 0], sizes = [128, 128], strides = [1, 1]} : vector<160x128xf32> to vector<128x128xf32>
    %13 = tpu.iota {dimensions = array<i32: 0>} : vector<128x1xi32>
    %c16_i32 = arith.constant 16 : i32
    %c0_i32 = arith.constant 0 : i32
    %14 = arith.cmpi eq, %c16_i32, %c0_i32 : i32
    %c1_i32 = arith.constant 1 : i32
    %15 = arith.select %14, %c1_i32, %c16_i32 : i32
    %16 = vector.broadcast %15 : i32 to vector<128x1xi32>
    %17 = arith.remsi %13, %16 : vector<128x1xi32>
    %c0_i32_11 = arith.constant 0 : i32
    %18 = vector.broadcast %c0_i32_11 : i32 to vector<128x1xi32>
    %19 = arith.cmpi ne, %17, %18 : vector<128x1xi32>
    %c0_i32_12 = arith.constant 0 : i32
    %20 = vector.broadcast %c0_i32_12 : i32 to vector<128x1xi32>
    %21 = arith.cmpi slt, %17, %20 : vector<128x1xi32>
    %c0_i32_13 = arith.constant 0 : i32
    %22 = arith.cmpi slt, %15, %c0_i32_13 : i32
    %23 = vector.broadcast %22 : i1 to vector<128x1xi1>
    %24 = vector.broadcast %23 : vector<128x1xi1> to vector<128x1xi1>
    %25 = arith.xori %21, %24 : vector<128x1xi1>
    %26 = arith.andi %25, %19 : vector<128x1xi1>
    %27 = vector.broadcast %15 : i32 to vector<128x1xi32>
    %28 = arith.addi %17, %27 : vector<128x1xi32>
    %29 = arith.select %26, %28, %17 : vector<128x1xi1>, vector<128x1xi32>
    %c0_i32_14 = arith.constant 0 : i32
    %30 = vector.broadcast %c0_i32_14 : i32 to vector<128x1xi32>
    %31 = arith.cmpi eq, %29, %30 : vector<128x1xi32>
    %c15_i32 = arith.constant 15 : i32
    %32 = vector.broadcast %c15_i32 : i32 to vector<128x1xi32>
    %33 = arith.cmpi eq, %29, %32 : vector<128x1xi32>
    %c0_15 = arith.constant 0 : index
    %c0_16 = arith.constant 0 : index
    %34 = vector.load %arg5[%c0_15, %c0_16] : memref<1x128xf32, #tpu.memory_space<vmem>>, vector<1x128xf32>
    %c0_17 = arith.constant 0 : index
    %c0_18 = arith.constant 0 : index
    %35 = vector.load %arg7[%c0_17, %c0_18] : memref<1x128xf32, #tpu.memory_space<vmem>>, vector<1x128xf32>
    %36 = vector.broadcast %35 : vector<1x128xf32> to vector<128x128xf32>
    %37 = arith.addf %12, %36 : vector<128x128xf32>
    %38 = vector.extract_strided_slice %11 {offsets = [0, 0], sizes = [128, 128], strides = [1, 1]} : vector<160x128xf32> to vector<128x128xf32>
    %c1_i32_19 = arith.constant 1 : i32
    %39 = tpu.dynamic_rotate %38 by %c1_i32_19 dim 0 : vector<128x128xf32>, i32 -> vector<128x128xf32>
    %40 = vector.shape_cast %31 : vector<128x1xi1> to vector<128x1xi1>
    %41 = vector.broadcast %40 : vector<128x1xi1> to vector<128x128xi1>
    %42 = vector.shape_cast %34 : vector<1x128xf32> to vector<1x128xf32>
    %43 = vector.broadcast %42 : vector<1x128xf32> to vector<128x128xf32>
    %44 = arith.select %41, %43, %39 : vector<128x128xi1>, vector<128x128xf32>
    %c0_20 = arith.constant 0 : index
    %c0_21 = arith.constant 0 : index
    %45 = vector.load %arg6[%c0_20, %c0_21] : memref<1152x128xf32, #tpu.memory_space<vmem>>, vector<128x128xf32>
    %cst_22 = arith.constant dense<0.000000e+00> : vector<128x128xf32>
    %46 = tpu.matmul %44, %45, %cst_22 {dimension_numbers = #tpu.dot_dimension_numbers<[1], [0], [0], [1], [0, 0, 1, 1], [], []>} : vector<128x128xf32>, vector<128x128xf32>, vector<128x128xf32> -> vector<128x128xf32>
    %47 = arith.addf %37, %46 : vector<128x128xf32>
    %c128 = arith.constant 128 : index
    %c0_23 = arith.constant 0 : index
    %48 = vector.load %arg6[%c128, %c0_23] : memref<1152x128xf32, #tpu.memory_space<vmem>>, vector<128x128xf32>
    %cst_24 = arith.constant dense<0.000000e+00> : vector<128x128xf32>
    %49 = tpu.matmul %38, %48, %cst_24 {dimension_numbers = #tpu.dot_dimension_numbers<[1], [0], [0], [1], [0, 0, 1, 1], [], []>} : vector<128x128xf32>, vector<128x128xf32>, vector<128x128xf32> -> vector<128x128xf32>
    %50 = arith.addf %47, %49 : vector<128x128xf32>
    %c127_i32 = arith.constant 127 : i32
    %51 = tpu.dynamic_rotate %38 by %c127_i32 dim 0 : vector<128x128xf32>, i32 -> vector<128x128xf32>
    %52 = vector.shape_cast %33 : vector<128x1xi1> to vector<128x1xi1>
    %53 = vector.broadcast %52 : vector<128x1xi1> to vector<128x128xi1>
    %54 = vector.shape_cast %34 : vector<1x128xf32> to vector<1x128xf32>
    %55 = vector.broadcast %54 : vector<1x128xf32> to vector<128x128xf32>
    %56 = arith.select %53, %55, %51 : vector<128x128xi1>, vector<128x128xf32>
    %c256 = arith.constant 256 : index
    %c0_25 = arith.constant 0 : index
    %57 = vector.load %arg6[%c256, %c0_25] : memref<1152x128xf32, #tpu.memory_space<vmem>>, vector<128x128xf32>
    %cst_26 = arith.constant dense<0.000000e+00> : vector<128x128xf32>
    %58 = tpu.matmul %56, %57, %cst_26 {dimension_numbers = #tpu.dot_dimension_numbers<[1], [0], [0], [1], [0, 0, 1, 1], [], []>} : vector<128x128xf32>, vector<128x128xf32>, vector<128x128xf32> -> vector<128x128xf32>
    %59 = arith.addf %50, %58 : vector<128x128xf32>
    %c1_i32_27 = arith.constant 1 : i32
    %60 = tpu.dynamic_rotate %12 by %c1_i32_27 dim 0 : vector<128x128xf32>, i32 -> vector<128x128xf32>
    %61 = vector.shape_cast %31 : vector<128x1xi1> to vector<128x1xi1>
    %62 = vector.broadcast %61 : vector<128x1xi1> to vector<128x128xi1>
    %63 = vector.shape_cast %34 : vector<1x128xf32> to vector<1x128xf32>
    %64 = vector.broadcast %63 : vector<1x128xf32> to vector<128x128xf32>
    %65 = arith.select %62, %64, %60 : vector<128x128xi1>, vector<128x128xf32>
    %c384 = arith.constant 384 : index
    %c0_28 = arith.constant 0 : index
    %66 = vector.load %arg6[%c384, %c0_28] : memref<1152x128xf32, #tpu.memory_space<vmem>>, vector<128x128xf32>
    %cst_29 = arith.constant dense<0.000000e+00> : vector<128x128xf32>
    %67 = tpu.matmul %65, %66, %cst_29 {dimension_numbers = #tpu.dot_dimension_numbers<[1], [0], [0], [1], [0, 0, 1, 1], [], []>} : vector<128x128xf32>, vector<128x128xf32>, vector<128x128xf32> -> vector<128x128xf32>
    %68 = arith.addf %59, %67 : vector<128x128xf32>
    %c512 = arith.constant 512 : index
    %c0_30 = arith.constant 0 : index
    %69 = vector.load %arg6[%c512, %c0_30] : memref<1152x128xf32, #tpu.memory_space<vmem>>, vector<128x128xf32>
    %cst_31 = arith.constant dense<0.000000e+00> : vector<128x128xf32>
    %70 = tpu.matmul %12, %69, %cst_31 {dimension_numbers = #tpu.dot_dimension_numbers<[1], [0], [0], [1], [0, 0, 1, 1], [], []>} : vector<128x128xf32>, vector<128x128xf32>, vector<128x128xf32> -> vector<128x128xf32>
    %71 = arith.addf %68, %70 : vector<128x128xf32>
    %c127_i32_32 = arith.constant 127 : i32
    %72 = tpu.dynamic_rotate %12 by %c127_i32_32 dim 0 : vector<128x128xf32>, i32 -> vector<128x128xf32>
    %73 = vector.shape_cast %33 : vector<128x1xi1> to vector<128x1xi1>
    %74 = vector.broadcast %73 : vector<128x1xi1> to vector<128x128xi1>
    %75 = vector.shape_cast %34 : vector<1x128xf32> to vector<1x128xf32>
    %76 = vector.broadcast %75 : vector<1x128xf32> to vector<128x128xf32>
    %77 = arith.select %74, %76, %72 : vector<128x128xi1>, vector<128x128xf32>
    %c640 = arith.constant 640 : index
    %c0_33 = arith.constant 0 : index
    %78 = vector.load %arg6[%c640, %c0_33] : memref<1152x128xf32, #tpu.memory_space<vmem>>, vector<128x128xf32>
    %cst_34 = arith.constant dense<0.000000e+00> : vector<128x128xf32>
    %79 = tpu.matmul %77, %78, %cst_34 {dimension_numbers = #tpu.dot_dimension_numbers<[1], [0], [0], [1], [0, 0, 1, 1], [], []>} : vector<128x128xf32>, vector<128x128xf32>, vector<128x128xf32> -> vector<128x128xf32>
    %80 = arith.addf %71, %79 : vector<128x128xf32>
    %81 = vector.extract_strided_slice %11 {offsets = [32, 0], sizes = [128, 128], strides = [1, 1]} : vector<160x128xf32> to vector<128x128xf32>
    %c1_i32_35 = arith.constant 1 : i32
    %82 = tpu.dynamic_rotate %81 by %c1_i32_35 dim 0 : vector<128x128xf32>, i32 -> vector<128x128xf32>
    %83 = vector.shape_cast %31 : vector<128x1xi1> to vector<128x1xi1>
    %84 = vector.broadcast %83 : vector<128x1xi1> to vector<128x128xi1>
    %85 = vector.shape_cast %34 : vector<1x128xf32> to vector<1x128xf32>
    %86 = vector.broadcast %85 : vector<1x128xf32> to vector<128x128xf32>
    %87 = arith.select %84, %86, %82 : vector<128x128xi1>, vector<128x128xf32>
    %c768 = arith.constant 768 : index
    %c0_36 = arith.constant 0 : index
    %88 = vector.load %arg6[%c768, %c0_36] : memref<1152x128xf32, #tpu.memory_space<vmem>>, vector<128x128xf32>
    %cst_37 = arith.constant dense<0.000000e+00> : vector<128x128xf32>
    %89 = tpu.matmul %87, %88, %cst_37 {dimension_numbers = #tpu.dot_dimension_numbers<[1], [0], [0], [1], [0, 0, 1, 1], [], []>} : vector<128x128xf32>, vector<128x128xf32>, vector<128x128xf32> -> vector<128x128xf32>
    %90 = arith.addf %80, %89 : vector<128x128xf32>
    %c896 = arith.constant 896 : index
    %c0_38 = arith.constant 0 : index
    %91 = vector.load %arg6[%c896, %c0_38] : memref<1152x128xf32, #tpu.memory_space<vmem>>, vector<128x128xf32>
    %cst_39 = arith.constant dense<0.000000e+00> : vector<128x128xf32>
    %92 = tpu.matmul %81, %91, %cst_39 {dimension_numbers = #tpu.dot_dimension_numbers<[1], [0], [0], [1], [0, 0, 1, 1], [], []>} : vector<128x128xf32>, vector<128x128xf32>, vector<128x128xf32> -> vector<128x128xf32>
    %93 = arith.addf %90, %92 : vector<128x128xf32>
    %c127_i32_40 = arith.constant 127 : i32
    %94 = tpu.dynamic_rotate %81 by %c127_i32_40 dim 0 : vector<128x128xf32>, i32 -> vector<128x128xf32>
    %95 = vector.shape_cast %33 : vector<128x1xi1> to vector<128x1xi1>
    %96 = vector.broadcast %95 : vector<128x1xi1> to vector<128x128xi1>
    %97 = vector.shape_cast %34 : vector<1x128xf32> to vector<1x128xf32>
    %98 = vector.broadcast %97 : vector<1x128xf32> to vector<128x128xf32>
    %99 = arith.select %96, %98, %94 : vector<128x128xi1>, vector<128x128xf32>
    %c1024 = arith.constant 1024 : index
    %c0_41 = arith.constant 0 : index
    %100 = vector.load %arg6[%c1024, %c0_41] : memref<1152x128xf32, #tpu.memory_space<vmem>>, vector<128x128xf32>
    %cst_42 = arith.constant dense<0.000000e+00> : vector<128x128xf32>
    %101 = tpu.matmul %99, %100, %cst_42 {dimension_numbers = #tpu.dot_dimension_numbers<[1], [0], [0], [1], [0, 0, 1, 1], [], []>} : vector<128x128xf32>, vector<128x128xf32>, vector<128x128xf32> -> vector<128x128xf32>
    %102 = arith.addf %93, %101 : vector<128x128xf32>
    %c0_43 = arith.constant 0 : index
    %c0_44 = arith.constant 0 : index
    %103 = vector.load %arg8[%c0_43, %c0_44] : memref<128x128xf32, #tpu.memory_space<vmem>>, vector<128x128xf32>
    %cst_45 = arith.constant dense<0.000000e+00> : vector<128x128xf32>
    %104 = tpu.matmul %102, %103, %cst_45 {dimension_numbers = #tpu.dot_dimension_numbers<[1], [0], [0], [1], [0, 0, 1, 1], [], []>} : vector<128x128xf32>, vector<128x128xf32>, vector<128x128xf32> -> vector<128x128xf32>
    %c0_46 = arith.constant 0 : index
    %c0_47 = arith.constant 0 : index
    %105 = vector.load %arg9[%c0_46, %c0_47] : memref<1x128xf32, #tpu.memory_space<vmem>>, vector<1x128xf32>
    %106 = vector.broadcast %105 : vector<1x128xf32> to vector<128x128xf32>
    %107 = arith.addf %104, %106 : vector<128x128xf32>
    %c0_48 = arith.constant 0 : index
    %c0_49 = arith.constant 0 : index
    %c0_50 = arith.constant 0 : index
    %108 = vector.load %arg2[%c0_48, %c0_49, %c0_50] : memref<1x128x128xf32, #tpu.memory_space<vmem>>, vector<1x128x128xf32>
    %109 = vector.shape_cast %108 : vector<1x128x128xf32> to vector<128x128xf32>
    %110 = arith.addf %107, %109 : vector<128x128xf32>
    %c0_51 = arith.constant 0 : index
    %c0_52 = arith.constant 0 : index
    %c0_53 = arith.constant 0 : index
    %111 = vector.load %arg10[%c0_51, %c0_52, %c0_53] : memref<1x128x128xf32, #tpu.memory_space<vmem>>, vector<1x128x128xf32>
    %112 = vector.shape_cast %111 : vector<1x128x128xf32> to vector<128x128xf32>
    %113 = vector.shape_cast %110 : vector<128x128xf32> to vector<1x128x128xf32>
    tpu.vector_store %arg10[%c0_51, %c0_52, %c0_53], %113 {strides = array<i32>} : memref<1x128x128xf32, #tpu.memory_space<vmem>>, vector<1x128x128xf32>,
    return
  }
  func.func @transform_0(%arg0: i32, %arg1: i32) -> (i32, i32, i32) {
    %c0_i32 = arith.constant 0 : i32
    %c0_i32_0 = arith.constant 0 : i32
    return %arg0, %arg1, %c0_i32 : i32, i32, i32
  }
  func.func @transform_1(%arg0: i32, %arg1: i32) -> (i32, i32, i32) {
    %c2_i32 = arith.constant 2 : i32
    %0 = arith.muli %arg0, %c2_i32 : i32
    %1 = arith.addi %0, %arg1 : i32
    %c0_i32 = arith.constant 0 : i32
    %c0_i32_0 = arith.constant 0 : i32
    %c0_i32_1 = arith.constant 0 : i32
    return %1, %c0_i32, %c0_i32_0 : i32, i32, i32
  }
  func.func @transform_2(%arg0: i32, %arg1: i32) -> (i32, i32) {
    %c0_i32 = arith.constant 0 : i32
    %c0_i32_0 = arith.constant 0 : i32
    %c0_i32_1 = arith.constant 0 : i32
    return %c0_i32, %c0_i32_0 : i32, i32
  }
  func.func @transform_3(%arg0: i32, %arg1: i32) -> (i32, i32) {
    %c0_i32 = arith.constant 0 : i32
    %c0_i32_0 = arith.constant 0 : i32
    %c0_i32_1 = arith.constant 0 : i32
    return %c0_i32, %c0_i32_0 : i32, i32
  }
  func.func @transform_4(%arg0: i32, %arg1: i32) -> (i32, i32) {
    %c0_i32 = arith.constant 0 : i32
    %c0_i32_0 = arith.constant 0 : i32
    %c0_i32_1 = arith.constant 0 : i32
    return %c0_i32, %c0_i32_0 : i32, i32
  }
  func.func @transform_5(%arg0: i32, %arg1: i32) -> (i32, i32) {
    %c0_i32 = arith.constant 0 : i32
    %c0_i32_0 = arith.constant 0 : i32
    %c0_i32_1 = arith.constant 0 : i32
    return %c0_i32, %c0_i32_0 : i32, i32
  }
  func.func @transform_6(%arg0: i32, %arg1: i32) -> (i32, i32) {
    %c0_i32 = arith.constant 0 : i32
    %c0_i32_0 = arith.constant 0 : i32
    %c0_i32_1 = arith.constant 0 : i32
    return %c0_i32, %c0_i32_0 : i32, i32
  }
  func.func @transform_7(%arg0: i32, %arg1: i32) -> (i32, i32) {
    %c0_i32 = arith.constant 0 : i32
    %c0_i32_0 = arith.constant 0 : i32
    %c0_i32_1 = arith.constant 0 : i32
    return %c0_i32, %c0_i32_0 : i32, i32
  }
  func.func @transform_8(%arg0: i32, %arg1: i32) -> (i32, i32, i32) {
    %c0_i32 = arith.constant 0 : i32
    %c0_i32_0 = arith.constant 0 : i32
    return %arg0, %arg1, %c0_i32 : i32, i32, i32
  }
}

module attributes {stable_mosaic.version = 11 : i64} {
  func.func @kernel(%arg0: i32, %arg1: i32, %arg2: memref<1x128x128xf32, #tpu.memory_space<vmem>>, %arg3: memref<1x32x128xf32, #tpu.memory_space<vmem>>, %arg4: memref<128x128xf32, #tpu.memory_space<vmem>>, %arg5: memref<1x128xf32, #tpu.memory_space<vmem>>, %arg6: memref<1152x128xf32, #tpu.memory_space<vmem>>, %arg7: memref<1x128xf32, #tpu.memory_space<vmem>>, %arg8: memref<128x128xf32, #tpu.memory_space<vmem>>, %arg9: memref<1x128xf32, #tpu.memory_space<vmem>>, %arg10: memref<1x128x128xf32, #tpu.memory_space<vmem>>) attributes {dimension_semantics = [#tpu.dimension_semantics<parallel>, #tpu.dimension_semantics<parallel>], iteration_bounds = array<i64: 2, 2>, scalar_prefetch = 0 : i64, scratch_operands = 0 : i64, tpu.core_type = #tpu.core_type<tc>, window_params = [{transform_indices = @transform_0, window_bounds = array<i64: 1, 128, 128>}, {transform_indices = @transform_1, window_bounds = array<i64: 1, 32, 128>}, {pipeline_mode = #tpu.pipeline_mode<synchronous>, transform_indices = @transform_2, window_bounds = array<i64: 128, 128>}, {pipeline_mode = #tpu.pipeline_mode<synchronous>, transform_indices = @transform_3, window_bounds = array<i64: 1, 128>}, {pipeline_mode = #tpu.pipeline_mode<synchronous>, transform_indices = @transform_4, window_bounds = array<i64: 1152, 128>}, {pipeline_mode = #tpu.pipeline_mode<synchronous>, transform_indices = @transform_5, window_bounds = array<i64: 1, 128>}, {pipeline_mode = #tpu.pipeline_mode<synchronous>, transform_indices = @transform_6, window_bounds = array<i64: 128, 128>}, {pipeline_mode = #tpu.pipeline_mode<synchronous>, transform_indices = @transform_7, window_bounds = array<i64: 1, 128>}, {transform_indices = @transform_8, window_bounds = array<i64: 1, 128, 128>}]} {
    %c0 = arith.constant 0 : index
    %c0_0 = arith.constant 0 : index
    %c0_1 = arith.constant 0 : index
    %0 = vector.load %arg3[%c0, %c0_0, %c0_1] : memref<1x32x128xf32, #tpu.memory_space<vmem>>, vector<1x16x128xf32>
    %1 = vector.shape_cast %0 : vector<1x16x128xf32> to vector<16x128xf32>
    %c0_2 = arith.constant 0 : index
    %c0_3 = arith.constant 0 : index
    %c0_4 = arith.constant 0 : index
    %2 = vector.load %arg2[%c0_2, %c0_3, %c0_4] : memref<1x128x128xf32, #tpu.memory_space<vmem>>, vector<1x128x128xf32>
    %3 = vector.shape_cast %2 : vector<1x128x128xf32> to vector<128x128xf32>
    %c0_5 = arith.constant 0 : index
    %c16 = arith.constant 16 : index
    %c0_6 = arith.constant 0 : index
    %4 = vector.load %arg3[%c0_5, %c16, %c0_6] : memref<1x32x128xf32, #tpu.memory_space<vmem>>, vector<1x16x128xf32>
    %5 = vector.shape_cast %4 : vector<1x16x128xf32> to vector<16x128xf32>
    %6 = tpu.concatenate %1, %3, %5 in 0 : vector<16x128xf32>, vector<128x128xf32>, vector<16x128xf32> -> vector<160x128xf32>
    %c0_7 = arith.constant 0 : index
    %c0_8 = arith.constant 0 : index
    %7 = vector.load %arg4[%c0_7, %c0_8] : memref<128x128xf32, #tpu.memory_space<vmem>>, vector<128x128xf32>
    %cst = arith.constant dense<0.000000e+00> : vector<160x128xf32>
    %8 = tpu.matmul %6, %7, %cst {dimension_numbers = #tpu.dot_dimension_numbers<[1], [0], [0], [1], [0, 0, 1, 1], [], []>} : vector<160x128xf32>, vector<128x128xf32>, vector<160x128xf32> -> vector<160x128xf32>
    %c0_9 = arith.constant 0 : index
    %c0_10 = arith.constant 0 : index
    %9 = vector.load %arg5[%c0_9, %c0_10] : memref<1x128xf32, #tpu.memory_space<vmem>>, vector<1x128xf32>
    %10 = vector.broadcast %9 : vector<1x128xf32> to vector<160x128xf32>
    %11 = arith.addf %8, %10 : vector<160x128xf32>
    %12 = vector.extract_strided_slice %11 {offsets = [16, 0], sizes = [128, 128], strides = [1, 1]} : vector<160x128xf32> to vector<128x128xf32>
    %13 = tpu.iota {dimensions = array<i32: 0>} : vector<128x1xi32>
    %c16_i32 = arith.constant 16 : i32
    %c0_i32 = arith.constant 0 : i32
    %14 = arith.cmpi eq, %c16_i32, %c0_i32 : i32
    %c1_i32 = arith.constant 1 : i32
    %15 = arith.select %14, %c1_i32, %c16_i32 : i32
    %16 = vector.broadcast %15 : i32 to vector<128x1xi32>
    %17 = arith.remsi %13, %16 : vector<128x1xi32>
    %c0_i32_11 = arith.constant 0 : i32
    %18 = vector.broadcast %c0_i32_11 : i32 to vector<128x1xi32>
    %19 = arith.cmpi ne, %17, %18 : vector<128x1xi32>
    %c0_i32_12 = arith.constant 0 : i32
    %20 = vector.broadcast %c0_i32_12 : i32 to vector<128x1xi32>
    %21 = arith.cmpi slt, %17, %20 : vector<128x1xi32>
    %c0_i32_13 = arith.constant 0 : i32
    %22 = arith.cmpi slt, %15, %c0_i32_13 : i32
    %23 = vector.broadcast %22 : i1 to vector<128x1xi1>
    %24 = vector.broadcast %23 : vector<128x1xi1> to vector<128x1xi1>
    %25 = arith.xori %21, %24 : vector<128x1xi1>
    %26 = arith.andi %25, %19 : vector<128x1xi1>
    %27 = vector.broadcast %15 : i32 to vector<128x1xi32>
    %28 = arith.addi %17, %27 : vector<128x1xi32>
    %29 = arith.select %26, %28, %17 : vector<128x1xi1>, vector<128x1xi32>
    %c0_i32_14 = arith.constant 0 : i32
    %30 = vector.broadcast %c0_i32_14 : i32 to vector<128x1xi32>
    %31 = arith.cmpi eq, %29, %30 : vector<128x1xi32>
    %c15_i32 = arith.constant 15 : i32
    %32 = vector.broadcast %c15_i32 : i32 to vector<128x1xi32>
    %33 = arith.cmpi eq, %29, %32 : vector<128x1xi32>
    %c0_15 = arith.constant 0 : index
    %c0_16 = arith.constant 0 : index
    %34 = vector.load %arg5[%c0_15, %c0_16] : memref<1x128xf32, #tpu.memory_space<vmem>>, vector<1x128xf32>
    %c0_17 = arith.constant 0 : index
    %c0_18 = arith.constant 0 : index
    %35 = vector.load %arg7[%c0_17, %c0_18] : memref<1x128xf32, #tpu.memory_space<vmem>>, vector<1x128xf32>
    %36 = vector.broadcast %35 : vector<1x128xf32> to vector<128x128xf32>
    %37 = arith.addf %12, %36 : vector<128x128xf32>
    %38 = vector.extract_strided_slice %11 {offsets = [0, 0], sizes = [128, 128], strides = [1, 1]} : vector<160x128xf32> to vector<128x128xf32>
    %c1_i32_19 = arith.constant 1 : i32
    %39 = tpu.dynamic_rotate %38 by %c1_i32_19 dim 0 : vector<128x128xf32>, i32 -> vector<128x128xf32>
    %40 = vector.shape_cast %31 : vector<128x1xi1> to vector<128x1xi1>
    %41 = vector.broadcast %40 : vector<128x1xi1> to vector<128x128xi1>
    %42 = vector.shape_cast %34 : vector<1x128xf32> to vector<1x128xf32>
    %43 = vector.broadcast %42 : vector<1x128xf32> to vector<128x128xf32>
    %44 = arith.select %41, %43, %39 : vector<128x128xi1>, vector<128x128xf32>
    %c0_20 = arith.constant 0 : index
    %c0_21 = arith.constant 0 : index
    %45 = vector.load %arg6[%c0_20, %c0_21] : memref<1152x128xf32, #tpu.memory_space<vmem>>, vector<128x128xf32>
    %cst_22 = arith.constant dense<0.000000e+00> : vector<128x128xf32>
    %46 = tpu.matmul %44, %45, %cst_22 {dimension_numbers = #tpu.dot_dimension_numbers<[1], [0], [0], [1], [0, 0, 1, 1], [], []>} : vector<128x128xf32>, vector<128x128xf32>, vector<128x128xf32> -> vector<128x128xf32>
    %47 = arith.addf %37, %46 : vector<128x128xf32>
    %c128 = arith.constant 128 : index
    %c0_23 = arith.constant 0 : index
    %48 = vector.load %arg6[%c128, %c0_23] : memref<1152x128xf32, #tpu.memory_space<vmem>>, vector<128x128xf32>
    %cst_24 = arith.constant dense<0.000000e+00> : vector<128x128xf32>
    %49 = tpu.matmul %38, %48, %cst_24 {dimension_numbers = #tpu.dot_dimension_numbers<[1], [0], [0], [1], [0, 0, 1, 1], [], []>} : vector<128x128xf32>, vector<128x128xf32>, vector<128x128xf32> -> vector<128x128xf32>
    %50 = arith.addf %47, %49 : vector<128x128xf32>
    %c127_i32 = arith.constant 127 : i32
    %51 = tpu.dynamic_rotate %38 by %c127_i32 dim 0 : vector<128x128xf32>, i32 -> vector<128x128xf32>
    %52 = vector.shape_cast %33 : vector<128x1xi1> to vector<128x1xi1>
    %53 = vector.broadcast %52 : vector<128x1xi1> to vector<128x128xi1>
    %54 = vector.shape_cast %34 : vector<1x128xf32> to vector<1x128xf32>
    %55 = vector.broadcast %54 : vector<1x128xf32> to vector<128x128xf32>
    %56 = arith.select %53, %55, %51 : vector<128x128xi1>, vector<128x128xf32>
    %c256 = arith.constant 256 : index
    %c0_25 = arith.constant 0 : index
    %57 = vector.load %arg6[%c256, %c0_25] : memref<1152x128xf32, #tpu.memory_space<vmem>>, vector<128x128xf32>
    %cst_26 = arith.constant dense<0.000000e+00> : vector<128x128xf32>
    %58 = tpu.matmul %56, %57, %cst_26 {dimension_numbers = #tpu.dot_dimension_numbers<[1], [0], [0], [1], [0, 0, 1, 1], [], []>} : vector<128x128xf32>, vector<128x128xf32>, vector<128x128xf32> -> vector<128x128xf32>
    %59 = arith.addf %50, %58 : vector<128x128xf32>
    %c1_i32_27 = arith.constant 1 : i32
    %60 = tpu.dynamic_rotate %12 by %c1_i32_27 dim 0 : vector<128x128xf32>, i32 -> vector<128x128xf32>
    %61 = vector.shape_cast %31 : vector<128x1xi1> to vector<128x1xi1>
    %62 = vector.broadcast %61 : vector<128x1xi1> to vector<128x128xi1>
    %63 = vector.shape_cast %34 : vector<1x128xf32> to vector<1x128xf32>
    %64 = vector.broadcast %63 : vector<1x128xf32> to vector<128x128xf32>
    %65 = arith.select %62, %64, %60 : vector<128x128xi1>, vector<128x128xf32>
    %c384 = arith.constant 384 : index
    %c0_28 = arith.constant 0 : index
    %66 = vector.load %arg6[%c384, %c0_28] : memref<1152x128xf32, #tpu.memory_space<vmem>>, vector<128x128xf32>
    %cst_29 = arith.constant dense<0.000000e+00> : vector<128x128xf32>
    %67 = tpu.matmul %65, %66, %cst_29 {dimension_numbers = #tpu.dot_dimension_numbers<[1], [0], [0], [1], [0, 0, 1, 1], [], []>} : vector<128x128xf32>, vector<128x128xf32>, vector<128x128xf32> -> vector<128x128xf32>
    %68 = arith.addf %59, %67 : vector<128x128xf32>
    %c512 = arith.constant 512 : index
    %c0_30 = arith.constant 0 : index
    %69 = vector.load %arg6[%c512, %c0_30] : memref<1152x128xf32, #tpu.memory_space<vmem>>, vector<128x128xf32>
    %cst_31 = arith.constant dense<0.000000e+00> : vector<128x128xf32>
    %70 = tpu.matmul %12, %69, %cst_31 {dimension_numbers = #tpu.dot_dimension_numbers<[1], [0], [0], [1], [0, 0, 1, 1], [], []>} : vector<128x128xf32>, vector<128x128xf32>, vector<128x128xf32> -> vector<128x128xf32>
    %71 = arith.addf %68, %70 : vector<128x128xf32>
    %c127_i32_32 = arith.constant 127 : i32
    %72 = tpu.dynamic_rotate %12 by %c127_i32_32 dim 0 : vector<128x128xf32>, i32 -> vector<128x128xf32>
    %73 = vector.shape_cast %33 : vector<128x1xi1> to vector<128x1xi1>
    %74 = vector.broadcast %73 : vector<128x1xi1> to vector<128x128xi1>
    %75 = vector.shape_cast %34 : vector<1x128xf32> to vector<1x128xf32>
    %76 = vector.broadcast %75 : vector<1x128xf32> to vector<128x128xf32>
    %77 = arith.select %74, %76, %72 : vector<128x128xi1>, vector<128x128xf32>
    %c640 = arith.constant 640 : index
    %c0_33 = arith.constant 0 : index
    %78 = vector.load %arg6[%c640, %c0_33] : memref<1152x128xf32, #tpu.memory_space<vmem>>, vector<128x128xf32>
    %cst_34 = arith.constant dense<0.000000e+00> : vector<128x128xf32>
    %79 = tpu.matmul %77, %78, %cst_34 {dimension_numbers = #tpu.dot_dimension_numbers<[1], [0], [0], [1], [0, 0, 1, 1], [], []>} : vector<128x128xf32>, vector<128x128xf32>, vector<128x128xf32> -> vector<128x128xf32>
    %80 = arith.addf %71, %79 : vector<128x128xf32>
    %81 = vector.extract_strided_slice %11 {offsets = [32, 0], sizes = [128, 128], strides = [1, 1]} : vector<160x128xf32> to vector<128x128xf32>
    %c1_i32_35 = arith.constant 1 : i32
    %82 = tpu.dynamic_rotate %81 by %c1_i32_35 dim 0 : vector<128x128xf32>, i32 -> vector<128x128xf32>
    %83 = vector.shape_cast %31 : vector<128x1xi1> to vector<128x1xi1>
    %84 = vector.broadcast %83 : vector<128x1xi1> to vector<128x128xi1>
    %85 = vector.shape_cast %34 : vector<1x128xf32> to vector<1x128xf32>
    %86 = vector.broadcast %85 : vector<1x128xf32> to vector<128x128xf32>
    %87 = arith.select %84, %86, %82 : vector<128x128xi1>, vector<128x128xf32>
    %c768 = arith.constant 768 : index
    %c0_36 = arith.constant 0 : index
    %88 = vector.load %arg6[%c768, %c0_36] : memref<1152x128xf32, #tpu.memory_space<vmem>>, vector<128x128xf32>
    %cst_37 = arith.constant dense<0.000000e+00> : vector<128x128xf32>
    %89 = tpu.matmul %87, %88, %cst_37 {dimension_numbers = #tpu.dot_dimension_numbers<[1], [0], [0], [1], [0, 0, 1, 1], [], []>} : vector<128x128xf32>, vector<128x128xf32>, vector<128x128xf32> -> vector<128x128xf32>
    %90 = arith.addf %80, %89 : vector<128x128xf32>
    %c896 = arith.constant 896 : index
    %c0_38 = arith.constant 0 : index
    %91 = vector.load %arg6[%c896, %c0_38] : memref<1152x128xf32, #tpu.memory_space<vmem>>, vector<128x128xf32>
    %cst_39 = arith.constant dense<0.000000e+00> : vector<128x128xf32>
    %92 = tpu.matmul %81, %91, %cst_39 {dimension_numbers = #tpu.dot_dimension_numbers<[1], [0], [0], [1], [0, 0, 1, 1], [], []>} : vector<128x128xf32>, vector<128x128xf32>, vector<128x128xf32> -> vector<128x128xf32>
    %93 = arith.addf %90, %92 : vector<128x128xf32>
    %c127_i32_40 = arith.constant 127 : i32
    %94 = tpu.dynamic_rotate %81 by %c127_i32_40 dim 0 : vector<128x128xf32>, i32 -> vector<128x128xf32>
    %95 = vector.shape_cast %33 : vector<128x1xi1> to vector<128x1xi1>
    %96 = vector.broadcast %95 : vector<128x1xi1> to vector<128x128xi1>
    %97 = vector.shape_cast %34 : vector<1x128xf32> to vector<1x128xf32>
    %98 = vector.broadcast %97 : vector<1x128xf32> to vector<128x128xf32>
    %99 = arith.select %96, %98, %94 : vector<128x128xi1>, vector<128x128xf32>
    %c1024 = arith.constant 1024 : index
    %c0_41 = arith.constant 0 : index
    %100 = vector.load %arg6[%c1024, %c0_41] : memref<1152x128xf32, #tpu.memory_space<vmem>>, vector<128x128xf32>
    %cst_42 = arith.constant dense<0.000000e+00> : vector<128x128xf32>
    %101 = tpu.matmul %99, %100, %cst_42 {dimension_numbers = #tpu.dot_dimension_numbers<[1], [0], [0], [1], [0, 0, 1, 1], [], []>} : vector<128x128xf32>, vector<128x128xf32>, vector<128x128xf32> -> vector<128x128xf32>
    %102 = arith.addf %93, %101 : vector<128x128xf32>
    %c0_43 = arith.constant 0 : index
    %c0_44 = arith.constant 0 : index
    %103 = vector.load %arg8[%c0_43, %c0_44] : memref<128x128xf32, #tpu.memory_space<vmem>>, vector<128x128xf32>
    %cst_45 = arith.constant dense<0.000000e+00> : vector<128x128xf32>
    %104 = tpu.matmul %102, %103, %cst_45 {dimension_numbers = #tpu.dot_dimension_numbers<[1], [0], [0], [1], [0, 0, 1, 1], [], []>} : vector<128x128xf32>, vector<128x128xf32>, vector<128x128xf32> -> vector<128x128xf32>
    %c0_46 = arith.constant 0 : index
    %c0_47 = arith.constant 0 : index
    %105 = vector.load %arg9[%c0_46, %c0_47] : memref<1x128xf32, #tpu.memory_space<vmem>>, vector<1x128xf32>
    %106 = vector.broadcast %105 : vector<1x128xf32> to vector<128x128xf32>
    %107 = arith.addf %104, %106 : vector<128x128xf32>
    %c0_48 = arith.constant 0 : index
    %c0_49 = arith.constant 0 : index
    %c0_50 = arith.constant 0 : index
    %108 = vector.load %arg2[%c0_48, %c0_49, %c0_50] : memref<1x128x128xf32, #tpu.memory_space<vmem>>, vector<1x128x128xf32>
    %109 = vector.shape_cast %108 : vector<1x128x128xf32> to vector<128x128xf32>
    %110 = arith.addf %107, %109 : vector<128x128xf32>
    %c0_51 = arith.constant 0 : index
    %c0_52 = arith.constant 0 : index
    %c0_53 = arith.constant 0 : index
    %111 = vector.load %arg10[%c0_51, %c0_52, %c0_53] : memref<1x128x128xf32, #tpu.memory_space<vmem>>, vector<1x128x128xf32>
    %112 = vector.shape_cast %111 : vector<1x128x128xf32> to vector<128x128xf32>
    %113 = vector.shape_cast %110 : vector<128x128xf32> to vector<1x128x128xf32>
    tpu.vector_store %arg10[%c0_51, %c0_52, %c0_53], %113 {strides = array<i32>} : memref<1x128x128xf32, #tpu.memory_space<vmem>>, vector<1x128x128xf32>,
    return
  }
  func.func @transform_0(%arg0: i32, %arg1: i32) -> (i32, i32, i32) {
    %c0_i32 = arith.constant 0 : i32
    %c0_i32_0 = arith.constant 0 : i32
    return %arg0, %arg1, %c0_i32 : i32, i32, i32
  }
  func.func @transform_1(%arg0: i32, %arg1: i32) -> (i32, i32, i32) {
    %c2_i32 = arith.constant 2 : i32
    %0 = arith.muli %arg0, %c2_i32 : i32
    %1 = arith.addi %0, %arg1 : i32
    %c0_i32 = arith.constant 0 : i32
    %c0_i32_0 = arith.constant 0 : i32
    %c0_i32_1 = arith.constant 0 : i32
    return %1, %c0_i32, %c0_i32_0 : i32, i32, i32
  }
  func.func @transform_2(%arg0: i32, %arg1: i32) -> (i32, i32) {
    %c0_i32 = arith.constant 0 : i32
    %c0_i32_0 = arith.constant 0 : i32
    %c0_i32_1 = arith.constant 0 : i32
    return %c0_i32, %c0_i32_0 : i32, i32
  }
  func.func @transform_3(%arg0: i32, %arg1: i32) -> (i32, i32) {
    %c0_i32 = arith.constant 0 : i32
    %c0_i32_0 = arith.constant 0 : i32
    %c0_i32_1 = arith.constant 0 : i32
    return %c0_i32, %c0_i32_0 : i32, i32
  }
  func.func @transform_4(%arg0: i32, %arg1: i32) -> (i32, i32) {
    %c0_i32 = arith.constant 0 : i32
    %c0_i32_0 = arith.constant 0 : i32
    %c0_i32_1 = arith.constant 0 : i32
    return %c0_i32, %c0_i32_0 : i32, i32
  }
  func.func @transform_5(%arg0: i32, %arg1: i32) -> (i32, i32) {
    %c0_i32 = arith.constant 0 : i32
    %c0_i32_0 = arith.constant 0 : i32
    %c0_i32_1 = arith.constant 0 : i32
    return %c0_i32, %c0_i32_0 : i32, i32
  }
  func.func @transform_6(%arg0: i32, %arg1: i32) -> (i32, i32) {
    %c0_i32 = arith.constant 0 : i32
    %c0_i32_0 = arith.constant 0 : i32
    %c0_i32_1 = arith.constant 0 : i32
    return %c0_i32, %c0_i32_0 : i32, i32
  }
  func.func @transform_7(%arg0: i32, %arg1: i32) -> (i32, i32) {
    %c0_i32 = arith.constant 0 : i32
    %c0_i32_0 = arith.constant 0 : i32
    %c0_i32_1 = arith.constant 0 : i32
    return %c0_i32, %c0_i32_0 : i32, i32
  }
  func.func @transform_8(%arg0: i32, %arg1: i32) -> (i32, i32, i32) {
    %c0_i32 = arith.constant 0 : i32
    %c0_i32_0 = arith.constant 0 : i32
    return %arg0, %arg1, %c0_i32 : i32, i32, i32
  }
}

</mosaic_0001>

<llo_original>
// kernel: tpu_custom_call.1
$region0: #{tpu_custom_call.1}
  #allocation0 [shape = 'u32[]', space=smem, size = 0x4, offset = 0x4, fixed_abs, tag = 'smem constant byte address 0x4 - core index']
  #allocation1 [shape = 'u32[144,128]{1,0:T(1,128)}', space=vmem, size = 0x12000, scoped, tag = 'internal scratch']
  %s0 = inlined_call_operand.hbm [shape: f32[2,256,128], index: 0, kind: input, shape index: {}]
  %s1 = inlined_call_operand.hbm [shape: f32[4,32,128], index: 1, kind: input, shape index: {}]
  %s2 = inlined_call_operand.hbm [shape: f32[128,128], index: 2, kind: input, shape index: {}]
  %s3 = inlined_call_operand.vmem [shape: f32[1,128], index: 3, kind: input, shape index: {}]
  %s4 = inlined_call_operand.hbm [shape: f32[1152,128], index: 4, kind: input, shape index: {}]
  %s5 = inlined_call_operand.vmem [shape: f32[1,128], index: 5, kind: input, shape index: {}]
  %s6 = inlined_call_operand.hbm [shape: f32[128,128], index: 6, kind: input, shape index: {}]
  %s7 = inlined_call_operand.vmem [shape: f32[1,128], index: 7, kind: input, shape index: {}]
  %s8 = inlined_call_operand.hbm [shape: f32[2,256,128], index: 8, kind: output, shape index: {}]
  %s9 = sld [smem:[#allocation0]]
  $region85: #{tpu_custom_call.1} parent=0
    _
  %s11 = ssub.s32 1, %s9
  %s12 = scalar_select 0, %s11, %s9
  $region1: #{tpu_custom_call.1} parent=0
    #allocation2 [shape = 'u8[131072]{0}', space=vmem, size = 0x20000, scoped, tag = 'input window, operand 0']
    #allocation3 [shape = 's32[2]{0}', space=sflag, size = 0x8, scoped, tag = 'scoped memory for tpu_custom_call.1']
    #allocation4 [shape = 's32[2]{0}', space=sflag, size = 0x8, scoped, tag = 'scoped memory for tpu_custom_call.1']
    #allocation5 [shape = 'u8[32768]{0}', space=vmem, size = 0x8000, scoped, tag = 'input window, operand 1']
    #allocation6 [shape = 's32[2]{0}', space=sflag, size = 0x8, scoped, tag = 'scoped memory for tpu_custom_call.1']
    #allocation7 [shape = 'u8[65536]{0}', space=vmem, size = 0x10000, scoped, tag = 'input window, operand 2, single buffered']
    #allocation8 [shape = 'u8[589824]{0}', space=vmem, size = 0x90000, scoped, tag = 'input window, operand 4, single buffered']
    #allocation9 [shape = 's32[1]{0}', space=sflag, size = 0x4, scoped, tag = 'scoped memory for tpu_custom_call.1']
    #allocation10 [shape = 'u8[65536]{0}', space=vmem, size = 0x10000, scoped, tag = 'input window, operand 6, single buffered']
    #allocation11 [shape = 'u8[131072]{0}', space=vmem, size = 0x20000, scoped, tag = 'output window, operand 0']
    %13 = vsyncpa [#allocation3], 0
    %s14 = scalar_lea.sflag [#allocation3], 1
    %15 = vsyncpa %s14, 0
    %16 = vsyncpa [#allocation6], 0
    %s17 = scalar_lea.sflag [#allocation6], 1
    %18 = vsyncpa %s17, 0
    %19 = vsyncpa [#allocation9], 0
    %20 = vsyncpa [#allocation4], 0
    %s21 = scalar_lea.sflag [#allocation4], 1
    %22 = vsyncpa %s21, 0
    loop: start=0, step=1, limit=6
    $region2: #{tpu_custom_call.1} parent=1 // loop_pre_header
      _
    $region3: #{tpu_custom_call.1} parent=1 // loop_header
      %s24 = sphi 0, %s28
      %p25 = scmp.ge.s32.totalorder %s24, 6
      %s31 = sphi 0, %s43
      %s32 = sphi 0, %s39
      %s33 = sphi 0, %s31
      %s34 = sphi 0, %s32
      %s35 = sphi 0, %s33
      %s36 = sphi 0, %s34
      %s48 = sphi 0, %s50
      %s51 = sphi 0, %s48
      %s52 = sphi 0, %s51
      %s68 = sphi 0, %s52
      %s78 = sphi 0, %s80
      %s81 = sphi 0, %s78
      %s82 = sphi 0, %s81
      %s98 = sphi 0, %s82
      %s102 = sphi 0, %s102
      %s104 = sphi 0, %s102
      %s105 = sphi 0, %s104
      %s119 = sphi 0, %s105
      %s123 = sphi 0, %s123
      %s125 = sphi 0, %s123
      %s126 = sphi 0, %s125
      %s140 = sphi 0, %s126
      %s144 = sphi 0, %s144
      %s146 = sphi 0, %s144
      %s147 = sphi 0, %s146
      %s161 = sphi 0, %s147
      %s165 = sphi 0, %s165
      %s167 = sphi 0, %s165
      %s168 = sphi 0, %s167
      %s182 = sphi 0, %s168
      %s186 = sphi 0, %s186
      %s188 = sphi 0, %s186
      %s189 = sphi 0, %s188
      %s203 = sphi 0, %s189
      %s207 = sphi 0, %s207
      %s209 = sphi 0, %s207
      %s210 = sphi 0, %s209
      %s224 = sphi 0, %s210
      %s232 = sphi 0, %s234
      %s235 = sphi 0, %s232
      %s236 = sphi 0, %s235
      %s252 = sphi 0, %s236
    $region4: #{tpu_custom_call.1} parent=1 // loop_header_branch
      %27 = sbr.rel (%p25) target = $region8
    $region5: #{tpu_custom_call.1} parent=1 // loop_body
      %s29 = ssub.s32 %s24, 1
      %s30 = ssub.s32 %s24, 2
      %s37 = sadd.s32 1, %s32
      %p38 = scmp.ge.s32.totalorder %s37, 2
      %s39 = scalar_select %p38, 0, %s37
      %s40 = sadd.s32 1, %s31
      %s41 = scalar_select %p38, %s40, %s31
      %p42 = scmp.ge.s32.totalorder %s41, 2
      %s43 = scalar_select %p42, 0, %s41
      %s44 = ssub.s32 %s31, %s43
      %s45 = ssub.s32 %s32, %s39
      %s46 = sor.u32 %s44, %s45
      %p47 = scmp.eq.s32.totalorder %s46, 0
      %s49 = sadd.s32 %s48, 1
      %s50 = scalar_select %p47, %s48, %s49
      %p53 = pneg %p47
      %p54 = scmp.eq.s32.totalorder %s24, 3
      %p55 = por %p53, %p54
      %p56 = scmp.ne.s32.totalorder %s48, %s51
      %p57 = scmp.eq.s32.totalorder %s24, 0
      %p58 = por %p56, %p57
      %p59 = scmp.ne.s32.totalorder %s48, %s51
      %p60 = scmp.eq.s32.totalorder %s29, 3
      %p61 = por %p59, %p60
      %p62 = scmp.ne.s32.totalorder %s51, %s52
      %p63 = scmp.eq.s32.totalorder %s29, 0
      %p64 = por %p62, %p63
      %p65 = scmp.ne.s32.totalorder %s51, %s52
      %p66 = scmp.eq.s32.totalorder %s30, 3
      %p67 = por %p65, %p66
      %p69 = scmp.ne.s32.totalorder %s52, %s68
      %p70 = scmp.eq.s32.totalorder %s30, 0
      %p71 = por %p69, %p70
      %s72 = smul.u32 %s31, 2
      %s73 = sadd.s32 %s72, %s32
      %s74 = smul.u32 %s43, 2
      %s75 = sadd.s32 %s74, %s39
      %s76 = ssub.s32 %s73, %s75
      %p77 = scmp.eq.s32.totalorder %s76, 0
      %s79 = sadd.s32 %s78, 1
      %s80 = scalar_select %p77, %s78, %s79
      %p83 = pneg %p77
      %p84 = scmp.eq.s32.totalorder %s24, 3
      %p85 = por %p83, %p84
      %p86 = scmp.ne.s32.totalorder %s78, %s81
      %p87 = scmp.eq.s32.totalorder %s24, 0
      %p88 = por %p86, %p87
      %p89 = scmp.ne.s32.totalorder %s78, %s81
      %p90 = scmp.eq.s32.totalorder %s29, 3
      %p91 = por %p89, %p90
      %p92 = scmp.ne.s32.totalorder %s81, %s82
      %p93 = scmp.eq.s32.totalorder %s29, 0
      %p94 = por %p92, %p93
      %p95 = scmp.ne.s32.totalorder %s81, %s82
      %p96 = scmp.eq.s32.totalorder %s30, 3
      %p97 = por %p95, %p96
      %p99 = scmp.ne.s32.totalorder %s82, %s98
      %p100 = scmp.eq.s32.totalorder %s30, 0
      %p101 = por %p99, %p100
      %s103 = sadd.s32 %s102, 1
      %p106 = scmp.eq.s32.totalorder %s24, 3
      %p107 = scmp.ne.s32.totalorder %s102, %s104
      %p108 = scmp.eq.s32.totalorder %s24, 0
      %p109 = por %p107, %p108
      %p110 = scmp.ne.s32.totalorder %s102, %s104
      %p111 = scmp.eq.s32.totalorder %s29, 3
      %p112 = por %p110, %p111
      %p113 = scmp.ne.s32.totalorder %s104, %s105
      %p114 = scmp.eq.s32.totalorder %s29, 0
      %p115 = por %p113, %p114
      %p116 = scmp.ne.s32.totalorder %s104, %s105
      %p117 = scmp.eq.s32.totalorder %s30, 3
      %p118 = por %p116, %p117
      %p120 = scmp.ne.s32.totalorder %s105, %s119
      %p121 = scmp.eq.s32.totalorder %s30, 0
      %p122 = por %p120, %p121
      %s124 = sadd.s32 %s123, 1
      %p127 = scmp.eq.s32.totalorder %s24, 3
      %p128 = scmp.ne.s32.totalorder %s123, %s125
      %p129 = scmp.eq.s32.totalorder %s24, 0
      %p130 = por %p128, %p129
      %p131 = scmp.ne.s32.totalorder %s123, %s125
      %p132 = scmp.eq.s32.totalorder %s29, 3
      %p133 = por %p131, %p132
      %p134 = scmp.ne.s32.totalorder %s125, %s126
      %p135 = scmp.eq.s32.totalorder %s29, 0
      %p136 = por %p134, %p135
      %p137 = scmp.ne.s32.totalorder %s125, %s126
      %p138 = scmp.eq.s32.totalorder %s30, 3
      %p139 = por %p137, %p138
      %p141 = scmp.ne.s32.totalorder %s126, %s140
      %p142 = scmp.eq.s32.totalorder %s30, 0
      %p143 = por %p141, %p142
      %s145 = sadd.s32 %s144, 1
      %p148 = scmp.eq.s32.totalorder %s24, 3
      %p149 = scmp.ne.s32.totalorder %s144, %s146
      %p150 = scmp.eq.s32.totalorder %s24, 0
      %p151 = por %p149, %p150
      %p152 = scmp.ne.s32.totalorder %s144, %s146
      %p153 = scmp.eq.s32.totalorder %s29, 3
      %p154 = por %p152, %p153
      %p155 = scmp.ne.s32.totalorder %s146, %s147
      %p156 = scmp.eq.s32.totalorder %s29, 0
      %p157 = por %p155, %p156
      %p158 = scmp.ne.s32.totalorder %s146, %s147
      %p159 = scmp.eq.s32.totalorder %s30, 3
      %p160 = por %p158, %p159
      %p162 = scmp.ne.s32.totalorder %s147, %s161
      %p163 = scmp.eq.s32.totalorder %s30, 0
      %p164 = por %p162, %p163
      %s166 = sadd.s32 %s165, 1
      %p169 = scmp.eq.s32.totalorder %s24, 3
      %p170 = scmp.ne.s32.totalorder %s165, %s167
      %p171 = scmp.eq.s32.totalorder %s24, 0
      %p172 = por %p170, %p171
      %p173 = scmp.ne.s32.totalorder %s165, %s167
      %p174 = scmp.eq.s32.totalorder %s29, 3
      %p175 = por %p173, %p174
      %p176 = scmp.ne.s32.totalorder %s167, %s168
      %p177 = scmp.eq.s32.totalorder %s29, 0
      %p178 = por %p176, %p177
      %p179 = scmp.ne.s32.totalorder %s167, %s168
      %p180 = scmp.eq.s32.totalorder %s30, 3
      %p181 = por %p179, %p180
      %p183 = scmp.ne.s32.totalorder %s168, %s182
      %p184 = scmp.eq.s32.totalorder %s30, 0
      %p185 = por %p183, %p184
      %s187 = sadd.s32 %s186, 1
      %p190 = scmp.eq.s32.totalorder %s24, 3
      %p191 = scmp.ne.s32.totalorder %s186, %s188
      %p192 = scmp.eq.s32.totalorder %s24, 0
      %p193 = por %p191, %p192
      %p194 = scmp.ne.s32.totalorder %s186, %s188
      %p195 = scmp.eq.s32.totalorder %s29, 3
      %p196 = por %p194, %p195
      %p197 = scmp.ne.s32.totalorder %s188, %s189
      %p198 = scmp.eq.s32.totalorder %s29, 0
      %p199 = por %p197, %p198
      %p200 = scmp.ne.s32.totalorder %s188, %s189
      %p201 = scmp.eq.s32.totalorder %s30, 3
      %p202 = por %p200, %p201
      %p204 = scmp.ne.s32.totalorder %s189, %s203
      %p205 = scmp.eq.s32.totalorder %s30, 0
      %p206 = por %p204, %p205
      %s208 = sadd.s32 %s207, 1
      %p211 = scmp.eq.s32.totalorder %s24, 3
      %p212 = scmp.ne.s32.totalorder %s207, %s209
      %p213 = scmp.eq.s32.totalorder %s24, 0
      %p214 = por %p212, %p213
      %p215 = scmp.ne.s32.totalorder %s207, %s209
      %p216 = scmp.eq.s32.totalorder %s29, 3
      %p217 = por %p215, %p216
      %p218 = scmp.ne.s32.totalorder %s209, %s210
      %p219 = scmp.eq.s32.totalorder %s29, 0
      %p220 = por %p218, %p219
      %p221 = scmp.ne.s32.totalorder %s209, %s210
      %p222 = scmp.eq.s32.totalorder %s30, 3
      %p223 = por %p221, %p222
      %p225 = scmp.ne.s32.totalorder %s210, %s224
      %p226 = scmp.eq.s32.totalorder %s30, 0
      %p227 = por %p225, %p226
      %s228 = ssub.s32 %s31, %s43
      %s229 = ssub.s32 %s32, %s39
      %s230 = sor.u32 %s228, %s229
      %p231 = scmp.eq.s32.totalorder %s230, 0
      %s233 = sadd.s32 %s232, 1
      %s234 = scalar_select %p231, %s232, %s233
      %p237 = pneg %p231
      %p238 = scmp.eq.s32.totalorder %s24, 3
      %p239 = por %p237, %p238
      %p240 = scmp.ne.s32.totalorder %s232, %s235
      %p241 = scmp.eq.s32.totalorder %s24, 0
      %p242 = por %p240, %p241
      %p243 = scmp.ne.s32.totalorder %s232, %s235
      %p244 = scmp.eq.s32.totalorder %s29, 3
      %p245 = por %p243, %p244
      %p246 = scmp.ne.s32.totalorder %s235, %s236
      %p247 = scmp.eq.s32.totalorder %s29, 0
      %p248 = por %p246, %p247
      %p249 = scmp.ne.s32.totalorder %s235, %s236
      %p250 = scmp.eq.s32.totalorder %s30, 3
      %p251 = por %p249, %p250
      %p253 = scmp.ne.s32.totalorder %s236, %s252
      %p254 = scmp.eq.s32.totalorder %s30, 0
      %p255 = por %p253, %p254
      %p256 = scmp.le.s32.totalorder 1, %s24
      %p257 = scmp.lt.s32.totalorder %s24, 5
      %p258 = pnand %p256, %p257
      %p259 = pneg %p258
      // Predicated region
      $region9: #{tpu_custom_call.1} parent=5 // pred_check
        _
      $region10: #{tpu_custom_call.1} parent=5 // pred_check_branch
        %261 = sbr.rel (%p258) target = $region12
      $region11: #{tpu_custom_call.1} parent=5 // pred_region
        %s262 = ssub.s32 %s24, 1
        // Predicated region
        $region13: #{tpu_custom_call.1} parent=11 // pred_check
          %p263 = pneg %p115
        $region14: #{tpu_custom_call.1} parent=11 // pred_check_branch
          %265 = sbr.rel (%p263) target = $region16
        $region15: #{tpu_custom_call.1} parent=11 // pred_region
          %s267 = ssub.s32 2048, 2048
          %268 = vsyncadd [#allocation6], %s267
          %s269 = sshll.u32 [#allocation7], 4
          %s270 = int_to_ptr.vmem [resolvable:$true] %s269
          %275 = dma.hbm_to_vmem [thread:$0]  %s2, 2048, %s270, [#allocation6], 128, 128, 8
        $region16: #{tpu_custom_call.1} parent=11 // pred_fallthru
          _
        // Predicated region
        $region17: #{tpu_custom_call.1} parent=11 // pred_check
          %p276 = pneg %p136
        $region18: #{tpu_custom_call.1} parent=11 // pred_check_branch
          %278 = sbr.rel (%p276) target = $region20
        $region19: #{tpu_custom_call.1} parent=11 // pred_region
          _
        $region20: #{tpu_custom_call.1} parent=11 // pred_fallthru
          _
        // Predicated region
        $region21: #{tpu_custom_call.1} parent=11 // pred_check
          %p279 = pneg %p157
        $region22: #{tpu_custom_call.1} parent=11 // pred_check_branch
          %281 = sbr.rel (%p279) target = $region24
        $region23: #{tpu_custom_call.1} parent=11 // pred_region
          %s283 = ssub.s32 18432, 18432
          %284 = vsyncadd [#allocation9], %s283
          %s285 = sshll.u32 [#allocation8], 4
          %s286 = int_to_ptr.vmem [resolvable:$true] %s285
          %291 = dma.hbm_to_vmem [thread:$0]  %s4, 18432, %s286, [#allocation9], 128, 128, 8
        $region24: #{tpu_custom_call.1} parent=11 // pred_fallthru
          _
        // Predicated region
        $region25: #{tpu_custom_call.1} parent=11 // pred_check
          %p292 = pneg %p178
        $region26: #{tpu_custom_call.1} parent=11 // pred_check_branch
          %294 = sbr.rel (%p292) target = $region28
        $region27: #{tpu_custom_call.1} parent=11 // pred_region
          _
        $region28: #{tpu_custom_call.1} parent=11 // pred_fallthru
          _
        // Predicated region
        $region29: #{tpu_custom_call.1} parent=11 // pred_check
          %p295 = pneg %p199
        $region30: #{tpu_custom_call.1} parent=11 // pred_check_branch
          %297 = sbr.rel (%p295) target = $region32
        $region31: #{tpu_custom_call.1} parent=11 // pred_region
          %s299 = ssub.s32 2048, 2048
          %300 = vsyncadd [#allocation9], %s299
          %s301 = sshll.u32 [#allocation10], 4
          %s302 = int_to_ptr.vmem [resolvable:$true] %s301
          %307 = dma.hbm_to_vmem [thread:$0]  %s6, 2048, %s302, [#allocation9], 128, 128, 8
        $region32: #{tpu_custom_call.1} parent=11 // pred_fallthru
          _
        // Predicated region
        $region33: #{tpu_custom_call.1} parent=11 // pred_check
          %p308 = pneg %p220
        $region34: #{tpu_custom_call.1} parent=11 // pred_check_branch
          %310 = sbr.rel (%p308) target = $region36
        $region35: #{tpu_custom_call.1} parent=11 // pred_region
          _
        $region36: #{tpu_custom_call.1} parent=11 // pred_fallthru
          _
      $region12: #{tpu_custom_call.1} parent=5 // pred_fallthru
        _
      %p311 = scmp.lt.s32.totalorder %s24, 4
      // Predicated region
      $region37: #{tpu_custom_call.1} parent=5 // pred_check
        %p312 = pneg %p311
      $region38: #{tpu_custom_call.1} parent=5 // pred_check_branch
        %314 = sbr.rel (%p312) target = $region40
      $region39: #{tpu_custom_call.1} parent=5 // pred_region
        // Predicated region
        $region41: #{tpu_custom_call.1} parent=39 // pred_check
          %p315 = pneg %p58
        $region42: #{tpu_custom_call.1} parent=39 // pred_check_branch
          %317 = sbr.rel (%p315) target = $region44
        $region43: #{tpu_custom_call.1} parent=39 // pred_region
          %s318 = sand.u32 %s48, 1
          %s319 = scalar_lea.sflag [#allocation3], %s318
          %s320 = sand.u32 %s48, 1
          %s321 = smul.addr %s320, 128
          %s322 = scalar_lea.vmem [#allocation2], %s321
          %s323 = smul.u32 16, %s32
          %s325 = ssub.s32 2048, 2048
          %326 = vsyncadd %s319, %s325
          %s327 = smul.addr %s31, 32
          %s328 = sadd.s32 %s323, %s327
          %s329 = smul.addr %s328, 128
          %s330 = scalar_lea.hbm %s0, %s329
          %s331 = sshll.u32 %s322, 4
          %s332 = int_to_ptr.vmem [resolvable:$true] %s331
          %337 = dma.hbm_to_vmem [thread:$0]  %s330, 2048, %s332, %s319, 128, 128, 8
        $region44: #{tpu_custom_call.1} parent=39 // pred_fallthru
          _
        // Predicated region
        $region45: #{tpu_custom_call.1} parent=39 // pred_check
          %p338 = pneg %p88
        $region46: #{tpu_custom_call.1} parent=39 // pred_check_branch
          %340 = sbr.rel (%p338) target = $region48
        $region47: #{tpu_custom_call.1} parent=39 // pred_region
          %s341 = sand.u32 %s24, 1
          %s342 = scalar_lea.sflag [#allocation6], %s341
          %s343 = sand.u32 %s78, 1
          %s344 = smul.addr %s343, 32
          %s345 = scalar_lea.vmem [#allocation5], %s344
          %s346 = smul.u32 %s31, 2
          %s347 = sadd.s32 %s346, %s32
          %s349 = ssub.s32 512, 512
          %350 = vsyncadd %s342, %s349
          %s351 = smul.addr %s347, 4
          %s352 = smul.addr %s351, 128
          %s353 = scalar_lea.hbm %s1, %s352
          %s354 = sshll.u32 %s345, 4
          %s355 = int_to_ptr.vmem [resolvable:$true] %s354
          %360 = dma.hbm_to_vmem [thread:$0]  %s353, 512, %s355, %s342, 128, 128, 8
        $region48: #{tpu_custom_call.1} parent=39 // pred_fallthru
          _
      $region40: #{tpu_custom_call.1} parent=5 // pred_fallthru
        _
      %p361 = scmp.le.s32.totalorder 1, %s24
      %p362 = scmp.lt.s32.totalorder %s24, 5
      %p363 = pnand %p361, %p362
      %p364 = pneg %p363
      // Predicated region
      $region49: #{tpu_custom_call.1} parent=5 // pred_check
        _
      $region50: #{tpu_custom_call.1} parent=5 // pred_check_branch
        %366 = sbr.rel (%p363) target = $region52
      $region51: #{tpu_custom_call.1} parent=5 // pred_region
        %s367 = ssub.s32 %s24, 1
        %s368 = sand.u32 %s51, 1
        %s369 = scalar_lea.sflag [#allocation3], %s368
        %s370 = sand.u32 %s51, 1
        %s371 = smul.addr %s370, 128
        %s372 = scalar_lea.vmem [#allocation2], %s371
        // Predicated region
        $region53: #{tpu_custom_call.1} parent=51 // pred_check
          %p373 = pneg %p64
        $region54: #{tpu_custom_call.1} parent=51 // pred_check_branch
          %375 = sbr.rel (%p373) target = $region56
        $region55: #{tpu_custom_call.1} parent=51 // pred_region
          %376 = dma.done %s369, 2048
        $region56: #{tpu_custom_call.1} parent=51 // pred_fallthru
          _
        %s377 = sand.u32 %s29, 1
        %s378 = scalar_lea.sflag [#allocation6], %s377
        %s379 = sand.u32 %s81, 1
        %s380 = smul.addr %s379, 32
        %s381 = scalar_lea.vmem [#allocation5], %s380
        // Predicated region
        $region57: #{tpu_custom_call.1} parent=51 // pred_check
          %p382 = pneg %p94
        $region58: #{tpu_custom_call.1} parent=51 // pred_check_branch
          %384 = sbr.rel (%p382) target = $region60
        $region59: #{tpu_custom_call.1} parent=51 // pred_region
          %385 = dma.done %s378, 512
        $region60: #{tpu_custom_call.1} parent=51 // pred_fallthru
          _
        // Predicated region
        $region61: #{tpu_custom_call.1} parent=51 // pred_check
          %p386 = pneg %p115
        $region62: #{tpu_custom_call.1} parent=51 // pred_check_branch
          %388 = sbr.rel (%p386) target = $region64
        $region63: #{tpu_custom_call.1} parent=51 // pred_region
          %389 = dma.done [#allocation6], 2048
        $region64: #{tpu_custom_call.1} parent=51 // pred_fallthru
          _
        // Predicated region
        $region65: #{tpu_custom_call.1} parent=51 // pred_check
          %p390 = pneg %p157
        $region66: #{tpu_custom_call.1} parent=51 // pred_check_branch
          %392 = sbr.rel (%p390) target = $region68
        $region67: #{tpu_custom_call.1} parent=51 // pred_region
          %393 = dma.done [#allocation9], 18432
        $region68: #{tpu_custom_call.1} parent=51 // pred_fallthru
          _
        // Predicated region
        $region69: #{tpu_custom_call.1} parent=51 // pred_check
          %p394 = pneg %p199
        $region70: #{tpu_custom_call.1} parent=51 // pred_check_branch
          %396 = sbr.rel (%p394) target = $region72
        $region71: #{tpu_custom_call.1} parent=51 // pred_region
          %397 = dma.done [#allocation9], 2048
        $region72: #{tpu_custom_call.1} parent=51 // pred_fallthru
          _
        %s398 = sand.u32 %s51, 1
        %s399 = scalar_lea.sflag [#allocation3], %s398
        %s400 = sand.u32 %s51, 1
        %s401 = smul.addr %s400, 128
        %s402 = scalar_lea.vmem [#allocation2], %s401
        %p403 = pneg %p64
        %p404 = pneg %p61
        %s405 = sand.u32 %s29, 1
        %s406 = scalar_lea.sflag [#allocation6], %s405
        %s407 = sand.u32 %s81, 1
        %s408 = smul.addr %s407, 32
        %s409 = scalar_lea.vmem [#allocation5], %s408
        %p410 = pneg %p94
        %p411 = pneg %p91
        %p412 = pneg %p115
        %p413 = pneg %p112
        %p414 = pneg %p136
        %p415 = pneg %p133
        %p416 = pneg %p157
        %p417 = pneg %p154
        %p418 = pneg %p178
        %p419 = pneg %p175
        %p420 = pneg %p199
        %p421 = pneg %p196
        %p422 = pneg %p220
        %p423 = pneg %p217
        %p424 = pneg %p248
        %p425 = pneg %p245
        %s426 = sand.u32 %s235, 1
        %s427 = scalar_lea.sflag [#allocation4], %s426
        %s428 = sand.u32 %s235, 1
        %s429 = smul.addr %s428, 128
        %s430 = scalar_lea.vmem [#allocation11], %s429
        %s431 = smul.u32 16, %s34
        %s432 = smul.u32 %s33, 2
        %s433 = sadd.s32 %s432, %s34
        %s434 = smul.u32 16, %s34
        %v435 = vld [vmem:[%s381] sm:$0xff]
        %v436 = vld [vmem:[%s381 + $0x8] sm:$0xff]
        %v437 = vld [vmem:[%s372] sm:$0xff]
        %v438 = vld [vmem:[%s372 + $0x8] sm:$0xff]
        %v439 = vld [vmem:[%s372 + $0x10] sm:$0xff]
        %v440 = vld [vmem:[%s372 + $0x18] sm:$0xff]
        %v441 = vld [vmem:[%s372 + $0x20] sm:$0xff]
        %v442 = vld [vmem:[%s372 + $0x28] sm:$0xff]
        %v443 = vld [vmem:[%s372 + $0x30] sm:$0xff]
        %v444 = vld [vmem:[%s372 + $0x38] sm:$0xff]
        %v445 = vld [vmem:[%s372 + $0x40] sm:$0xff]
        %v446 = vld [vmem:[%s372 + $0x48] sm:$0xff]
        %v447 = vld [vmem:[%s372 + $0x50] sm:$0xff]
        %v448 = vld [vmem:[%s372 + $0x58] sm:$0xff]
        %v449 = vld [vmem:[%s372 + $0x60] sm:$0xff]
        %v450 = vld [vmem:[%s372 + $0x68] sm:$0xff]
        %v451 = vld [vmem:[%s372 + $0x70] sm:$0xff]
        %v452 = vld [vmem:[%s372 + $0x78] sm:$0xff]
        %v453 = vld [vmem:[%s381 + $0x10] sm:$0xff]
        %v454 = vld [vmem:[%s381 + $0x18] sm:$0xff]
        %v455 = vld [vmem:[#allocation7] sm:$0xff]
        %v456 = vld [vmem:[#allocation7 + $0x8] sm:$0xff]
        %v457 = vld [vmem:[#allocation7 + $0x10] sm:$0xff]
        %v458 = vld [vmem:[#allocation7 + $0x18] sm:$0xff]
        %v459 = vld [vmem:[#allocation7 + $0x20] sm:$0xff]
        %v460 = vld [vmem:[#allocation7 + $0x28] sm:$0xff]
        %v461 = vld [vmem:[#allocation7 + $0x30] sm:$0xff]
        %v462 = vld [vmem:[#allocation7 + $0x38] sm:$0xff]
        %v463 = vld [vmem:[#allocation7 + $0x40] sm:$0xff]
        %v464 = vld [vmem:[#allocation7 + $0x48] sm:$0xff]
        %v465 = vld [vmem:[#allocation7 + $0x50] sm:$0xff]
        %v466 = vld [vmem:[#allocation7 + $0x58] sm:$0xff]
        %v467 = vld [vmem:[#allocation7 + $0x60] sm:$0xff]
        %v468 = vld [vmem:[#allocation7 + $0x68] sm:$0xff]
        %v469 = vld [vmem:[#allocation7 + $0x70] sm:$0xff]
        %v470 = vld [vmem:[#allocation7 + $0x78] sm:$0xff]
        %v471 = vld [vmem:[%s3] sm:$0x1]
        %v473 = vlaneseq
        %v474 = vshrl.u32 %v473, 7
        %v475 = vsub.s32 0, %v474
        %v476 = vrot.slane %v471, %v475
        %478 = vmatprep.subr.mxu0 0.0
        %479 = vmatpush1.msra.mxu0 %v455
        %480 = vmatprep.subr.mxu0 0.0
        %481 = vmatpush1.msra.mxu0 %v456
        %482 = vmatprep.subr.mxu0 0.0
        %483 = vmatpush1.msra.mxu0 %v457
        %484 = vmatprep.subr.mxu0 0.0
        %485 = vmatpush1.msra.mxu0 %v458
        %486 = vmatprep.subr.mxu0 0.0
        %487 = vmatpush1.msra.mxu0 %v459
        %488 = vmatprep.subr.mxu0 0.0
        %489 = vmatpush1.msra.mxu0 %v460
        %490 = vmatprep.subr.mxu0 0.0
        %491 = vmatpush1.msra.mxu0 %v461
        %492 = vmatprep.subr.mxu0 0.0
        %493 = vmatpush1.msra.mxu0 %v462
        %494 = vmatprep.subr.mxu0 0.0
        %495 = vmatpush1.msra.mxu0 %v463
        %496 = vmatprep.subr.mxu0 0.0
        %497 = vmatpush1.msra.mxu0 %v464
        %498 = vmatprep.subr.mxu0 0.0
        %499 = vmatpush1.msra.mxu0 %v465
        %500 = vmatprep.subr.mxu0 0.0
        %501 = vmatpush1.msra.mxu0 %v466
        %502 = vmatprep.subr.mxu0 0.0
        %503 = vmatpush1.msra.mxu0 %v467
        %504 = vmatprep.subr.mxu0 0.0
        %505 = vmatpush1.msra.mxu0 %v468
        %506 = vmatprep.subr.mxu0 0.0
        %507 = vmatpush1.msra.mxu0 %v469
        %508 = vmatprep.subr.mxu0 0.0
        %509 = vmatpush1.msra.mxu0 %v470
        %510 = vmatprep.subr.mxu0 0.0
        %511 = vmatpush1.msra.mxu0 0.0
        %512 = vmatprep.subr.mxu0 0.0
        %513 = vmatpush1.msra.mxu0 0.0
        %514 = vmatprep.subr.mxu0 0.0
        %515 = vmatpush1.msra.mxu0 0.0
        %516 = vmatprep.subr.mxu0 0.0
        %517 = vmatpush1.msra.mxu0 0.0
        %518 = vmatprep.subr.mxu0 0.0
        %519 = vmatpush1.msra.mxu0 0.0
        %520 = vmatprep.subr.mxu0 0.0
        %521 = vmatpush1.msra.mxu0 0.0
        %522 = vmatprep.subr.mxu0 0.0
        %523 = vmatpush1.msra.mxu0 0.0
        %524 = vmatprep.subr.mxu0 0.0
        %525 = vmatpush1.msra.mxu0 0.0
        %526 = vmatprep.subr.mxu0 0.0
        %527 = vmatpush1.msra.mxu0 0.0
        %528 = vmatprep.subr.mxu0 0.0
        %529 = vmatpush1.msra.mxu0 0.0
        %530 = vmatprep.subr.mxu0 0.0
        %531 = vmatpush1.msra.mxu0 0.0
        %532 = vmatprep.subr.mxu0 0.0
        %533 = vmatpush1.msra.mxu0 0.0
        %534 = vmatprep.subr.mxu0 0.0
        %535 = vmatpush1.msra.mxu0 0.0
        %536 = vmatprep.subr.mxu0 0.0
        %537 = vmatpush1.msra.mxu0 0.0
        %538 = vmatprep.subr.mxu0 0.0
        %539 = vmatpush1.msra.mxu0 0.0
        %540 = vmatprep.subr.mxu0 0.0
        %541 = vmatpush1.msra.mxu0 0.0
        %542 = vmatprep.mubr.f32.mxu0 0.0
        %543 = vmatmul.mubr.f32.gmra.mrb[0].mxu0 %v435
        %v544 = vpop.f32.mrb[0].mxu0
        %v545 = vadd.f32 %v476, %v544
        %v546 = vpop.f32.mrb[0].mxu0
        %547 = vmatprep.mubr.f32.mxu0 0.0
        %548 = vmatmul.mubr.f32.gmra.mrb[0].mxu0 %v436
        %v549 = vpop.f32.mrb[0].mxu0
        %v550 = vadd.f32 %v476, %v549
        %v551 = vpop.f32.mrb[0].mxu0
        %552 = vmatprep.mubr.f32.mxu0 0.0
        %553 = vmatmul.mubr.f32.gmra.mrb[0].mxu0 %v437
        %v554 = vpop.f32.mrb[0].mxu0
        %v555 = vadd.f32 %v476, %v554
        %v556 = vpop.f32.mrb[0].mxu0
        %557 = vmatprep.mubr.f32.mxu0 0.0
        %558 = vmatmul.mubr.f32.gmra.mrb[0].mxu0 %v438
        %v559 = vpop.f32.mrb[0].mxu0
        %v560 = vadd.f32 %v476, %v559
        %v561 = vpop.f32.mrb[0].mxu0
        %562 = vmatprep.mubr.f32.mxu0 0.0
        %563 = vmatmul.mubr.f32.gmra.mrb[0].mxu0 %v439
        %v564 = vpop.f32.mrb[0].mxu0
        %v565 = vadd.f32 %v476, %v564
        %v566 = vpop.f32.mrb[0].mxu0
        %567 = vmatprep.mubr.f32.mxu0 0.0
        %568 = vmatmul.mubr.f32.gmra.mrb[0].mxu0 %v440
        %v569 = vpop.f32.mrb[0].mxu0
        %v570 = vadd.f32 %v476, %v569
        %v571 = vpop.f32.mrb[0].mxu0
        %572 = vmatprep.mubr.f32.mxu0 0.0
        %573 = vmatmul.mubr.f32.gmra.mrb[0].mxu0 %v441
        %v574 = vpop.f32.mrb[0].mxu0
        %v575 = vadd.f32 %v476, %v574
        %v576 = vpop.f32.mrb[0].mxu0
        %577 = vmatprep.mubr.f32.mxu0 0.0
        %578 = vmatmul.mubr.f32.gmra.mrb[0].mxu0 %v442
        %v579 = vpop.f32.mrb[0].mxu0
        %v580 = vadd.f32 %v476, %v579
        %v581 = vpop.f32.mrb[0].mxu0
        %582 = vmatprep.mubr.f32.mxu0 0.0
        %583 = vmatmul.mubr.f32.gmra.mrb[0].mxu0 %v443
        %v584 = vpop.f32.mrb[0].mxu0
        %v585 = vadd.f32 %v476, %v584
        %v586 = vpop.f32.mrb[0].mxu0
        %587 = vmatprep.mubr.f32.mxu0 0.0
        %588 = vmatmul.mubr.f32.gmra.mrb[0].mxu0 %v444
        %v589 = vpop.f32.mrb[0].mxu0
        %v590 = vadd.f32 %v476, %v589
        %v591 = vpop.f32.mrb[0].mxu0
        %592 = vmatprep.mubr.f32.mxu0 0.0
        %593 = vmatmul.mubr.f32.gmra.mrb[0].mxu0 %v445
        %v594 = vpop.f32.mrb[0].mxu0
        %v595 = vadd.f32 %v476, %v594
        %v596 = vpop.f32.mrb[0].mxu0
        %597 = vmatprep.mubr.f32.mxu0 0.0
        %598 = vmatmul.mubr.f32.gmra.mrb[0].mxu0 %v446
        %v599 = vpop.f32.mrb[0].mxu0
        %v600 = vadd.f32 %v476, %v599
        %v601 = vpop.f32.mrb[0].mxu0
        %602 = vmatprep.mubr.f32.mxu0 0.0
        %603 = vmatmul.mubr.f32.gmra.mrb[0].mxu0 %v447
        %v604 = vpop.f32.mrb[0].mxu0
        %v605 = vadd.f32 %v476, %v604
        %v606 = vpop.f32.mrb[0].mxu0
        %607 = vmatprep.mubr.f32.mxu0 0.0
        %608 = vmatmul.mubr.f32.gmra.mrb[0].mxu0 %v448
        %v609 = vpop.f32.mrb[0].mxu0
        %v610 = vadd.f32 %v476, %v609
        %v611 = vpop.f32.mrb[0].mxu0
        %612 = vmatprep.mubr.f32.mxu0 0.0
        %613 = vmatmul.mubr.f32.gmra.mrb[0].mxu0 %v449
        %v614 = vpop.f32.mrb[0].mxu0
        %v615 = vadd.f32 %v476, %v614
        %v616 = vpop.f32.mrb[0].mxu0
        %617 = vmatprep.mubr.f32.mxu0 0.0
        %618 = vmatmul.mubr.f32.gmra.mrb[0].mxu0 %v450
        %v619 = vpop.f32.mrb[0].mxu0
        %v620 = vadd.f32 %v476, %v619
        %v621 = vpop.f32.mrb[0].mxu0
        %622 = vmatprep.mubr.f32.mxu0 0.0
        %623 = vmatmul.mubr.f32.gmra.mrb[0].mxu0 %v451
        %v624 = vpop.f32.mrb[0].mxu0
        %v625 = vadd.f32 %v476, %v624
        %v626 = vpop.f32.mrb[0].mxu0
        %627 = vmatprep.mubr.f32.mxu0 0.0
        %628 = vmatmul.mubr.f32.gmra.mrb[0].mxu0 %v452
        %v629 = vpop.f32.mrb[0].mxu0
        %v630 = vadd.f32 %v476, %v629
        %v631 = vpop.f32.mrb[0].mxu0
        %632 = vmatprep.mubr.f32.mxu0 0.0
        %633 = vmatmul.mubr.f32.gmra.mrb[0].mxu0 %v453
        %v634 = vpop.f32.mrb[0].mxu0
        %v635 = vadd.f32 %v476, %v634
        %v636 = vpop.f32.mrb[0].mxu0
        %637 = vmatprep.mubr.f32.mxu0 0.0
        %638 = vmatmul.mubr.f32.gmra.mrb[0].mxu0 %v454
        %v639 = vpop.f32.mrb[0].mxu0
        %v640 = vadd.f32 %v476, %v639
        %v641 = vpop.f32.mrb[0].mxu0
        %642 = vdwg.mxu0
        %v643 = vlaneseq
        %v644 = vshrl.u32 %v643, 7
        %v645 = vadd.s32 %v644, 8
        %v646 = vadd.s32 %v644, 16
        %v647 = vadd.s32 %v644, 24
        %v648 = vadd.s32 %v644, 32
        %v649 = vadd.s32 %v644, 40
        %v650 = vadd.s32 %v644, 48
        %v651 = vadd.s32 %v644, 56
        %v652 = vadd.s32 %v644, 64
        %v653 = vadd.s32 %v644, 72
        %v654 = vadd.s32 %v644, 80
        %v655 = vadd.s32 %v644, 88
        %v656 = vadd.s32 %v644, 96
        %v657 = vadd.s32 %v644, 104
        %v658 = vadd.s32 %v644, 112
        %v659 = vadd.s32 %v644, 120
        %vm660 = vcmp.lt.s32.totalorder %v644, 0
        %v661 = vsub.s32 0, %v644
        %v662 = vsel %vm660, %v661, %v644
        %v663 = vshrl.u32 %v662, 4
        %v664 = vand.u32 %v662, 15
        %v665 = vsub.s32 0, %v664
        %v666 = vsel %vm660, %v665, %v664
        %vm667 = vcmp.lt.s32.totalorder %v645, 0
        %v668 = vsub.s32 0, %v645
        %v669 = vsel %vm667, %v668, %v645
        %v670 = vshrl.u32 %v669, 4
        %v671 = vand.u32 %v669, 15
        %v672 = vsub.s32 0, %v671
        %v673 = vsel %vm667, %v672, %v671
        %vm674 = vcmp.lt.s32.totalorder %v646, 0
        %v675 = vsub.s32 0, %v646
        %v676 = vsel %vm674, %v675, %v646
        %v677 = vshrl.u32 %v676, 4
        %v678 = vand.u32 %v676, 15
        %v679 = vsub.s32 0, %v678
        %v680 = vsel %vm674, %v679, %v678
        %vm681 = vcmp.lt.s32.totalorder %v647, 0
        %v682 = vsub.s32 0, %v647
        %v683 = vsel %vm681, %v682, %v647
        %v684 = vshrl.u32 %v683, 4
        %v685 = vand.u32 %v683, 15
        %v686 = vsub.s32 0, %v685
        %v687 = vsel %vm681, %v686, %v685
        %vm688 = vcmp.lt.s32.totalorder %v648, 0
        %v689 = vsub.s32 0, %v648
        %v690 = vsel %vm688, %v689, %v648
        %v691 = vshrl.u32 %v690, 4
        %v692 = vand.u32 %v690, 15
        %v693 = vsub.s32 0, %v692
        %v694 = vsel %vm688, %v693, %v692
        %vm695 = vcmp.lt.s32.totalorder %v649, 0
        %v696 = vsub.s32 0, %v649
        %v697 = vsel %vm695, %v696, %v649
        %v698 = vshrl.u32 %v697, 4
        %v699 = vand.u32 %v697, 15
        %v700 = vsub.s32 0, %v699
        %v701 = vsel %vm695, %v700, %v699
        %vm702 = vcmp.lt.s32.totalorder %v650, 0
        %v703 = vsub.s32 0, %v650
        %v704 = vsel %vm702, %v703, %v650
        %v705 = vshrl.u32 %v704, 4
        %v706 = vand.u32 %v704, 15
        %v707 = vsub.s32 0, %v706
        %v708 = vsel %vm702, %v707, %v706
        %vm709 = vcmp.lt.s32.totalorder %v651, 0
        %v710 = vsub.s32 0, %v651
        %v711 = vsel %vm709, %v710, %v651
        %v712 = vshrl.u32 %v711, 4
        %v713 = vand.u32 %v711, 15
        %v714 = vsub.s32 0, %v713
        %v715 = vsel %vm709, %v714, %v713
        %vm716 = vcmp.lt.s32.totalorder %v652, 0
        %v717 = vsub.s32 0, %v652
        %v718 = vsel %vm716, %v717, %v652
        %v719 = vshrl.u32 %v718, 4
        %v720 = vand.u32 %v718, 15
        %v721 = vsub.s32 0, %v720
        %v722 = vsel %vm716, %v721, %v720
        %vm723 = vcmp.lt.s32.totalorder %v653, 0
        %v724 = vsub.s32 0, %v653
        %v725 = vsel %vm723, %v724, %v653
        %v726 = vshrl.u32 %v725, 4
        %v727 = vand.u32 %v725, 15
        %v728 = vsub.s32 0, %v727
        %v729 = vsel %vm723, %v728, %v727
        %vm730 = vcmp.lt.s32.totalorder %v654, 0
        %v731 = vsub.s32 0, %v654
        %v732 = vsel %vm730, %v731, %v654
        %v733 = vshrl.u32 %v732, 4
        %v734 = vand.u32 %v732, 15
        %v735 = vsub.s32 0, %v734
        %v736 = vsel %vm730, %v735, %v734
        %vm737 = vcmp.lt.s32.totalorder %v655, 0
        %v738 = vsub.s32 0, %v655
        %v739 = vsel %vm737, %v738, %v655
        %v740 = vshrl.u32 %v739, 4
        %v741 = vand.u32 %v739, 15
        %v742 = vsub.s32 0, %v741
        %v743 = vsel %vm737, %v742, %v741
        %vm744 = vcmp.lt.s32.totalorder %v656, 0
        %v745 = vsub.s32 0, %v656
        %v746 = vsel %vm744, %v745, %v656
        %v747 = vshrl.u32 %v746, 4
        %v748 = vand.u32 %v746, 15
        %v749 = vsub.s32 0, %v748
        %v750 = vsel %vm744, %v749, %v748
        %vm751 = vcmp.lt.s32.totalorder %v657, 0
        %v752 = vsub.s32 0, %v657
        %v753 = vsel %vm751, %v752, %v657
        %v754 = vshrl.u32 %v753, 4
        %v755 = vand.u32 %v753, 15
        %v756 = vsub.s32 0, %v755
        %v757 = vsel %vm751, %v756, %v755
        %vm758 = vcmp.lt.s32.totalorder %v658, 0
        %v759 = vsub.s32 0, %v658
        %v760 = vsel %vm758, %v759, %v658
        %v761 = vshrl.u32 %v760, 4
        %v762 = vand.u32 %v760, 15
        %v763 = vsub.s32 0, %v762
        %v764 = vsel %vm758, %v763, %v762
        %vm765 = vcmp.lt.s32.totalorder %v659, 0
        %v766 = vsub.s32 0, %v659
        %v767 = vsel %vm765, %v766, %v659
        %v768 = vshrl.u32 %v767, 4
        %v769 = vand.u32 %v767, 15
        %v770 = vsub.s32 0, %v769
        %v771 = vsel %vm765, %v770, %v769
        %vm772 = vcmp.ne.s32.totalorder %v666, 0
        %vm773 = vcmp.ne.s32.totalorder %v673, 0
        %vm774 = vcmp.ne.s32.totalorder %v680, 0
        %vm775 = vcmp.ne.s32.totalorder %v687, 0
        %vm776 = vcmp.ne.s32.totalorder %v694, 0
        %vm777 = vcmp.ne.s32.totalorder %v701, 0
        %vm778 = vcmp.ne.s32.totalorder %v708, 0
        %vm779 = vcmp.ne.s32.totalorder %v715, 0
        %vm780 = vcmp.ne.s32.totalorder %v722, 0
        %vm781 = vcmp.ne.s32.totalorder %v729, 0
        %vm782 = vcmp.ne.s32.totalorder %v736, 0
        %vm783 = vcmp.ne.s32.totalorder %v743, 0
        %vm784 = vcmp.ne.s32.totalorder %v750, 0
        %vm785 = vcmp.ne.s32.totalorder %v757, 0
        %vm786 = vcmp.ne.s32.totalorder %v764, 0
        %vm787 = vcmp.ne.s32.totalorder %v771, 0
        %vm788 = vcmp.lt.s32.totalorder %v666, 0
        %vm789 = vcmp.lt.s32.totalorder %v673, 0
        %vm790 = vcmp.lt.s32.totalorder %v680, 0
        %vm791 = vcmp.lt.s32.totalorder %v687, 0
        %vm792 = vcmp.lt.s32.totalorder %v694, 0
        %vm793 = vcmp.lt.s32.totalorder %v701, 0
        %vm794 = vcmp.lt.s32.totalorder %v708, 0
        %vm795 = vcmp.lt.s32.totalorder %v715, 0
        %vm796 = vcmp.lt.s32.totalorder %v722, 0
        %vm797 = vcmp.lt.s32.totalorder %v729, 0
        %vm798 = vcmp.lt.s32.totalorder %v736, 0
        %vm799 = vcmp.lt.s32.totalorder %v743, 0
        %vm800 = vcmp.lt.s32.totalorder %v750, 0
        %vm801 = vcmp.lt.s32.totalorder %v757, 0
        %vm802 = vcmp.lt.s32.totalorder %v764, 0
        %vm803 = vcmp.lt.s32.totalorder %v771, 0
        %vm804 = vmand %vm788, %vm772
        %vm805 = vmand %vm789, %vm773
        %vm806 = vmand %vm790, %vm774
        %vm807 = vmand %vm791, %vm775
        %vm808 = vmand %vm792, %vm776
        %vm809 = vmand %vm793, %vm777
        %vm810 = vmand %vm794, %vm778
        %vm811 = vmand %vm795, %vm779
        %vm812 = vmand %vm796, %vm780
        %vm813 = vmand %vm797, %vm781
        %vm814 = vmand %vm798, %vm782
        %vm815 = vmand %vm799, %vm783
        %vm816 = vmand %vm800, %vm784
        %vm817 = vmand %vm801, %vm785
        %vm818 = vmand %vm802, %vm786
        %vm819 = vmand %vm803, %vm787
        %v820 = vadd.s32 %v666, 16
        %v821 = vadd.s32 %v673, 16
        %v822 = vadd.s32 %v680, 16
        %v823 = vadd.s32 %v687, 16
        %v824 = vadd.s32 %v694, 16
        %v825 = vadd.s32 %v701, 16
        %v826 = vadd.s32 %v708, 16
        %v827 = vadd.s32 %v715, 16
        %v828 = vadd.s32 %v722, 16
        %v829 = vadd.s32 %v729, 16
        %v830 = vadd.s32 %v736, 16
        %v831 = vadd.s32 %v743, 16
        %v832 = vadd.s32 %v750, 16
        %v833 = vadd.s32 %v757, 16
        %v834 = vadd.s32 %v764, 16
        %v835 = vadd.s32 %v771, 16
        %v836 = vsel %vm804, %v820, %v666
        %v837 = vsel %vm805, %v821, %v673
        %v838 = vsel %vm806, %v822, %v680
        %v839 = vsel %vm807, %v823, %v687
        %v840 = vsel %vm808, %v824, %v694
        %v841 = vsel %vm809, %v825, %v701
        %v842 = vsel %vm810, %v826, %v708
        %v843 = vsel %vm811, %v827, %v715
        %v844 = vsel %vm812, %v828, %v722
        %v845 = vsel %vm813, %v829, %v729
        %v846 = vsel %vm814, %v830, %v736
        %v847 = vsel %vm815, %v831, %v743
        %v848 = vsel %vm816, %v832, %v750
        %v849 = vsel %vm817, %v833, %v757
        %v850 = vsel %vm818, %v834, %v764
        %v851 = vsel %vm819, %v835, %v771
        %vm852 = vcmp.eq.s32.totalorder %v836, 0
        %vm853 = vcmp.eq.s32.totalorder %v837, 0
        %vm854 = vcmp.eq.s32.totalorder %v838, 0
        %vm855 = vcmp.eq.s32.totalorder %v839, 0
        %vm856 = vcmp.eq.s32.totalorder %v840, 0
        %vm857 = vcmp.eq.s32.totalorder %v841, 0
        %vm858 = vcmp.eq.s32.totalorder %v842, 0
        %vm859 = vcmp.eq.s32.totalorder %v843, 0
        %vm860 = vcmp.eq.s32.totalorder %v844, 0
        %vm861 = vcmp.eq.s32.totalorder %v845, 0
        %vm862 = vcmp.eq.s32.totalorder %v846, 0
        %vm863 = vcmp.eq.s32.totalorder %v847, 0
        %vm864 = vcmp.eq.s32.totalorder %v848, 0
        %vm865 = vcmp.eq.s32.totalorder %v849, 0
        %vm866 = vcmp.eq.s32.totalorder %v850, 0
        %vm867 = vcmp.eq.s32.totalorder %v851, 0
        %vm868 = vcmp.eq.s32.totalorder %v836, 15
        %vm869 = vcmp.eq.s32.totalorder %v837, 15
        %vm870 = vcmp.eq.s32.totalorder %v838, 15
        %vm871 = vcmp.eq.s32.totalorder %v839, 15
        %vm872 = vcmp.eq.s32.totalorder %v840, 15
        %vm873 = vcmp.eq.s32.totalorder %v841, 15
        %vm874 = vcmp.eq.s32.totalorder %v842, 15
        %vm875 = vcmp.eq.s32.totalorder %v843, 15
        %vm876 = vcmp.eq.s32.totalorder %v844, 15
        %vm877 = vcmp.eq.s32.totalorder %v845, 15
        %vm878 = vcmp.eq.s32.totalorder %v846, 15
        %vm879 = vcmp.eq.s32.totalorder %v847, 15
        %vm880 = vcmp.eq.s32.totalorder %v848, 15
        %vm881 = vcmp.eq.s32.totalorder %v849, 15
        %vm882 = vcmp.eq.s32.totalorder %v850, 15
        %vm883 = vcmp.eq.s32.totalorder %v851, 15
        %v884 = vld [vmem:[%s5] sm:$0x1]
        %v886 = vlaneseq
        %v887 = vshrl.u32 %v886, 7
        %v888 = vsub.s32 0, %v887
        %v889 = vrot.slane %v884, %v888
        %v891 = vadd.f32 %v555, %v889
        %v892 = vadd.f32 %v560, %v889
        %v893 = vadd.f32 %v565, %v889
        %v894 = vadd.f32 %v570, %v889
        %v895 = vadd.f32 %v575, %v889
        %v896 = vadd.f32 %v580, %v889
        %v897 = vadd.f32 %v585, %v889
        %v898 = vadd.f32 %v590, %v889
        %v899 = vadd.f32 %v595, %v889
        %v900 = vadd.f32 %v600, %v889
        %v901 = vadd.f32 %v605, %v889
        %v902 = vadd.f32 %v610, %v889
        %v903 = vadd.f32 %v615, %v889
        %v904 = vadd.f32 %v620, %v889
        %v905 = vadd.f32 %v625, %v889
        %v906 = vadd.f32 %v630, %v889
        %v907 = vrot.slane %v545, 7
        %v908 = vrot.slane %v550, 7
        %v909 = vrot.slane %v555, 7
        %v910 = vrot.slane %v560, 7
        %v911 = vrot.slane %v565, 7
        %v912 = vrot.slane %v570, 7
        %v913 = vrot.slane %v575, 7
        %v914 = vrot.slane %v580, 7
        %v915 = vrot.slane %v585, 7
        %v916 = vrot.slane %v590, 7
        %v917 = vrot.slane %v595, 7
        %v918 = vrot.slane %v600, 7
        %v919 = vrot.slane %v605, 7
        %v920 = vrot.slane %v610, 7
        %v921 = vrot.slane %v615, 7
        %v922 = vrot.slane %v620, 7
        %vm923 = vcmp.lt.s32.totalorder %v644, 1
        %v924 = vsel %vm923, %v921, %v922
        %v925 = vsel %vm923, %v920, %v921
        %v926 = vsel %vm923, %v919, %v920
        %v927 = vsel %vm923, %v918, %v919
        %v928 = vsel %vm923, %v917, %v918
        %v929 = vsel %vm923, %v916, %v917
        %v930 = vsel %vm923, %v915, %v916
        %v931 = vsel %vm923, %v914, %v915
        %v932 = vsel %vm923, %v913, %v914
        %v933 = vsel %vm923, %v912, %v913
        %v934 = vsel %vm923, %v911, %v912
        %v935 = vsel %vm923, %v910, %v911
        %v936 = vsel %vm923, %v909, %v910
        %v937 = vsel %vm923, %v908, %v909
        %v938 = vsel %vm923, %v907, %v908
        %v939 = vsel %vm923, %v922, %v907
        %v940 = vsel %vm852, 1, 0
        %v941 = vsel %vm853, 1, 0
        %v942 = vsel %vm854, 1, 0
        %v943 = vsel %vm855, 1, 0
        %v944 = vsel %vm856, 1, 0
        %v945 = vsel %vm857, 1, 0
        %v946 = vsel %vm858, 1, 0
        %v947 = vsel %vm859, 1, 0
        %v948 = vsel %vm860, 1, 0
        %v949 = vsel %vm861, 1, 0
        %v950 = vsel %vm862, 1, 0
        %v951 = vsel %vm863, 1, 0
        %v952 = vsel %vm864, 1, 0
        %v953 = vsel %vm865, 1, 0
        %v954 = vsel %vm866, 1, 0
        %v955 = vsel %vm867, 1, 0
        %vm956 = vcmp.eq.s32.totalorder %v940, 1
        %vm957 = vcmp.eq.s32.totalorder %v941, 1
        %vm958 = vcmp.eq.s32.totalorder %v942, 1
        %vm959 = vcmp.eq.s32.totalorder %v943, 1
        %vm960 = vcmp.eq.s32.totalorder %v944, 1
        %vm961 = vcmp.eq.s32.totalorder %v945, 1
        %vm962 = vcmp.eq.s32.totalorder %v946, 1
        %vm963 = vcmp.eq.s32.totalorder %v947, 1
        %vm964 = vcmp.eq.s32.totalorder %v948, 1
        %vm965 = vcmp.eq.s32.totalorder %v949, 1
        %vm966 = vcmp.eq.s32.totalorder %v950, 1
        %vm967 = vcmp.eq.s32.totalorder %v951, 1
        %vm968 = vcmp.eq.s32.totalorder %v952, 1
        %vm969 = vcmp.eq.s32.totalorder %v953, 1
        %vm970 = vcmp.eq.s32.totalorder %v954, 1
        %vm971 = vcmp.eq.s32.totalorder %v955, 1
        %v972 = vsel %vm956, %v476, %v939
        %v973 = vsel %vm957, %v476, %v938
        %v974 = vsel %vm958, %v476, %v937
        %v975 = vsel %vm959, %v476, %v936
        %v976 = vsel %vm960, %v476, %v935
        %v977 = vsel %vm961, %v476, %v934
        %v978 = vsel %vm962, %v476, %v933
        %v979 = vsel %vm963, %v476, %v932
        %v980 = vsel %vm964, %v476, %v931
        %v981 = vsel %vm965, %v476, %v930
        %v982 = vsel %vm966, %v476, %v929
        %v983 = vsel %vm967, %v476, %v928
        %v984 = vsel %vm968, %v476, %v927
        %v985 = vsel %vm969, %v476, %v926
        %v986 = vsel %vm970, %v476, %v925
        %v987 = vsel %vm971, %v476, %v924
        %v988 = vld [vmem:[#allocation8] sm:$0xff]
        %v989 = vld [vmem:[#allocation8 + $0x8] sm:$0xff]
        %v990 = vld [vmem:[#allocation8 + $0x10] sm:$0xff]
        %v991 = vld [vmem:[#allocation8 + $0x18] sm:$0xff]
        %v992 = vld [vmem:[#allocation8 + $0x20] sm:$0xff]
        %v993 = vld [vmem:[#allocation8 + $0x28] sm:$0xff]
        %v994 = vld [vmem:[#allocation8 + $0x30] sm:$0xff]
        %v995 = vld [vmem:[#allocation8 + $0x38] sm:$0xff]
        %v996 = vld [vmem:[#allocation8 + $0x40] sm:$0xff]
        %v997 = vld [vmem:[#allocation8 + $0x48] sm:$0xff]
        %v998 = vld [vmem:[#allocation8 + $0x50] sm:$0xff]
        %v999 = vld [vmem:[#allocation8 + $0x58] sm:$0xff]
        %v1000 = vld [vmem:[#allocation8 + $0x60] sm:$0xff]
        %v1001 = vld [vmem:[#allocation8 + $0x68] sm:$0xff]
        %v1002 = vld [vmem:[#allocation8 + $0x70] sm:$0xff]
        %v1003 = vld [vmem:[#allocation8 + $0x78] sm:$0xff]
        %1004 = vmatprep.subr.mxu0 0.0
        %1005 = vmatpush1.msra.mxu0 %v988
        %1006 = vmatprep.subr.mxu0 0.0
        %1007 = vmatpush1.msra.mxu0 %v989
        %1008 = vmatprep.subr.mxu0 0.0
        %1009 = vmatpush1.msra.mxu0 %v990
        %1010 = vmatprep.subr.mxu0 0.0
        %1011 = vmatpush1.msra.mxu0 %v991
        %1012 = vmatprep.subr.mxu0 0.0
        %1013 = vmatpush1.msra.mxu0 %v992
        %1014 = vmatprep.subr.mxu0 0.0
        %1015 = vmatpush1.msra.mxu0 %v993
        %1016 = vmatprep.subr.mxu0 0.0
        %1017 = vmatpush1.msra.mxu0 %v994
        %1018 = vmatprep.subr.mxu0 0.0
        %1019 = vmatpush1.msra.mxu0 %v995
        %1020 = vmatprep.subr.mxu0 0.0
        %1021 = vmatpush1.msra.mxu0 %v996
        %1022 = vmatprep.subr.mxu0 0.0
        %1023 = vmatpush1.msra.mxu0 %v997
        %1024 = vmatprep.subr.mxu0 0.0
        %1025 = vmatpush1.msra.mxu0 %v998
        %1026 = vmatprep.subr.mxu0 0.0
        %1027 = vmatpush1.msra.mxu0 %v999
        %1028 = vmatprep.subr.mxu0 0.0
        %1029 = vmatpush1.msra.mxu0 %v1000
        %1030 = vmatprep.subr.mxu0 0.0
        %1031 = vmatpush1.msra.mxu0 %v1001
        %1032 = vmatprep.subr.mxu0 0.0
        %1033 = vmatpush1.msra.mxu0 %v1002
        %1034 = vmatprep.subr.mxu0 0.0
        %1035 = vmatpush1.msra.mxu0 %v1003
        %1036 = vmatprep.subr.mxu0 0.0
        %1037 = vmatpush1.msra.mxu0 0.0
        %1038 = vmatprep.subr.mxu0 0.0
        %1039 = vmatpush1.msra.mxu0 0.0
        %1040 = vmatprep.subr.mxu0 0.0
        %1041 = vmatpush1.msra.mxu0 0.0
        %1042 = vmatprep.subr.mxu0 0.0
        %1043 = vmatpush1.msra.mxu0 0.0
        %1044 = vmatprep.subr.mxu0 0.0
        %1045 = vmatpush1.msra.mxu0 0.0
        %1046 = vmatprep.subr.mxu0 0.0
        %1047 = vmatpush1.msra.mxu0 0.0
        %1048 = vmatprep.subr.mxu0 0.0
        %1049 = vmatpush1.msra.mxu0 0.0
        %1050 = vmatprep.subr.mxu0 0.0
        %1051 = vmatpush1.msra.mxu0 0.0
        %1052 = vmatprep.subr.mxu0 0.0
        %1053 = vmatpush1.msra.mxu0 0.0
        %1054 = vmatprep.subr.mxu0 0.0
        %1055 = vmatpush1.msra.mxu0 0.0
        %1056 = vmatprep.subr.mxu0 0.0
        %1057 = vmatpush1.msra.mxu0 0.0
        %1058 = vmatprep.subr.mxu0 0.0
        %1059 = vmatpush1.msra.mxu0 0.0
        %1060 = vmatprep.subr.mxu0 0.0
        %1061 = vmatpush1.msra.mxu0 0.0
        %1062 = vmatprep.subr.mxu0 0.0
        %1063 = vmatpush1.msra.mxu0 0.0
        %1064 = vmatprep.subr.mxu0 0.0
        %1065 = vmatpush1.msra.mxu0 0.0
        %1066 = vmatprep.subr.mxu0 0.0
        %1067 = vmatpush1.msra.mxu0 0.0
        %1068 = vmatprep.mubr.f32.mxu0 0.0
        %1069 = vmatmul.mubr.f32.gmra.mrb[0].mxu0 %v972
        %v1070 = vpop.f32.mrb[0].mxu0
        %v1071 = vadd.f32 0.0, %v1070
        %v1072 = vpop.f32.mrb[0].mxu0
        %1073 = vmatprep.mubr.f32.mxu0 0.0
        %1074 = vmatmul.mubr.f32.gmra.mrb[0].mxu0 %v973
        %v1075 = vpop.f32.mrb[0].mxu0
        %v1076 = vadd.f32 0.0, %v1075
        %v1077 = vpop.f32.mrb[0].mxu0
        %1078 = vmatprep.mubr.f32.mxu0 0.0
        %1079 = vmatmul.mubr.f32.gmra.mrb[0].mxu0 %v974
        %v1080 = vpop.f32.mrb[0].mxu0
        %v1081 = vadd.f32 0.0, %v1080
        %v1082 = vpop.f32.mrb[0].mxu0
        %1083 = vmatprep.mubr.f32.mxu0 0.0
        %1084 = vmatmul.mubr.f32.gmra.mrb[0].mxu0 %v975
        %v1085 = vpop.f32.mrb[0].mxu0
        %v1086 = vadd.f32 0.0, %v1085
        %v1087 = vpop.f32.mrb[0].mxu0
        %1088 = vmatprep.mubr.f32.mxu0 0.0
        %1089 = vmatmul.mubr.f32.gmra.mrb[0].mxu0 %v976
        %v1090 = vpop.f32.mrb[0].mxu0
        %v1091 = vadd.f32 0.0, %v1090
        %v1092 = vpop.f32.mrb[0].mxu0
        %1093 = vmatprep.mubr.f32.mxu0 0.0
        %1094 = vmatmul.mubr.f32.gmra.mrb[0].mxu0 %v977
        %v1095 = vpop.f32.mrb[0].mxu0
        %v1096 = vadd.f32 0.0, %v1095
        %v1097 = vpop.f32.mrb[0].mxu0
        %1098 = vmatprep.mubr.f32.mxu0 0.0
        %1099 = vmatmul.mubr.f32.gmra.mrb[0].mxu0 %v978
        %v1100 = vpop.f32.mrb[0].mxu0
        %v1101 = vadd.f32 0.0, %v1100
        %v1102 = vpop.f32.mrb[0].mxu0
        %1103 = vmatprep.mubr.f32.mxu0 0.0
        %1104 = vmatmul.mubr.f32.gmra.mrb[0].mxu0 %v979
        %v1105 = vpop.f32.mrb[0].mxu0
        %v1106 = vadd.f32 0.0, %v1105
        %v1107 = vpop.f32.mrb[0].mxu0
        %1108 = vmatprep.mubr.f32.mxu0 0.0
        %1109 = vmatmul.mubr.f32.gmra.mrb[0].mxu0 %v980
        %v1110 = vpop.f32.mrb[0].mxu0
        %v1111 = vadd.f32 0.0, %v1110
        %v1112 = vpop.f32.mrb[0].mxu0
        %1113 = vmatprep.mubr.f32.mxu0 0.0
        %1114 = vmatmul.mubr.f32.gmra.mrb[0].mxu0 %v981
        %v1115 = vpop.f32.mrb[0].mxu0
        %v1116 = vadd.f32 0.0, %v1115
        %v1117 = vpop.f32.mrb[0].mxu0
        %1118 = vmatprep.mubr.f32.mxu0 0.0
        %1119 = vmatmul.mubr.f32.gmra.mrb[0].mxu0 %v982
        %v1120 = vpop.f32.mrb[0].mxu0
        %v1121 = vadd.f32 0.0, %v1120
        %v1122 = vpop.f32.mrb[0].mxu0
        %1123 = vmatprep.mubr.f32.mxu0 0.0
        %1124 = vmatmul.mubr.f32.gmra.mrb[0].mxu0 %v983
        %v1125 = vpop.f32.mrb[0].mxu0
        %v1126 = vadd.f32 0.0, %v1125
        %v1127 = vpop.f32.mrb[0].mxu0
        %1128 = vmatprep.mubr.f32.mxu0 0.0
        %1129 = vmatmul.mubr.f32.gmra.mrb[0].mxu0 %v984
        %v1130 = vpop.f32.mrb[0].mxu0
        %v1131 = vadd.f32 0.0, %v1130
        %v1132 = vpop.f32.mrb[0].mxu0
        %1133 = vmatprep.mubr.f32.mxu0 0.0
        %1134 = vmatmul.mubr.f32.gmra.mrb[0].mxu0 %v985
        %v1135 = vpop.f32.mrb[0].mxu0
        %v1136 = vadd.f32 0.0, %v1135
        %v1137 = vpop.f32.mrb[0].mxu0
        %1138 = vmatprep.mubr.f32.mxu0 0.0
        %1139 = vmatmul.mubr.f32.gmra.mrb[0].mxu0 %v986
        %v1140 = vpop.f32.mrb[0].mxu0
        %v1141 = vadd.f32 0.0, %v1140
        %v1142 = vpop.f32.mrb[0].mxu0
        %1143 = vmatprep.mubr.f32.mxu0 0.0
        %1144 = vmatmul.mubr.f32.gmra.mrb[0].mxu0 %v987
        %v1145 = vpop.f32.mrb[0].mxu0
        %v1146 = vadd.f32 0.0, %v1145
        %v1147 = vpop.f32.mrb[0].mxu0
        %1148 = vdwg.mxu0
        %v1149 = vadd.f32 %v891, %v1071
        %v1150 = vadd.f32 %v892, %v1076
        %v1151 = vadd.f32 %v893, %v1081
        %v1152 = vadd.f32 %v894, %v1086
        %v1153 = vadd.f32 %v895, %v1091
        %v1154 = vadd.f32 %v896, %v1096
        %v1155 = vadd.f32 %v897, %v1101
        %v1156 = vadd.f32 %v898, %v1106
        %v1157 = vadd.f32 %v899, %v1111
        %v1158 = vadd.f32 %v900, %v1116
        %v1159 = vadd.f32 %v901, %v1121
        %v1160 = vadd.f32 %v902, %v1126
        %v1161 = vadd.f32 %v903, %v1131
        %v1162 = vadd.f32 %v904, %v1136
        %v1163 = vadd.f32 %v905, %v1141
        %v1164 = vadd.f32 %v906, %v1146
        %v1165 = vld [vmem:[#allocation8 + $0x80] sm:$0xff]
        %v1166 = vld [vmem:[#allocation8 + $0x88] sm:$0xff]
        %v1167 = vld [vmem:[#allocation8 + $0x90] sm:$0xff]
        %v1168 = vld [vmem:[#allocation8 + $0x98] sm:$0xff]
        %v1169 = vld [vmem:[#allocation8 + $0xa0] sm:$0xff]
        %v1170 = vld [vmem:[#allocation8 + $0xa8] sm:$0xff]
        %v1171 = vld [vmem:[#allocation8 + $0xb0] sm:$0xff]
        %v1172 = vld [vmem:[#allocation8 + $0xb8] sm:$0xff]
        %v1173 = vld [vmem:[#allocation8 + $0xc0] sm:$0xff]
        %v1174 = vld [vmem:[#allocation8 + $0xc8] sm:$0xff]
        %v1175 = vld [vmem:[#allocation8 + $0xd0] sm:$0xff]
        %v1176 = vld [vmem:[#allocation8 + $0xd8] sm:$0xff]
        %v1177 = vld [vmem:[#allocation8 + $0xe0] sm:$0xff]
        %v1178 = vld [vmem:[#allocation8 + $0xe8] sm:$0xff]
        %v1179 = vld [vmem:[#allocation8 + $0xf0] sm:$0xff]
        %v1180 = vld [vmem:[#allocation8 + $0xf8] sm:$0xff]
        %1181 = vmatprep.subr.mxu0 0.0
        %1182 = vmatpush1.msra.mxu0 %v1165
        %1183 = vmatprep.subr.mxu0 0.0
        %1184 = vmatpush1.msra.mxu0 %v1166
        %1185 = vmatprep.subr.mxu0 0.0
        %1186 = vmatpush1.msra.mxu0 %v1167
        %1187 = vmatprep.subr.mxu0 0.0
        %1188 = vmatpush1.msra.mxu0 %v1168
        %1189 = vmatprep.subr.mxu0 0.0
        %1190 = vmatpush1.msra.mxu0 %v1169
        %1191 = vmatprep.subr.mxu0 0.0
        %1192 = vmatpush1.msra.mxu0 %v1170
        %1193 = vmatprep.subr.mxu0 0.0
        %1194 = vmatpush1.msra.mxu0 %v1171
        %1195 = vmatprep.subr.mxu0 0.0
        %1196 = vmatpush1.msra.mxu0 %v1172
        %1197 = vmatprep.subr.mxu0 0.0
        %1198 = vmatpush1.msra.mxu0 %v1173
        %1199 = vmatprep.subr.mxu0 0.0
        %1200 = vmatpush1.msra.mxu0 %v1174
        %1201 = vmatprep.subr.mxu0 0.0
        %1202 = vmatpush1.msra.mxu0 %v1175
        %1203 = vmatprep.subr.mxu0 0.0
        %1204 = vmatpush1.msra.mxu0 %v1176
        %1205 = vmatprep.subr.mxu0 0.0
        %1206 = vmatpush1.msra.mxu0 %v1177
        %1207 = vmatprep.subr.mxu0 0.0
        %1208 = vmatpush1.msra.mxu0 %v1178
        %1209 = vmatprep.subr.mxu0 0.0
        %1210 = vmatpush1.msra.mxu0 %v1179
        %1211 = vmatprep.subr.mxu0 0.0
        %1212 = vmatpush1.msra.mxu0 %v1180
        %1213 = vmatprep.subr.mxu0 0.0
        %1214 = vmatpush1.msra.mxu0 0.0
        %1215 = vmatprep.subr.mxu0 0.0
        %1216 = vmatpush1.msra.mxu0 0.0
        %1217 = vmatprep.subr.mxu0 0.0
        %1218 = vmatpush1.msra.mxu0 0.0
        %1219 = vmatprep.subr.mxu0 0.0
        %1220 = vmatpush1.msra.mxu0 0.0
        %1221 = vmatprep.subr.mxu0 0.0
        %1222 = vmatpush1.msra.mxu0 0.0
        %1223 = vmatprep.subr.mxu0 0.0
        %1224 = vmatpush1.msra.mxu0 0.0
        %1225 = vmatprep.subr.mxu0 0.0
        %1226 = vmatpush1.msra.mxu0 0.0
        %1227 = vmatprep.subr.mxu0 0.0
        %1228 = vmatpush1.msra.mxu0 0.0
        %1229 = vmatprep.subr.mxu0 0.0
        %1230 = vmatpush1.msra.mxu0 0.0
        %1231 = vmatprep.subr.mxu0 0.0
        %1232 = vmatpush1.msra.mxu0 0.0
        %1233 = vmatprep.subr.mxu0 0.0
        %1234 = vmatpush1.msra.mxu0 0.0
        %1235 = vmatprep.subr.mxu0 0.0
        %1236 = vmatpush1.msra.mxu0 0.0
        %1237 = vmatprep.subr.mxu0 0.0
        %1238 = vmatpush1.msra.mxu0 0.0
        %1239 = vmatprep.subr.mxu0 0.0
        %1240 = vmatpush1.msra.mxu0 0.0
        %1241 = vmatprep.subr.mxu0 0.0
        %1242 = vmatpush1.msra.mxu0 0.0
        %1243 = vmatprep.subr.mxu0 0.0
        %1244 = vmatpush1.msra.mxu0 0.0
        %1245 = vmatprep.mubr.f32.mxu0 0.0
        %1246 = vmatmul.mubr.f32.gmra.mrb[0].mxu0 %v545
        %v1247 = vpop.f32.mrb[0].mxu0
        %v1248 = vadd.f32 0.0, %v1247
        %v1249 = vpop.f32.mrb[0].mxu0
        %1250 = vmatprep.mubr.f32.mxu0 0.0
        %1251 = vmatmul.mubr.f32.gmra.mrb[0].mxu0 %v550
        %v1252 = vpop.f32.mrb[0].mxu0
        %v1253 = vadd.f32 0.0, %v1252
        %v1254 = vpop.f32.mrb[0].mxu0
        %1255 = vmatprep.mubr.f32.mxu0 0.0
        %1256 = vmatmul.mubr.f32.gmra.mrb[0].mxu0 %v555
        %v1257 = vpop.f32.mrb[0].mxu0
        %v1258 = vadd.f32 0.0, %v1257
        %v1259 = vpop.f32.mrb[0].mxu0
        %1260 = vmatprep.mubr.f32.mxu0 0.0
        %1261 = vmatmul.mubr.f32.gmra.mrb[0].mxu0 %v560
        %v1262 = vpop.f32.mrb[0].mxu0
        %v1263 = vadd.f32 0.0, %v1262
        %v1264 = vpop.f32.mrb[0].mxu0
        %1265 = vmatprep.mubr.f32.mxu0 0.0
        %1266 = vmatmul.mubr.f32.gmra.mrb[0].mxu0 %v565
        %v1267 = vpop.f32.mrb[0].mxu0
        %v1268 = vadd.f32 0.0, %v1267
        %v1269 = vpop.f32.mrb[0].mxu0
        %1270 = vmatprep.mubr.f32.mxu0 0.0
        %1271 = vmatmul.mubr.f32.gmra.mrb[0].mxu0 %v570
        %v1272 = vpop.f32.mrb[0].mxu0
        %v1273 = vadd.f32 0.0, %v1272
        %v1274 = vpop.f32.mrb[0].mxu0
        %1275 = vmatprep.mubr.f32.mxu0 0.0
        %1276 = vmatmul.mubr.f32.gmra.mrb[0].mxu0 %v575
        %v1277 = vpop.f32.mrb[0].mxu0
        %v1278 = vadd.f32 0.0, %v1277
        %v1279 = vpop.f32.mrb[0].mxu0
        %1280 = vmatprep.mubr.f32.mxu0 0.0
        %1281 = vmatmul.mubr.f32.gmra.mrb[0].mxu0 %v580
        %v1282 = vpop.f32.mrb[0].mxu0
        %v1283 = vadd.f32 0.0, %v1282
        %v1284 = vpop.f32.mrb[0].mxu0
        %1285 = vmatprep.mubr.f32.mxu0 0.0
        %1286 = vmatmul.mubr.f32.gmra.mrb[0].mxu0 %v585
        %v1287 = vpop.f32.mrb[0].mxu0
        %v1288 = vadd.f32 0.0, %v1287
        %v1289 = vpop.f32.mrb[0].mxu0
        %1290 = vmatprep.mubr.f32.mxu0 0.0
        %1291 = vmatmul.mubr.f32.gmra.mrb[0].mxu0 %v590
        %v1292 = vpop.f32.mrb[0].mxu0
        %v1293 = vadd.f32 0.0, %v1292
        %v1294 = vpop.f32.mrb[0].mxu0
        %1295 = vmatprep.mubr.f32.mxu0 0.0
        %1296 = vmatmul.mubr.f32.gmra.mrb[0].mxu0 %v595
        %v1297 = vpop.f32.mrb[0].mxu0
        %v1298 = vadd.f32 0.0, %v1297
        %v1299 = vpop.f32.mrb[0].mxu0
        %1300 = vmatprep.mubr.f32.mxu0 0.0
        %1301 = vmatmul.mubr.f32.gmra.mrb[0].mxu0 %v600
        %v1302 = vpop.f32.mrb[0].mxu0
        %v1303 = vadd.f32 0.0, %v1302
        %v1304 = vpop.f32.mrb[0].mxu0
        %1305 = vmatprep.mubr.f32.mxu0 0.0
        %1306 = vmatmul.mubr.f32.gmra.mrb[0].mxu0 %v605
        %v1307 = vpop.f32.mrb[0].mxu0
        %v1308 = vadd.f32 0.0, %v1307
        %v1309 = vpop.f32.mrb[0].mxu0
        %1310 = vmatprep.mubr.f32.mxu0 0.0
        %1311 = vmatmul.mubr.f32.gmra.mrb[0].mxu0 %v610
        %v1312 = vpop.f32.mrb[0].mxu0
        %v1313 = vadd.f32 0.0, %v1312
        %v1314 = vpop.f32.mrb[0].mxu0
        %1315 = vmatprep.mubr.f32.mxu0 0.0
        %1316 = vmatmul.mubr.f32.gmra.mrb[0].mxu0 %v615
        %v1317 = vpop.f32.mrb[0].mxu0
        %v1318 = vadd.f32 0.0, %v1317
        %v1319 = vpop.f32.mrb[0].mxu0
        %1320 = vmatprep.mubr.f32.mxu0 0.0
        %1321 = vmatmul.mubr.f32.gmra.mrb[0].mxu0 %v620
        %v1322 = vpop.f32.mrb[0].mxu0
        %v1323 = vadd.f32 0.0, %v1322
        %v1324 = vpop.f32.mrb[0].mxu0
        %1325 = vdwg.mxu0
        %v1326 = vadd.f32 %v1149, %v1248
        %v1327 = vadd.f32 %v1150, %v1253
        %v1328 = vadd.f32 %v1151, %v1258
        %v1329 = vadd.f32 %v1152, %v1263
        %v1330 = vadd.f32 %v1153, %v1268
        %v1331 = vadd.f32 %v1154, %v1273
        %v1332 = vadd.f32 %v1155, %v1278
        %v1333 = vadd.f32 %v1156, %v1283
        %v1334 = vadd.f32 %v1157, %v1288
        %v1335 = vadd.f32 %v1158, %v1293
        %v1336 = vadd.f32 %v1159, %v1298
        %v1337 = vadd.f32 %v1160, %v1303
        %v1338 = vadd.f32 %v1161, %v1308
        %v1339 = vadd.f32 %v1162, %v1313
        %v1340 = vadd.f32 %v1163, %v1318
        %v1341 = vadd.f32 %v1164, %v1323
        %v1342 = vrot.slane %v545, 1
        %v1343 = vrot.slane %v550, 1
        %v1344 = vrot.slane %v555, 1
        %v1345 = vrot.slane %v560, 1
        %v1346 = vrot.slane %v565, 1
        %v1347 = vrot.slane %v570, 1
        %v1348 = vrot.slane %v575, 1
        %v1349 = vrot.slane %v580, 1
        %v1350 = vrot.slane %v585, 1
        %v1351 = vrot.slane %v590, 1
        %v1352 = vrot.slane %v595, 1
        %v1353 = vrot.slane %v600, 1
        %v1354 = vrot.slane %v605, 1
        %v1355 = vrot.slane %v610, 1
        %v1356 = vrot.slane %v615, 1
        %v1357 = vrot.slane %v620, 1
        %vm1358 = vcmp.lt.s32.totalorder %v644, 7
        %v1359 = vsel %vm1358, %v1356, %v1357
        %v1360 = vsel %vm1358, %v1355, %v1356
        %v1361 = vsel %vm1358, %v1354, %v1355
        %v1362 = vsel %vm1358, %v1353, %v1354
        %v1363 = vsel %vm1358, %v1352, %v1353
        %v1364 = vsel %vm1358, %v1351, %v1352
        %v1365 = vsel %vm1358, %v1350, %v1351
        %v1366 = vsel %vm1358, %v1349, %v1350
        %v1367 = vsel %vm1358, %v1348, %v1349
        %v1368 = vsel %vm1358, %v1347, %v1348
        %v1369 = vsel %vm1358, %v1346, %v1347
        %v1370 = vsel %vm1358, %v1345, %v1346
        %v1371 = vsel %vm1358, %v1344, %v1345
        %v1372 = vsel %vm1358, %v1343, %v1344
        %v1373 = vsel %vm1358, %v1342, %v1343
        %v1374 = vsel %vm1358, %v1357, %v1342
        %v1375 = vsel %vm868, 1, 0
        %v1376 = vsel %vm869, 1, 0
        %v1377 = vsel %vm870, 1, 0
        %v1378 = vsel %vm871, 1, 0
        %v1379 = vsel %vm872, 1, 0
        %v1380 = vsel %vm873, 1, 0
        %v1381 = vsel %vm874, 1, 0
        %v1382 = vsel %vm875, 1, 0
        %v1383 = vsel %vm876, 1, 0
        %v1384 = vsel %vm877, 1, 0
        %v1385 = vsel %vm878, 1, 0
        %v1386 = vsel %vm879, 1, 0
        %v1387 = vsel %vm880, 1, 0
        %v1388 = vsel %vm881, 1, 0
        %v1389 = vsel %vm882, 1, 0
        %v1390 = vsel %vm883, 1, 0
        %vm1391 = vcmp.eq.s32.totalorder %v1375, 1
        %vm1392 = vcmp.eq.s32.totalorder %v1376, 1
        %vm1393 = vcmp.eq.s32.totalorder %v1377, 1
        %vm1394 = vcmp.eq.s32.totalorder %v1378, 1
        %vm1395 = vcmp.eq.s32.totalorder %v1379, 1
        %vm1396 = vcmp.eq.s32.totalorder %v1380, 1
        %vm1397 = vcmp.eq.s32.totalorder %v1381, 1
        %vm1398 = vcmp.eq.s32.totalorder %v1382, 1
        %vm1399 = vcmp.eq.s32.totalorder %v1383, 1
        %vm1400 = vcmp.eq.s32.totalorder %v1384, 1
        %vm1401 = vcmp.eq.s32.totalorder %v1385, 1
        %vm1402 = vcmp.eq.s32.totalorder %v1386, 1
        %vm1403 = vcmp.eq.s32.totalorder %v1387, 1
        %vm1404 = vcmp.eq.s32.totalorder %v1388, 1
        %vm1405 = vcmp.eq.s32.totalorder %v1389, 1
        %vm1406 = vcmp.eq.s32.totalorder %v1390, 1
        %v1407 = vsel %vm1391, %v476, %v1373
        %v1408 = vsel %vm1392, %v476, %v1372
        %v1409 = vsel %vm1393, %v476, %v1371
        %v1410 = vsel %vm1394, %v476, %v1370
        %v1411 = vsel %vm1395, %v476, %v1369
        %v1412 = vsel %vm1396, %v476, %v1368
        %v1413 = vsel %vm1397, %v476, %v1367
        %v1414 = vsel %vm1398, %v476, %v1366
        %v1415 = vsel %vm1399, %v476, %v1365
        %v1416 = vsel %vm1400, %v476, %v1364
        %v1417 = vsel %vm1401, %v476, %v1363
        %v1418 = vsel %vm1402, %v476, %v1362
        %v1419 = vsel %vm1403, %v476, %v1361
        %v1420 = vsel %vm1404, %v476, %v1360
        %v1421 = vsel %vm1405, %v476, %v1359
        %v1422 = vsel %vm1406, %v476, %v1374
        %v1423 = vld [vmem:[#allocation8 + $0x100] sm:$0xff]
        %v1424 = vld [vmem:[#allocation8 + $0x108] sm:$0xff]
        %v1425 = vld [vmem:[#allocation8 + $0x110] sm:$0xff]
        %v1426 = vld [vmem:[#allocation8 + $0x118] sm:$0xff]
        %v1427 = vld [vmem:[#allocation8 + $0x120] sm:$0xff]
        %v1428 = vld [vmem:[#allocation8 + $0x128] sm:$0xff]
        %v1429 = vld [vmem:[#allocation8 + $0x130] sm:$0xff]
        %v1430 = vld [vmem:[#allocation8 + $0x138] sm:$0xff]
        %v1431 = vld [vmem:[#allocation8 + $0x140] sm:$0xff]
        %v1432 = vld [vmem:[#allocation8 + $0x148] sm:$0xff]
        %v1433 = vld [vmem:[#allocation8 + $0x150] sm:$0xff]
        %v1434 = vld [vmem:[#allocation8 + $0x158] sm:$0xff]
        %v1435 = vld [vmem:[#allocation8 + $0x160] sm:$0xff]
        %v1436 = vld [vmem:[#allocation8 + $0x168] sm:$0xff]
        %v1437 = vld [vmem:[#allocation8 + $0x170] sm:$0xff]
        %v1438 = vld [vmem:[#allocation8 + $0x178] sm:$0xff]
        %1439 = vmatprep.subr.mxu0 0.0
        %1440 = vmatpush1.msra.mxu0 %v1423
        %1441 = vmatprep.subr.mxu0 0.0
        %1442 = vmatpush1.msra.mxu0 %v1424
        %1443 = vmatprep.subr.mxu0 0.0
        %1444 = vmatpush1.msra.mxu0 %v1425
        %1445 = vmatprep.subr.mxu0 0.0
        %1446 = vmatpush1.msra.mxu0 %v1426
        %1447 = vmatprep.subr.mxu0 0.0
        %1448 = vmatpush1.msra.mxu0 %v1427
        %1449 = vmatprep.subr.mxu0 0.0
        %1450 = vmatpush1.msra.mxu0 %v1428
        %1451 = vmatprep.subr.mxu0 0.0
        %1452 = vmatpush1.msra.mxu0 %v1429
        %1453 = vmatprep.subr.mxu0 0.0
        %1454 = vmatpush1.msra.mxu0 %v1430
        %1455 = vmatprep.subr.mxu0 0.0
        %1456 = vmatpush1.msra.mxu0 %v1431
        %1457 = vmatprep.subr.mxu0 0.0
        %1458 = vmatpush1.msra.mxu0 %v1432
        %1459 = vmatprep.subr.mxu0 0.0
        %1460 = vmatpush1.msra.mxu0 %v1433
        %1461 = vmatprep.subr.mxu0 0.0
        %1462 = vmatpush1.msra.mxu0 %v1434
        %1463 = vmatprep.subr.mxu0 0.0
        %1464 = vmatpush1.msra.mxu0 %v1435
        %1465 = vmatprep.subr.mxu0 0.0
        %1466 = vmatpush1.msra.mxu0 %v1436
        %1467 = vmatprep.subr.mxu0 0.0
        %1468 = vmatpush1.msra.mxu0 %v1437
        %1469 = vmatprep.subr.mxu0 0.0
        %1470 = vmatpush1.msra.mxu0 %v1438
        %1471 = vmatprep.subr.mxu0 0.0
        %1472 = vmatpush1.msra.mxu0 0.0
        %1473 = vmatprep.subr.mxu0 0.0
        %1474 = vmatpush1.msra.mxu0 0.0
        %1475 = vmatprep.subr.mxu0 0.0
        %1476 = vmatpush1.msra.mxu0 0.0
        %1477 = vmatprep.subr.mxu0 0.0
        %1478 = vmatpush1.msra.mxu0 0.0
        %1479 = vmatprep.subr.mxu0 0.0
        %1480 = vmatpush1.msra.mxu0 0.0
        %1481 = vmatprep.subr.mxu0 0.0
        %1482 = vmatpush1.msra.mxu0 0.0
        %1483 = vmatprep.subr.mxu0 0.0
        %1484 = vmatpush1.msra.mxu0 0.0
        %1485 = vmatprep.subr.mxu0 0.0
        %1486 = vmatpush1.msra.mxu0 0.0
        %1487 = vmatprep.subr.mxu0 0.0
        %1488 = vmatpush1.msra.mxu0 0.0
        %1489 = vmatprep.subr.mxu0 0.0
        %1490 = vmatpush1.msra.mxu0 0.0
        %1491 = vmatprep.subr.mxu0 0.0
        %1492 = vmatpush1.msra.mxu0 0.0
        %1493 = vmatprep.subr.mxu0 0.0
        %1494 = vmatpush1.msra.mxu0 0.0
        %1495 = vmatprep.subr.mxu0 0.0
        %1496 = vmatpush1.msra.mxu0 0.0
        %1497 = vmatprep.subr.mxu0 0.0
        %1498 = vmatpush1.msra.mxu0 0.0
        %1499 = vmatprep.subr.mxu0 0.0
        %1500 = vmatpush1.msra.mxu0 0.0
        %1501 = vmatprep.subr.mxu0 0.0
        %1502 = vmatpush1.msra.mxu0 0.0
        %1503 = vmatprep.mubr.f32.mxu0 0.0
        %1504 = vmatmul.mubr.f32.gmra.mrb[0].mxu0 %v1407
        %v1505 = vpop.f32.mrb[0].mxu0
        %v1506 = vadd.f32 0.0, %v1505
        %v1507 = vpop.f32.mrb[0].mxu0
        %1508 = vmatprep.mubr.f32.mxu0 0.0
        %1509 = vmatmul.mubr.f32.gmra.mrb[0].mxu0 %v1408
        %v1510 = vpop.f32.mrb[0].mxu0
        %v1511 = vadd.f32 0.0, %v1510
        %v1512 = vpop.f32.mrb[0].mxu0
        %1513 = vmatprep.mubr.f32.mxu0 0.0
        %1514 = vmatmul.mubr.f32.gmra.mrb[0].mxu0 %v1409
        %v1515 = vpop.f32.mrb[0].mxu0
        %v1516 = vadd.f32 0.0, %v1515
        %v1517 = vpop.f32.mrb[0].mxu0
        %1518 = vmatprep.mubr.f32.mxu0 0.0
        %1519 = vmatmul.mubr.f32.gmra.mrb[0].mxu0 %v1410
        %v1520 = vpop.f32.mrb[0].mxu0
        %v1521 = vadd.f32 0.0, %v1520
        %v1522 = vpop.f32.mrb[0].mxu0
        %1523 = vmatprep.mubr.f32.mxu0 0.0
        %1524 = vmatmul.mubr.f32.gmra.mrb[0].mxu0 %v1411
        %v1525 = vpop.f32.mrb[0].mxu0
        %v1526 = vadd.f32 0.0, %v1525
        %v1527 = vpop.f32.mrb[0].mxu0
        %1528 = vmatprep.mubr.f32.mxu0 0.0
        %1529 = vmatmul.mubr.f32.gmra.mrb[0].mxu0 %v1412
        %v1530 = vpop.f32.mrb[0].mxu0
        %v1531 = vadd.f32 0.0, %v1530
        %v1532 = vpop.f32.mrb[0].mxu0
        %1533 = vmatprep.mubr.f32.mxu0 0.0
        %1534 = vmatmul.mubr.f32.gmra.mrb[0].mxu0 %v1413
        %v1535 = vpop.f32.mrb[0].mxu0
        %v1536 = vadd.f32 0.0, %v1535
        %v1537 = vpop.f32.mrb[0].mxu0
        %1538 = vmatprep.mubr.f32.mxu0 0.0
        %1539 = vmatmul.mubr.f32.gmra.mrb[0].mxu0 %v1414
        %v1540 = vpop.f32.mrb[0].mxu0
        %v1541 = vadd.f32 0.0, %v1540
        %v1542 = vpop.f32.mrb[0].mxu0
        %1543 = vmatprep.mubr.f32.mxu0 0.0
        %1544 = vmatmul.mubr.f32.gmra.mrb[0].mxu0 %v1415
        %v1545 = vpop.f32.mrb[0].mxu0
        %v1546 = vadd.f32 0.0, %v1545
        %v1547 = vpop.f32.mrb[0].mxu0
        %1548 = vmatprep.mubr.f32.mxu0 0.0
        %1549 = vmatmul.mubr.f32.gmra.mrb[0].mxu0 %v1416
        %v1550 = vpop.f32.mrb[0].mxu0
        %v1551 = vadd.f32 0.0, %v1550
        %v1552 = vpop.f32.mrb[0].mxu0
        %1553 = vmatprep.mubr.f32.mxu0 0.0
        %1554 = vmatmul.mubr.f32.gmra.mrb[0].mxu0 %v1417
        %v1555 = vpop.f32.mrb[0].mxu0
        %v1556 = vadd.f32 0.0, %v1555
        %v1557 = vpop.f32.mrb[0].mxu0
        %1558 = vmatprep.mubr.f32.mxu0 0.0
        %1559 = vmatmul.mubr.f32.gmra.mrb[0].mxu0 %v1418
        %v1560 = vpop.f32.mrb[0].mxu0
        %v1561 = vadd.f32 0.0, %v1560
        %v1562 = vpop.f32.mrb[0].mxu0
        %1563 = vmatprep.mubr.f32.mxu0 0.0
        %1564 = vmatmul.mubr.f32.gmra.mrb[0].mxu0 %v1419
        %v1565 = vpop.f32.mrb[0].mxu0
        %v1566 = vadd.f32 0.0, %v1565
        %v1567 = vpop.f32.mrb[0].mxu0
        %1568 = vmatprep.mubr.f32.mxu0 0.0
        %1569 = vmatmul.mubr.f32.gmra.mrb[0].mxu0 %v1420
        %v1570 = vpop.f32.mrb[0].mxu0
        %v1571 = vadd.f32 0.0, %v1570
        %v1572 = vpop.f32.mrb[0].mxu0
        %1573 = vmatprep.mubr.f32.mxu0 0.0
        %1574 = vmatmul.mubr.f32.gmra.mrb[0].mxu0 %v1421
        %v1575 = vpop.f32.mrb[0].mxu0
        %v1576 = vadd.f32 0.0, %v1575
        %v1577 = vpop.f32.mrb[0].mxu0
        %1578 = vmatprep.mubr.f32.mxu0 0.0
        %1579 = vmatmul.mubr.f32.gmra.mrb[0].mxu0 %v1422
        %v1580 = vpop.f32.mrb[0].mxu0
        %v1581 = vadd.f32 0.0, %v1580
        %v1582 = vpop.f32.mrb[0].mxu0
        %1583 = vdwg.mxu0
        %v1584 = vadd.f32 %v1326, %v1506
        %v1585 = vadd.f32 %v1327, %v1511
        %v1586 = vadd.f32 %v1328, %v1516
        %v1587 = vadd.f32 %v1329, %v1521
        %v1588 = vadd.f32 %v1330, %v1526
        %v1589 = vadd.f32 %v1331, %v1531
        %v1590 = vadd.f32 %v1332, %v1536
        %v1591 = vadd.f32 %v1333, %v1541
        %v1592 = vadd.f32 %v1334, %v1546
        %v1593 = vadd.f32 %v1335, %v1551
        %v1594 = vadd.f32 %v1336, %v1556
        %v1595 = vadd.f32 %v1337, %v1561
        %v1596 = vadd.f32 %v1338, %v1566
        %v1597 = vadd.f32 %v1339, %v1571
        %v1598 = vadd.f32 %v1340, %v1576
        %v1599 = vadd.f32 %v1341, %v1581
        %v1600 = vrot.slane %v625, 7
        %v1601 = vrot.slane %v630, 7
        %v1602 = vsel %vm923, %v1600, %v1601
        %v1603 = vsel %vm923, %v922, %v1600
        %v1604 = vsel %vm923, %v1601, %v909
        %v1605 = vsel %vm956, %v476, %v1604
        %v1606 = vsel %vm957, %v476, %v936
        %v1607 = vsel %vm958, %v476, %v935
        %v1608 = vsel %vm959, %v476, %v934
        %v1609 = vsel %vm960, %v476, %v933
        %v1610 = vsel %vm961, %v476, %v932
        %v1611 = vsel %vm962, %v476, %v931
        %v1612 = vsel %vm963, %v476, %v930
        %v1613 = vsel %vm964, %v476, %v929
        %v1614 = vsel %vm965, %v476, %v928
        %v1615 = vsel %vm966, %v476, %v927
        %v1616 = vsel %vm967, %v476, %v926
        %v1617 = vsel %vm968, %v476, %v925
        %v1618 = vsel %vm969, %v476, %v924
        %v1619 = vsel %vm970, %v476, %v1603
        %v1620 = vsel %vm971, %v476, %v1602
        %v1621 = vld [vmem:[#allocation8 + $0x180] sm:$0xff]
        %v1622 = vld [vmem:[#allocation8 + $0x188] sm:$0xff]
        %v1623 = vld [vmem:[#allocation8 + $0x190] sm:$0xff]
        %v1624 = vld [vmem:[#allocation8 + $0x198] sm:$0xff]
        %v1625 = vld [vmem:[#allocation8 + $0x1a0] sm:$0xff]
        %v1626 = vld [vmem:[#allocation8 + $0x1a8] sm:$0xff]
        %v1627 = vld [vmem:[#allocation8 + $0x1b0] sm:$0xff]
        %v1628 = vld [vmem:[#allocation8 + $0x1b8] sm:$0xff]
        %v1629 = vld [vmem:[#allocation8 + $0x1c0] sm:$0xff]
        %v1630 = vld [vmem:[#allocation8 + $0x1c8] sm:$0xff]
        %v1631 = vld [vmem:[#allocation8 + $0x1d0] sm:$0xff]
        %v1632 = vld [vmem:[#allocation8 + $0x1d8] sm:$0xff]
        %v1633 = vld [vmem:[#allocation8 + $0x1e0] sm:$0xff]
        %v1634 = vld [vmem:[#allocation8 + $0x1e8] sm:$0xff]
        %v1635 = vld [vmem:[#allocation8 + $0x1f0] sm:$0xff]
        %v1636 = vld [vmem:[#allocation8 + $0x1f8] sm:$0xff]
        %1637 = vmatprep.subr.mxu0 0.0
        %1638 = vmatpush1.msra.mxu0 %v1621
        %1639 = vmatprep.subr.mxu0 0.0
        %1640 = vmatpush1.msra.mxu0 %v1622
        %1641 = vmatprep.subr.mxu0 0.0
        %1642 = vmatpush1.msra.mxu0 %v1623
        %1643 = vmatprep.subr.mxu0 0.0
        %1644 = vmatpush1.msra.mxu0 %v1624
        %1645 = vmatprep.subr.mxu0 0.0
        %1646 = vmatpush1.msra.mxu0 %v1625
        %1647 = vmatprep.subr.mxu0 0.0
        %1648 = vmatpush1.msra.mxu0 %v1626
        %1649 = vmatprep.subr.mxu0 0.0
        %1650 = vmatpush1.msra.mxu0 %v1627
        %1651 = vmatprep.subr.mxu0 0.0
        %1652 = vmatpush1.msra.mxu0 %v1628
        %1653 = vmatprep.subr.mxu0 0.0
        %1654 = vmatpush1.msra.mxu0 %v1629
        %1655 = vmatprep.subr.mxu0 0.0
        %1656 = vmatpush1.msra.mxu0 %v1630
        %1657 = vmatprep.subr.mxu0 0.0
        %1658 = vmatpush1.msra.mxu0 %v1631
        %1659 = vmatprep.subr.mxu0 0.0
        %1660 = vmatpush1.msra.mxu0 %v1632
        %1661 = vmatprep.subr.mxu0 0.0
        %1662 = vmatpush1.msra.mxu0 %v1633
        %1663 = vmatprep.subr.mxu0 0.0
        %1664 = vmatpush1.msra.mxu0 %v1634
        %1665 = vmatprep.subr.mxu0 0.0
        %1666 = vmatpush1.msra.mxu0 %v1635
        %1667 = vmatprep.subr.mxu0 0.0
        %1668 = vmatpush1.msra.mxu0 %v1636
        %1669 = vmatprep.subr.mxu0 0.0
        %1670 = vmatpush1.msra.mxu0 0.0
        %1671 = vmatprep.subr.mxu0 0.0
        %1672 = vmatpush1.msra.mxu0 0.0
        %1673 = vmatprep.subr.mxu0 0.0
        %1674 = vmatpush1.msra.mxu0 0.0
        %1675 = vmatprep.subr.mxu0 0.0
        %1676 = vmatpush1.msra.mxu0 0.0
        %1677 = vmatprep.subr.mxu0 0.0
        %1678 = vmatpush1.msra.mxu0 0.0
        %1679 = vmatprep.subr.mxu0 0.0
        %1680 = vmatpush1.msra.mxu0 0.0
        %1681 = vmatprep.subr.mxu0 0.0
        %1682 = vmatpush1.msra.mxu0 0.0
        %1683 = vmatprep.subr.mxu0 0.0
        %1684 = vmatpush1.msra.mxu0 0.0
        %1685 = vmatprep.subr.mxu0 0.0
        %1686 = vmatpush1.msra.mxu0 0.0
        %1687 = vmatprep.subr.mxu0 0.0
        %1688 = vmatpush1.msra.mxu0 0.0
        %1689 = vmatprep.subr.mxu0 0.0
        %1690 = vmatpush1.msra.mxu0 0.0
        %1691 = vmatprep.subr.mxu0 0.0
        %1692 = vmatpush1.msra.mxu0 0.0
        %1693 = vmatprep.subr.mxu0 0.0
        %1694 = vmatpush1.msra.mxu0 0.0
        %1695 = vmatprep.subr.mxu0 0.0
        %1696 = vmatpush1.msra.mxu0 0.0
        %1697 = vmatprep.subr.mxu0 0.0
        %1698 = vmatpush1.msra.mxu0 0.0
        %1699 = vmatprep.subr.mxu0 0.0
        %1700 = vmatpush1.msra.mxu0 0.0
        %1701 = vmatprep.mubr.f32.mxu0 0.0
        %1702 = vmatmul.mubr.f32.gmra.mrb[0].mxu0 %v1605
        %v1703 = vpop.f32.mrb[0].mxu0
        %v1704 = vadd.f32 0.0, %v1703
        %v1705 = vpop.f32.mrb[0].mxu0
        %1706 = vmatprep.mubr.f32.mxu0 0.0
        %1707 = vmatmul.mubr.f32.gmra.mrb[0].mxu0 %v1606
        %v1708 = vpop.f32.mrb[0].mxu0
        %v1709 = vadd.f32 0.0, %v1708
        %v1710 = vpop.f32.mrb[0].mxu0
        %1711 = vmatprep.mubr.f32.mxu0 0.0
        %1712 = vmatmul.mubr.f32.gmra.mrb[0].mxu0 %v1607
        %v1713 = vpop.f32.mrb[0].mxu0
        %v1714 = vadd.f32 0.0, %v1713
        %v1715 = vpop.f32.mrb[0].mxu0
        %1716 = vmatprep.mubr.f32.mxu0 0.0
        %1717 = vmatmul.mubr.f32.gmra.mrb[0].mxu0 %v1608
        %v1718 = vpop.f32.mrb[0].mxu0
        %v1719 = vadd.f32 0.0, %v1718
        %v1720 = vpop.f32.mrb[0].mxu0
        %1721 = vmatprep.mubr.f32.mxu0 0.0
        %1722 = vmatmul.mubr.f32.gmra.mrb[0].mxu0 %v1609
        %v1723 = vpop.f32.mrb[0].mxu0
        %v1724 = vadd.f32 0.0, %v1723
        %v1725 = vpop.f32.mrb[0].mxu0
        %1726 = vmatprep.mubr.f32.mxu0 0.0
        %1727 = vmatmul.mubr.f32.gmra.mrb[0].mxu0 %v1610
        %v1728 = vpop.f32.mrb[0].mxu0
        %v1729 = vadd.f32 0.0, %v1728
        %v1730 = vpop.f32.mrb[0].mxu0
        %1731 = vmatprep.mubr.f32.mxu0 0.0
        %1732 = vmatmul.mubr.f32.gmra.mrb[0].mxu0 %v1611
        %v1733 = vpop.f32.mrb[0].mxu0
        %v1734 = vadd.f32 0.0, %v1733
        %v1735 = vpop.f32.mrb[0].mxu0
        %1736 = vmatprep.mubr.f32.mxu0 0.0
        %1737 = vmatmul.mubr.f32.gmra.mrb[0].mxu0 %v1612
        %v1738 = vpop.f32.mrb[0].mxu0
        %v1739 = vadd.f32 0.0, %v1738
        %v1740 = vpop.f32.mrb[0].mxu0
        %1741 = vmatprep.mubr.f32.mxu0 0.0
        %1742 = vmatmul.mubr.f32.gmra.mrb[0].mxu0 %v1613
        %v1743 = vpop.f32.mrb[0].mxu0
        %v1744 = vadd.f32 0.0, %v1743
        %v1745 = vpop.f32.mrb[0].mxu0
        %1746 = vmatprep.mubr.f32.mxu0 0.0
        %1747 = vmatmul.mubr.f32.gmra.mrb[0].mxu0 %v1614
        %v1748 = vpop.f32.mrb[0].mxu0
        %v1749 = vadd.f32 0.0, %v1748
        %v1750 = vpop.f32.mrb[0].mxu0
        %1751 = vmatprep.mubr.f32.mxu0 0.0
        %1752 = vmatmul.mubr.f32.gmra.mrb[0].mxu0 %v1615
        %v1753 = vpop.f32.mrb[0].mxu0
        %v1754 = vadd.f32 0.0, %v1753
        %v1755 = vpop.f32.mrb[0].mxu0
        %1756 = vmatprep.mubr.f32.mxu0 0.0
        %1757 = vmatmul.mubr.f32.gmra.mrb[0].mxu0 %v1616
        %v1758 = vpop.f32.mrb[0].mxu0
        %v1759 = vadd.f32 0.0, %v1758
        %v1760 = vpop.f32.mrb[0].mxu0
        %1761 = vmatprep.mubr.f32.mxu0 0.0
        %1762 = vmatmul.mubr.f32.gmra.mrb[0].mxu0 %v1617
        %v1763 = vpop.f32.mrb[0].mxu0
        %v1764 = vadd.f32 0.0, %v1763
        %v1765 = vpop.f32.mrb[0].mxu0
        %1766 = vmatprep.mubr.f32.mxu0 0.0
        %1767 = vmatmul.mubr.f32.gmra.mrb[0].mxu0 %v1618
        %v1768 = vpop.f32.mrb[0].mxu0
        %v1769 = vadd.f32 0.0, %v1768
        %v1770 = vpop.f32.mrb[0].mxu0
        %1771 = vmatprep.mubr.f32.mxu0 0.0
        %1772 = vmatmul.mubr.f32.gmra.mrb[0].mxu0 %v1619
        %v1773 = vpop.f32.mrb[0].mxu0
        %v1774 = vadd.f32 0.0, %v1773
        %v1775 = vpop.f32.mrb[0].mxu0
        %1776 = vmatprep.mubr.f32.mxu0 0.0
        %1777 = vmatmul.mubr.f32.gmra.mrb[0].mxu0 %v1620
        %v1778 = vpop.f32.mrb[0].mxu0
        %v1779 = vadd.f32 0.0, %v1778
        %v1780 = vpop.f32.mrb[0].mxu0
        %1781 = vdwg.mxu0
        %v1782 = vadd.f32 %v1584, %v1704
        %v1783 = vadd.f32 %v1585, %v1709
        %v1784 = vadd.f32 %v1586, %v1714
        %v1785 = vadd.f32 %v1587, %v1719
        %v1786 = vadd.f32 %v1588, %v1724
        %v1787 = vadd.f32 %v1589, %v1729
        %v1788 = vadd.f32 %v1590, %v1734
        %v1789 = vadd.f32 %v1591, %v1739
        %v1790 = vadd.f32 %v1592, %v1744
        %v1791 = vadd.f32 %v1593, %v1749
        %v1792 = vadd.f32 %v1594, %v1754
        %v1793 = vadd.f32 %v1595, %v1759
        %v1794 = vadd.f32 %v1596, %v1764
        %v1795 = vadd.f32 %v1597, %v1769
        %v1796 = vadd.f32 %v1598, %v1774
        %v1797 = vadd.f32 %v1599, %v1779
        %v1798 = vld [vmem:[#allocation8 + $0x200] sm:$0xff]
        %v1799 = vld [vmem:[#allocation8 + $0x208] sm:$0xff]
        %v1800 = vld [vmem:[#allocation8 + $0x210] sm:$0xff]
        %v1801 = vld [vmem:[#allocation8 + $0x218] sm:$0xff]
        %v1802 = vld [vmem:[#allocation8 + $0x220] sm:$0xff]
        %v1803 = vld [vmem:[#allocation8 + $0x228] sm:$0xff]
        %v1804 = vld [vmem:[#allocation8 + $0x230] sm:$0xff]
        %v1805 = vld [vmem:[#allocation8 + $0x238] sm:$0xff]
        %v1806 = vld [vmem:[#allocation8 + $0x240] sm:$0xff]
        %v1807 = vld [vmem:[#allocation8 + $0x248] sm:$0xff]
        %v1808 = vld [vmem:[#allocation8 + $0x250] sm:$0xff]
        %v1809 = vld [vmem:[#allocation8 + $0x258] sm:$0xff]
        %v1810 = vld [vmem:[#allocation8 + $0x260] sm:$0xff]
        %v1811 = vld [vmem:[#allocation8 + $0x268] sm:$0xff]
        %v1812 = vld [vmem:[#allocation8 + $0x270] sm:$0xff]
        %v1813 = vld [vmem:[#allocation8 + $0x278] sm:$0xff]
        %1814 = vmatprep.subr.mxu0 0.0
        %1815 = vmatpush1.msra.mxu0 %v1798
        %1816 = vmatprep.subr.mxu0 0.0
        %1817 = vmatpush1.msra.mxu0 %v1799
        %1818 = vmatprep.subr.mxu0 0.0
        %1819 = vmatpush1.msra.mxu0 %v1800
        %1820 = vmatprep.subr.mxu0 0.0
        %1821 = vmatpush1.msra.mxu0 %v1801
        %1822 = vmatprep.subr.mxu0 0.0
        %1823 = vmatpush1.msra.mxu0 %v1802
        %1824 = vmatprep.subr.mxu0 0.0
        %1825 = vmatpush1.msra.mxu0 %v1803
        %1826 = vmatprep.subr.mxu0 0.0
        %1827 = vmatpush1.msra.mxu0 %v1804
        %1828 = vmatprep.subr.mxu0 0.0
        %1829 = vmatpush1.msra.mxu0 %v1805
        %1830 = vmatprep.subr.mxu0 0.0
        %1831 = vmatpush1.msra.mxu0 %v1806
        %1832 = vmatprep.subr.mxu0 0.0
        %1833 = vmatpush1.msra.mxu0 %v1807
        %1834 = vmatprep.subr.mxu0 0.0
        %1835 = vmatpush1.msra.mxu0 %v1808
        %1836 = vmatprep.subr.mxu0 0.0
        %1837 = vmatpush1.msra.mxu0 %v1809
        %1838 = vmatprep.subr.mxu0 0.0
        %1839 = vmatpush1.msra.mxu0 %v1810
        %1840 = vmatprep.subr.mxu0 0.0
        %1841 = vmatpush1.msra.mxu0 %v1811
        %1842 = vmatprep.subr.mxu0 0.0
        %1843 = vmatpush1.msra.mxu0 %v1812
        %1844 = vmatprep.subr.mxu0 0.0
        %1845 = vmatpush1.msra.mxu0 %v1813
        %1846 = vmatprep.subr.mxu0 0.0
        %1847 = vmatpush1.msra.mxu0 0.0
        %1848 = vmatprep.subr.mxu0 0.0
        %1849 = vmatpush1.msra.mxu0 0.0
        %1850 = vmatprep.subr.mxu0 0.0
        %1851 = vmatpush1.msra.mxu0 0.0
        %1852 = vmatprep.subr.mxu0 0.0
        %1853 = vmatpush1.msra.mxu0 0.0
        %1854 = vmatprep.subr.mxu0 0.0
        %1855 = vmatpush1.msra.mxu0 0.0
        %1856 = vmatprep.subr.mxu0 0.0
        %1857 = vmatpush1.msra.mxu0 0.0
        %1858 = vmatprep.subr.mxu0 0.0
        %1859 = vmatpush1.msra.mxu0 0.0
        %1860 = vmatprep.subr.mxu0 0.0
        %1861 = vmatpush1.msra.mxu0 0.0
        %1862 = vmatprep.subr.mxu0 0.0
        %1863 = vmatpush1.msra.mxu0 0.0
        %1864 = vmatprep.subr.mxu0 0.0
        %1865 = vmatpush1.msra.mxu0 0.0
        %1866 = vmatprep.subr.mxu0 0.0
        %1867 = vmatpush1.msra.mxu0 0.0
        %1868 = vmatprep.subr.mxu0 0.0
        %1869 = vmatpush1.msra.mxu0 0.0
        %1870 = vmatprep.subr.mxu0 0.0
        %1871 = vmatpush1.msra.mxu0 0.0
        %1872 = vmatprep.subr.mxu0 0.0
        %1873 = vmatpush1.msra.mxu0 0.0
        %1874 = vmatprep.subr.mxu0 0.0
        %1875 = vmatpush1.msra.mxu0 0.0
        %1876 = vmatprep.subr.mxu0 0.0
        %1877 = vmatpush1.msra.mxu0 0.0
        %1878 = vmatprep.mubr.f32.mxu0 0.0
        %1879 = vmatmul.mubr.f32.gmra.mrb[0].mxu0 %v555
        %v1880 = vpop.f32.mrb[0].mxu0
        %v1881 = vadd.f32 0.0, %v1880
        %v1882 = vpop.f32.mrb[0].mxu0
        %1883 = vmatprep.mubr.f32.mxu0 0.0
        %1884 = vmatmul.mubr.f32.gmra.mrb[0].mxu0 %v560
        %v1885 = vpop.f32.mrb[0].mxu0
        %v1886 = vadd.f32 0.0, %v1885
        %v1887 = vpop.f32.mrb[0].mxu0
        %1888 = vmatprep.mubr.f32.mxu0 0.0
        %1889 = vmatmul.mubr.f32.gmra.mrb[0].mxu0 %v565
        %v1890 = vpop.f32.mrb[0].mxu0
        %v1891 = vadd.f32 0.0, %v1890
        %v1892 = vpop.f32.mrb[0].mxu0
        %1893 = vmatprep.mubr.f32.mxu0 0.0
        %1894 = vmatmul.mubr.f32.gmra.mrb[0].mxu0 %v570
        %v1895 = vpop.f32.mrb[0].mxu0
        %v1896 = vadd.f32 0.0, %v1895
        %v1897 = vpop.f32.mrb[0].mxu0
        %1898 = vmatprep.mubr.f32.mxu0 0.0
        %1899 = vmatmul.mubr.f32.gmra.mrb[0].mxu0 %v575
        %v1900 = vpop.f32.mrb[0].mxu0
        %v1901 = vadd.f32 0.0, %v1900
        %v1902 = vpop.f32.mrb[0].mxu0
        %1903 = vmatprep.mubr.f32.mxu0 0.0
        %1904 = vmatmul.mubr.f32.gmra.mrb[0].mxu0 %v580
        %v1905 = vpop.f32.mrb[0].mxu0
        %v1906 = vadd.f32 0.0, %v1905
        %v1907 = vpop.f32.mrb[0].mxu0
        %1908 = vmatprep.mubr.f32.mxu0 0.0
        %1909 = vmatmul.mubr.f32.gmra.mrb[0].mxu0 %v585
        %v1910 = vpop.f32.mrb[0].mxu0
        %v1911 = vadd.f32 0.0, %v1910
        %v1912 = vpop.f32.mrb[0].mxu0
        %1913 = vmatprep.mubr.f32.mxu0 0.0
        %1914 = vmatmul.mubr.f32.gmra.mrb[0].mxu0 %v590
        %v1915 = vpop.f32.mrb[0].mxu0
        %v1916 = vadd.f32 0.0, %v1915
        %v1917 = vpop.f32.mrb[0].mxu0
        %1918 = vmatprep.mubr.f32.mxu0 0.0
        %1919 = vmatmul.mubr.f32.gmra.mrb[0].mxu0 %v595
        %v1920 = vpop.f32.mrb[0].mxu0
        %v1921 = vadd.f32 0.0, %v1920
        %v1922 = vpop.f32.mrb[0].mxu0
        %1923 = vmatprep.mubr.f32.mxu0 0.0
        %1924 = vmatmul.mubr.f32.gmra.mrb[0].mxu0 %v600
        %v1925 = vpop.f32.mrb[0].mxu0
        %v1926 = vadd.f32 0.0, %v1925
        %v1927 = vpop.f32.mrb[0].mxu0
        %1928 = vmatprep.mubr.f32.mxu0 0.0
        %1929 = vmatmul.mubr.f32.gmra.mrb[0].mxu0 %v605
        %v1930 = vpop.f32.mrb[0].mxu0
        %v1931 = vadd.f32 0.0, %v1930
        %v1932 = vpop.f32.mrb[0].mxu0
        %1933 = vmatprep.mubr.f32.mxu0 0.0
        %1934 = vmatmul.mubr.f32.gmra.mrb[0].mxu0 %v610
        %v1935 = vpop.f32.mrb[0].mxu0
        %v1936 = vadd.f32 0.0, %v1935
        %v1937 = vpop.f32.mrb[0].mxu0
        %1938 = vmatprep.mubr.f32.mxu0 0.0
        %1939 = vmatmul.mubr.f32.gmra.mrb[0].mxu0 %v615
        %v1940 = vpop.f32.mrb[0].mxu0
        %v1941 = vadd.f32 0.0, %v1940
        %v1942 = vpop.f32.mrb[0].mxu0
        %1943 = vmatprep.mubr.f32.mxu0 0.0
        %1944 = vmatmul.mubr.f32.gmra.mrb[0].mxu0 %v620
        %v1945 = vpop.f32.mrb[0].mxu0
        %v1946 = vadd.f32 0.0, %v1945
        %v1947 = vpop.f32.mrb[0].mxu0
        %1948 = vmatprep.mubr.f32.mxu0 0.0
        %1949 = vmatmul.mubr.f32.gmra.mrb[0].mxu0 %v625
        %v1950 = vpop.f32.mrb[0].mxu0
        %v1951 = vadd.f32 0.0, %v1950
        %v1952 = vpop.f32.mrb[0].mxu0
        %1953 = vmatprep.mubr.f32.mxu0 0.0
        %1954 = vmatmul.mubr.f32.gmra.mrb[0].mxu0 %v630
        %v1955 = vpop.f32.mrb[0].mxu0
        %v1956 = vadd.f32 0.0, %v1955
        %v1957 = vpop.f32.mrb[0].mxu0
        %1958 = vdwg.mxu0
        %v1959 = vadd.f32 %v1782, %v1881
        %v1960 = vadd.f32 %v1783, %v1886
        %v1961 = vadd.f32 %v1784, %v1891
        %v1962 = vadd.f32 %v1785, %v1896
        %v1963 = vadd.f32 %v1786, %v1901
        %v1964 = vadd.f32 %v1787, %v1906
        %v1965 = vadd.f32 %v1788, %v1911
        %v1966 = vadd.f32 %v1789, %v1916
        %v1967 = vadd.f32 %v1790, %v1921
        %v1968 = vadd.f32 %v1791, %v1926
        %v1969 = vadd.f32 %v1792, %v1931
        %v1970 = vadd.f32 %v1793, %v1936
        %v1971 = vadd.f32 %v1794, %v1941
        %v1972 = vadd.f32 %v1795, %v1946
        %v1973 = vadd.f32 %v1796, %v1951
        %v1974 = vadd.f32 %v1797, %v1956
        %v1975 = vrot.slane %v625, 1
        %v1976 = vrot.slane %v630, 1
        %v1977 = vsel %vm1358, %v1975, %v1976
        %v1978 = vsel %vm1358, %v1357, %v1975
        %v1979 = vsel %vm1358, %v1976, %v1344
        %v1980 = vsel %vm1391, %v476, %v1371
        %v1981 = vsel %vm1392, %v476, %v1370
        %v1982 = vsel %vm1393, %v476, %v1369
        %v1983 = vsel %vm1394, %v476, %v1368
        %v1984 = vsel %vm1395, %v476, %v1367
        %v1985 = vsel %vm1396, %v476, %v1366
        %v1986 = vsel %vm1397, %v476, %v1365
        %v1987 = vsel %vm1398, %v476, %v1364
        %v1988 = vsel %vm1399, %v476, %v1363
        %v1989 = vsel %vm1400, %v476, %v1362
        %v1990 = vsel %vm1401, %v476, %v1361
        %v1991 = vsel %vm1402, %v476, %v1360
        %v1992 = vsel %vm1403, %v476, %v1359
        %v1993 = vsel %vm1404, %v476, %v1978
        %v1994 = vsel %vm1405, %v476, %v1977
        %v1995 = vsel %vm1406, %v476, %v1979
        %v1996 = vld [vmem:[#allocation8 + $0x280] sm:$0xff]
        %v1997 = vld [vmem:[#allocation8 + $0x288] sm:$0xff]
        %v1998 = vld [vmem:[#allocation8 + $0x290] sm:$0xff]
        %v1999 = vld [vmem:[#allocation8 + $0x298] sm:$0xff]
        %v2000 = vld [vmem:[#allocation8 + $0x2a0] sm:$0xff]
        %v2001 = vld [vmem:[#allocation8 + $0x2a8] sm:$0xff]
        %v2002 = vld [vmem:[#allocation8 + $0x2b0] sm:$0xff]
        %v2003 = vld [vmem:[#allocation8 + $0x2b8] sm:$0xff]
        %v2004 = vld [vmem:[#allocation8 + $0x2c0] sm:$0xff]
        %v2005 = vld [vmem:[#allocation8 + $0x2c8] sm:$0xff]
        %v2006 = vld [vmem:[#allocation8 + $0x2d0] sm:$0xff]
        %v2007 = vld [vmem:[#allocation8 + $0x2d8] sm:$0xff]
        %v2008 = vld [vmem:[#allocation8 + $0x2e0] sm:$0xff]
        %v2009 = vld [vmem:[#allocation8 + $0x2e8] sm:$0xff]
        %v2010 = vld [vmem:[#allocation8 + $0x2f0] sm:$0xff]
        %v2011 = vld [vmem:[#allocation8 + $0x2f8] sm:$0xff]
        %2012 = vmatprep.subr.mxu0 0.0
        %2013 = vmatpush1.msra.mxu0 %v1996
        %2014 = vmatprep.subr.mxu0 0.0
        %2015 = vmatpush1.msra.mxu0 %v1997
        %2016 = vmatprep.subr.mxu0 0.0
        %2017 = vmatpush1.msra.mxu0 %v1998
        %2018 = vmatprep.subr.mxu0 0.0
        %2019 = vmatpush1.msra.mxu0 %v1999
        %2020 = vmatprep.subr.mxu0 0.0
        %2021 = vmatpush1.msra.mxu0 %v2000
        %2022 = vmatprep.subr.mxu0 0.0
        %2023 = vmatpush1.msra.mxu0 %v2001
        %2024 = vmatprep.subr.mxu0 0.0
        %2025 = vmatpush1.msra.mxu0 %v2002
        %2026 = vmatprep.subr.mxu0 0.0
        %2027 = vmatpush1.msra.mxu0 %v2003
        %2028 = vmatprep.subr.mxu0 0.0
        %2029 = vmatpush1.msra.mxu0 %v2004
        %2030 = vmatprep.subr.mxu0 0.0
        %2031 = vmatpush1.msra.mxu0 %v2005
        %2032 = vmatprep.subr.mxu0 0.0
        %2033 = vmatpush1.msra.mxu0 %v2006
        %2034 = vmatprep.subr.mxu0 0.0
        %2035 = vmatpush1.msra.mxu0 %v2007
        %2036 = vmatprep.subr.mxu0 0.0
        %2037 = vmatpush1.msra.mxu0 %v2008
        %2038 = vmatprep.subr.mxu0 0.0
        %2039 = vmatpush1.msra.mxu0 %v2009
        %2040 = vmatprep.subr.mxu0 0.0
        %2041 = vmatpush1.msra.mxu0 %v2010
        %2042 = vmatprep.subr.mxu0 0.0
        %2043 = vmatpush1.msra.mxu0 %v2011
        %2044 = vmatprep.subr.mxu0 0.0
        %2045 = vmatpush1.msra.mxu0 0.0
        %2046 = vmatprep.subr.mxu0 0.0
        %2047 = vmatpush1.msra.mxu0 0.0
        %2048 = vmatprep.subr.mxu0 0.0
        %2049 = vmatpush1.msra.mxu0 0.0
        %2050 = vmatprep.subr.mxu0 0.0
        %2051 = vmatpush1.msra.mxu0 0.0
        %2052 = vmatprep.subr.mxu0 0.0
        %2053 = vmatpush1.msra.mxu0 0.0
        %2054 = vmatprep.subr.mxu0 0.0
        %2055 = vmatpush1.msra.mxu0 0.0
        %2056 = vmatprep.subr.mxu0 0.0
        %2057 = vmatpush1.msra.mxu0 0.0
        %2058 = vmatprep.subr.mxu0 0.0
        %2059 = vmatpush1.msra.mxu0 0.0
        %2060 = vmatprep.subr.mxu0 0.0
        %2061 = vmatpush1.msra.mxu0 0.0
        %2062 = vmatprep.subr.mxu0 0.0
        %2063 = vmatpush1.msra.mxu0 0.0
        %2064 = vmatprep.subr.mxu0 0.0
        %2065 = vmatpush1.msra.mxu0 0.0
        %2066 = vmatprep.subr.mxu0 0.0
        %2067 = vmatpush1.msra.mxu0 0.0
        %2068 = vmatprep.subr.mxu0 0.0
        %2069 = vmatpush1.msra.mxu0 0.0
        %2070 = vmatprep.subr.mxu0 0.0
        %2071 = vmatpush1.msra.mxu0 0.0
        %2072 = vmatprep.subr.mxu0 0.0
        %2073 = vmatpush1.msra.mxu0 0.0
        %2074 = vmatprep.subr.mxu0 0.0
        %2075 = vmatpush1.msra.mxu0 0.0
        %2076 = vmatprep.mubr.f32.mxu0 0.0
        %2077 = vmatmul.mubr.f32.gmra.mrb[0].mxu0 %v1980
        %v2078 = vpop.f32.mrb[0].mxu0
        %v2079 = vadd.f32 0.0, %v2078
        %v2080 = vpop.f32.mrb[0].mxu0
        %2081 = vmatprep.mubr.f32.mxu0 0.0
        %2082 = vmatmul.mubr.f32.gmra.mrb[0].mxu0 %v1981
        %v2083 = vpop.f32.mrb[0].mxu0
        %v2084 = vadd.f32 0.0, %v2083
        %v2085 = vpop.f32.mrb[0].mxu0
        %2086 = vmatprep.mubr.f32.mxu0 0.0
        %2087 = vmatmul.mubr.f32.gmra.mrb[0].mxu0 %v1982
        %v2088 = vpop.f32.mrb[0].mxu0
        %v2089 = vadd.f32 0.0, %v2088
        %v2090 = vpop.f32.mrb[0].mxu0
        %2091 = vmatprep.mubr.f32.mxu0 0.0
        %2092 = vmatmul.mubr.f32.gmra.mrb[0].mxu0 %v1983
        %v2093 = vpop.f32.mrb[0].mxu0
        %v2094 = vadd.f32 0.0, %v2093
        %v2095 = vpop.f32.mrb[0].mxu0
        %2096 = vmatprep.mubr.f32.mxu0 0.0
        %2097 = vmatmul.mubr.f32.gmra.mrb[0].mxu0 %v1984
        %v2098 = vpop.f32.mrb[0].mxu0
        %v2099 = vadd.f32 0.0, %v2098
        %v2100 = vpop.f32.mrb[0].mxu0
        %2101 = vmatprep.mubr.f32.mxu0 0.0
        %2102 = vmatmul.mubr.f32.gmra.mrb[0].mxu0 %v1985
        %v2103 = vpop.f32.mrb[0].mxu0
        %v2104 = vadd.f32 0.0, %v2103
        %v2105 = vpop.f32.mrb[0].mxu0
        %2106 = vmatprep.mubr.f32.mxu0 0.0
        %2107 = vmatmul.mubr.f32.gmra.mrb[0].mxu0 %v1986
        %v2108 = vpop.f32.mrb[0].mxu0
        %v2109 = vadd.f32 0.0, %v2108
        %v2110 = vpop.f32.mrb[0].mxu0
        %2111 = vmatprep.mubr.f32.mxu0 0.0
        %2112 = vmatmul.mubr.f32.gmra.mrb[0].mxu0 %v1987
        %v2113 = vpop.f32.mrb[0].mxu0
        %v2114 = vadd.f32 0.0, %v2113
        %v2115 = vpop.f32.mrb[0].mxu0
        %2116 = vmatprep.mubr.f32.mxu0 0.0
        %2117 = vmatmul.mubr.f32.gmra.mrb[0].mxu0 %v1988
        %v2118 = vpop.f32.mrb[0].mxu0
        %v2119 = vadd.f32 0.0, %v2118
        %v2120 = vpop.f32.mrb[0].mxu0
        %2121 = vmatprep.mubr.f32.mxu0 0.0
        %2122 = vmatmul.mubr.f32.gmra.mrb[0].mxu0 %v1989
        %v2123 = vpop.f32.mrb[0].mxu0
        %v2124 = vadd.f32 0.0, %v2123
        %v2125 = vpop.f32.mrb[0].mxu0
        %2126 = vmatprep.mubr.f32.mxu0 0.0
        %2127 = vmatmul.mubr.f32.gmra.mrb[0].mxu0 %v1990
        %v2128 = vpop.f32.mrb[0].mxu0
        %v2129 = vadd.f32 0.0, %v2128
        %v2130 = vpop.f32.mrb[0].mxu0
        %2131 = vmatprep.mubr.f32.mxu0 0.0
        %2132 = vmatmul.mubr.f32.gmra.mrb[0].mxu0 %v1991
        %v2133 = vpop.f32.mrb[0].mxu0
        %v2134 = vadd.f32 0.0, %v2133
        %v2135 = vpop.f32.mrb[0].mxu0
        %2136 = vmatprep.mubr.f32.mxu0 0.0
        %2137 = vmatmul.mubr.f32.gmra.mrb[0].mxu0 %v1992
        %v2138 = vpop.f32.mrb[0].mxu0
        %v2139 = vadd.f32 0.0, %v2138
        %v2140 = vpop.f32.mrb[0].mxu0
        %2141 = vmatprep.mubr.f32.mxu0 0.0
        %2142 = vmatmul.mubr.f32.gmra.mrb[0].mxu0 %v1993
        %v2143 = vpop.f32.mrb[0].mxu0
        %v2144 = vadd.f32 0.0, %v2143
        %v2145 = vpop.f32.mrb[0].mxu0
        %2146 = vmatprep.mubr.f32.mxu0 0.0
        %2147 = vmatmul.mubr.f32.gmra.mrb[0].mxu0 %v1994
        %v2148 = vpop.f32.mrb[0].mxu0
        %v2149 = vadd.f32 0.0, %v2148
        %v2150 = vpop.f32.mrb[0].mxu0
        %2151 = vmatprep.mubr.f32.mxu0 0.0
        %2152 = vmatmul.mubr.f32.gmra.mrb[0].mxu0 %v1995
        %v2153 = vpop.f32.mrb[0].mxu0
        %v2154 = vadd.f32 0.0, %v2153
        %v2155 = vpop.f32.mrb[0].mxu0
        %2156 = vdwg.mxu0
        %v2157 = vadd.f32 %v1959, %v2079
        %v2158 = vadd.f32 %v1960, %v2084
        %v2159 = vadd.f32 %v1961, %v2089
        %v2160 = vadd.f32 %v1962, %v2094
        %v2161 = vadd.f32 %v1963, %v2099
        %v2162 = vadd.f32 %v1964, %v2104
        %v2163 = vadd.f32 %v1965, %v2109
        %v2164 = vadd.f32 %v1966, %v2114
        %v2165 = vadd.f32 %v1967, %v2119
        %v2166 = vadd.f32 %v1968, %v2124
        %v2167 = vadd.f32 %v1969, %v2129
        %v2168 = vadd.f32 %v1970, %v2134
        %v2169 = vadd.f32 %v1971, %v2139
        %v2170 = vadd.f32 %v1972, %v2144
        %v2171 = vadd.f32 %v1973, %v2149
        %v2172 = vadd.f32 %v1974, %v2154
        %v2173 = vrot.slane %v635, 7
        %v2174 = vrot.slane %v640, 7
        %v2175 = vsel %vm923, %v2173, %v2174
        %v2176 = vsel %vm923, %v1601, %v2173
        %v2177 = vsel %vm923, %v2174, %v911
        %v2178 = vsel %vm956, %v476, %v2177
        %v2179 = vsel %vm957, %v476, %v934
        %v2180 = vsel %vm958, %v476, %v933
        %v2181 = vsel %vm959, %v476, %v932
        %v2182 = vsel %vm960, %v476, %v931
        %v2183 = vsel %vm961, %v476, %v930
        %v2184 = vsel %vm962, %v476, %v929
        %v2185 = vsel %vm963, %v476, %v928
        %v2186 = vsel %vm964, %v476, %v927
        %v2187 = vsel %vm965, %v476, %v926
        %v2188 = vsel %vm966, %v476, %v925
        %v2189 = vsel %vm967, %v476, %v924
        %v2190 = vsel %vm968, %v476, %v1603
        %v2191 = vsel %vm969, %v476, %v1602
        %v2192 = vsel %vm970, %v476, %v2176
        %v2193 = vsel %vm971, %v476, %v2175
        %v2194 = vld [vmem:[#allocation8 + $0x300] sm:$0xff]
        %v2195 = vld [vmem:[#allocation8 + $0x308] sm:$0xff]
        %v2196 = vld [vmem:[#allocation8 + $0x310] sm:$0xff]
        %v2197 = vld [vmem:[#allocation8 + $0x318] sm:$0xff]
        %v2198 = vld [vmem:[#allocation8 + $0x320] sm:$0xff]
        %v2199 = vld [vmem:[#allocation8 + $0x328] sm:$0xff]
        %v2200 = vld [vmem:[#allocation8 + $0x330] sm:$0xff]
        %v2201 = vld [vmem:[#allocation8 + $0x338] sm:$0xff]
        %v2202 = vld [vmem:[#allocation8 + $0x340] sm:$0xff]
        %v2203 = vld [vmem:[#allocation8 + $0x348] sm:$0xff]
        %v2204 = vld [vmem:[#allocation8 + $0x350] sm:$0xff]
        %v2205 = vld [vmem:[#allocation8 + $0x358] sm:$0xff]
        %v2206 = vld [vmem:[#allocation8 + $0x360] sm:$0xff]
        %v2207 = vld [vmem:[#allocation8 + $0x368] sm:$0xff]
        %v2208 = vld [vmem:[#allocation8 + $0x370] sm:$0xff]
        %v2209 = vld [vmem:[#allocation8 + $0x378] sm:$0xff]
        %2210 = vmatprep.subr.mxu0 0.0
        %2211 = vmatpush1.msra.mxu0 %v2194
        %2212 = vmatprep.subr.mxu0 0.0
        %2213 = vmatpush1.msra.mxu0 %v2195
        %2214 = vmatprep.subr.mxu0 0.0
        %2215 = vmatpush1.msra.mxu0 %v2196
        %2216 = vmatprep.subr.mxu0 0.0
        %2217 = vmatpush1.msra.mxu0 %v2197
        %2218 = vmatprep.subr.mxu0 0.0
        %2219 = vmatpush1.msra.mxu0 %v2198
        %2220 = vmatprep.subr.mxu0 0.0
        %2221 = vmatpush1.msra.mxu0 %v2199
        %2222 = vmatprep.subr.mxu0 0.0
        %2223 = vmatpush1.msra.mxu0 %v2200
        %2224 = vmatprep.subr.mxu0 0.0
        %2225 = vmatpush1.msra.mxu0 %v2201
        %2226 = vmatprep.subr.mxu0 0.0
        %2227 = vmatpush1.msra.mxu0 %v2202
        %2228 = vmatprep.subr.mxu0 0.0
        %2229 = vmatpush1.msra.mxu0 %v2203
        %2230 = vmatprep.subr.mxu0 0.0
        %2231 = vmatpush1.msra.mxu0 %v2204
        %2232 = vmatprep.subr.mxu0 0.0
        %2233 = vmatpush1.msra.mxu0 %v2205
        %2234 = vmatprep.subr.mxu0 0.0
        %2235 = vmatpush1.msra.mxu0 %v2206
        %2236 = vmatprep.subr.mxu0 0.0
        %2237 = vmatpush1.msra.mxu0 %v2207
        %2238 = vmatprep.subr.mxu0 0.0
        %2239 = vmatpush1.msra.mxu0 %v2208
        %2240 = vmatprep.subr.mxu0 0.0
        %2241 = vmatpush1.msra.mxu0 %v2209
        %2242 = vmatprep.subr.mxu0 0.0
        %2243 = vmatpush1.msra.mxu0 0.0
        %2244 = vmatprep.subr.mxu0 0.0
        %2245 = vmatpush1.msra.mxu0 0.0
        %2246 = vmatprep.subr.mxu0 0.0
        %2247 = vmatpush1.msra.mxu0 0.0
        %2248 = vmatprep.subr.mxu0 0.0
        %2249 = vmatpush1.msra.mxu0 0.0
        %2250 = vmatprep.subr.mxu0 0.0
        %2251 = vmatpush1.msra.mxu0 0.0
        %2252 = vmatprep.subr.mxu0 0.0
        %2253 = vmatpush1.msra.mxu0 0.0
        %2254 = vmatprep.subr.mxu0 0.0
        %2255 = vmatpush1.msra.mxu0 0.0
        %2256 = vmatprep.subr.mxu0 0.0
        %2257 = vmatpush1.msra.mxu0 0.0
        %2258 = vmatprep.subr.mxu0 0.0
        %2259 = vmatpush1.msra.mxu0 0.0
        %2260 = vmatprep.subr.mxu0 0.0
        %2261 = vmatpush1.msra.mxu0 0.0
        %2262 = vmatprep.subr.mxu0 0.0
        %2263 = vmatpush1.msra.mxu0 0.0
        %2264 = vmatprep.subr.mxu0 0.0
        %2265 = vmatpush1.msra.mxu0 0.0
        %2266 = vmatprep.subr.mxu0 0.0
        %2267 = vmatpush1.msra.mxu0 0.0
        %2268 = vmatprep.subr.mxu0 0.0
        %2269 = vmatpush1.msra.mxu0 0.0
        %2270 = vmatprep.subr.mxu0 0.0
        %2271 = vmatpush1.msra.mxu0 0.0
        %2272 = vmatprep.subr.mxu0 0.0
        %2273 = vmatpush1.msra.mxu0 0.0
        %2274 = vmatprep.mubr.f32.mxu0 0.0
        %2275 = vmatmul.mubr.f32.gmra.mrb[0].mxu0 %v2178
        %v2276 = vpop.f32.mrb[0].mxu0
        %v2277 = vadd.f32 0.0, %v2276
        %v2278 = vpop.f32.mrb[0].mxu0
        %2279 = vmatprep.mubr.f32.mxu0 0.0
        %2280 = vmatmul.mubr.f32.gmra.mrb[0].mxu0 %v2179
        %v2281 = vpop.f32.mrb[0].mxu0
        %v2282 = vadd.f32 0.0, %v2281
        %v2283 = vpop.f32.mrb[0].mxu0
        %2284 = vmatprep.mubr.f32.mxu0 0.0
        %2285 = vmatmul.mubr.f32.gmra.mrb[0].mxu0 %v2180
        %v2286 = vpop.f32.mrb[0].mxu0
        %v2287 = vadd.f32 0.0, %v2286
        %v2288 = vpop.f32.mrb[0].mxu0
        %2289 = vmatprep.mubr.f32.mxu0 0.0
        %2290 = vmatmul.mubr.f32.gmra.mrb[0].mxu0 %v2181
        %v2291 = vpop.f32.mrb[0].mxu0
        %v2292 = vadd.f32 0.0, %v2291
        %v2293 = vpop.f32.mrb[0].mxu0
        %2294 = vmatprep.mubr.f32.mxu0 0.0
        %2295 = vmatmul.mubr.f32.gmra.mrb[0].mxu0 %v2182
        %v2296 = vpop.f32.mrb[0].mxu0
        %v2297 = vadd.f32 0.0, %v2296
        %v2298 = vpop.f32.mrb[0].mxu0
        %2299 = vmatprep.mubr.f32.mxu0 0.0
        %2300 = vmatmul.mubr.f32.gmra.mrb[0].mxu0 %v2183
        %v2301 = vpop.f32.mrb[0].mxu0
        %v2302 = vadd.f32 0.0, %v2301
        %v2303 = vpop.f32.mrb[0].mxu0
        %2304 = vmatprep.mubr.f32.mxu0 0.0
        %2305 = vmatmul.mubr.f32.gmra.mrb[0].mxu0 %v2184
        %v2306 = vpop.f32.mrb[0].mxu0
        %v2307 = vadd.f32 0.0, %v2306
        %v2308 = vpop.f32.mrb[0].mxu0
        %2309 = vmatprep.mubr.f32.mxu0 0.0
        %2310 = vmatmul.mubr.f32.gmra.mrb[0].mxu0 %v2185
        %v2311 = vpop.f32.mrb[0].mxu0
        %v2312 = vadd.f32 0.0, %v2311
        %v2313 = vpop.f32.mrb[0].mxu0
        %2314 = vmatprep.mubr.f32.mxu0 0.0
        %2315 = vmatmul.mubr.f32.gmra.mrb[0].mxu0 %v2186
        %v2316 = vpop.f32.mrb[0].mxu0
        %v2317 = vadd.f32 0.0, %v2316
        %v2318 = vpop.f32.mrb[0].mxu0
        %2319 = vmatprep.mubr.f32.mxu0 0.0
        %2320 = vmatmul.mubr.f32.gmra.mrb[0].mxu0 %v2187
        %v2321 = vpop.f32.mrb[0].mxu0
        %v2322 = vadd.f32 0.0, %v2321
        %v2323 = vpop.f32.mrb[0].mxu0
        %2324 = vmatprep.mubr.f32.mxu0 0.0
        %2325 = vmatmul.mubr.f32.gmra.mrb[0].mxu0 %v2188
        %v2326 = vpop.f32.mrb[0].mxu0
        %v2327 = vadd.f32 0.0, %v2326
        %v2328 = vpop.f32.mrb[0].mxu0
        %2329 = vmatprep.mubr.f32.mxu0 0.0
        %2330 = vmatmul.mubr.f32.gmra.mrb[0].mxu0 %v2189
        %v2331 = vpop.f32.mrb[0].mxu0
        %v2332 = vadd.f32 0.0, %v2331
        %v2333 = vpop.f32.mrb[0].mxu0
        %2334 = vmatprep.mubr.f32.mxu0 0.0
        %2335 = vmatmul.mubr.f32.gmra.mrb[0].mxu0 %v2190
        %v2336 = vpop.f32.mrb[0].mxu0
        %v2337 = vadd.f32 0.0, %v2336
        %v2338 = vpop.f32.mrb[0].mxu0
        %2339 = vmatprep.mubr.f32.mxu0 0.0
        %2340 = vmatmul.mubr.f32.gmra.mrb[0].mxu0 %v2191
        %v2341 = vpop.f32.mrb[0].mxu0
        %v2342 = vadd.f32 0.0, %v2341
        %v2343 = vpop.f32.mrb[0].mxu0
        %2344 = vmatprep.mubr.f32.mxu0 0.0
        %2345 = vmatmul.mubr.f32.gmra.mrb[0].mxu0 %v2192
        %v2346 = vpop.f32.mrb[0].mxu0
        %v2347 = vadd.f32 0.0, %v2346
        %v2348 = vpop.f32.mrb[0].mxu0
        %2349 = vmatprep.mubr.f32.mxu0 0.0
        %2350 = vmatmul.mubr.f32.gmra.mrb[0].mxu0 %v2193
        %v2351 = vpop.f32.mrb[0].mxu0
        %v2352 = vadd.f32 0.0, %v2351
        %v2353 = vpop.f32.mrb[0].mxu0
        %2354 = vdwg.mxu0
        %v2355 = vadd.f32 %v2157, %v2277
        %v2356 = vadd.f32 %v2158, %v2282
        %v2357 = vadd.f32 %v2159, %v2287
        %v2358 = vadd.f32 %v2160, %v2292
        %v2359 = vadd.f32 %v2161, %v2297
        %v2360 = vadd.f32 %v2162, %v2302
        %v2361 = vadd.f32 %v2163, %v2307
        %v2362 = vadd.f32 %v2164, %v2312
        %v2363 = vadd.f32 %v2165, %v2317
        %v2364 = vadd.f32 %v2166, %v2322
        %v2365 = vadd.f32 %v2167, %v2327
        %v2366 = vadd.f32 %v2168, %v2332
        %v2367 = vadd.f32 %v2169, %v2337
        %v2368 = vadd.f32 %v2170, %v2342
        %v2369 = vadd.f32 %v2171, %v2347
        %v2370 = vadd.f32 %v2172, %v2352
        %v2371 = vld [vmem:[#allocation8 + $0x380] sm:$0xff]
        %v2372 = vld [vmem:[#allocation8 + $0x388] sm:$0xff]
        %v2373 = vld [vmem:[#allocation8 + $0x390] sm:$0xff]
        %v2374 = vld [vmem:[#allocation8 + $0x398] sm:$0xff]
        %v2375 = vld [vmem:[#allocation8 + $0x3a0] sm:$0xff]
        %v2376 = vld [vmem:[#allocation8 + $0x3a8] sm:$0xff]
        %v2377 = vld [vmem:[#allocation8 + $0x3b0] sm:$0xff]
        %v2378 = vld [vmem:[#allocation8 + $0x3b8] sm:$0xff]
        %v2379 = vld [vmem:[#allocation8 + $0x3c0] sm:$0xff]
        %v2380 = vld [vmem:[#allocation8 + $0x3c8] sm:$0xff]
        %v2381 = vld [vmem:[#allocation8 + $0x3d0] sm:$0xff]
        %v2382 = vld [vmem:[#allocation8 + $0x3d8] sm:$0xff]
        %v2383 = vld [vmem:[#allocation8 + $0x3e0] sm:$0xff]
        %v2384 = vld [vmem:[#allocation8 + $0x3e8] sm:$0xff]
        %v2385 = vld [vmem:[#allocation8 + $0x3f0] sm:$0xff]
        %v2386 = vld [vmem:[#allocation8 + $0x3f8] sm:$0xff]
        %2387 = vmatprep.subr.mxu0 0.0
        %2388 = vmatpush1.msra.mxu0 %v2371
        %2389 = vmatprep.subr.mxu0 0.0
        %2390 = vmatpush1.msra.mxu0 %v2372
        %2391 = vmatprep.subr.mxu0 0.0
        %2392 = vmatpush1.msra.mxu0 %v2373
        %2393 = vmatprep.subr.mxu0 0.0
        %2394 = vmatpush1.msra.mxu0 %v2374
        %2395 = vmatprep.subr.mxu0 0.0
        %2396 = vmatpush1.msra.mxu0 %v2375
        %2397 = vmatprep.subr.mxu0 0.0
        %2398 = vmatpush1.msra.mxu0 %v2376
        %2399 = vmatprep.subr.mxu0 0.0
        %2400 = vmatpush1.msra.mxu0 %v2377
        %2401 = vmatprep.subr.mxu0 0.0
        %2402 = vmatpush1.msra.mxu0 %v2378
        %2403 = vmatprep.subr.mxu0 0.0
        %2404 = vmatpush1.msra.mxu0 %v2379
        %2405 = vmatprep.subr.mxu0 0.0
        %2406 = vmatpush1.msra.mxu0 %v2380
        %2407 = vmatprep.subr.mxu0 0.0
        %2408 = vmatpush1.msra.mxu0 %v2381
        %2409 = vmatprep.subr.mxu0 0.0
        %2410 = vmatpush1.msra.mxu0 %v2382
        %2411 = vmatprep.subr.mxu0 0.0
        %2412 = vmatpush1.msra.mxu0 %v2383
        %2413 = vmatprep.subr.mxu0 0.0
        %2414 = vmatpush1.msra.mxu0 %v2384
        %2415 = vmatprep.subr.mxu0 0.0
        %2416 = vmatpush1.msra.mxu0 %v2385
        %2417 = vmatprep.subr.mxu0 0.0
        %2418 = vmatpush1.msra.mxu0 %v2386
        %2419 = vmatprep.subr.mxu0 0.0
        %2420 = vmatpush1.msra.mxu0 0.0
        %2421 = vmatprep.subr.mxu0 0.0
        %2422 = vmatpush1.msra.mxu0 0.0
        %2423 = vmatprep.subr.mxu0 0.0
        %2424 = vmatpush1.msra.mxu0 0.0
        %2425 = vmatprep.subr.mxu0 0.0
        %2426 = vmatpush1.msra.mxu0 0.0
        %2427 = vmatprep.subr.mxu0 0.0
        %2428 = vmatpush1.msra.mxu0 0.0
        %2429 = vmatprep.subr.mxu0 0.0
        %2430 = vmatpush1.msra.mxu0 0.0
        %2431 = vmatprep.subr.mxu0 0.0
        %2432 = vmatpush1.msra.mxu0 0.0
        %2433 = vmatprep.subr.mxu0 0.0
        %2434 = vmatpush1.msra.mxu0 0.0
        %2435 = vmatprep.subr.mxu0 0.0
        %2436 = vmatpush1.msra.mxu0 0.0
        %2437 = vmatprep.subr.mxu0 0.0
        %2438 = vmatpush1.msra.mxu0 0.0
        %2439 = vmatprep.subr.mxu0 0.0
        %2440 = vmatpush1.msra.mxu0 0.0
        %2441 = vmatprep.subr.mxu0 0.0
        %2442 = vmatpush1.msra.mxu0 0.0
        %2443 = vmatprep.subr.mxu0 0.0
        %2444 = vmatpush1.msra.mxu0 0.0
        %2445 = vmatprep.subr.mxu0 0.0
        %2446 = vmatpush1.msra.mxu0 0.0
        %2447 = vmatprep.subr.mxu0 0.0
        %2448 = vmatpush1.msra.mxu0 0.0
        %2449 = vmatprep.subr.mxu0 0.0
        %2450 = vmatpush1.msra.mxu0 0.0
        %2451 = vmatprep.mubr.f32.mxu0 0.0
        %2452 = vmatmul.mubr.f32.gmra.mrb[0].mxu0 %v565
        %v2453 = vpop.f32.mrb[0].mxu0
        %v2454 = vadd.f32 0.0, %v2453
        %v2455 = vpop.f32.mrb[0].mxu0
        %2456 = vmatprep.mubr.f32.mxu0 0.0
        %2457 = vmatmul.mubr.f32.gmra.mrb[0].mxu0 %v570
        %v2458 = vpop.f32.mrb[0].mxu0
        %v2459 = vadd.f32 0.0, %v2458
        %v2460 = vpop.f32.mrb[0].mxu0
        %2461 = vmatprep.mubr.f32.mxu0 0.0
        %2462 = vmatmul.mubr.f32.gmra.mrb[0].mxu0 %v575
        %v2463 = vpop.f32.mrb[0].mxu0
        %v2464 = vadd.f32 0.0, %v2463
        %v2465 = vpop.f32.mrb[0].mxu0
        %2466 = vmatprep.mubr.f32.mxu0 0.0
        %2467 = vmatmul.mubr.f32.gmra.mrb[0].mxu0 %v580
        %v2468 = vpop.f32.mrb[0].mxu0
        %v2469 = vadd.f32 0.0, %v2468
        %v2470 = vpop.f32.mrb[0].mxu0
        %2471 = vmatprep.mubr.f32.mxu0 0.0
        %2472 = vmatmul.mubr.f32.gmra.mrb[0].mxu0 %v585
        %v2473 = vpop.f32.mrb[0].mxu0
        %v2474 = vadd.f32 0.0, %v2473
        %v2475 = vpop.f32.mrb[0].mxu0
        %2476 = vmatprep.mubr.f32.mxu0 0.0
        %2477 = vmatmul.mubr.f32.gmra.mrb[0].mxu0 %v590
        %v2478 = vpop.f32.mrb[0].mxu0
        %v2479 = vadd.f32 0.0, %v2478
        %v2480 = vpop.f32.mrb[0].mxu0
        %2481 = vmatprep.mubr.f32.mxu0 0.0
        %2482 = vmatmul.mubr.f32.gmra.mrb[0].mxu0 %v595
        %v2483 = vpop.f32.mrb[0].mxu0
        %v2484 = vadd.f32 0.0, %v2483
        %v2485 = vpop.f32.mrb[0].mxu0
        %2486 = vmatprep.mubr.f32.mxu0 0.0
        %2487 = vmatmul.mubr.f32.gmra.mrb[0].mxu0 %v600
        %v2488 = vpop.f32.mrb[0].mxu0
        %v2489 = vadd.f32 0.0, %v2488
        %v2490 = vpop.f32.mrb[0].mxu0
        %2491 = vmatprep.mubr.f32.mxu0 0.0
        %2492 = vmatmul.mubr.f32.gmra.mrb[0].mxu0 %v605
        %v2493 = vpop.f32.mrb[0].mxu0
        %v2494 = vadd.f32 0.0, %v2493
        %v2495 = vpop.f32.mrb[0].mxu0
        %2496 = vmatprep.mubr.f32.mxu0 0.0
        %2497 = vmatmul.mubr.f32.gmra.mrb[0].mxu0 %v610
        %v2498 = vpop.f32.mrb[0].mxu0
        %v2499 = vadd.f32 0.0, %v2498
        %v2500 = vpop.f32.mrb[0].mxu0
        %2501 = vmatprep.mubr.f32.mxu0 0.0
        %2502 = vmatmul.mubr.f32.gmra.mrb[0].mxu0 %v615
        %v2503 = vpop.f32.mrb[0].mxu0
        %v2504 = vadd.f32 0.0, %v2503
        %v2505 = vpop.f32.mrb[0].mxu0
        %2506 = vmatprep.mubr.f32.mxu0 0.0
        %2507 = vmatmul.mubr.f32.gmra.mrb[0].mxu0 %v620
        %v2508 = vpop.f32.mrb[0].mxu0
        %v2509 = vadd.f32 0.0, %v2508
        %v2510 = vpop.f32.mrb[0].mxu0
        %2511 = vmatprep.mubr.f32.mxu0 0.0
        %2512 = vmatmul.mubr.f32.gmra.mrb[0].mxu0 %v625
        %v2513 = vpop.f32.mrb[0].mxu0
        %v2514 = vadd.f32 0.0, %v2513
        %v2515 = vpop.f32.mrb[0].mxu0
        %2516 = vmatprep.mubr.f32.mxu0 0.0
        %2517 = vmatmul.mubr.f32.gmra.mrb[0].mxu0 %v630
        %v2518 = vpop.f32.mrb[0].mxu0
        %v2519 = vadd.f32 0.0, %v2518
        %v2520 = vpop.f32.mrb[0].mxu0
        %2521 = vmatprep.mubr.f32.mxu0 0.0
        %2522 = vmatmul.mubr.f32.gmra.mrb[0].mxu0 %v635
        %v2523 = vpop.f32.mrb[0].mxu0
        %v2524 = vadd.f32 0.0, %v2523
        %v2525 = vpop.f32.mrb[0].mxu0
        %2526 = vmatprep.mubr.f32.mxu0 0.0
        %2527 = vmatmul.mubr.f32.gmra.mrb[0].mxu0 %v640
        %v2528 = vpop.f32.mrb[0].mxu0
        %v2529 = vadd.f32 0.0, %v2528
        %v2530 = vpop.f32.mrb[0].mxu0
        %2531 = vdwg.mxu0
        %v2532 = vadd.f32 %v2355, %v2454
        %v2533 = vadd.f32 %v2356, %v2459
        %v2534 = vadd.f32 %v2357, %v2464
        %v2535 = vadd.f32 %v2358, %v2469
        %v2536 = vadd.f32 %v2359, %v2474
        %v2537 = vadd.f32 %v2360, %v2479
        %v2538 = vadd.f32 %v2361, %v2484
        %v2539 = vadd.f32 %v2362, %v2489
        %v2540 = vadd.f32 %v2363, %v2494
        %v2541 = vadd.f32 %v2364, %v2499
        %v2542 = vadd.f32 %v2365, %v2504
        %v2543 = vadd.f32 %v2366, %v2509
        %v2544 = vadd.f32 %v2367, %v2514
        %v2545 = vadd.f32 %v2368, %v2519
        %v2546 = vadd.f32 %v2369, %v2524
        %v2547 = vadd.f32 %v2370, %v2529
        %v2548 = vrot.slane %v635, 1
        %v2549 = vrot.slane %v640, 1
        %v2550 = vsel %vm1358, %v2548, %v2549
        %v2551 = vsel %vm1358, %v1976, %v2548
        %v2552 = vsel %vm1358, %v2549, %v1346
        %v2553 = vsel %vm1391, %v476, %v1369
        %v2554 = vsel %vm1392, %v476, %v1368
        %v2555 = vsel %vm1393, %v476, %v1367
        %v2556 = vsel %vm1394, %v476, %v1366
        %v2557 = vsel %vm1395, %v476, %v1365
        %v2558 = vsel %vm1396, %v476, %v1364
        %v2559 = vsel %vm1397, %v476, %v1363
        %v2560 = vsel %vm1398, %v476, %v1362
        %v2561 = vsel %vm1399, %v476, %v1361
        %v2562 = vsel %vm1400, %v476, %v1360
        %v2563 = vsel %vm1401, %v476, %v1359
        %v2564 = vsel %vm1402, %v476, %v1978
        %v2565 = vsel %vm1403, %v476, %v1977
        %v2566 = vsel %vm1404, %v476, %v2551
        %v2567 = vsel %vm1405, %v476, %v2550
        %v2568 = vsel %vm1406, %v476, %v2552
        %v2569 = vld [vmem:[#allocation8 + $0x400] sm:$0xff]
        %v2570 = vld [vmem:[#allocation8 + $0x408] sm:$0xff]
        %v2571 = vld [vmem:[#allocation8 + $0x410] sm:$0xff]
        %v2572 = vld [vmem:[#allocation8 + $0x418] sm:$0xff]
        %v2573 = vld [vmem:[#allocation8 + $0x420] sm:$0xff]
        %v2574 = vld [vmem:[#allocation8 + $0x428] sm:$0xff]
        %v2575 = vld [vmem:[#allocation8 + $0x430] sm:$0xff]
        %v2576 = vld [vmem:[#allocation8 + $0x438] sm:$0xff]
        %v2577 = vld [vmem:[#allocation8 + $0x440] sm:$0xff]
        %v2578 = vld [vmem:[#allocation8 + $0x448] sm:$0xff]
        %v2579 = vld [vmem:[#allocation8 + $0x450] sm:$0xff]
        %v2580 = vld [vmem:[#allocation8 + $0x458] sm:$0xff]
        %v2581 = vld [vmem:[#allocation8 + $0x460] sm:$0xff]
        %v2582 = vld [vmem:[#allocation8 + $0x468] sm:$0xff]
        %v2583 = vld [vmem:[#allocation8 + $0x470] sm:$0xff]
        %v2584 = vld [vmem:[#allocation8 + $0x478] sm:$0xff]
        %2585 = vmatprep.subr.mxu0 0.0
        %2586 = vmatpush1.msra.mxu0 %v2569
        %2587 = vmatprep.subr.mxu0 0.0
        %2588 = vmatpush1.msra.mxu0 %v2570
        %2589 = vmatprep.subr.mxu0 0.0
        %2590 = vmatpush1.msra.mxu0 %v2571
        %2591 = vmatprep.subr.mxu0 0.0
        %2592 = vmatpush1.msra.mxu0 %v2572
        %2593 = vmatprep.subr.mxu0 0.0
        %2594 = vmatpush1.msra.mxu0 %v2573
        %2595 = vmatprep.subr.mxu0 0.0
        %2596 = vmatpush1.msra.mxu0 %v2574
        %2597 = vmatprep.subr.mxu0 0.0
        %2598 = vmatpush1.msra.mxu0 %v2575
        %2599 = vmatprep.subr.mxu0 0.0
        %2600 = vmatpush1.msra.mxu0 %v2576
        %2601 = vmatprep.subr.mxu0 0.0
        %2602 = vmatpush1.msra.mxu0 %v2577
        %2603 = vmatprep.subr.mxu0 0.0
        %2604 = vmatpush1.msra.mxu0 %v2578
        %2605 = vmatprep.subr.mxu0 0.0
        %2606 = vmatpush1.msra.mxu0 %v2579
        %2607 = vmatprep.subr.mxu0 0.0
        %2608 = vmatpush1.msra.mxu0 %v2580
        %2609 = vmatprep.subr.mxu0 0.0
        %2610 = vmatpush1.msra.mxu0 %v2581
        %2611 = vmatprep.subr.mxu0 0.0
        %2612 = vmatpush1.msra.mxu0 %v2582
        %2613 = vmatprep.subr.mxu0 0.0
        %2614 = vmatpush1.msra.mxu0 %v2583
        %2615 = vmatprep.subr.mxu0 0.0
        %2616 = vmatpush1.msra.mxu0 %v2584
        %2617 = vmatprep.subr.mxu0 0.0
        %2618 = vmatpush1.msra.mxu0 0.0
        %2619 = vmatprep.subr.mxu0 0.0
        %2620 = vmatpush1.msra.mxu0 0.0
        %2621 = vmatprep.subr.mxu0 0.0
        %2622 = vmatpush1.msra.mxu0 0.0
        %2623 = vmatprep.subr.mxu0 0.0
        %2624 = vmatpush1.msra.mxu0 0.0
        %2625 = vmatprep.subr.mxu0 0.0
        %2626 = vmatpush1.msra.mxu0 0.0
        %2627 = vmatprep.subr.mxu0 0.0
        %2628 = vmatpush1.msra.mxu0 0.0
        %2629 = vmatprep.subr.mxu0 0.0
        %2630 = vmatpush1.msra.mxu0 0.0
        %2631 = vmatprep.subr.mxu0 0.0
        %2632 = vmatpush1.msra.mxu0 0.0
        %2633 = vmatprep.subr.mxu0 0.0
        %2634 = vmatpush1.msra.mxu0 0.0
        %2635 = vmatprep.subr.mxu0 0.0
        %2636 = vmatpush1.msra.mxu0 0.0
        %2637 = vmatprep.subr.mxu0 0.0
        %2638 = vmatpush1.msra.mxu0 0.0
        %2639 = vmatprep.subr.mxu0 0.0
        %2640 = vmatpush1.msra.mxu0 0.0
        %2641 = vmatprep.subr.mxu0 0.0
        %2642 = vmatpush1.msra.mxu0 0.0
        %2643 = vmatprep.subr.mxu0 0.0
        %2644 = vmatpush1.msra.mxu0 0.0
        %2645 = vmatprep.subr.mxu0 0.0
        %2646 = vmatpush1.msra.mxu0 0.0
        %2647 = vmatprep.subr.mxu0 0.0
        %2648 = vmatpush1.msra.mxu0 0.0
        %2649 = vmatprep.mubr.f32.mxu0 0.0
        %2650 = vmatmul.mubr.f32.gmra.mrb[0].mxu0 %v2553
        %v2651 = vpop.f32.mrb[0].mxu0
        %v2652 = vadd.f32 0.0, %v2651
        %v2653 = vpop.f32.mrb[0].mxu0
        %2654 = vmatprep.mubr.f32.mxu0 0.0
        %2655 = vmatmul.mubr.f32.gmra.mrb[0].mxu0 %v2554
        %v2656 = vpop.f32.mrb[0].mxu0
        %v2657 = vadd.f32 0.0, %v2656
        %v2658 = vpop.f32.mrb[0].mxu0
        %2659 = vmatprep.mubr.f32.mxu0 0.0
        %2660 = vmatmul.mubr.f32.gmra.mrb[0].mxu0 %v2555
        %v2661 = vpop.f32.mrb[0].mxu0
        %v2662 = vadd.f32 0.0, %v2661
        %v2663 = vpop.f32.mrb[0].mxu0
        %2664 = vmatprep.mubr.f32.mxu0 0.0
        %2665 = vmatmul.mubr.f32.gmra.mrb[0].mxu0 %v2556
        %v2666 = vpop.f32.mrb[0].mxu0
        %v2667 = vadd.f32 0.0, %v2666
        %v2668 = vpop.f32.mrb[0].mxu0
        %2669 = vmatprep.mubr.f32.mxu0 0.0
        %2670 = vmatmul.mubr.f32.gmra.mrb[0].mxu0 %v2557
        %v2671 = vpop.f32.mrb[0].mxu0
        %v2672 = vadd.f32 0.0, %v2671
        %v2673 = vpop.f32.mrb[0].mxu0
        %2674 = vmatprep.mubr.f32.mxu0 0.0
        %2675 = vmatmul.mubr.f32.gmra.mrb[0].mxu0 %v2558
        %v2676 = vpop.f32.mrb[0].mxu0
        %v2677 = vadd.f32 0.0, %v2676
        %v2678 = vpop.f32.mrb[0].mxu0
        %2679 = vmatprep.mubr.f32.mxu0 0.0
        %2680 = vmatmul.mubr.f32.gmra.mrb[0].mxu0 %v2559
        %v2681 = vpop.f32.mrb[0].mxu0
        %v2682 = vadd.f32 0.0, %v2681
        %v2683 = vpop.f32.mrb[0].mxu0
        %2684 = vmatprep.mubr.f32.mxu0 0.0
        %2685 = vmatmul.mubr.f32.gmra.mrb[0].mxu0 %v2560
        %v2686 = vpop.f32.mrb[0].mxu0
        %v2687 = vadd.f32 0.0, %v2686
        %v2688 = vpop.f32.mrb[0].mxu0
        %2689 = vmatprep.mubr.f32.mxu0 0.0
        %2690 = vmatmul.mubr.f32.gmra.mrb[0].mxu0 %v2561
        %v2691 = vpop.f32.mrb[0].mxu0
        %v2692 = vadd.f32 0.0, %v2691
        %v2693 = vpop.f32.mrb[0].mxu0
        %2694 = vmatprep.mubr.f32.mxu0 0.0
        %2695 = vmatmul.mubr.f32.gmra.mrb[0].mxu0 %v2562
        %v2696 = vpop.f32.mrb[0].mxu0
        %v2697 = vadd.f32 0.0, %v2696
        %v2698 = vpop.f32.mrb[0].mxu0
        %2699 = vmatprep.mubr.f32.mxu0 0.0
        %2700 = vmatmul.mubr.f32.gmra.mrb[0].mxu0 %v2563
        %v2701 = vpop.f32.mrb[0].mxu0
        %v2702 = vadd.f32 0.0, %v2701
        %v2703 = vpop.f32.mrb[0].mxu0
        %2704 = vmatprep.mubr.f32.mxu0 0.0
        %2705 = vmatmul.mubr.f32.gmra.mrb[0].mxu0 %v2564
        %v2706 = vpop.f32.mrb[0].mxu0
        %v2707 = vadd.f32 0.0, %v2706
        %v2708 = vpop.f32.mrb[0].mxu0
        %2709 = vmatprep.mubr.f32.mxu0 0.0
        %2710 = vmatmul.mubr.f32.gmra.mrb[0].mxu0 %v2565
        %v2711 = vpop.f32.mrb[0].mxu0
        %v2712 = vadd.f32 0.0, %v2711
        %v2713 = vpop.f32.mrb[0].mxu0
        %2714 = vmatprep.mubr.f32.mxu0 0.0
        %2715 = vmatmul.mubr.f32.gmra.mrb[0].mxu0 %v2566
        %v2716 = vpop.f32.mrb[0].mxu0
        %v2717 = vadd.f32 0.0, %v2716
        %v2718 = vpop.f32.mrb[0].mxu0
        %2719 = vmatprep.mubr.f32.mxu0 0.0
        %2720 = vmatmul.mubr.f32.gmra.mrb[0].mxu0 %v2567
        %v2721 = vpop.f32.mrb[0].mxu0
        %v2722 = vadd.f32 0.0, %v2721
        %v2723 = vpop.f32.mrb[0].mxu0
        %2724 = vmatprep.mubr.f32.mxu0 0.0
        %2725 = vmatmul.mubr.f32.gmra.mrb[0].mxu0 %v2568
        %v2726 = vpop.f32.mrb[0].mxu0
        %v2727 = vadd.f32 0.0, %v2726
        %v2728 = vpop.f32.mrb[0].mxu0
        %2729 = vdwg.mxu0
        %v2730 = vadd.f32 %v2532, %v2652
        %v2731 = vadd.f32 %v2533, %v2657
        %v2732 = vadd.f32 %v2534, %v2662
        %v2733 = vadd.f32 %v2535, %v2667
        %v2734 = vadd.f32 %v2536, %v2672
        %v2735 = vadd.f32 %v2537, %v2677
        %v2736 = vadd.f32 %v2538, %v2682
        %v2737 = vadd.f32 %v2539, %v2687
        %v2738 = vadd.f32 %v2540, %v2692
        %v2739 = vadd.f32 %v2541, %v2697
        %v2740 = vadd.f32 %v2542, %v2702
        %v2741 = vadd.f32 %v2543, %v2707
        %v2742 = vadd.f32 %v2544, %v2712
        %v2743 = vadd.f32 %v2545, %v2717
        %v2744 = vadd.f32 %v2546, %v2722
        %v2745 = vadd.f32 %v2547, %v2727
        %v2746 = vld [vmem:[#allocation10] sm:$0xff]
        %v2747 = vld [vmem:[#allocation10 + $0x8] sm:$0xff]
        %v2748 = vld [vmem:[#allocation10 + $0x10] sm:$0xff]
        %v2749 = vld [vmem:[#allocation10 + $0x18] sm:$0xff]
        %v2750 = vld [vmem:[#allocation10 + $0x20] sm:$0xff]
        %v2751 = vld [vmem:[#allocation10 + $0x28] sm:$0xff]
        %v2752 = vld [vmem:[#allocation10 + $0x30] sm:$0xff]
        %v2753 = vld [vmem:[#allocation10 + $0x38] sm:$0xff]
        %v2754 = vld [vmem:[#allocation10 + $0x40] sm:$0xff]
        %v2755 = vld [vmem:[#allocation10 + $0x48] sm:$0xff]
        %v2756 = vld [vmem:[#allocation10 + $0x50] sm:$0xff]
        %v2757 = vld [vmem:[#allocation10 + $0x58] sm:$0xff]
        %v2758 = vld [vmem:[#allocation10 + $0x60] sm:$0xff]
        %v2759 = vld [vmem:[#allocation10 + $0x68] sm:$0xff]
        %v2760 = vld [vmem:[#allocation10 + $0x70] sm:$0xff]
        %v2761 = vld [vmem:[#allocation10 + $0x78] sm:$0xff]
        %v2762 = vld [vmem:[%s7] sm:$0x1]
        %v2764 = vlaneseq
        %v2765 = vshrl.u32 %v2764, 7
        %v2766 = vsub.s32 0, %v2765
        %v2767 = vrot.slane %v2762, %v2766
        %2769 = vmatprep.subr.mxu0 0.0
        %2770 = vmatpush1.msra.mxu0 %v2746
        %2771 = vmatprep.subr.mxu0 0.0
        %2772 = vmatpush1.msra.mxu0 %v2747
        %2773 = vmatprep.subr.mxu0 0.0
        %2774 = vmatpush1.msra.mxu0 %v2748
        %2775 = vmatprep.subr.mxu0 0.0
        %2776 = vmatpush1.msra.mxu0 %v2749
        %2777 = vmatprep.subr.mxu0 0.0
        %2778 = vmatpush1.msra.mxu0 %v2750
        %2779 = vmatprep.subr.mxu0 0.0
        %2780 = vmatpush1.msra.mxu0 %v2751
        %2781 = vmatprep.subr.mxu0 0.0
        %2782 = vmatpush1.msra.mxu0 %v2752
        %2783 = vmatprep.subr.mxu0 0.0
        %2784 = vmatpush1.msra.mxu0 %v2753
        %2785 = vmatprep.subr.mxu0 0.0
        %2786 = vmatpush1.msra.mxu0 %v2754
        %2787 = vmatprep.subr.mxu0 0.0
        %2788 = vmatpush1.msra.mxu0 %v2755
        %2789 = vmatprep.subr.mxu0 0.0
        %2790 = vmatpush1.msra.mxu0 %v2756
        %2791 = vmatprep.subr.mxu0 0.0
        %2792 = vmatpush1.msra.mxu0 %v2757
        %2793 = vmatprep.subr.mxu0 0.0
        %2794 = vmatpush1.msra.mxu0 %v2758
        %2795 = vmatprep.subr.mxu0 0.0
        %2796 = vmatpush1.msra.mxu0 %v2759
        %2797 = vmatprep.subr.mxu0 0.0
        %2798 = vmatpush1.msra.mxu0 %v2760
        %2799 = vmatprep.subr.mxu0 0.0
        %2800 = vmatpush1.msra.mxu0 %v2761
        %2801 = vmatprep.subr.mxu0 0.0
        %2802 = vmatpush1.msra.mxu0 0.0
        %2803 = vmatprep.subr.mxu0 0.0
        %2804 = vmatpush1.msra.mxu0 0.0
        %2805 = vmatprep.subr.mxu0 0.0
        %2806 = vmatpush1.msra.mxu0 0.0
        %2807 = vmatprep.subr.mxu0 0.0
        %2808 = vmatpush1.msra.mxu0 0.0
        %2809 = vmatprep.subr.mxu0 0.0
        %2810 = vmatpush1.msra.mxu0 0.0
        %2811 = vmatprep.subr.mxu0 0.0
        %2812 = vmatpush1.msra.mxu0 0.0
        %2813 = vmatprep.subr.mxu0 0.0
        %2814 = vmatpush1.msra.mxu0 0.0
        %2815 = vmatprep.subr.mxu0 0.0
        %2816 = vmatpush1.msra.mxu0 0.0
        %2817 = vmatprep.subr.mxu0 0.0
        %2818 = vmatpush1.msra.mxu0 0.0
        %2819 = vmatprep.subr.mxu0 0.0
        %2820 = vmatpush1.msra.mxu0 0.0
        %2821 = vmatprep.subr.mxu0 0.0
        %2822 = vmatpush1.msra.mxu0 0.0
        %2823 = vmatprep.subr.mxu0 0.0
        %2824 = vmatpush1.msra.mxu0 0.0
        %2825 = vmatprep.subr.mxu0 0.0
        %2826 = vmatpush1.msra.mxu0 0.0
        %2827 = vmatprep.subr.mxu0 0.0
        %2828 = vmatpush1.msra.mxu0 0.0
        %2829 = vmatprep.subr.mxu0 0.0
        %2830 = vmatpush1.msra.mxu0 0.0
        %2831 = vmatprep.subr.mxu0 0.0
        %2832 = vmatpush1.msra.mxu0 0.0
        %2833 = vmatprep.mubr.f32.mxu0 0.0
        %2834 = vmatmul.mubr.f32.gmra.mrb[0].mxu0 %v2730
        %v2835 = vpop.f32.mrb[0].mxu0
        %v2836 = vadd.f32 %v2767, %v2835
        %v2837 = vpop.f32.mrb[0].mxu0
        %2838 = vmatprep.mubr.f32.mxu0 0.0
        %2839 = vmatmul.mubr.f32.gmra.mrb[0].mxu0 %v2731
        %v2840 = vpop.f32.mrb[0].mxu0
        %v2841 = vadd.f32 %v2767, %v2840
        %v2842 = vpop.f32.mrb[0].mxu0
        %2843 = vmatprep.mubr.f32.mxu0 0.0
        %2844 = vmatmul.mubr.f32.gmra.mrb[0].mxu0 %v2732
        %v2845 = vpop.f32.mrb[0].mxu0
        %v2846 = vadd.f32 %v2767, %v2845
        %v2847 = vpop.f32.mrb[0].mxu0
        %2848 = vmatprep.mubr.f32.mxu0 0.0
        %2849 = vmatmul.mubr.f32.gmra.mrb[0].mxu0 %v2733
        %v2850 = vpop.f32.mrb[0].mxu0
        %v2851 = vadd.f32 %v2767, %v2850
        %v2852 = vpop.f32.mrb[0].mxu0
        %2853 = vmatprep.mubr.f32.mxu0 0.0
        %2854 = vmatmul.mubr.f32.gmra.mrb[0].mxu0 %v2734
        %v2855 = vpop.f32.mrb[0].mxu0
        %v2856 = vadd.f32 %v2767, %v2855
        %v2857 = vpop.f32.mrb[0].mxu0
        %2858 = vmatprep.mubr.f32.mxu0 0.0
        %2859 = vmatmul.mubr.f32.gmra.mrb[0].mxu0 %v2735
        %v2860 = vpop.f32.mrb[0].mxu0
        %v2861 = vadd.f32 %v2767, %v2860
        %v2862 = vpop.f32.mrb[0].mxu0
        %2863 = vmatprep.mubr.f32.mxu0 0.0
        %2864 = vmatmul.mubr.f32.gmra.mrb[0].mxu0 %v2736
        %v2865 = vpop.f32.mrb[0].mxu0
        %v2866 = vadd.f32 %v2767, %v2865
        %v2867 = vpop.f32.mrb[0].mxu0
        %2868 = vmatprep.mubr.f32.mxu0 0.0
        %2869 = vmatmul.mubr.f32.gmra.mrb[0].mxu0 %v2737
        %v2870 = vpop.f32.mrb[0].mxu0
        %v2871 = vadd.f32 %v2767, %v2870
        %v2872 = vpop.f32.mrb[0].mxu0
        %2873 = vmatprep.mubr.f32.mxu0 0.0
        %2874 = vmatmul.mubr.f32.gmra.mrb[0].mxu0 %v2738
        %v2875 = vpop.f32.mrb[0].mxu0
        %v2876 = vadd.f32 %v2767, %v2875
        %v2877 = vpop.f32.mrb[0].mxu0
        %2878 = vmatprep.mubr.f32.mxu0 0.0
        %2879 = vmatmul.mubr.f32.gmra.mrb[0].mxu0 %v2739
        %v2880 = vpop.f32.mrb[0].mxu0
        %v2881 = vadd.f32 %v2767, %v2880
        %v2882 = vpop.f32.mrb[0].mxu0
        %2883 = vmatprep.mubr.f32.mxu0 0.0
        %2884 = vmatmul.mubr.f32.gmra.mrb[0].mxu0 %v2740
        %v2885 = vpop.f32.mrb[0].mxu0
        %v2886 = vadd.f32 %v2767, %v2885
        %v2887 = vpop.f32.mrb[0].mxu0
        %2888 = vmatprep.mubr.f32.mxu0 0.0
        %2889 = vmatmul.mubr.f32.gmra.mrb[0].mxu0 %v2741
        %v2890 = vpop.f32.mrb[0].mxu0
        %v2891 = vadd.f32 %v2767, %v2890
        %v2892 = vpop.f32.mrb[0].mxu0
        %2893 = vmatprep.mubr.f32.mxu0 0.0
        %2894 = vmatmul.mubr.f32.gmra.mrb[0].mxu0 %v2742
        %v2895 = vpop.f32.mrb[0].mxu0
        %v2896 = vadd.f32 %v2767, %v2895
        %v2897 = vpop.f32.mrb[0].mxu0
        %2898 = vmatprep.mubr.f32.mxu0 0.0
        %2899 = vmatmul.mubr.f32.gmra.mrb[0].mxu0 %v2743
        %v2900 = vpop.f32.mrb[0].mxu0
        %v2901 = vadd.f32 %v2767, %v2900
        %v2902 = vpop.f32.mrb[0].mxu0
        %2903 = vmatprep.mubr.f32.mxu0 0.0
        %2904 = vmatmul.mubr.f32.gmra.mrb[0].mxu0 %v2744
        %v2905 = vpop.f32.mrb[0].mxu0
        %v2906 = vadd.f32 %v2767, %v2905
        %v2907 = vpop.f32.mrb[0].mxu0
        %2908 = vmatprep.mubr.f32.mxu0 0.0
        %2909 = vmatmul.mubr.f32.gmra.mrb[0].mxu0 %v2745
        %v2910 = vpop.f32.mrb[0].mxu0
        %v2911 = vadd.f32 %v2767, %v2910
        %v2912 = vpop.f32.mrb[0].mxu0
        %2913 = vdwg.mxu0
        %v2914 = vadd.f32 %v2836, %v437
        %v2915 = vadd.f32 %v2841, %v438
        %v2916 = vadd.f32 %v2846, %v439
        %v2917 = vadd.f32 %v2851, %v440
        %v2918 = vadd.f32 %v2856, %v441
        %v2919 = vadd.f32 %v2861, %v442
        %v2920 = vadd.f32 %v2866, %v443
        %v2921 = vadd.f32 %v2871, %v444
        %v2922 = vadd.f32 %v2876, %v445
        %v2923 = vadd.f32 %v2881, %v446
        %v2924 = vadd.f32 %v2886, %v447
        %v2925 = vadd.f32 %v2891, %v448
        %v2926 = vadd.f32 %v2896, %v449
        %v2927 = vadd.f32 %v2901, %v450
        %v2928 = vadd.f32 %v2906, %v451
        %v2929 = vadd.f32 %v2911, %v452
        %2930 = vst [vmem:[%s430] sm:$0xff] %v2914
        %2931 = vst [vmem:[%s430 + $0x8] sm:$0xff] %v2915
        %2932 = vst [vmem:[%s430 + $0x10] sm:$0xff] %v2916
        %2933 = vst [vmem:[%s430 + $0x18] sm:$0xff] %v2917
        %2934 = vst [vmem:[%s430 + $0x20] sm:$0xff] %v2918
        %2935 = vst [vmem:[%s430 + $0x28] sm:$0xff] %v2919
        %2936 = vst [vmem:[%s430 + $0x30] sm:$0xff] %v2920
        %2937 = vst [vmem:[%s430 + $0x38] sm:$0xff] %v2921
        %2938 = vst [vmem:[%s430 + $0x40] sm:$0xff] %v2922
        %2939 = vst [vmem:[%s430 + $0x48] sm:$0xff] %v2923
        %2940 = vst [vmem:[%s430 + $0x50] sm:$0xff] %v2924
        %2941 = vst [vmem:[%s430 + $0x58] sm:$0xff] %v2925
        %2942 = vst [vmem:[%s430 + $0x60] sm:$0xff] %v2926
        %2943 = vst [vmem:[%s430 + $0x68] sm:$0xff] %v2927
        %2944 = vst [vmem:[%s430 + $0x70] sm:$0xff] %v2928
        %2945 = vst [vmem:[%s430 + $0x78] sm:$0xff] %v2929
        %s2946 = sand.u32 %s235, 1
        %s2947 = scalar_lea.sflag [#allocation4], %s2946
        %s2948 = sand.u32 %s235, 1
        %s2949 = smul.addr %s2948, 128
        %s2950 = scalar_lea.vmem [#allocation11], %s2949
        // Predicated region
        $region73: #{tpu_custom_call.1} parent=51 // pred_check
          %p2951 = pneg %p245
        $region74: #{tpu_custom_call.1} parent=51 // pred_check_branch
          %2953 = sbr.rel (%p2951) target = $region76
        $region75: #{tpu_custom_call.1} parent=51 // pred_region
          %s2954 = smul.u32 16, %s34
          %s2956 = ssub.s32 2048, 2048
          %2957 = vsyncadd %s2947, %s2956
          %s2958 = smul.addr %s33, 32
          %s2959 = sadd.s32 %s2954, %s2958
          %s2960 = smul.addr %s2959, 128
          %s2961 = scalar_lea.hbm %s8, %s2960
          %s2962 = sshll.u32 %s2950, 4
          %s2963 = int_to_ptr.vmem [resolvable:$true] %s2962
          %2968 = dma.vmem_to_hbm [thread:$0]  %s2963, 2048, %s2961, %s2947, 128, 128, 8
        $region76: #{tpu_custom_call.1} parent=51 // pred_fallthru
          _
      $region52: #{tpu_custom_call.1} parent=5 // pred_fallthru
        _
      %p2969 = scmp.le.s32.totalorder 2, %s24
      // Predicated region
      $region77: #{tpu_custom_call.1} parent=5 // pred_check
        %p2970 = pneg %p2969
      $region78: #{tpu_custom_call.1} parent=5 // pred_check_branch
        %2972 = sbr.rel (%p2970) target = $region80
      $region79: #{tpu_custom_call.1} parent=5 // pred_region
        %s2973 = ssub.s32 %s24, 2
        // Predicated region
        $region81: #{tpu_custom_call.1} parent=79 // pred_check
          %p2974 = pneg %p251
        $region82: #{tpu_custom_call.1} parent=79 // pred_check_branch
          %2976 = sbr.rel (%p2974) target = $region84
        $region83: #{tpu_custom_call.1} parent=79 // pred_region
          %s2977 = sand.u32 %s236, 1
          %s2978 = scalar_lea.sflag [#allocation4], %s2977
          %s2979 = sand.u32 %s236, 1
          %s2980 = smul.addr %s2979, 128
          %s2981 = scalar_lea.vmem [#allocation11], %s2980
          %2982 = dma.done %s2978, 2048
        $region84: #{tpu_custom_call.1} parent=79 // pred_fallthru
          _
      $region80: #{tpu_custom_call.1} parent=5 // pred_fallthru
        _
    $region6: #{tpu_custom_call.1} parent=1 // loop_footer
      %s28 = sadd.s32 1, %s24
    $region7: #{tpu_custom_call.1} parent=1 // loop_footer_branch
      %23 = sbr.rel target = $region3
    $region8: #{tpu_custom_call.1} parent=1 // loop_exit
      _
    %2983 = vsyncpa [#allocation3], 1
    %s2984 = scalar_lea.sflag [#allocation3], 1
    %2985 = vsyncpa %s2984, 1
    %2986 = vsyncpa [#allocation6], 1
    %s2987 = scalar_lea.sflag [#allocation6], 1
    %2988 = vsyncpa %s2987, 1
    %2989 = vsyncpa [#allocation9], 1
    %2990 = vsyncpa [#allocation4], 1
    %s2991 = scalar_lea.sflag [#allocation4], 1
    %2992 = vsyncpa %s2991, 1

// kernel: tpu_custom_call.1
$region0: #{tpu_custom_call.1}
  #allocation0 [shape = 'u32[]', space=smem, size = 0x4, offset = 0x4, fixed_abs, tag = 'smem constant byte address 0x4 - core index']
  #allocation1 [shape = 'u32[144,128]{1,0:T(1,128)}', space=vmem, size = 0x12000, scoped, tag = 'internal scratch']
  %s0 = inlined_call_operand.hbm [shape: f32[2,256,128], index: 0, kind: input, shape index: {}]
  %s1 = inlined_call_operand.hbm [shape: f32[4,32,128], index: 1, kind: input, shape index: {}]
  %s2 = inlined_call_operand.hbm [shape: f32[128,128], index: 2, kind: input, shape index: {}]
  %s3 = inlined_call_operand.vmem [shape: f32[1,128], index: 3, kind: input, shape index: {}]
  %s4 = inlined_call_operand.hbm [shape: f32[1152,128], index: 4, kind: input, shape index: {}]
  %s5 = inlined_call_operand.vmem [shape: f32[1,128], index: 5, kind: input, shape index: {}]
  %s6 = inlined_call_operand.hbm [shape: f32[128,128], index: 6, kind: input, shape index: {}]
  %s7 = inlined_call_operand.vmem [shape: f32[1,128], index: 7, kind: input, shape index: {}]
  %s8 = inlined_call_operand.hbm [shape: f32[2,256,128], index: 8, kind: output, shape index: {}]
  %s9 = sld [smem:[#allocation0]]
  $region85: #{tpu_custom_call.1} parent=0
    _
  %s11 = ssub.s32 1, %s9
  %s12 = scalar_select 0, %s11, %s9
  $region1: #{tpu_custom_call.1} parent=0
    #allocation2 [shape = 'u8[131072]{0}', space=vmem, size = 0x20000, scoped, tag = 'input window, operand 0']
    #allocation3 [shape = 's32[2]{0}', space=sflag, size = 0x8, scoped, tag = 'scoped memory for tpu_custom_call.1']
    #allocation4 [shape = 's32[2]{0}', space=sflag, size = 0x8, scoped, tag = 'scoped memory for tpu_custom_call.1']
    #allocation5 [shape = 'u8[32768]{0}', space=vmem, size = 0x8000, scoped, tag = 'input window, operand 1']
    #allocation6 [shape = 's32[2]{0}', space=sflag, size = 0x8, scoped, tag = 'scoped memory for tpu_custom_call.1']
    #allocation7 [shape = 'u8[65536]{0}', space=vmem, size = 0x10000, scoped, tag = 'input window, operand 2, single buffered']
    #allocation8 [shape = 'u8[589824]{0}', space=vmem, size = 0x90000, scoped, tag = 'input window, operand 4, single buffered']
    #allocation9 [shape = 's32[1]{0}', space=sflag, size = 0x4, scoped, tag = 'scoped memory for tpu_custom_call.1']
    #allocation10 [shape = 'u8[65536]{0}', space=vmem, size = 0x10000, scoped, tag = 'input window, operand 6, single buffered']
    #allocation11 [shape = 'u8[131072]{0}', space=vmem, size = 0x20000, scoped, tag = 'output window, operand 0']
    %13 = vsyncpa [#allocation3], 0
    %s14 = scalar_lea.sflag [#allocation3], 1
    %15 = vsyncpa %s14, 0
    %16 = vsyncpa [#allocation6], 0
    %s17 = scalar_lea.sflag [#allocation6], 1
    %18 = vsyncpa %s17, 0
    %19 = vsyncpa [#allocation9], 0
    %20 = vsyncpa [#allocation4], 0
    %s21 = scalar_lea.sflag [#allocation4], 1
    %22 = vsyncpa %s21, 0
    loop: start=0, step=1, limit=6
    $region2: #{tpu_custom_call.1} parent=1 // loop_pre_header
      _
    $region3: #{tpu_custom_call.1} parent=1 // loop_header
      %s24 = sphi 0, %s28
      %p25 = scmp.ge.s32.totalorder %s24, 6
      %s31 = sphi 0, %s43
      %s32 = sphi 0, %s39
      %s33 = sphi 0, %s31
      %s34 = sphi 0, %s32
      %s35 = sphi 0, %s33
      %s36 = sphi 0, %s34
      %s48 = sphi 0, %s50
      %s51 = sphi 0, %s48
      %s52 = sphi 0, %s51
      %s68 = sphi 0, %s52
      %s78 = sphi 0, %s80
      %s81 = sphi 0, %s78
      %s82 = sphi 0, %s81
      %s98 = sphi 0, %s82
      %s102 = sphi 0, %s102
      %s104 = sphi 0, %s102
      %s105 = sphi 0, %s104
      %s119 = sphi 0, %s105
      %s123 = sphi 0, %s123
      %s125 = sphi 0, %s123
      %s126 = sphi 0, %s125
      %s140 = sphi 0, %s126
      %s144 = sphi 0, %s144
      %s146 = sphi 0, %s144
      %s147 = sphi 0, %s146
      %s161 = sphi 0, %s147
      %s165 = sphi 0, %s165
      %s167 = sphi 0, %s165
      %s168 = sphi 0, %s167
      %s182 = sphi 0, %s168
      %s186 = sphi 0, %s186
      %s188 = sphi 0, %s186
      %s189 = sphi 0, %s188
      %s203 = sphi 0, %s189
      %s207 = sphi 0, %s207
      %s209 = sphi 0, %s207
      %s210 = sphi 0, %s209
      %s224 = sphi 0, %s210
      %s232 = sphi 0, %s234
      %s235 = sphi 0, %s232
      %s236 = sphi 0, %s235
      %s252 = sphi 0, %s236
    $region4: #{tpu_custom_call.1} parent=1 // loop_header_branch
      %27 = sbr.rel (%p25) target = $region8
    $region5: #{tpu_custom_call.1} parent=1 // loop_body
      %s29 = ssub.s32 %s24, 1
      %s30 = ssub.s32 %s24, 2
      %s37 = sadd.s32 1, %s32
      %p38 = scmp.ge.s32.totalorder %s37, 2
      %s39 = scalar_select %p38, 0, %s37
      %s40 = sadd.s32 1, %s31
      %s41 = scalar_select %p38, %s40, %s31
      %p42 = scmp.ge.s32.totalorder %s41, 2
      %s43 = scalar_select %p42, 0, %s41
      %s44 = ssub.s32 %s31, %s43
      %s45 = ssub.s32 %s32, %s39
      %s46 = sor.u32 %s44, %s45
      %p47 = scmp.eq.s32.totalorder %s46, 0
      %s49 = sadd.s32 %s48, 1
      %s50 = scalar_select %p47, %s48, %s49
      %p53 = pneg %p47
      %p54 = scmp.eq.s32.totalorder %s24, 3
      %p55 = por %p53, %p54
      %p56 = scmp.ne.s32.totalorder %s48, %s51
      %p57 = scmp.eq.s32.totalorder %s24, 0
      %p58 = por %p56, %p57
      %p59 = scmp.ne.s32.totalorder %s48, %s51
      %p60 = scmp.eq.s32.totalorder %s29, 3
      %p61 = por %p59, %p60
      %p62 = scmp.ne.s32.totalorder %s51, %s52
      %p63 = scmp.eq.s32.totalorder %s29, 0
      %p64 = por %p62, %p63
      %p65 = scmp.ne.s32.totalorder %s51, %s52
      %p66 = scmp.eq.s32.totalorder %s30, 3
      %p67 = por %p65, %p66
      %p69 = scmp.ne.s32.totalorder %s52, %s68
      %p70 = scmp.eq.s32.totalorder %s30, 0
      %p71 = por %p69, %p70
      %s72 = smul.u32 %s31, 2
      %s73 = sadd.s32 %s72, %s32
      %s74 = smul.u32 %s43, 2
      %s75 = sadd.s32 %s74, %s39
      %s76 = ssub.s32 %s73, %s75
      %p77 = scmp.eq.s32.totalorder %s76, 0
      %s79 = sadd.s32 %s78, 1
      %s80 = scalar_select %p77, %s78, %s79
      %p83 = pneg %p77
      %p84 = scmp.eq.s32.totalorder %s24, 3
      %p85 = por %p83, %p84
      %p86 = scmp.ne.s32.totalorder %s78, %s81
      %p87 = scmp.eq.s32.totalorder %s24, 0
      %p88 = por %p86, %p87
      %p89 = scmp.ne.s32.totalorder %s78, %s81
      %p90 = scmp.eq.s32.totalorder %s29, 3
      %p91 = por %p89, %p90
      %p92 = scmp.ne.s32.totalorder %s81, %s82
      %p93 = scmp.eq.s32.totalorder %s29, 0
      %p94 = por %p92, %p93
      %p95 = scmp.ne.s32.totalorder %s81, %s82
      %p96 = scmp.eq.s32.totalorder %s30, 3
      %p97 = por %p95, %p96
      %p99 = scmp.ne.s32.totalorder %s82, %s98
      %p100 = scmp.eq.s32.totalorder %s30, 0
      %p101 = por %p99, %p100
      %s103 = sadd.s32 %s102, 1
      %p106 = scmp.eq.s32.totalorder %s24, 3
      %p107 = scmp.ne.s32.totalorder %s102, %s104
      %p108 = scmp.eq.s32.totalorder %s24, 0
      %p109 = por %p107, %p108
      %p110 = scmp.ne.s32.totalorder %s102, %s104
      %p111 = scmp.eq.s32.totalorder %s29, 3
      %p112 = por %p110, %p111
      %p113 = scmp.ne.s32.totalorder %s104, %s105
      %p114 = scmp.eq.s32.totalorder %s29, 0
      %p115 = por %p113, %p114
      %p116 = scmp.ne.s32.totalorder %s104, %s105
      %p117 = scmp.eq.s32.totalorder %s30, 3
      %p118 = por %p116, %p117
      %p120 = scmp.ne.s32.totalorder %s105, %s119
      %p121 = scmp.eq.s32.totalorder %s30, 0
      %p122 = por %p120, %p121
      %s124 = sadd.s32 %s123, 1
      %p127 = scmp.eq.s32.totalorder %s24, 3
      %p128 = scmp.ne.s32.totalorder %s123, %s125
      %p129 = scmp.eq.s32.totalorder %s24, 0
      %p130 = por %p128, %p129
      %p131 = scmp.ne.s32.totalorder %s123, %s125
      %p132 = scmp.eq.s32.totalorder %s29, 3
      %p133 = por %p131, %p132
      %p134 = scmp.ne.s32.totalorder %s125, %s126
      %p135 = scmp.eq.s32.totalorder %s29, 0
      %p136 = por %p134, %p135
      %p137 = scmp.ne.s32.totalorder %s125, %s126
      %p138 = scmp.eq.s32.totalorder %s30, 3
      %p139 = por %p137, %p138
      %p141 = scmp.ne.s32.totalorder %s126, %s140
      %p142 = scmp.eq.s32.totalorder %s30, 0
      %p143 = por %p141, %p142
      %s145 = sadd.s32 %s144, 1
      %p148 = scmp.eq.s32.totalorder %s24, 3
      %p149 = scmp.ne.s32.totalorder %s144, %s146
      %p150 = scmp.eq.s32.totalorder %s24, 0
      %p151 = por %p149, %p150
      %p152 = scmp.ne.s32.totalorder %s144, %s146
      %p153 = scmp.eq.s32.totalorder %s29, 3
      %p154 = por %p152, %p153
      %p155 = scmp.ne.s32.totalorder %s146, %s147
      %p156 = scmp.eq.s32.totalorder %s29, 0
      %p157 = por %p155, %p156
      %p158 = scmp.ne.s32.totalorder %s146, %s147
      %p159 = scmp.eq.s32.totalorder %s30, 3
      %p160 = por %p158, %p159
      %p162 = scmp.ne.s32.totalorder %s147, %s161
      %p163 = scmp.eq.s32.totalorder %s30, 0
      %p164 = por %p162, %p163
      %s166 = sadd.s32 %s165, 1
      %p169 = scmp.eq.s32.totalorder %s24, 3
      %p170 = scmp.ne.s32.totalorder %s165, %s167
      %p171 = scmp.eq.s32.totalorder %s24, 0
      %p172 = por %p170, %p171
      %p173 = scmp.ne.s32.totalorder %s165, %s167
      %p174 = scmp.eq.s32.totalorder %s29, 3
      %p175 = por %p173, %p174
      %p176 = scmp.ne.s32.totalorder %s167, %s168
      %p177 = scmp.eq.s32.totalorder %s29, 0
      %p178 = por %p176, %p177
      %p179 = scmp.ne.s32.totalorder %s167, %s168
      %p180 = scmp.eq.s32.totalorder %s30, 3
      %p181 = por %p179, %p180
      %p183 = scmp.ne.s32.totalorder %s168, %s182
      %p184 = scmp.eq.s32.totalorder %s30, 0
      %p185 = por %p183, %p184
      %s187 = sadd.s32 %s186, 1
      %p190 = scmp.eq.s32.totalorder %s24, 3
      %p191 = scmp.ne.s32.totalorder %s186, %s188
      %p192 = scmp.eq.s32.totalorder %s24, 0
      %p193 = por %p191, %p192
      %p194 = scmp.ne.s32.totalorder %s186, %s188
      %p195 = scmp.eq.s32.totalorder %s29, 3
      %p196 = por %p194, %p195
      %p197 = scmp.ne.s32.totalorder %s188, %s189
      %p198 = scmp.eq.s32.totalorder %s29, 0
      %p199 = por %p197, %p198
      %p200 = scmp.ne.s32.totalorder %s188, %s189
      %p201 = scmp.eq.s32.totalorder %s30, 3
      %p202 = por %p200, %p201
      %p204 = scmp.ne.s32.totalorder %s189, %s203
      %p205 = scmp.eq.s32.totalorder %s30, 0
      %p206 = por %p204, %p205
      %s208 = sadd.s32 %s207, 1
      %p211 = scmp.eq.s32.totalorder %s24, 3
      %p212 = scmp.ne.s32.totalorder %s207, %s209
      %p213 = scmp.eq.s32.totalorder %s24, 0
      %p214 = por %p212, %p213
      %p215 = scmp.ne.s32.totalorder %s207, %s209
      %p216 = scmp.eq.s32.totalorder %s29, 3
      %p217 = por %p215, %p216
      %p218 = scmp.ne.s32.totalorder %s209, %s210
      %p219 = scmp.eq.s32.totalorder %s29, 0
      %p220 = por %p218, %p219
      %p221 = scmp.ne.s32.totalorder %s209, %s210
      %p222 = scmp.eq.s32.totalorder %s30, 3
      %p223 = por %p221, %p222
      %p225 = scmp.ne.s32.totalorder %s210, %s224
      %p226 = scmp.eq.s32.totalorder %s30, 0
      %p227 = por %p225, %p226
      %s228 = ssub.s32 %s31, %s43
      %s229 = ssub.s32 %s32, %s39
      %s230 = sor.u32 %s228, %s229
      %p231 = scmp.eq.s32.totalorder %s230, 0
      %s233 = sadd.s32 %s232, 1
      %s234 = scalar_select %p231, %s232, %s233
      %p237 = pneg %p231
      %p238 = scmp.eq.s32.totalorder %s24, 3
      %p239 = por %p237, %p238
      %p240 = scmp.ne.s32.totalorder %s232, %s235
      %p241 = scmp.eq.s32.totalorder %s24, 0
      %p242 = por %p240, %p241
      %p243 = scmp.ne.s32.totalorder %s232, %s235
      %p244 = scmp.eq.s32.totalorder %s29, 3
      %p245 = por %p243, %p244
      %p246 = scmp.ne.s32.totalorder %s235, %s236
      %p247 = scmp.eq.s32.totalorder %s29, 0
      %p248 = por %p246, %p247
      %p249 = scmp.ne.s32.totalorder %s235, %s236
      %p250 = scmp.eq.s32.totalorder %s30, 3
      %p251 = por %p249, %p250
      %p253 = scmp.ne.s32.totalorder %s236, %s252
      %p254 = scmp.eq.s32.totalorder %s30, 0
      %p255 = por %p253, %p254
      %p256 = scmp.le.s32.totalorder 1, %s24
      %p257 = scmp.lt.s32.totalorder %s24, 5
      %p258 = pnand %p256, %p257
      %p259 = pneg %p258
      // Predicated region
      $region9: #{tpu_custom_call.1} parent=5 // pred_check
        _
      $region10: #{tpu_custom_call.1} parent=5 // pred_check_branch
        %261 = sbr.rel (%p258) target = $region12
      $region11: #{tpu_custom_call.1} parent=5 // pred_region
        %s262 = ssub.s32 %s24, 1
        // Predicated region
        $region13: #{tpu_custom_call.1} parent=11 // pred_check
          %p263 = pneg %p115
        $region14: #{tpu_custom_call.1} parent=11 // pred_check_branch
          %265 = sbr.rel (%p263) target = $region16
        $region15: #{tpu_custom_call.1} parent=11 // pred_region
          %s267 = ssub.s32 2048, 2048
          %268 = vsyncadd [#allocation6], %s267
          %s269 = sshll.u32 [#allocation7], 4
          %s270 = int_to_ptr.vmem [resolvable:$true] %s269
          %275 = dma.hbm_to_vmem [thread:$0]  %s2, 2048, %s270, [#allocation6], 128, 128, 8
        $region16: #{tpu_custom_call.1} parent=11 // pred_fallthru
          _
        // Predicated region
        $region17: #{tpu_custom_call.1} parent=11 // pred_check
          %p276 = pneg %p136
        $region18: #{tpu_custom_call.1} parent=11 // pred_check_branch
          %278 = sbr.rel (%p276) target = $region20
        $region19: #{tpu_custom_call.1} parent=11 // pred_region
          _
        $region20: #{tpu_custom_call.1} parent=11 // pred_fallthru
          _
        // Predicated region
        $region21: #{tpu_custom_call.1} parent=11 // pred_check
          %p279 = pneg %p157
        $region22: #{tpu_custom_call.1} parent=11 // pred_check_branch
          %281 = sbr.rel (%p279) target = $region24
        $region23: #{tpu_custom_call.1} parent=11 // pred_region
          %s283 = ssub.s32 18432, 18432
          %284 = vsyncadd [#allocation9], %s283
          %s285 = sshll.u32 [#allocation8], 4
          %s286 = int_to_ptr.vmem [resolvable:$true] %s285
          %291 = dma.hbm_to_vmem [thread:$0]  %s4, 18432, %s286, [#allocation9], 128, 128, 8
        $region24: #{tpu_custom_call.1} parent=11 // pred_fallthru
          _
        // Predicated region
        $region25: #{tpu_custom_call.1} parent=11 // pred_check
          %p292 = pneg %p178
        $region26: #{tpu_custom_call.1} parent=11 // pred_check_branch
          %294 = sbr.rel (%p292) target = $region28
        $region27: #{tpu_custom_call.1} parent=11 // pred_region
          _
        $region28: #{tpu_custom_call.1} parent=11 // pred_fallthru
          _
        // Predicated region
        $region29: #{tpu_custom_call.1} parent=11 // pred_check
          %p295 = pneg %p199
        $region30: #{tpu_custom_call.1} parent=11 // pred_check_branch
          %297 = sbr.rel (%p295) target = $region32
        $region31: #{tpu_custom_call.1} parent=11 // pred_region
          %s299 = ssub.s32 2048, 2048
          %300 = vsyncadd [#allocation9], %s299
          %s301 = sshll.u32 [#allocation10], 4
          %s302 = int_to_ptr.vmem [resolvable:$true] %s301
          %307 = dma.hbm_to_vmem [thread:$0]  %s6, 2048, %s302, [#allocation9], 128, 128, 8
        $region32: #{tpu_custom_call.1} parent=11 // pred_fallthru
          _
        // Predicated region
        $region33: #{tpu_custom_call.1} parent=11 // pred_check
          %p308 = pneg %p220
        $region34: #{tpu_custom_call.1} parent=11 // pred_check_branch
          %310 = sbr.rel (%p308) target = $region36
        $region35: #{tpu_custom_call.1} parent=11 // pred_region
          _
        $region36: #{tpu_custom_call.1} parent=11 // pred_fallthru
          _
      $region12: #{tpu_custom_call.1} parent=5 // pred_fallthru
        _
      %p311 = scmp.lt.s32.totalorder %s24, 4
      // Predicated region
      $region37: #{tpu_custom_call.1} parent=5 // pred_check
        %p312 = pneg %p311
      $region38: #{tpu_custom_call.1} parent=5 // pred_check_branch
        %314 = sbr.rel (%p312) target = $region40
      $region39: #{tpu_custom_call.1} parent=5 // pred_region
        // Predicated region
        $region41: #{tpu_custom_call.1} parent=39 // pred_check
          %p315 = pneg %p58
        $region42: #{tpu_custom_call.1} parent=39 // pred_check_branch
          %317 = sbr.rel (%p315) target = $region44
        $region43: #{tpu_custom_call.1} parent=39 // pred_region
          %s318 = sand.u32 %s48, 1
          %s319 = scalar_lea.sflag [#allocation3], %s318
          %s320 = sand.u32 %s48, 1
          %s321 = smul.addr %s320, 128
          %s322 = scalar_lea.vmem [#allocation2], %s321
          %s323 = smul.u32 16, %s32
          %s325 = ssub.s32 2048, 2048
          %326 = vsyncadd %s319, %s325
          %s327 = smul.addr %s31, 32
          %s328 = sadd.s32 %s323, %s327
          %s329 = smul.addr %s328, 128
          %s330 = scalar_lea.hbm %s0, %s329
          %s331 = sshll.u32 %s322, 4
          %s332 = int_to_ptr.vmem [resolvable:$true] %s331
          %337 = dma.hbm_to_vmem [thread:$0]  %s330, 2048, %s332, %s319, 128, 128, 8
        $region44: #{tpu_custom_call.1} parent=39 // pred_fallthru
          _
        // Predicated region
        $region45: #{tpu_custom_call.1} parent=39 // pred_check
          %p338 = pneg %p88
        $region46: #{tpu_custom_call.1} parent=39 // pred_check_branch
          %340 = sbr.rel (%p338) target = $region48
        $region47: #{tpu_custom_call.1} parent=39 // pred_region
          %s341 = sand.u32 %s24, 1
          %s342 = scalar_lea.sflag [#allocation6], %s341
          %s343 = sand.u32 %s78, 1
          %s344 = smul.addr %s343, 32
          %s345 = scalar_lea.vmem [#allocation5], %s344
          %s346 = smul.u32 %s31, 2
          %s347 = sadd.s32 %s346, %s32
          %s349 = ssub.s32 512, 512
          %350 = vsyncadd %s342, %s349
          %s351 = smul.addr %s347, 4
          %s352 = smul.addr %s351, 128
          %s353 = scalar_lea.hbm %s1, %s352
          %s354 = sshll.u32 %s345, 4
          %s355 = int_to_ptr.vmem [resolvable:$true] %s354
          %360 = dma.hbm_to_vmem [thread:$0]  %s353, 512, %s355, %s342, 128, 128, 8
        $region48: #{tpu_custom_call.1} parent=39 // pred_fallthru
          _
      $region40: #{tpu_custom_call.1} parent=5 // pred_fallthru
        _
      %p361 = scmp.le.s32.totalorder 1, %s24
      %p362 = scmp.lt.s32.totalorder %s24, 5
      %p363 = pnand %p361, %p362
      %p364 = pneg %p363
      // Predicated region
      $region49: #{tpu_custom_call.1} parent=5 // pred_check
        _
      $region50: #{tpu_custom_call.1} parent=5 // pred_check_branch
        %366 = sbr.rel (%p363) target = $region52
      $region51: #{tpu_custom_call.1} parent=5 // pred_region
        %s367 = ssub.s32 %s24, 1
        %s368 = sand.u32 %s51, 1
        %s369 = scalar_lea.sflag [#allocation3], %s368
        %s370 = sand.u32 %s51, 1
        %s371 = smul.addr %s370, 128
        %s372 = scalar_lea.vmem [#allocation2], %s371
        // Predicated region
        $region53: #{tpu_custom_call.1} parent=51 // pred_check
          %p373 = pneg %p64
        $region54: #{tpu_custom_call.1} parent=51 // pred_check_branch
          %375 = sbr.rel (%p373) target = $region56
        $region55: #{tpu_custom_call.1} parent=51 // pred_region
          %376 = dma.done %s369, 2048
        $region56: #{tpu_custom_call.1} parent=51 // pred_fallthru
          _
        %s377 = sand.u32 %s29, 1
        %s378 = scalar_lea.sflag [#allocation6], %s377
        %s379 = sand.u32 %s81, 1
        %s380 = smul.addr %s379, 32
        %s381 = scalar_lea.vmem [#allocation5], %s380
        // Predicated region
        $region57: #{tpu_custom_call.1} parent=51 // pred_check
          %p382 = pneg %p94
        $region58: #{tpu_custom_call.1} parent=51 // pred_check_branch
          %384 = sbr.rel (%p382) target = $region60
        $region59: #{tpu_custom_call.1} parent=51 // pred_region
          %385 = dma.done %s378, 512
        $region60: #{tpu_custom_call.1} parent=51 // pred_fallthru
          _
        // Predicated region
        $region61: #{tpu_custom_call.1} parent=51 // pred_check
          %p386 = pneg %p115
        $region62: #{tpu_custom_call.1} parent=51 // pred_check_branch
          %388 = sbr.rel (%p386) target = $region64
        $region63: #{tpu_custom_call.1} parent=51 // pred_region
          %389 = dma.done [#allocation6], 2048
        $region64: #{tpu_custom_call.1} parent=51 // pred_fallthru
          _
        // Predicated region
        $region65: #{tpu_custom_call.1} parent=51 // pred_check
          %p390 = pneg %p157
        $region66: #{tpu_custom_call.1} parent=51 // pred_check_branch
          %392 = sbr.rel (%p390) target = $region68
        $region67: #{tpu_custom_call.1} parent=51 // pred_region
          %393 = dma.done [#allocation9], 18432
        $region68: #{tpu_custom_call.1} parent=51 // pred_fallthru
          _
        // Predicated region
        $region69: #{tpu_custom_call.1} parent=51 // pred_check
          %p394 = pneg %p199
        $region70: #{tpu_custom_call.1} parent=51 // pred_check_branch
          %396 = sbr.rel (%p394) target = $region72
        $region71: #{tpu_custom_call.1} parent=51 // pred_region
          %397 = dma.done [#allocation9], 2048
        $region72: #{tpu_custom_call.1} parent=51 // pred_fallthru
          _
        %s398 = sand.u32 %s51, 1
        %s399 = scalar_lea.sflag [#allocation3], %s398
        %s400 = sand.u32 %s51, 1
        %s401 = smul.addr %s400, 128
        %s402 = scalar_lea.vmem [#allocation2], %s401
        %p403 = pneg %p64
        %p404 = pneg %p61
        %s405 = sand.u32 %s29, 1
        %s406 = scalar_lea.sflag [#allocation6], %s405
        %s407 = sand.u32 %s81, 1
        %s408 = smul.addr %s407, 32
        %s409 = scalar_lea.vmem [#allocation5], %s408
        %p410 = pneg %p94
        %p411 = pneg %p91
        %p412 = pneg %p115
        %p413 = pneg %p112
        %p414 = pneg %p136
        %p415 = pneg %p133
        %p416 = pneg %p157
        %p417 = pneg %p154
        %p418 = pneg %p178
        %p419 = pneg %p175
        %p420 = pneg %p199
        %p421 = pneg %p196
        %p422 = pneg %p220
        %p423 = pneg %p217
        %p424 = pneg %p248
        %p425 = pneg %p245
        %s426 = sand.u32 %s235, 1
        %s427 = scalar_lea.sflag [#allocation4], %s426
        %s428 = sand.u32 %s235, 1
        %s429 = smul.addr %s428, 128
        %s430 = scalar_lea.vmem [#allocation11], %s429
        %s431 = smul.u32 16, %s34
        %s432 = smul.u32 %s33, 2
        %s433 = sadd.s32 %s432, %s34
        %s434 = smul.u32 16, %s34
        %v435 = vld [vmem:[%s381] sm:$0xff]
        %v436 = vld [vmem:[%s381 + $0x8] sm:$0xff]
        %v437 = vld [vmem:[%s372] sm:$0xff]
        %v438 = vld [vmem:[%s372 + $0x8] sm:$0xff]
        %v439 = vld [vmem:[%s372 + $0x10] sm:$0xff]
        %v440 = vld [vmem:[%s372 + $0x18] sm:$0xff]
        %v441 = vld [vmem:[%s372 + $0x20] sm:$0xff]
        %v442 = vld [vmem:[%s372 + $0x28] sm:$0xff]
        %v443 = vld [vmem:[%s372 + $0x30] sm:$0xff]
        %v444 = vld [vmem:[%s372 + $0x38] sm:$0xff]
        %v445 = vld [vmem:[%s372 + $0x40] sm:$0xff]
        %v446 = vld [vmem:[%s372 + $0x48] sm:$0xff]
        %v447 = vld [vmem:[%s372 + $0x50] sm:$0xff]
        %v448 = vld [vmem:[%s372 + $0x58] sm:$0xff]
        %v449 = vld [vmem:[%s372 + $0x60] sm:$0xff]
        %v450 = vld [vmem:[%s372 + $0x68] sm:$0xff]
        %v451 = vld [vmem:[%s372 + $0x70] sm:$0xff]
        %v452 = vld [vmem:[%s372 + $0x78] sm:$0xff]
        %v453 = vld [vmem:[%s381 + $0x10] sm:$0xff]
        %v454 = vld [vmem:[%s381 + $0x18] sm:$0xff]
        %v455 = vld [vmem:[#allocation7] sm:$0xff]
        %v456 = vld [vmem:[#allocation7 + $0x8] sm:$0xff]
        %v457 = vld [vmem:[#allocation7 + $0x10] sm:$0xff]
        %v458 = vld [vmem:[#allocation7 + $0x18] sm:$0xff]
        %v459 = vld [vmem:[#allocation7 + $0x20] sm:$0xff]
        %v460 = vld [vmem:[#allocation7 + $0x28] sm:$0xff]
        %v461 = vld [vmem:[#allocation7 + $0x30] sm:$0xff]
        %v462 = vld [vmem:[#allocation7 + $0x38] sm:$0xff]
        %v463 = vld [vmem:[#allocation7 + $0x40] sm:$0xff]
        %v464 = vld [vmem:[#allocation7 + $0x48] sm:$0xff]
        %v465 = vld [vmem:[#allocation7 + $0x50] sm:$0xff]
        %v466 = vld [vmem:[#allocation7 + $0x58] sm:$0xff]
        %v467 = vld [vmem:[#allocation7 + $0x60] sm:$0xff]
        %v468 = vld [vmem:[#allocation7 + $0x68] sm:$0xff]
        %v469 = vld [vmem:[#allocation7 + $0x70] sm:$0xff]
        %v470 = vld [vmem:[#allocation7 + $0x78] sm:$0xff]
        %v471 = vld [vmem:[%s3] sm:$0x1]
        %v473 = vlaneseq
        %v474 = vshrl.u32 %v473, 7
        %v475 = vsub.s32 0, %v474
        %v476 = vrot.slane %v471, %v475
        %478 = vmatprep.subr.mxu0 0.0
        %479 = vmatpush1.msra.mxu0 %v455
        %480 = vmatprep.subr.mxu0 0.0
        %481 = vmatpush1.msra.mxu0 %v456
        %482 = vmatprep.subr.mxu0 0.0
        %483 = vmatpush1.msra.mxu0 %v457
        %484 = vmatprep.subr.mxu0 0.0
        %485 = vmatpush1.msra.mxu0 %v458
        %486 = vmatprep.subr.mxu0 0.0
        %487 = vmatpush1.msra.mxu0 %v459
        %488 = vmatprep.subr.mxu0 0.0
        %489 = vmatpush1.msra.mxu0 %v460
        %490 = vmatprep.subr.mxu0 0.0
        %491 = vmatpush1.msra.mxu0 %v461
        %492 = vmatprep.subr.mxu0 0.0
        %493 = vmatpush1.msra.mxu0 %v462
        %494 = vmatprep.subr.mxu0 0.0
        %495 = vmatpush1.msra.mxu0 %v463
        %496 = vmatprep.subr.mxu0 0.0
        %497 = vmatpush1.msra.mxu0 %v464
        %498 = vmatprep.subr.mxu0 0.0
        %499 = vmatpush1.msra.mxu0 %v465
        %500 = vmatprep.subr.mxu0 0.0
        %501 = vmatpush1.msra.mxu0 %v466
        %502 = vmatprep.subr.mxu0 0.0
        %503 = vmatpush1.msra.mxu0 %v467
        %504 = vmatprep.subr.mxu0 0.0
        %505 = vmatpush1.msra.mxu0 %v468
        %506 = vmatprep.subr.mxu0 0.0
        %507 = vmatpush1.msra.mxu0 %v469
        %508 = vmatprep.subr.mxu0 0.0
        %509 = vmatpush1.msra.mxu0 %v470
        %510 = vmatprep.subr.mxu0 0.0
        %511 = vmatpush1.msra.mxu0 0.0
        %512 = vmatprep.subr.mxu0 0.0
        %513 = vmatpush1.msra.mxu0 0.0
        %514 = vmatprep.subr.mxu0 0.0
        %515 = vmatpush1.msra.mxu0 0.0
        %516 = vmatprep.subr.mxu0 0.0
        %517 = vmatpush1.msra.mxu0 0.0
        %518 = vmatprep.subr.mxu0 0.0
        %519 = vmatpush1.msra.mxu0 0.0
        %520 = vmatprep.subr.mxu0 0.0
        %521 = vmatpush1.msra.mxu0 0.0
        %522 = vmatprep.subr.mxu0 0.0
        %523 = vmatpush1.msra.mxu0 0.0
        %524 = vmatprep.subr.mxu0 0.0
        %525 = vmatpush1.msra.mxu0 0.0
        %526 = vmatprep.subr.mxu0 0.0
        %527 = vmatpush1.msra.mxu0 0.0
        %528 = vmatprep.subr.mxu0 0.0
        %529 = vmatpush1.msra.mxu0 0.0
        %530 = vmatprep.subr.mxu0 0.0
        %531 = vmatpush1.msra.mxu0 0.0
        %532 = vmatprep.subr.mxu0 0.0
        %533 = vmatpush1.msra.mxu0 0.0
        %534 = vmatprep.subr.mxu0 0.0
        %535 = vmatpush1.msra.mxu0 0.0
        %536 = vmatprep.subr.mxu0 0.0
        %537 = vmatpush1.msra.mxu0 0.0
        %538 = vmatprep.subr.mxu0 0.0
        %539 = vmatpush1.msra.mxu0 0.0
        %540 = vmatprep.subr.mxu0 0.0
        %541 = vmatpush1.msra.mxu0 0.0
        %542 = vmatprep.mubr.f32.mxu0 0.0
        %543 = vmatmul.mubr.f32.gmra.mrb[0].mxu0 %v435
        %v544 = vpop.f32.mrb[0].mxu0
        %v545 = vadd.f32 %v476, %v544
        %v546 = vpop.f32.mrb[0].mxu0
        %547 = vmatprep.mubr.f32.mxu0 0.0
        %548 = vmatmul.mubr.f32.gmra.mrb[0].mxu0 %v436
        %v549 = vpop.f32.mrb[0].mxu0
        %v550 = vadd.f32 %v476, %v549
        %v551 = vpop.f32.mrb[0].mxu0
        %552 = vmatprep.mubr.f32.mxu0 0.0
        %553 = vmatmul.mubr.f32.gmra.mrb[0].mxu0 %v437
        %v554 = vpop.f32.mrb[0].mxu0
        %v555 = vadd.f32 %v476, %v554
        %v556 = vpop.f32.mrb[0].mxu0
        %557 = vmatprep.mubr.f32.mxu0 0.0
        %558 = vmatmul.mubr.f32.gmra.mrb[0].mxu0 %v438
        %v559 = vpop.f32.mrb[0].mxu0
        %v560 = vadd.f32 %v476, %v559
        %v561 = vpop.f32.mrb[0].mxu0
        %562 = vmatprep.mubr.f32.mxu0 0.0
        %563 = vmatmul.mubr.f32.gmra.mrb[0].mxu0 %v439
        %v564 = vpop.f32.mrb[0].mxu0
        %v565 = vadd.f32 %v476, %v564
        %v566 = vpop.f32.mrb[0].mxu0
        %567 = vmatprep.mubr.f32.mxu0 0.0
        %568 = vmatmul.mubr.f32.gmra.mrb[0].mxu0 %v440
        %v569 = vpop.f32.mrb[0].mxu0
        %v570 = vadd.f32 %v476, %v569
        %v571 = vpop.f32.mrb[0].mxu0
        %572 = vmatprep.mubr.f32.mxu0 0.0
        %573 = vmatmul.mubr.f32.gmra.mrb[0].mxu0 %v441
        %v574 = vpop.f32.mrb[0].mxu0
        %v575 = vadd.f32 %v476, %v574
        %v576 = vpop.f32.mrb[0].mxu0
        %577 = vmatprep.mubr.f32.mxu0 0.0
        %578 = vmatmul.mubr.f32.gmra.mrb[0].mxu0 %v442
        %v579 = vpop.f32.mrb[0].mxu0
        %v580 = vadd.f32 %v476, %v579
        %v581 = vpop.f32.mrb[0].mxu0
        %582 = vmatprep.mubr.f32.mxu0 0.0
        %583 = vmatmul.mubr.f32.gmra.mrb[0].mxu0 %v443
        %v584 = vpop.f32.mrb[0].mxu0
        %v585 = vadd.f32 %v476, %v584
        %v586 = vpop.f32.mrb[0].mxu0
        %587 = vmatprep.mubr.f32.mxu0 0.0
        %588 = vmatmul.mubr.f32.gmra.mrb[0].mxu0 %v444
        %v589 = vpop.f32.mrb[0].mxu0
        %v590 = vadd.f32 %v476, %v589
        %v591 = vpop.f32.mrb[0].mxu0
        %592 = vmatprep.mubr.f32.mxu0 0.0
        %593 = vmatmul.mubr.f32.gmra.mrb[0].mxu0 %v445
        %v594 = vpop.f32.mrb[0].mxu0
        %v595 = vadd.f32 %v476, %v594
        %v596 = vpop.f32.mrb[0].mxu0
        %597 = vmatprep.mubr.f32.mxu0 0.0
        %598 = vmatmul.mubr.f32.gmra.mrb[0].mxu0 %v446
        %v599 = vpop.f32.mrb[0].mxu0
        %v600 = vadd.f32 %v476, %v599
        %v601 = vpop.f32.mrb[0].mxu0
        %602 = vmatprep.mubr.f32.mxu0 0.0
        %603 = vmatmul.mubr.f32.gmra.mrb[0].mxu0 %v447
        %v604 = vpop.f32.mrb[0].mxu0
        %v605 = vadd.f32 %v476, %v604
        %v606 = vpop.f32.mrb[0].mxu0
        %607 = vmatprep.mubr.f32.mxu0 0.0
        %608 = vmatmul.mubr.f32.gmra.mrb[0].mxu0 %v448
        %v609 = vpop.f32.mrb[0].mxu0
        %v610 = vadd.f32 %v476, %v609
        %v611 = vpop.f32.mrb[0].mxu0
        %612 = vmatprep.mubr.f32.mxu0 0.0
        %613 = vmatmul.mubr.f32.gmra.mrb[0].mxu0 %v449
        %v614 = vpop.f32.mrb[0].mxu0
        %v615 = vadd.f32 %v476, %v614
        %v616 = vpop.f32.mrb[0].mxu0
        %617 = vmatprep.mubr.f32.mxu0 0.0
        %618 = vmatmul.mubr.f32.gmra.mrb[0].mxu0 %v450
        %v619 = vpop.f32.mrb[0].mxu0
        %v620 = vadd.f32 %v476, %v619
        %v621 = vpop.f32.mrb[0].mxu0
        %622 = vmatprep.mubr.f32.mxu0 0.0
        %623 = vmatmul.mubr.f32.gmra.mrb[0].mxu0 %v451
        %v624 = vpop.f32.mrb[0].mxu0
        %v625 = vadd.f32 %v476, %v624
        %v626 = vpop.f32.mrb[0].mxu0
        %627 = vmatprep.mubr.f32.mxu0 0.0
        %628 = vmatmul.mubr.f32.gmra.mrb[0].mxu0 %v452
        %v629 = vpop.f32.mrb[0].mxu0
        %v630 = vadd.f32 %v476, %v629
        %v631 = vpop.f32.mrb[0].mxu0
        %632 = vmatprep.mubr.f32.mxu0 0.0
        %633 = vmatmul.mubr.f32.gmra.mrb[0].mxu0 %v453
        %v634 = vpop.f32.mrb[0].mxu0
        %v635 = vadd.f32 %v476, %v634
        %v636 = vpop.f32.mrb[0].mxu0
        %637 = vmatprep.mubr.f32.mxu0 0.0
        %638 = vmatmul.mubr.f32.gmra.mrb[0].mxu0 %v454
        %v639 = vpop.f32.mrb[0].mxu0
        %v640 = vadd.f32 %v476, %v639
        %v641 = vpop.f32.mrb[0].mxu0
        %642 = vdwg.mxu0
        %v643 = vlaneseq
        %v644 = vshrl.u32 %v643, 7
        %v645 = vadd.s32 %v644, 8
        %v646 = vadd.s32 %v644, 16
        %v647 = vadd.s32 %v644, 24
        %v648 = vadd.s32 %v644, 32
        %v649 = vadd.s32 %v644, 40
        %v650 = vadd.s32 %v644, 48
        %v651 = vadd.s32 %v644, 56
        %v652 = vadd.s32 %v644, 64
        %v653 = vadd.s32 %v644, 72
        %v654 = vadd.s32 %v644, 80
        %v655 = vadd.s32 %v644, 88
        %v656 = vadd.s32 %v644, 96
        %v657 = vadd.s32 %v644, 104
        %v658 = vadd.s32 %v644, 112
        %v659 = vadd.s32 %v644, 120
        %vm660 = vcmp.lt.s32.totalorder %v644, 0
        %v661 = vsub.s32 0, %v644
        %v662 = vsel %vm660, %v661, %v644
        %v663 = vshrl.u32 %v662, 4
        %v664 = vand.u32 %v662, 15
        %v665 = vsub.s32 0, %v664
        %v666 = vsel %vm660, %v665, %v664
        %vm667 = vcmp.lt.s32.totalorder %v645, 0
        %v668 = vsub.s32 0, %v645
        %v669 = vsel %vm667, %v668, %v645
        %v670 = vshrl.u32 %v669, 4
        %v671 = vand.u32 %v669, 15
        %v672 = vsub.s32 0, %v671
        %v673 = vsel %vm667, %v672, %v671
        %vm674 = vcmp.lt.s32.totalorder %v646, 0
        %v675 = vsub.s32 0, %v646
        %v676 = vsel %vm674, %v675, %v646
        %v677 = vshrl.u32 %v676, 4
        %v678 = vand.u32 %v676, 15
        %v679 = vsub.s32 0, %v678
        %v680 = vsel %vm674, %v679, %v678
        %vm681 = vcmp.lt.s32.totalorder %v647, 0
        %v682 = vsub.s32 0, %v647
        %v683 = vsel %vm681, %v682, %v647
        %v684 = vshrl.u32 %v683, 4
        %v685 = vand.u32 %v683, 15
        %v686 = vsub.s32 0, %v685
        %v687 = vsel %vm681, %v686, %v685
        %vm688 = vcmp.lt.s32.totalorder %v648, 0
        %v689 = vsub.s32 0, %v648
        %v690 = vsel %vm688, %v689, %v648
        %v691 = vshrl.u32 %v690, 4
        %v692 = vand.u32 %v690, 15
        %v693 = vsub.s32 0, %v692
        %v694 = vsel %vm688, %v693, %v692
        %vm695 = vcmp.lt.s32.totalorder %v649, 0
        %v696 = vsub.s32 0, %v649
        %v697 = vsel %vm695, %v696, %v649
        %v698 = vshrl.u32 %v697, 4
        %v699 = vand.u32 %v697, 15
        %v700 = vsub.s32 0, %v699
        %v701 = vsel %vm695, %v700, %v699
        %vm702 = vcmp.lt.s32.totalorder %v650, 0
        %v703 = vsub.s32 0, %v650
        %v704 = vsel %vm702, %v703, %v650
        %v705 = vshrl.u32 %v704, 4
        %v706 = vand.u32 %v704, 15
        %v707 = vsub.s32 0, %v706
        %v708 = vsel %vm702, %v707, %v706
        %vm709 = vcmp.lt.s32.totalorder %v651, 0
        %v710 = vsub.s32 0, %v651
        %v711 = vsel %vm709, %v710, %v651
        %v712 = vshrl.u32 %v711, 4
        %v713 = vand.u32 %v711, 15
        %v714 = vsub.s32 0, %v713
        %v715 = vsel %vm709, %v714, %v713
        %vm716 = vcmp.lt.s32.totalorder %v652, 0
        %v717 = vsub.s32 0, %v652
        %v718 = vsel %vm716, %v717, %v652
        %v719 = vshrl.u32 %v718, 4
        %v720 = vand.u32 %v718, 15
        %v721 = vsub.s32 0, %v720
        %v722 = vsel %vm716, %v721, %v720
        %vm723 = vcmp.lt.s32.totalorder %v653, 0
        %v724 = vsub.s32 0, %v653
        %v725 = vsel %vm723, %v724, %v653
        %v726 = vshrl.u32 %v725, 4
        %v727 = vand.u32 %v725, 15
        %v728 = vsub.s32 0, %v727
        %v729 = vsel %vm723, %v728, %v727
        %vm730 = vcmp.lt.s32.totalorder %v654, 0
        %v731 = vsub.s32 0, %v654
        %v732 = vsel %vm730, %v731, %v654
        %v733 = vshrl.u32 %v732, 4
        %v734 = vand.u32 %v732, 15
        %v735 = vsub.s32 0, %v734
        %v736 = vsel %vm730, %v735, %v734
        %vm737 = vcmp.lt.s32.totalorder %v655, 0
        %v738 = vsub.s32 0, %v655
        %v739 = vsel %vm737, %v738, %v655
        %v740 = vshrl.u32 %v739, 4
        %v741 = vand.u32 %v739, 15
        %v742 = vsub.s32 0, %v741
        %v743 = vsel %vm737, %v742, %v741
        %vm744 = vcmp.lt.s32.totalorder %v656, 0
        %v745 = vsub.s32 0, %v656
        %v746 = vsel %vm744, %v745, %v656
        %v747 = vshrl.u32 %v746, 4
        %v748 = vand.u32 %v746, 15
        %v749 = vsub.s32 0, %v748
        %v750 = vsel %vm744, %v749, %v748
        %vm751 = vcmp.lt.s32.totalorder %v657, 0
        %v752 = vsub.s32 0, %v657
        %v753 = vsel %vm751, %v752, %v657
        %v754 = vshrl.u32 %v753, 4
        %v755 = vand.u32 %v753, 15
        %v756 = vsub.s32 0, %v755
        %v757 = vsel %vm751, %v756, %v755
        %vm758 = vcmp.lt.s32.totalorder %v658, 0
        %v759 = vsub.s32 0, %v658
        %v760 = vsel %vm758, %v759, %v658
        %v761 = vshrl.u32 %v760, 4
        %v762 = vand.u32 %v760, 15
        %v763 = vsub.s32 0, %v762
        %v764 = vsel %vm758, %v763, %v762
        %vm765 = vcmp.lt.s32.totalorder %v659, 0
        %v766 = vsub.s32 0, %v659
        %v767 = vsel %vm765, %v766, %v659
        %v768 = vshrl.u32 %v767, 4
        %v769 = vand.u32 %v767, 15
        %v770 = vsub.s32 0, %v769
        %v771 = vsel %vm765, %v770, %v769
        %vm772 = vcmp.ne.s32.totalorder %v666, 0
        %vm773 = vcmp.ne.s32.totalorder %v673, 0
        %vm774 = vcmp.ne.s32.totalorder %v680, 0
        %vm775 = vcmp.ne.s32.totalorder %v687, 0
        %vm776 = vcmp.ne.s32.totalorder %v694, 0
        %vm777 = vcmp.ne.s32.totalorder %v701, 0
        %vm778 = vcmp.ne.s32.totalorder %v708, 0
        %vm779 = vcmp.ne.s32.totalorder %v715, 0
        %vm780 = vcmp.ne.s32.totalorder %v722, 0
        %vm781 = vcmp.ne.s32.totalorder %v729, 0
        %vm782 = vcmp.ne.s32.totalorder %v736, 0
        %vm783 = vcmp.ne.s32.totalorder %v743, 0
        %vm784 = vcmp.ne.s32.totalorder %v750, 0
        %vm785 = vcmp.ne.s32.totalorder %v757, 0
        %vm786 = vcmp.ne.s32.totalorder %v764, 0
        %vm787 = vcmp.ne.s32.totalorder %v771, 0
        %vm788 = vcmp.lt.s32.totalorder %v666, 0
        %vm789 = vcmp.lt.s32.totalorder %v673, 0
        %vm790 = vcmp.lt.s32.totalorder %v680, 0
        %vm791 = vcmp.lt.s32.totalorder %v687, 0
        %vm792 = vcmp.lt.s32.totalorder %v694, 0
        %vm793 = vcmp.lt.s32.totalorder %v701, 0
        %vm794 = vcmp.lt.s32.totalorder %v708, 0
        %vm795 = vcmp.lt.s32.totalorder %v715, 0
        %vm796 = vcmp.lt.s32.totalorder %v722, 0
        %vm797 = vcmp.lt.s32.totalorder %v729, 0
        %vm798 = vcmp.lt.s32.totalorder %v736, 0
        %vm799 = vcmp.lt.s32.totalorder %v743, 0
        %vm800 = vcmp.lt.s32.totalorder %v750, 0
        %vm801 = vcmp.lt.s32.totalorder %v757, 0
        %vm802 = vcmp.lt.s32.totalorder %v764, 0
        %vm803 = vcmp.lt.s32.totalorder %v771, 0
        %vm804 = vmand %vm788, %vm772
        %vm805 = vmand %vm789, %vm773
        %vm806 = vmand %vm790, %vm774
        %vm807 = vmand %vm791, %vm775
        %vm808 = vmand %vm792, %vm776
        %vm809 = vmand %vm793, %vm777
        %vm810 = vmand %vm794, %vm778
        %vm811 = vmand %vm795, %vm779
        %vm812 = vmand %vm796, %vm780
        %vm813 = vmand %vm797, %vm781
        %vm814 = vmand %vm798, %vm782
        %vm815 = vmand %vm799, %vm783
        %vm816 = vmand %vm800, %vm784
        %vm817 = vmand %vm801, %vm785
        %vm818 = vmand %vm802, %vm786
        %vm819 = vmand %vm803, %vm787
        %v820 = vadd.s32 %v666, 16
        %v821 = vadd.s32 %v673, 16
        %v822 = vadd.s32 %v680, 16
        %v823 = vadd.s32 %v687, 16
        %v824 = vadd.s32 %v694, 16
        %v825 = vadd.s32 %v701, 16
        %v826 = vadd.s32 %v708, 16
        %v827 = vadd.s32 %v715, 16
        %v828 = vadd.s32 %v722, 16
        %v829 = vadd.s32 %v729, 16
        %v830 = vadd.s32 %v736, 16
        %v831 = vadd.s32 %v743, 16
        %v832 = vadd.s32 %v750, 16
        %v833 = vadd.s32 %v757, 16
        %v834 = vadd.s32 %v764, 16
        %v835 = vadd.s32 %v771, 16
        %v836 = vsel %vm804, %v820, %v666
        %v837 = vsel %vm805, %v821, %v673
        %v838 = vsel %vm806, %v822, %v680
        %v839 = vsel %vm807, %v823, %v687
        %v840 = vsel %vm808, %v824, %v694
        %v841 = vsel %vm809, %v825, %v701
        %v842 = vsel %vm810, %v826, %v708
        %v843 = vsel %vm811, %v827, %v715
        %v844 = vsel %vm812, %v828, %v722
        %v845 = vsel %vm813, %v829, %v729
        %v846 = vsel %vm814, %v830, %v736
        %v847 = vsel %vm815, %v831, %v743
        %v848 = vsel %vm816, %v832, %v750
        %v849 = vsel %vm817, %v833, %v757
        %v850 = vsel %vm818, %v834, %v764
        %v851 = vsel %vm819, %v835, %v771
        %vm852 = vcmp.eq.s32.totalorder %v836, 0
        %vm853 = vcmp.eq.s32.totalorder %v837, 0
        %vm854 = vcmp.eq.s32.totalorder %v838, 0
        %vm855 = vcmp.eq.s32.totalorder %v839, 0
        %vm856 = vcmp.eq.s32.totalorder %v840, 0
        %vm857 = vcmp.eq.s32.totalorder %v841, 0
        %vm858 = vcmp.eq.s32.totalorder %v842, 0
        %vm859 = vcmp.eq.s32.totalorder %v843, 0
        %vm860 = vcmp.eq.s32.totalorder %v844, 0
        %vm861 = vcmp.eq.s32.totalorder %v845, 0
        %vm862 = vcmp.eq.s32.totalorder %v846, 0
        %vm863 = vcmp.eq.s32.totalorder %v847, 0
        %vm864 = vcmp.eq.s32.totalorder %v848, 0
        %vm865 = vcmp.eq.s32.totalorder %v849, 0
        %vm866 = vcmp.eq.s32.totalorder %v850, 0
        %vm867 = vcmp.eq.s32.totalorder %v851, 0
        %vm868 = vcmp.eq.s32.totalorder %v836, 15
        %vm869 = vcmp.eq.s32.totalorder %v837, 15
        %vm870 = vcmp.eq.s32.totalorder %v838, 15
        %vm871 = vcmp.eq.s32.totalorder %v839, 15
        %vm872 = vcmp.eq.s32.totalorder %v840, 15
        %vm873 = vcmp.eq.s32.totalorder %v841, 15
        %vm874 = vcmp.eq.s32.totalorder %v842, 15
        %vm875 = vcmp.eq.s32.totalorder %v843, 15
        %vm876 = vcmp.eq.s32.totalorder %v844, 15
        %vm877 = vcmp.eq.s32.totalorder %v845, 15
        %vm878 = vcmp.eq.s32.totalorder %v846, 15
        %vm879 = vcmp.eq.s32.totalorder %v847, 15
        %vm880 = vcmp.eq.s32.totalorder %v848, 15
        %vm881 = vcmp.eq.s32.totalorder %v849, 15
        %vm882 = vcmp.eq.s32.totalorder %v850, 15
        %vm883 = vcmp.eq.s32.totalorder %v851, 15
        %v884 = vld [vmem:[%s5] sm:$0x1]
        %v886 = vlaneseq
        %v887 = vshrl.u32 %v886, 7
        %v888 = vsub.s32 0, %v887
        %v889 = vrot.slane %v884, %v888
        %v891 = vadd.f32 %v555, %v889
        %v892 = vadd.f32 %v560, %v889
        %v893 = vadd.f32 %v565, %v889
        %v894 = vadd.f32 %v570, %v889
        %v895 = vadd.f32 %v575, %v889
        %v896 = vadd.f32 %v580, %v889
        %v897 = vadd.f32 %v585, %v889
        %v898 = vadd.f32 %v590, %v889
        %v899 = vadd.f32 %v595, %v889
        %v900 = vadd.f32 %v600, %v889
        %v901 = vadd.f32 %v605, %v889
        %v902 = vadd.f32 %v610, %v889
        %v903 = vadd.f32 %v615, %v889
        %v904 = vadd.f32 %v620, %v889
        %v905 = vadd.f32 %v625, %v889
        %v906 = vadd.f32 %v630, %v889
        %v907 = vrot.slane %v545, 7
        %v908 = vrot.slane %v550, 7
        %v909 = vrot.slane %v555, 7
        %v910 = vrot.slane %v560, 7
        %v911 = vrot.slane %v565, 7
        %v912 = vrot.slane %v570, 7
        %v913 = vrot.slane %v575, 7
        %v914 = vrot.slane %v580, 7
        %v915 = vrot.slane %v585, 7
        %v916 = vrot.slane %v590, 7
        %v917 = vrot.slane %v595, 7
        %v918 = vrot.slane %v600, 7
        %v919 = vrot.slane %v605, 7
        %v920 = vrot.slane %v610, 7
        %v921 = vrot.slane %v615, 7
        %v922 = vrot.slane %v620, 7
        %vm923 = vcmp.lt.s32.totalorder %v644, 1
        %v924 = vsel %vm923, %v921, %v922
        %v925 = vsel %vm923, %v920, %v921
        %v926 = vsel %vm923, %v919, %v920
        %v927 = vsel %vm923, %v918, %v919
        %v928 = vsel %vm923, %v917, %v918
        %v929 = vsel %vm923, %v916, %v917
        %v930 = vsel %vm923, %v915, %v916
        %v931 = vsel %vm923, %v914, %v915
        %v932 = vsel %vm923, %v913, %v914
        %v933 = vsel %vm923, %v912, %v913
        %v934 = vsel %vm923, %v911, %v912
        %v935 = vsel %vm923, %v910, %v911
        %v936 = vsel %vm923, %v909, %v910
        %v937 = vsel %vm923, %v908, %v909
        %v938 = vsel %vm923, %v907, %v908
        %v939 = vsel %vm923, %v922, %v907
        %v940 = vsel %vm852, 1, 0
        %v941 = vsel %vm853, 1, 0
        %v942 = vsel %vm854, 1, 0
        %v943 = vsel %vm855, 1, 0
        %v944 = vsel %vm856, 1, 0
        %v945 = vsel %vm857, 1, 0
        %v946 = vsel %vm858, 1, 0
        %v947 = vsel %vm859, 1, 0
        %v948 = vsel %vm860, 1, 0
        %v949 = vsel %vm861, 1, 0
        %v950 = vsel %vm862, 1, 0
        %v951 = vsel %vm863, 1, 0
        %v952 = vsel %vm864, 1, 0
        %v953 = vsel %vm865, 1, 0
        %v954 = vsel %vm866, 1, 0
        %v955 = vsel %vm867, 1, 0
        %vm956 = vcmp.eq.s32.totalorder %v940, 1
        %vm957 = vcmp.eq.s32.totalorder %v941, 1
        %vm958 = vcmp.eq.s32.totalorder %v942, 1
        %vm959 = vcmp.eq.s32.totalorder %v943, 1
        %vm960 = vcmp.eq.s32.totalorder %v944, 1
        %vm961 = vcmp.eq.s32.totalorder %v945, 1
        %vm962 = vcmp.eq.s32.totalorder %v946, 1
        %vm963 = vcmp.eq.s32.totalorder %v947, 1
        %vm964 = vcmp.eq.s32.totalorder %v948, 1
        %vm965 = vcmp.eq.s32.totalorder %v949, 1
        %vm966 = vcmp.eq.s32.totalorder %v950, 1
        %vm967 = vcmp.eq.s32.totalorder %v951, 1
        %vm968 = vcmp.eq.s32.totalorder %v952, 1
        %vm969 = vcmp.eq.s32.totalorder %v953, 1
        %vm970 = vcmp.eq.s32.totalorder %v954, 1
        %vm971 = vcmp.eq.s32.totalorder %v955, 1
        %v972 = vsel %vm956, %v476, %v939
        %v973 = vsel %vm957, %v476, %v938
        %v974 = vsel %vm958, %v476, %v937
        %v975 = vsel %vm959, %v476, %v936
        %v976 = vsel %vm960, %v476, %v935
        %v977 = vsel %vm961, %v476, %v934
        %v978 = vsel %vm962, %v476, %v933
        %v979 = vsel %vm963, %v476, %v932
        %v980 = vsel %vm964, %v476, %v931
        %v981 = vsel %vm965, %v476, %v930
        %v982 = vsel %vm966, %v476, %v929
        %v983 = vsel %vm967, %v476, %v928
        %v984 = vsel %vm968, %v476, %v927
        %v985 = vsel %vm969, %v476, %v926
        %v986 = vsel %vm970, %v476, %v925
        %v987 = vsel %vm971, %v476, %v924
        %v988 = vld [vmem:[#allocation8] sm:$0xff]
        %v989 = vld [vmem:[#allocation8 + $0x8] sm:$0xff]
        %v990 = vld [vmem:[#allocation8 + $0x10] sm:$0xff]
        %v991 = vld [vmem:[#allocation8 + $0x18] sm:$0xff]
        %v992 = vld [vmem:[#allocation8 + $0x20] sm:$0xff]
        %v993 = vld [vmem:[#allocation8 + $0x28] sm:$0xff]
        %v994 = vld [vmem:[#allocation8 + $0x30] sm:$0xff]
        %v995 = vld [vmem:[#allocation8 + $0x38] sm:$0xff]
        %v996 = vld [vmem:[#allocation8 + $0x40] sm:$0xff]
        %v997 = vld [vmem:[#allocation8 + $0x48] sm:$0xff]
        %v998 = vld [vmem:[#allocation8 + $0x50] sm:$0xff]
        %v999 = vld [vmem:[#allocation8 + $0x58] sm:$0xff]
        %v1000 = vld [vmem:[#allocation8 + $0x60] sm:$0xff]
        %v1001 = vld [vmem:[#allocation8 + $0x68] sm:$0xff]
        %v1002 = vld [vmem:[#allocation8 + $0x70] sm:$0xff]
        %v1003 = vld [vmem:[#allocation8 + $0x78] sm:$0xff]
        %1004 = vmatprep.subr.mxu0 0.0
        %1005 = vmatpush1.msra.mxu0 %v988
        %1006 = vmatprep.subr.mxu0 0.0
        %1007 = vmatpush1.msra.mxu0 %v989
        %1008 = vmatprep.subr.mxu0 0.0
        %1009 = vmatpush1.msra.mxu0 %v990
        %1010 = vmatprep.subr.mxu0 0.0
        %1011 = vmatpush1.msra.mxu0 %v991
        %1012 = vmatprep.subr.mxu0 0.0
        %1013 = vmatpush1.msra.mxu0 %v992
        %1014 = vmatprep.subr.mxu0 0.0
        %1015 = vmatpush1.msra.mxu0 %v993
        %1016 = vmatprep.subr.mxu0 0.0
        %1017 = vmatpush1.msra.mxu0 %v994
        %1018 = vmatprep.subr.mxu0 0.0
        %1019 = vmatpush1.msra.mxu0 %v995
        %1020 = vmatprep.subr.mxu0 0.0
        %1021 = vmatpush1.msra.mxu0 %v996
        %1022 = vmatprep.subr.mxu0 0.0
        %1023 = vmatpush1.msra.mxu0 %v997
        %1024 = vmatprep.subr.mxu0 0.0
        %1025 = vmatpush1.msra.mxu0 %v998
        %1026 = vmatprep.subr.mxu0 0.0
        %1027 = vmatpush1.msra.mxu0 %v999
        %1028 = vmatprep.subr.mxu0 0.0
        %1029 = vmatpush1.msra.mxu0 %v1000
        %1030 = vmatprep.subr.mxu0 0.0
        %1031 = vmatpush1.msra.mxu0 %v1001
        %1032 = vmatprep.subr.mxu0 0.0
        %1033 = vmatpush1.msra.mxu0 %v1002
        %1034 = vmatprep.subr.mxu0 0.0
        %1035 = vmatpush1.msra.mxu0 %v1003
        %1036 = vmatprep.subr.mxu0 0.0
        %1037 = vmatpush1.msra.mxu0 0.0
        %1038 = vmatprep.subr.mxu0 0.0
        %1039 = vmatpush1.msra.mxu0 0.0
        %1040 = vmatprep.subr.mxu0 0.0
        %1041 = vmatpush1.msra.mxu0 0.0
        %1042 = vmatprep.subr.mxu0 0.0
        %1043 = vmatpush1.msra.mxu0 0.0
        %1044 = vmatprep.subr.mxu0 0.0
        %1045 = vmatpush1.msra.mxu0 0.0
        %1046 = vmatprep.subr.mxu0 0.0
        %1047 = vmatpush1.msra.mxu0 0.0
        %1048 = vmatprep.subr.mxu0 0.0
        %1049 = vmatpush1.msra.mxu0 0.0
        %1050 = vmatprep.subr.mxu0 0.0
        %1051 = vmatpush1.msra.mxu0 0.0
        %1052 = vmatprep.subr.mxu0 0.0
        %1053 = vmatpush1.msra.mxu0 0.0
        %1054 = vmatprep.subr.mxu0 0.0
        %1055 = vmatpush1.msra.mxu0 0.0
        %1056 = vmatprep.subr.mxu0 0.0
        %1057 = vmatpush1.msra.mxu0 0.0
        %1058 = vmatprep.subr.mxu0 0.0
        %1059 = vmatpush1.msra.mxu0 0.0
        %1060 = vmatprep.subr.mxu0 0.0
        %1061 = vmatpush1.msra.mxu0 0.0
        %1062 = vmatprep.subr.mxu0 0.0
        %1063 = vmatpush1.msra.mxu0 0.0
        %1064 = vmatprep.subr.mxu0 0.0
        %1065 = vmatpush1.msra.mxu0 0.0
        %1066 = vmatprep.subr.mxu0 0.0
        %1067 = vmatpush1.msra.mxu0 0.0
        %1068 = vmatprep.mubr.f32.mxu0 0.0
        %1069 = vmatmul.mubr.f32.gmra.mrb[0].mxu0 %v972
        %v1070 = vpop.f32.mrb[0].mxu0
        %v1071 = vadd.f32 0.0, %v1070
        %v1072 = vpop.f32.mrb[0].mxu0
        %1073 = vmatprep.mubr.f32.mxu0 0.0
        %1074 = vmatmul.mubr.f32.gmra.mrb[0].mxu0 %v973
        %v1075 = vpop.f32.mrb[0].mxu0
        %v1076 = vadd.f32 0.0, %v1075
        %v1077 = vpop.f32.mrb[0].mxu0
        %1078 = vmatprep.mubr.f32.mxu0 0.0
        %1079 = vmatmul.mubr.f32.gmra.mrb[0].mxu0 %v974
        %v1080 = vpop.f32.mrb[0].mxu0
        %v1081 = vadd.f32 0.0, %v1080
        %v1082 = vpop.f32.mrb[0].mxu0
        %1083 = vmatprep.mubr.f32.mxu0 0.0
        %1084 = vmatmul.mubr.f32.gmra.mrb[0].mxu0 %v975
        %v1085 = vpop.f32.mrb[0].mxu0
        %v1086 = vadd.f32 0.0, %v1085
        %v1087 = vpop.f32.mrb[0].mxu0
        %1088 = vmatprep.mubr.f32.mxu0 0.0
        %1089 = vmatmul.mubr.f32.gmra.mrb[0].mxu0 %v976
        %v1090 = vpop.f32.mrb[0].mxu0
        %v1091 = vadd.f32 0.0, %v1090
        %v1092 = vpop.f32.mrb[0].mxu0
        %1093 = vmatprep.mubr.f32.mxu0 0.0
        %1094 = vmatmul.mubr.f32.gmra.mrb[0].mxu0 %v977
        %v1095 = vpop.f32.mrb[0].mxu0
        %v1096 = vadd.f32 0.0, %v1095
        %v1097 = vpop.f32.mrb[0].mxu0
        %1098 = vmatprep.mubr.f32.mxu0 0.0
        %1099 = vmatmul.mubr.f32.gmra.mrb[0].mxu0 %v978
        %v1100 = vpop.f32.mrb[0].mxu0
        %v1101 = vadd.f32 0.0, %v1100
        %v1102 = vpop.f32.mrb[0].mxu0
        %1103 = vmatprep.mubr.f32.mxu0 0.0
        %1104 = vmatmul.mubr.f32.gmra.mrb[0].mxu0 %v979
        %v1105 = vpop.f32.mrb[0].mxu0
        %v1106 = vadd.f32 0.0, %v1105
        %v1107 = vpop.f32.mrb[0].mxu0
        %1108 = vmatprep.mubr.f32.mxu0 0.0
        %1109 = vmatmul.mubr.f32.gmra.mrb[0].mxu0 %v980
        %v1110 = vpop.f32.mrb[0].mxu0
        %v1111 = vadd.f32 0.0, %v1110
        %v1112 = vpop.f32.mrb[0].mxu0
        %1113 = vmatprep.mubr.f32.mxu0 0.0
        %1114 = vmatmul.mubr.f32.gmra.mrb[0].mxu0 %v981
        %v1115 = vpop.f32.mrb[0].mxu0
        %v1116 = vadd.f32 0.0, %v1115
        %v1117 = vpop.f32.mrb[0].mxu0
        %1118 = vmatprep.mubr.f32.mxu0 0.0
        %1119 = vmatmul.mubr.f32.gmra.mrb[0].mxu0 %v982
        %v1120 = vpop.f32.mrb[0].mxu0
        %v1121 = vadd.f32 0.0, %v1120
        %v1122 = vpop.f32.mrb[0].mxu0
        %1123 = vmatprep.mubr.f32.mxu0 0.0
        %1124 = vmatmul.mubr.f32.gmra.mrb[0].mxu0 %v983
        %v1125 = vpop.f32.mrb[0].mxu0
        %v1126 = vadd.f32 0.0, %v1125
        %v1127 = vpop.f32.mrb[0].mxu0
        %1128 = vmatprep.mubr.f32.mxu0 0.0
        %1129 = vmatmul.mubr.f32.gmra.mrb[0].mxu0 %v984
        %v1130 = vpop.f32.mrb[0].mxu0
        %v1131 = vadd.f32 0.0, %v1130
        %v1132 = vpop.f32.mrb[0].mxu0
        %1133 = vmatprep.mubr.f32.mxu0 0.0
        %1134 = vmatmul.mubr.f32.gmra.mrb[0].mxu0 %v985
        %v1135 = vpop.f32.mrb[0].mxu0
        %v1136 = vadd.f32 0.0, %v1135
        %v1137 = vpop.f32.mrb[0].mxu0
        %1138 = vmatprep.mubr.f32.mxu0 0.0
        %1139 = vmatmul.mubr.f32.gmra.mrb[0].mxu0 %v986
        %v1140 = vpop.f32.mrb[0].mxu0
        %v1141 = vadd.f32 0.0, %v1140
        %v1142 = vpop.f32.mrb[0].mxu0
        %1143 = vmatprep.mubr.f32.mxu0 0.0
        %1144 = vmatmul.mubr.f32.gmra.mrb[0].mxu0 %v987
        %v1145 = vpop.f32.mrb[0].mxu0
        %v1146 = vadd.f32 0.0, %v1145
        %v1147 = vpop.f32.mrb[0].mxu0
        %1148 = vdwg.mxu0
        %v1149 = vadd.f32 %v891, %v1071
        %v1150 = vadd.f32 %v892, %v1076
        %v1151 = vadd.f32 %v893, %v1081
        %v1152 = vadd.f32 %v894, %v1086
        %v1153 = vadd.f32 %v895, %v1091
        %v1154 = vadd.f32 %v896, %v1096
        %v1155 = vadd.f32 %v897, %v1101
        %v1156 = vadd.f32 %v898, %v1106
        %v1157 = vadd.f32 %v899, %v1111
        %v1158 = vadd.f32 %v900, %v1116
        %v1159 = vadd.f32 %v901, %v1121
        %v1160 = vadd.f32 %v902, %v1126
        %v1161 = vadd.f32 %v903, %v1131
        %v1162 = vadd.f32 %v904, %v1136
        %v1163 = vadd.f32 %v905, %v1141
        %v1164 = vadd.f32 %v906, %v1146
        %v1165 = vld [vmem:[#allocation8 + $0x80] sm:$0xff]
        %v1166 = vld [vmem:[#allocation8 + $0x88] sm:$0xff]
        %v1167 = vld [vmem:[#allocation8 + $0x90] sm:$0xff]
        %v1168 = vld [vmem:[#allocation8 + $0x98] sm:$0xff]
        %v1169 = vld [vmem:[#allocation8 + $0xa0] sm:$0xff]
        %v1170 = vld [vmem:[#allocation8 + $0xa8] sm:$0xff]
        %v1171 = vld [vmem:[#allocation8 + $0xb0] sm:$0xff]
        %v1172 = vld [vmem:[#allocation8 + $0xb8] sm:$0xff]
        %v1173 = vld [vmem:[#allocation8 + $0xc0] sm:$0xff]
        %v1174 = vld [vmem:[#allocation8 + $0xc8] sm:$0xff]
        %v1175 = vld [vmem:[#allocation8 + $0xd0] sm:$0xff]
        %v1176 = vld [vmem:[#allocation8 + $0xd8] sm:$0xff]
        %v1177 = vld [vmem:[#allocation8 + $0xe0] sm:$0xff]
        %v1178 = vld [vmem:[#allocation8 + $0xe8] sm:$0xff]
        %v1179 = vld [vmem:[#allocation8 + $0xf0] sm:$0xff]
        %v1180 = vld [vmem:[#allocation8 + $0xf8] sm:$0xff]
        %1181 = vmatprep.subr.mxu0 0.0
        %1182 = vmatpush1.msra.mxu0 %v1165
        %1183 = vmatprep.subr.mxu0 0.0
        %1184 = vmatpush1.msra.mxu0 %v1166
        %1185 = vmatprep.subr.mxu0 0.0
        %1186 = vmatpush1.msra.mxu0 %v1167
        %1187 = vmatprep.subr.mxu0 0.0
        %1188 = vmatpush1.msra.mxu0 %v1168
        %1189 = vmatprep.subr.mxu0 0.0
        %1190 = vmatpush1.msra.mxu0 %v1169
        %1191 = vmatprep.subr.mxu0 0.0
        %1192 = vmatpush1.msra.mxu0 %v1170
        %1193 = vmatprep.subr.mxu0 0.0
        %1194 = vmatpush1.msra.mxu0 %v1171
        %1195 = vmatprep.subr.mxu0 0.0
        %1196 = vmatpush1.msra.mxu0 %v1172
        %1197 = vmatprep.subr.mxu0 0.0
        %1198 = vmatpush1.msra.mxu0 %v1173
        %1199 = vmatprep.subr.mxu0 0.0
        %1200 = vmatpush1.msra.mxu0 %v1174
        %1201 = vmatprep.subr.mxu0 0.0
        %1202 = vmatpush1.msra.mxu0 %v1175
        %1203 = vmatprep.subr.mxu0 0.0
        %1204 = vmatpush1.msra.mxu0 %v1176
        %1205 = vmatprep.subr.mxu0 0.0
        %1206 = vmatpush1.msra.mxu0 %v1177
        %1207 = vmatprep.subr.mxu0 0.0
        %1208 = vmatpush1.msra.mxu0 %v1178
        %1209 = vmatprep.subr.mxu0 0.0
        %1210 = vmatpush1.msra.mxu0 %v1179
        %1211 = vmatprep.subr.mxu0 0.0
        %1212 = vmatpush1.msra.mxu0 %v1180
        %1213 = vmatprep.subr.mxu0 0.0
        %1214 = vmatpush1.msra.mxu0 0.0
        %1215 = vmatprep.subr.mxu0 0.0
        %1216 = vmatpush1.msra.mxu0 0.0
        %1217 = vmatprep.subr.mxu0 0.0
        %1218 = vmatpush1.msra.mxu0 0.0
        %1219 = vmatprep.subr.mxu0 0.0
        %1220 = vmatpush1.msra.mxu0 0.0
        %1221 = vmatprep.subr.mxu0 0.0
        %1222 = vmatpush1.msra.mxu0 0.0
        %1223 = vmatprep.subr.mxu0 0.0
        %1224 = vmatpush1.msra.mxu0 0.0
        %1225 = vmatprep.subr.mxu0 0.0
        %1226 = vmatpush1.msra.mxu0 0.0
        %1227 = vmatprep.subr.mxu0 0.0
        %1228 = vmatpush1.msra.mxu0 0.0
        %1229 = vmatprep.subr.mxu0 0.0
        %1230 = vmatpush1.msra.mxu0 0.0
        %1231 = vmatprep.subr.mxu0 0.0
        %1232 = vmatpush1.msra.mxu0 0.0
        %1233 = vmatprep.subr.mxu0 0.0
        %1234 = vmatpush1.msra.mxu0 0.0
        %1235 = vmatprep.subr.mxu0 0.0
        %1236 = vmatpush1.msra.mxu0 0.0
        %1237 = vmatprep.subr.mxu0 0.0
        %1238 = vmatpush1.msra.mxu0 0.0
        %1239 = vmatprep.subr.mxu0 0.0
        %1240 = vmatpush1.msra.mxu0 0.0
        %1241 = vmatprep.subr.mxu0 0.0
        %1242 = vmatpush1.msra.mxu0 0.0
        %1243 = vmatprep.subr.mxu0 0.0
        %1244 = vmatpush1.msra.mxu0 0.0
        %1245 = vmatprep.mubr.f32.mxu0 0.0
        %1246 = vmatmul.mubr.f32.gmra.mrb[0].mxu0 %v545
        %v1247 = vpop.f32.mrb[0].mxu0
        %v1248 = vadd.f32 0.0, %v1247
        %v1249 = vpop.f32.mrb[0].mxu0
        %1250 = vmatprep.mubr.f32.mxu0 0.0
        %1251 = vmatmul.mubr.f32.gmra.mrb[0].mxu0 %v550
        %v1252 = vpop.f32.mrb[0].mxu0
        %v1253 = vadd.f32 0.0, %v1252
        %v1254 = vpop.f32.mrb[0].mxu0
        %1255 = vmatprep.mubr.f32.mxu0 0.0
        %1256 = vmatmul.mubr.f32.gmra.mrb[0].mxu0 %v555
        %v1257 = vpop.f32.mrb[0].mxu0
        %v1258 = vadd.f32 0.0, %v1257
        %v1259 = vpop.f32.mrb[0].mxu0
        %1260 = vmatprep.mubr.f32.mxu0 0.0
        %1261 = vmatmul.mubr.f32.gmra.mrb[0].mxu0 %v560
        %v1262 = vpop.f32.mrb[0].mxu0
        %v1263 = vadd.f32 0.0, %v1262
        %v1264 = vpop.f32.mrb[0].mxu0
        %1265 = vmatprep.mubr.f32.mxu0 0.0
        %1266 = vmatmul.mubr.f32.gmra.mrb[0].mxu0 %v565
        %v1267 = vpop.f32.mrb[0].mxu0
        %v1268 = vadd.f32 0.0, %v1267
        %v1269 = vpop.f32.mrb[0].mxu0
        %1270 = vmatprep.mubr.f32.mxu0 0.0
        %1271 = vmatmul.mubr.f32.gmra.mrb[0].mxu0 %v570
        %v1272 = vpop.f32.mrb[0].mxu0
        %v1273 = vadd.f32 0.0, %v1272
        %v1274 = vpop.f32.mrb[0].mxu0
        %1275 = vmatprep.mubr.f32.mxu0 0.0
        %1276 = vmatmul.mubr.f32.gmra.mrb[0].mxu0 %v575
        %v1277 = vpop.f32.mrb[0].mxu0
        %v1278 = vadd.f32 0.0, %v1277
        %v1279 = vpop.f32.mrb[0].mxu0
        %1280 = vmatprep.mubr.f32.mxu0 0.0
        %1281 = vmatmul.mubr.f32.gmra.mrb[0].mxu0 %v580
        %v1282 = vpop.f32.mrb[0].mxu0
        %v1283 = vadd.f32 0.0, %v1282
        %v1284 = vpop.f32.mrb[0].mxu0
        %1285 = vmatprep.mubr.f32.mxu0 0.0
        %1286 = vmatmul.mubr.f32.gmra.mrb[0].mxu0 %v585
        %v1287 = vpop.f32.mrb[0].mxu0
        %v1288 = vadd.f32 0.0, %v1287
        %v1289 = vpop.f32.mrb[0].mxu0
        %1290 = vmatprep.mubr.f32.mxu0 0.0
        %1291 = vmatmul.mubr.f32.gmra.mrb[0].mxu0 %v590
        %v1292 = vpop.f32.mrb[0].mxu0
        %v1293 = vadd.f32 0.0, %v1292
        %v1294 = vpop.f32.mrb[0].mxu0
        %1295 = vmatprep.mubr.f32.mxu0 0.0
        %1296 = vmatmul.mubr.f32.gmra.mrb[0].mxu0 %v595
        %v1297 = vpop.f32.mrb[0].mxu0
        %v1298 = vadd.f32 0.0, %v1297
        %v1299 = vpop.f32.mrb[0].mxu0
        %1300 = vmatprep.mubr.f32.mxu0 0.0
        %1301 = vmatmul.mubr.f32.gmra.mrb[0].mxu0 %v600
        %v1302 = vpop.f32.mrb[0].mxu0
        %v1303 = vadd.f32 0.0, %v1302
        %v1304 = vpop.f32.mrb[0].mxu0
        %1305 = vmatprep.mubr.f32.mxu0 0.0
        %1306 = vmatmul.mubr.f32.gmra.mrb[0].mxu0 %v605
        %v1307 = vpop.f32.mrb[0].mxu0
        %v1308 = vadd.f32 0.0, %v1307
        %v1309 = vpop.f32.mrb[0].mxu0
        %1310 = vmatprep.mubr.f32.mxu0 0.0
        %1311 = vmatmul.mubr.f32.gmra.mrb[0].mxu0 %v610
        %v1312 = vpop.f32.mrb[0].mxu0
        %v1313 = vadd.f32 0.0, %v1312
        %v1314 = vpop.f32.mrb[0].mxu0
        %1315 = vmatprep.mubr.f32.mxu0 0.0
        %1316 = vmatmul.mubr.f32.gmra.mrb[0].mxu0 %v615
        %v1317 = vpop.f32.mrb[0].mxu0
        %v1318 = vadd.f32 0.0, %v1317
        %v1319 = vpop.f32.mrb[0].mxu0
        %1320 = vmatprep.mubr.f32.mxu0 0.0
        %1321 = vmatmul.mubr.f32.gmra.mrb[0].mxu0 %v620
        %v1322 = vpop.f32.mrb[0].mxu0
        %v1323 = vadd.f32 0.0, %v1322
        %v1324 = vpop.f32.mrb[0].mxu0
        %1325 = vdwg.mxu0
        %v1326 = vadd.f32 %v1149, %v1248
        %v1327 = vadd.f32 %v1150, %v1253
        %v1328 = vadd.f32 %v1151, %v1258
        %v1329 = vadd.f32 %v1152, %v1263
        %v1330 = vadd.f32 %v1153, %v1268
        %v1331 = vadd.f32 %v1154, %v1273
        %v1332 = vadd.f32 %v1155, %v1278
        %v1333 = vadd.f32 %v1156, %v1283
        %v1334 = vadd.f32 %v1157, %v1288
        %v1335 = vadd.f32 %v1158, %v1293
        %v1336 = vadd.f32 %v1159, %v1298
        %v1337 = vadd.f32 %v1160, %v1303
        %v1338 = vadd.f32 %v1161, %v1308
        %v1339 = vadd.f32 %v1162, %v1313
        %v1340 = vadd.f32 %v1163, %v1318
        %v1341 = vadd.f32 %v1164, %v1323
        %v1342 = vrot.slane %v545, 1
        %v1343 = vrot.slane %v550, 1
        %v1344 = vrot.slane %v555, 1
        %v1345 = vrot.slane %v560, 1
        %v1346 = vrot.slane %v565, 1
        %v1347 = vrot.slane %v570, 1
        %v1348 = vrot.slane %v575, 1
        %v1349 = vrot.slane %v580, 1
        %v1350 = vrot.slane %v585, 1
        %v1351 = vrot.slane %v590, 1
        %v1352 = vrot.slane %v595, 1
        %v1353 = vrot.slane %v600, 1
        %v1354 = vrot.slane %v605, 1
        %v1355 = vrot.slane %v610, 1
        %v1356 = vrot.slane %v615, 1
        %v1357 = vrot.slane %v620, 1
        %vm1358 = vcmp.lt.s32.totalorder %v644, 7
        %v1359 = vsel %vm1358, %v1356, %v1357
        %v1360 = vsel %vm1358, %v1355, %v1356
        %v1361 = vsel %vm1358, %v1354, %v1355
        %v1362 = vsel %vm1358, %v1353, %v1354
        %v1363 = vsel %vm1358, %v1352, %v1353
        %v1364 = vsel %vm1358, %v1351, %v1352
        %v1365 = vsel %vm1358, %v1350, %v1351
        %v1366 = vsel %vm1358, %v1349, %v1350
        %v1367 = vsel %vm1358, %v1348, %v1349
        %v1368 = vsel %vm1358, %v1347, %v1348
        %v1369 = vsel %vm1358, %v1346, %v1347
        %v1370 = vsel %vm1358, %v1345, %v1346
        %v1371 = vsel %vm1358, %v1344, %v1345
        %v1372 = vsel %vm1358, %v1343, %v1344
        %v1373 = vsel %vm1358, %v1342, %v1343
        %v1374 = vsel %vm1358, %v1357, %v1342
        %v1375 = vsel %vm868, 1, 0
        %v1376 = vsel %vm869, 1, 0
        %v1377 = vsel %vm870, 1, 0
        %v1378 = vsel %vm871, 1, 0
        %v1379 = vsel %vm872, 1, 0
        %v1380 = vsel %vm873, 1, 0
        %v1381 = vsel %vm874, 1, 0
        %v1382 = vsel %vm875, 1, 0
        %v1383 = vsel %vm876, 1, 0
        %v1384 = vsel %vm877, 1, 0
        %v1385 = vsel %vm878, 1, 0
        %v1386 = vsel %vm879, 1, 0
        %v1387 = vsel %vm880, 1, 0
        %v1388 = vsel %vm881, 1, 0
        %v1389 = vsel %vm882, 1, 0
        %v1390 = vsel %vm883, 1, 0
        %vm1391 = vcmp.eq.s32.totalorder %v1375, 1
        %vm1392 = vcmp.eq.s32.totalorder %v1376, 1
        %vm1393 = vcmp.eq.s32.totalorder %v1377, 1
        %vm1394 = vcmp.eq.s32.totalorder %v1378, 1
        %vm1395 = vcmp.eq.s32.totalorder %v1379, 1
        %vm1396 = vcmp.eq.s32.totalorder %v1380, 1
        %vm1397 = vcmp.eq.s32.totalorder %v1381, 1
        %vm1398 = vcmp.eq.s32.totalorder %v1382, 1
        %vm1399 = vcmp.eq.s32.totalorder %v1383, 1
        %vm1400 = vcmp.eq.s32.totalorder %v1384, 1
        %vm1401 = vcmp.eq.s32.totalorder %v1385, 1
        %vm1402 = vcmp.eq.s32.totalorder %v1386, 1
        %vm1403 = vcmp.eq.s32.totalorder %v1387, 1
        %vm1404 = vcmp.eq.s32.totalorder %v1388, 1
        %vm1405 = vcmp.eq.s32.totalorder %v1389, 1
        %vm1406 = vcmp.eq.s32.totalorder %v1390, 1
        %v1407 = vsel %vm1391, %v476, %v1373
        %v1408 = vsel %vm1392, %v476, %v1372
        %v1409 = vsel %vm1393, %v476, %v1371
        %v1410 = vsel %vm1394, %v476, %v1370
        %v1411 = vsel %vm1395, %v476, %v1369
        %v1412 = vsel %vm1396, %v476, %v1368
        %v1413 = vsel %vm1397, %v476, %v1367
        %v1414 = vsel %vm1398, %v476, %v1366
        %v1415 = vsel %vm1399, %v476, %v1365
        %v1416 = vsel %vm1400, %v476, %v1364
        %v1417 = vsel %vm1401, %v476, %v1363
        %v1418 = vsel %vm1402, %v476, %v1362
        %v1419 = vsel %vm1403, %v476, %v1361
        %v1420 = vsel %vm1404, %v476, %v1360
        %v1421 = vsel %vm1405, %v476, %v1359
        %v1422 = vsel %vm1406, %v476, %v1374
        %v1423 = vld [vmem:[#allocation8 + $0x100] sm:$0xff]
        %v1424 = vld [vmem:[#allocation8 + $0x108] sm:$0xff]
        %v1425 = vld [vmem:[#allocation8 + $0x110] sm:$0xff]
        %v1426 = vld [vmem:[#allocation8 + $0x118] sm:$0xff]
        %v1427 = vld [vmem:[#allocation8 + $0x120] sm:$0xff]
        %v1428 = vld [vmem:[#allocation8 + $0x128] sm:$0xff]
        %v1429 = vld [vmem:[#allocation8 + $0x130] sm:$0xff]
        %v1430 = vld [vmem:[#allocation8 + $0x138] sm:$0xff]
        %v1431 = vld [vmem:[#allocation8 + $0x140] sm:$0xff]
        %v1432 = vld [vmem:[#allocation8 + $0x148] sm:$0xff]
        %v1433 = vld [vmem:[#allocation8 + $0x150] sm:$0xff]
        %v1434 = vld [vmem:[#allocation8 + $0x158] sm:$0xff]
        %v1435 = vld [vmem:[#allocation8 + $0x160] sm:$0xff]
        %v1436 = vld [vmem:[#allocation8 + $0x168] sm:$0xff]
        %v1437 = vld [vmem:[#allocation8 + $0x170] sm:$0xff]
        %v1438 = vld [vmem:[#allocation8 + $0x178] sm:$0xff]
        %1439 = vmatprep.subr.mxu0 0.0
        %1440 = vmatpush1.msra.mxu0 %v1423
        %1441 = vmatprep.subr.mxu0 0.0
        %1442 = vmatpush1.msra.mxu0 %v1424
        %1443 = vmatprep.subr.mxu0 0.0
        %1444 = vmatpush1.msra.mxu0 %v1425
        %1445 = vmatprep.subr.mxu0 0.0
        %1446 = vmatpush1.msra.mxu0 %v1426
        %1447 = vmatprep.subr.mxu0 0.0
        %1448 = vmatpush1.msra.mxu0 %v1427
        %1449 = vmatprep.subr.mxu0 0.0
        %1450 = vmatpush1.msra.mxu0 %v1428
        %1451 = vmatprep.subr.mxu0 0.0
        %1452 = vmatpush1.msra.mxu0 %v1429
        %1453 = vmatprep.subr.mxu0 0.0
        %1454 = vmatpush1.msra.mxu0 %v1430
        %1455 = vmatprep.subr.mxu0 0.0
        %1456 = vmatpush1.msra.mxu0 %v1431
        %1457 = vmatprep.subr.mxu0 0.0
        %1458 = vmatpush1.msra.mxu0 %v1432
        %1459 = vmatprep.subr.mxu0 0.0
        %1460 = vmatpush1.msra.mxu0 %v1433
        %1461 = vmatprep.subr.mxu0 0.0
        %1462 = vmatpush1.msra.mxu0 %v1434
        %1463 = vmatprep.subr.mxu0 0.0
        %1464 = vmatpush1.msra.mxu0 %v1435
        %1465 = vmatprep.subr.mxu0 0.0
        %1466 = vmatpush1.msra.mxu0 %v1436
        %1467 = vmatprep.subr.mxu0 0.0
        %1468 = vmatpush1.msra.mxu0 %v1437
        %1469 = vmatprep.subr.mxu0 0.0
        %1470 = vmatpush1.msra.mxu0 %v1438
        %1471 = vmatprep.subr.mxu0 0.0
        %1472 = vmatpush1.msra.mxu0 0.0
        %1473 = vmatprep.subr.mxu0 0.0
        %1474 = vmatpush1.msra.mxu0 0.0
        %1475 = vmatprep.subr.mxu0 0.0
        %1476 = vmatpush1.msra.mxu0 0.0
        %1477 = vmatprep.subr.mxu0 0.0
        %1478 = vmatpush1.msra.mxu0 0.0
        %1479 = vmatprep.subr.mxu0 0.0
        %1480 = vmatpush1.msra.mxu0 0.0
        %1481 = vmatprep.subr.mxu0 0.0
        %1482 = vmatpush1.msra.mxu0 0.0
        %1483 = vmatprep.subr.mxu0 0.0
        %1484 = vmatpush1.msra.mxu0 0.0
        %1485 = vmatprep.subr.mxu0 0.0
        %1486 = vmatpush1.msra.mxu0 0.0
        %1487 = vmatprep.subr.mxu0 0.0
        %1488 = vmatpush1.msra.mxu0 0.0
        %1489 = vmatprep.subr.mxu0 0.0
        %1490 = vmatpush1.msra.mxu0 0.0
        %1491 = vmatprep.subr.mxu0 0.0
        %1492 = vmatpush1.msra.mxu0 0.0
        %1493 = vmatprep.subr.mxu0 0.0
        %1494 = vmatpush1.msra.mxu0 0.0
        %1495 = vmatprep.subr.mxu0 0.0
        %1496 = vmatpush1.msra.mxu0 0.0
        %1497 = vmatprep.subr.mxu0 0.0
        %1498 = vmatpush1.msra.mxu0 0.0
        %1499 = vmatprep.subr.mxu0 0.0
        %1500 = vmatpush1.msra.mxu0 0.0
        %1501 = vmatprep.subr.mxu0 0.0
        %1502 = vmatpush1.msra.mxu0 0.0
        %1503 = vmatprep.mubr.f32.mxu0 0.0
        %1504 = vmatmul.mubr.f32.gmra.mrb[0].mxu0 %v1407
        %v1505 = vpop.f32.mrb[0].mxu0
        %v1506 = vadd.f32 0.0, %v1505
        %v1507 = vpop.f32.mrb[0].mxu0
        %1508 = vmatprep.mubr.f32.mxu0 0.0
        %1509 = vmatmul.mubr.f32.gmra.mrb[0].mxu0 %v1408
        %v1510 = vpop.f32.mrb[0].mxu0
        %v1511 = vadd.f32 0.0, %v1510
        %v1512 = vpop.f32.mrb[0].mxu0
        %1513 = vmatprep.mubr.f32.mxu0 0.0
        %1514 = vmatmul.mubr.f32.gmra.mrb[0].mxu0 %v1409
        %v1515 = vpop.f32.mrb[0].mxu0
        %v1516 = vadd.f32 0.0, %v1515
        %v1517 = vpop.f32.mrb[0].mxu0
        %1518 = vmatprep.mubr.f32.mxu0 0.0
        %1519 = vmatmul.mubr.f32.gmra.mrb[0].mxu0 %v1410
        %v1520 = vpop.f32.mrb[0].mxu0
        %v1521 = vadd.f32 0.0, %v1520
        %v1522 = vpop.f32.mrb[0].mxu0
        %1523 = vmatprep.mubr.f32.mxu0 0.0
        %1524 = vmatmul.mubr.f32.gmra.mrb[0].mxu0 %v1411
        %v1525 = vpop.f32.mrb[0].mxu0
        %v1526 = vadd.f32 0.0, %v1525
        %v1527 = vpop.f32.mrb[0].mxu0
        %1528 = vmatprep.mubr.f32.mxu0 0.0
        %1529 = vmatmul.mubr.f32.gmra.mrb[0].mxu0 %v1412
        %v1530 = vpop.f32.mrb[0].mxu0
        %v1531 = vadd.f32 0.0, %v1530
        %v1532 = vpop.f32.mrb[0].mxu0
        %1533 = vmatprep.mubr.f32.mxu0 0.0
        %1534 = vmatmul.mubr.f32.gmra.mrb[0].mxu0 %v1413
        %v1535 = vpop.f32.mrb[0].mxu0
        %v1536 = vadd.f32 0.0, %v1535
        %v1537 = vpop.f32.mrb[0].mxu0
        %1538 = vmatprep.mubr.f32.mxu0 0.0
        %1539 = vmatmul.mubr.f32.gmra.mrb[0].mxu0 %v1414
        %v1540 = vpop.f32.mrb[0].mxu0
        %v1541 = vadd.f32 0.0, %v1540
        %v1542 = vpop.f32.mrb[0].mxu0
        %1543 = vmatprep.mubr.f32.mxu0 0.0
        %1544 = vmatmul.mubr.f32.gmra.mrb[0].mxu0 %v1415
        %v1545 = vpop.f32.mrb[0].mxu0
        %v1546 = vadd.f32 0.0, %v1545
        %v1547 = vpop.f32.mrb[0].mxu0
        %1548 = vmatprep.mubr.f32.mxu0 0.0
        %1549 = vmatmul.mubr.f32.gmra.mrb[0].mxu0 %v1416
        %v1550 = vpop.f32.mrb[0].mxu0
        %v1551 = vadd.f32 0.0, %v1550
        %v1552 = vpop.f32.mrb[0].mxu0
        %1553 = vmatprep.mubr.f32.mxu0 0.0
        %1554 = vmatmul.mubr.f32.gmra.mrb[0].mxu0 %v1417
        %v1555 = vpop.f32.mrb[0].mxu0
        %v1556 = vadd.f32 0.0, %v1555
        %v1557 = vpop.f32.mrb[0].mxu0
        %1558 = vmatprep.mubr.f32.mxu0 0.0
        %1559 = vmatmul.mubr.f32.gmra.mrb[0].mxu0 %v1418
        %v1560 = vpop.f32.mrb[0].mxu0
        %v1561 = vadd.f32 0.0, %v1560
        %v1562 = vpop.f32.mrb[0].mxu0
        %1563 = vmatprep.mubr.f32.mxu0 0.0
        %1564 = vmatmul.mubr.f32.gmra.mrb[0].mxu0 %v1419
        %v1565 = vpop.f32.mrb[0].mxu0
        %v1566 = vadd.f32 0.0, %v1565
        %v1567 = vpop.f32.mrb[0].mxu0
        %1568 = vmatprep.mubr.f32.mxu0 0.0
        %1569 = vmatmul.mubr.f32.gmra.mrb[0].mxu0 %v1420
        %v1570 = vpop.f32.mrb[0].mxu0
        %v1571 = vadd.f32 0.0, %v1570
        %v1572 = vpop.f32.mrb[0].mxu0
        %1573 = vmatprep.mubr.f32.mxu0 0.0
        %1574 = vmatmul.mubr.f32.gmra.mrb[0].mxu0 %v1421
        %v1575 = vpop.f32.mrb[0].mxu0
        %v1576 = vadd.f32 0.0, %v1575
        %v1577 = vpop.f32.mrb[0].mxu0
        %1578 = vmatprep.mubr.f32.mxu0 0.0
        %1579 = vmatmul.mubr.f32.gmra.mrb[0].mxu0 %v1422
        %v1580 = vpop.f32.mrb[0].mxu0
        %v1581 = vadd.f32 0.0, %v1580
        %v1582 = vpop.f32.mrb[0].mxu0
        %1583 = vdwg.mxu0
        %v1584 = vadd.f32 %v1326, %v1506
        %v1585 = vadd.f32 %v1327, %v1511
        %v1586 = vadd.f32 %v1328, %v1516
        %v1587 = vadd.f32 %v1329, %v1521
        %v1588 = vadd.f32 %v1330, %v1526
        %v1589 = vadd.f32 %v1331, %v1531
        %v1590 = vadd.f32 %v1332, %v1536
        %v1591 = vadd.f32 %v1333, %v1541
        %v1592 = vadd.f32 %v1334, %v1546
        %v1593 = vadd.f32 %v1335, %v1551
        %v1594 = vadd.f32 %v1336, %v1556
        %v1595 = vadd.f32 %v1337, %v1561
        %v1596 = vadd.f32 %v1338, %v1566
        %v1597 = vadd.f32 %v1339, %v1571
        %v1598 = vadd.f32 %v1340, %v1576
        %v1599 = vadd.f32 %v1341, %v1581
        %v1600 = vrot.slane %v625, 7
        %v1601 = vrot.slane %v630, 7
        %v1602 = vsel %vm923, %v1600, %v1601
        %v1603 = vsel %vm923, %v922, %v1600
        %v1604 = vsel %vm923, %v1601, %v909
        %v1605 = vsel %vm956, %v476, %v1604
        %v1606 = vsel %vm957, %v476, %v936
        %v1607 = vsel %vm958, %v476, %v935
        %v1608 = vsel %vm959, %v476, %v934
        %v1609 = vsel %vm960, %v476, %v933
        %v1610 = vsel %vm961, %v476, %v932
        %v1611 = vsel %vm962, %v476, %v931
        %v1612 = vsel %vm963, %v476, %v930
        %v1613 = vsel %vm964, %v476, %v929
        %v1614 = vsel %vm965, %v476, %v928
        %v1615 = vsel %vm966, %v476, %v927
        %v1616 = vsel %vm967, %v476, %v926
        %v1617 = vsel %vm968, %v476, %v925
        %v1618 = vsel %vm969, %v476, %v924
        %v1619 = vsel %vm970, %v476, %v1603
        %v1620 = vsel %vm971, %v476, %v1602
        %v1621 = vld [vmem:[#allocation8 + $0x180] sm:$0xff]
        %v1622 = vld [vmem:[#allocation8 + $0x188] sm:$0xff]
        %v1623 = vld [vmem:[#allocation8 + $0x190] sm:$0xff]
        %v1624 = vld [vmem:[#allocation8 + $0x198] sm:$0xff]
        %v1625 = vld [vmem:[#allocation8 + $0x1a0] sm:$0xff]
        %v1626 = vld [vmem:[#allocation8 + $0x1a8] sm:$0xff]
        %v1627 = vld [vmem:[#allocation8 + $0x1b0] sm:$0xff]
        %v1628 = vld [vmem:[#allocation8 + $0x1b8] sm:$0xff]
        %v1629 = vld [vmem:[#allocation8 + $0x1c0] sm:$0xff]
        %v1630 = vld [vmem:[#allocation8 + $0x1c8] sm:$0xff]
        %v1631 = vld [vmem:[#allocation8 + $0x1d0] sm:$0xff]
        %v1632 = vld [vmem:[#allocation8 + $0x1d8] sm:$0xff]
        %v1633 = vld [vmem:[#allocation8 + $0x1e0] sm:$0xff]
        %v1634 = vld [vmem:[#allocation8 + $0x1e8] sm:$0xff]
        %v1635 = vld [vmem:[#allocation8 + $0x1f0] sm:$0xff]
        %v1636 = vld [vmem:[#allocation8 + $0x1f8] sm:$0xff]
        %1637 = vmatprep.subr.mxu0 0.0
        %1638 = vmatpush1.msra.mxu0 %v1621
        %1639 = vmatprep.subr.mxu0 0.0
        %1640 = vmatpush1.msra.mxu0 %v1622
        %1641 = vmatprep.subr.mxu0 0.0
        %1642 = vmatpush1.msra.mxu0 %v1623
        %1643 = vmatprep.subr.mxu0 0.0
        %1644 = vmatpush1.msra.mxu0 %v1624
        %1645 = vmatprep.subr.mxu0 0.0
        %1646 = vmatpush1.msra.mxu0 %v1625
        %1647 = vmatprep.subr.mxu0 0.0
        %1648 = vmatpush1.msra.mxu0 %v1626
        %1649 = vmatprep.subr.mxu0 0.0
        %1650 = vmatpush1.msra.mxu0 %v1627
        %1651 = vmatprep.subr.mxu0 0.0
        %1652 = vmatpush1.msra.mxu0 %v1628
        %1653 = vmatprep.subr.mxu0 0.0
        %1654 = vmatpush1.msra.mxu0 %v1629
        %1655 = vmatprep.subr.mxu0 0.0
        %1656 = vmatpush1.msra.mxu0 %v1630
        %1657 = vmatprep.subr.mxu0 0.0
        %1658 = vmatpush1.msra.mxu0 %v1631
        %1659 = vmatprep.subr.mxu0 0.0
        %1660 = vmatpush1.msra.mxu0 %v1632
        %1661 = vmatprep.subr.mxu0 0.0
        %1662 = vmatpush1.msra.mxu0 %v1633
        %1663 = vmatprep.subr.mxu0 0.0
        %1664 = vmatpush1.msra.mxu0 %v1634
        %1665 = vmatprep.subr.mxu0 0.0
        %1666 = vmatpush1.msra.mxu0 %v1635
        %1667 = vmatprep.subr.mxu0 0.0
        %1668 = vmatpush1.msra.mxu0 %v1636
        %1669 = vmatprep.subr.mxu0 0.0
        %1670 = vmatpush1.msra.mxu0 0.0
        %1671 = vmatprep.subr.mxu0 0.0
        %1672 = vmatpush1.msra.mxu0 0.0
        %1673 = vmatprep.subr.mxu0 0.0
        %1674 = vmatpush1.msra.mxu0 0.0
        %1675 = vmatprep.subr.mxu0 0.0
        %1676 = vmatpush1.msra.mxu0 0.0
        %1677 = vmatprep.subr.mxu0 0.0
        %1678 = vmatpush1.msra.mxu0 0.0
        %1679 = vmatprep.subr.mxu0 0.0
        %1680 = vmatpush1.msra.mxu0 0.0
        %1681 = vmatprep.subr.mxu0 0.0
        %1682 = vmatpush1.msra.mxu0 0.0
        %1683 = vmatprep.subr.mxu0 0.0
        %1684 = vmatpush1.msra.mxu0 0.0
        %1685 = vmatprep.subr.mxu0 0.0
        %1686 = vmatpush1.msra.mxu0 0.0
        %1687 = vmatprep.subr.mxu0 0.0
        %1688 = vmatpush1.msra.mxu0 0.0
        %1689 = vmatprep.subr.mxu0 0.0
        %1690 = vmatpush1.msra.mxu0 0.0
        %1691 = vmatprep.subr.mxu0 0.0
        %1692 = vmatpush1.msra.mxu0 0.0
        %1693 = vmatprep.subr.mxu0 0.0
        %1694 = vmatpush1.msra.mxu0 0.0
        %1695 = vmatprep.subr.mxu0 0.0
        %1696 = vmatpush1.msra.mxu0 0.0
        %1697 = vmatprep.subr.mxu0 0.0
        %1698 = vmatpush1.msra.mxu0 0.0
        %1699 = vmatprep.subr.mxu0 0.0
        %1700 = vmatpush1.msra.mxu0 0.0
        %1701 = vmatprep.mubr.f32.mxu0 0.0
        %1702 = vmatmul.mubr.f32.gmra.mrb[0].mxu0 %v1605
        %v1703 = vpop.f32.mrb[0].mxu0
        %v1704 = vadd.f32 0.0, %v1703
        %v1705 = vpop.f32.mrb[0].mxu0
        %1706 = vmatprep.mubr.f32.mxu0 0.0
        %1707 = vmatmul.mubr.f32.gmra.mrb[0].mxu0 %v1606
        %v1708 = vpop.f32.mrb[0].mxu0
        %v1709 = vadd.f32 0.0, %v1708
        %v1710 = vpop.f32.mrb[0].mxu0
        %1711 = vmatprep.mubr.f32.mxu0 0.0
        %1712 = vmatmul.mubr.f32.gmra.mrb[0].mxu0 %v1607
        %v1713 = vpop.f32.mrb[0].mxu0
        %v1714 = vadd.f32 0.0, %v1713
        %v1715 = vpop.f32.mrb[0].mxu0
        %1716 = vmatprep.mubr.f32.mxu0 0.0
        %1717 = vmatmul.mubr.f32.gmra.mrb[0].mxu0 %v1608
        %v1718 = vpop.f32.mrb[0].mxu0
        %v1719 = vadd.f32 0.0, %v1718
        %v1720 = vpop.f32.mrb[0].mxu0
        %1721 = vmatprep.mubr.f32.mxu0 0.0
        %1722 = vmatmul.mubr.f32.gmra.mrb[0].mxu0 %v1609
        %v1723 = vpop.f32.mrb[0].mxu0
        %v1724 = vadd.f32 0.0, %v1723
        %v1725 = vpop.f32.mrb[0].mxu0
        %1726 = vmatprep.mubr.f32.mxu0 0.0
        %1727 = vmatmul.mubr.f32.gmra.mrb[0].mxu0 %v1610
        %v1728 = vpop.f32.mrb[0].mxu0
        %v1729 = vadd.f32 0.0, %v1728
        %v1730 = vpop.f32.mrb[0].mxu0
        %1731 = vmatprep.mubr.f32.mxu0 0.0
        %1732 = vmatmul.mubr.f32.gmra.mrb[0].mxu0 %v1611
        %v1733 = vpop.f32.mrb[0].mxu0
        %v1734 = vadd.f32 0.0, %v1733
        %v1735 = vpop.f32.mrb[0].mxu0
        %1736 = vmatprep.mubr.f32.mxu0 0.0
        %1737 = vmatmul.mubr.f32.gmra.mrb[0].mxu0 %v1612
        %v1738 = vpop.f32.mrb[0].mxu0
        %v1739 = vadd.f32 0.0, %v1738
        %v1740 = vpop.f32.mrb[0].mxu0
        %1741 = vmatprep.mubr.f32.mxu0 0.0
        %1742 = vmatmul.mubr.f32.gmra.mrb[0].mxu0 %v1613
        %v1743 = vpop.f32.mrb[0].mxu0
        %v1744 = vadd.f32 0.0, %v1743
        %v1745 = vpop.f32.mrb[0].mxu0
        %1746 = vmatprep.mubr.f32.mxu0 0.0
        %1747 = vmatmul.mubr.f32.gmra.mrb[0].mxu0 %v1614
        %v1748 = vpop.f32.mrb[0].mxu0
        %v1749 = vadd.f32 0.0, %v1748
        %v1750 = vpop.f32.mrb[0].mxu0
        %1751 = vmatprep.mubr.f32.mxu0 0.0
        %1752 = vmatmul.mubr.f32.gmra.mrb[0].mxu0 %v1615
        %v1753 = vpop.f32.mrb[0].mxu0
        %v1754 = vadd.f32 0.0, %v1753
        %v1755 = vpop.f32.mrb[0].mxu0
        %1756 = vmatprep.mubr.f32.mxu0 0.0
        %1757 = vmatmul.mubr.f32.gmra.mrb[0].mxu0 %v1616
        %v1758 = vpop.f32.mrb[0].mxu0
        %v1759 = vadd.f32 0.0, %v1758
        %v1760 = vpop.f32.mrb[0].mxu0
        %1761 = vmatprep.mubr.f32.mxu0 0.0
        %1762 = vmatmul.mubr.f32.gmra.mrb[0].mxu0 %v1617
        %v1763 = vpop.f32.mrb[0].mxu0
        %v1764 = vadd.f32 0.0, %v1763
        %v1765 = vpop.f32.mrb[0].mxu0
        %1766 = vmatprep.mubr.f32.mxu0 0.0
        %1767 = vmatmul.mubr.f32.gmra.mrb[0].mxu0 %v1618
        %v1768 = vpop.f32.mrb[0].mxu0
        %v1769 = vadd.f32 0.0, %v1768
        %v1770 = vpop.f32.mrb[0].mxu0
        %1771 = vmatprep.mubr.f32.mxu0 0.0
        %1772 = vmatmul.mubr.f32.gmra.mrb[0].mxu0 %v1619
        %v1773 = vpop.f32.mrb[0].mxu0
        %v1774 = vadd.f32 0.0, %v1773
        %v1775 = vpop.f32.mrb[0].mxu0
        %1776 = vmatprep.mubr.f32.mxu0 0.0
        %1777 = vmatmul.mubr.f32.gmra.mrb[0].mxu0 %v1620
        %v1778 = vpop.f32.mrb[0].mxu0
        %v1779 = vadd.f32 0.0, %v1778
        %v1780 = vpop.f32.mrb[0].mxu0
        %1781 = vdwg.mxu0
        %v1782 = vadd.f32 %v1584, %v1704
        %v1783 = vadd.f32 %v1585, %v1709
        %v1784 = vadd.f32 %v1586, %v1714
        %v1785 = vadd.f32 %v1587, %v1719
        %v1786 = vadd.f32 %v1588, %v1724
        %v1787 = vadd.f32 %v1589, %v1729
        %v1788 = vadd.f32 %v1590, %v1734
        %v1789 = vadd.f32 %v1591, %v1739
        %v1790 = vadd.f32 %v1592, %v1744
        %v1791 = vadd.f32 %v1593, %v1749
        %v1792 = vadd.f32 %v1594, %v1754
        %v1793 = vadd.f32 %v1595, %v1759
        %v1794 = vadd.f32 %v1596, %v1764
        %v1795 = vadd.f32 %v1597, %v1769
        %v1796 = vadd.f32 %v1598, %v1774
        %v1797 = vadd.f32 %v1599, %v1779
        %v1798 = vld [vmem:[#allocation8 + $0x200] sm:$0xff]
        %v1799 = vld [vmem:[#allocation8 + $0x208] sm:$0xff]
        %v1800 = vld [vmem:[#allocation8 + $0x210] sm:$0xff]
        %v1801 = vld [vmem:[#allocation8 + $0x218] sm:$0xff]
        %v1802 = vld [vmem:[#allocation8 + $0x220] sm:$0xff]
        %v1803 = vld [vmem:[#allocation8 + $0x228] sm:$0xff]
        %v1804 = vld [vmem:[#allocation8 + $0x230] sm:$0xff]
        %v1805 = vld [vmem:[#allocation8 + $0x238] sm:$0xff]
        %v1806 = vld [vmem:[#allocation8 + $0x240] sm:$0xff]
        %v1807 = vld [vmem:[#allocation8 + $0x248] sm:$0xff]
        %v1808 = vld [vmem:[#allocation8 + $0x250] sm:$0xff]
        %v1809 = vld [vmem:[#allocation8 + $0x258] sm:$0xff]
        %v1810 = vld [vmem:[#allocation8 + $0x260] sm:$0xff]
        %v1811 = vld [vmem:[#allocation8 + $0x268] sm:$0xff]
        %v1812 = vld [vmem:[#allocation8 + $0x270] sm:$0xff]
        %v1813 = vld [vmem:[#allocation8 + $0x278] sm:$0xff]
        %1814 = vmatprep.subr.mxu0 0.0
        %1815 = vmatpush1.msra.mxu0 %v1798
        %1816 = vmatprep.subr.mxu0 0.0
        %1817 = vmatpush1.msra.mxu0 %v1799
        %1818 = vmatprep.subr.mxu0 0.0
        %1819 = vmatpush1.msra.mxu0 %v1800
        %1820 = vmatprep.subr.mxu0 0.0
        %1821 = vmatpush1.msra.mxu0 %v1801
        %1822 = vmatprep.subr.mxu0 0.0
        %1823 = vmatpush1.msra.mxu0 %v1802
        %1824 = vmatprep.subr.mxu0 0.0
        %1825 = vmatpush1.msra.mxu0 %v1803
        %1826 = vmatprep.subr.mxu0 0.0
        %1827 = vmatpush1.msra.mxu0 %v1804
        %1828 = vmatprep.subr.mxu0 0.0
        %1829 = vmatpush1.msra.mxu0 %v1805
        %1830 = vmatprep.subr.mxu0 0.0
        %1831 = vmatpush1.msra.mxu0 %v1806
        %1832 = vmatprep.subr.mxu0 0.0
        %1833 = vmatpush1.msra.mxu0 %v1807
        %1834 = vmatprep.subr.mxu0 0.0
        %1835 = vmatpush1.msra.mxu0 %v1808
        %1836 = vmatprep.subr.mxu0 0.0
        %1837 = vmatpush1.msra.mxu0 %v1809
        %1838 = vmatprep.subr.mxu0 0.0
        %1839 = vmatpush1.msra.mxu0 %v1810
        %1840 = vmatprep.subr.mxu0 0.0
        %1841 = vmatpush1.msra.mxu0 %v1811
        %1842 = vmatprep.subr.mxu0 0.0
        %1843 = vmatpush1.msra.mxu0 %v1812
        %1844 = vmatprep.subr.mxu0 0.0
        %1845 = vmatpush1.msra.mxu0 %v1813
        %1846 = vmatprep.subr.mxu0 0.0
        %1847 = vmatpush1.msra.mxu0 0.0
        %1848 = vmatprep.subr.mxu0 0.0
        %1849 = vmatpush1.msra.mxu0 0.0
        %1850 = vmatprep.subr.mxu0 0.0
        %1851 = vmatpush1.msra.mxu0 0.0
        %1852 = vmatprep.subr.mxu0 0.0
        %1853 = vmatpush1.msra.mxu0 0.0
        %1854 = vmatprep.subr.mxu0 0.0
        %1855 = vmatpush1.msra.mxu0 0.0
        %1856 = vmatprep.subr.mxu0 0.0
        %1857 = vmatpush1.msra.mxu0 0.0
        %1858 = vmatprep.subr.mxu0 0.0
        %1859 = vmatpush1.msra.mxu0 0.0
        %1860 = vmatprep.subr.mxu0 0.0
        %1861 = vmatpush1.msra.mxu0 0.0
        %1862 = vmatprep.subr.mxu0 0.0
        %1863 = vmatpush1.msra.mxu0 0.0
        %1864 = vmatprep.subr.mxu0 0.0
        %1865 = vmatpush1.msra.mxu0 0.0
        %1866 = vmatprep.subr.mxu0 0.0
        %1867 = vmatpush1.msra.mxu0 0.0
        %1868 = vmatprep.subr.mxu0 0.0
        %1869 = vmatpush1.msra.mxu0 0.0
        %1870 = vmatprep.subr.mxu0 0.0
        %1871 = vmatpush1.msra.mxu0 0.0
        %1872 = vmatprep.subr.mxu0 0.0
        %1873 = vmatpush1.msra.mxu0 0.0
        %1874 = vmatprep.subr.mxu0 0.0
        %1875 = vmatpush1.msra.mxu0 0.0
        %1876 = vmatprep.subr.mxu0 0.0
        %1877 = vmatpush1.msra.mxu0 0.0
        %1878 = vmatprep.mubr.f32.mxu0 0.0
        %1879 = vmatmul.mubr.f32.gmra.mrb[0].mxu0 %v555
        %v1880 = vpop.f32.mrb[0].mxu0
        %v1881 = vadd.f32 0.0, %v1880
        %v1882 = vpop.f32.mrb[0].mxu0
        %1883 = vmatprep.mubr.f32.mxu0 0.0
        %1884 = vmatmul.mubr.f32.gmra.mrb[0].mxu0 %v560
        %v1885 = vpop.f32.mrb[0].mxu0
        %v1886 = vadd.f32 0.0, %v1885
        %v1887 = vpop.f32.mrb[0].mxu0
        %1888 = vmatprep.mubr.f32.mxu0 0.0
        %1889 = vmatmul.mubr.f32.gmra.mrb[0].mxu0 %v565
        %v1890 = vpop.f32.mrb[0].mxu0
        %v1891 = vadd.f32 0.0, %v1890
        %v1892 = vpop.f32.mrb[0].mxu0
        %1893 = vmatprep.mubr.f32.mxu0 0.0
        %1894 = vmatmul.mubr.f32.gmra.mrb[0].mxu0 %v570
        %v1895 = vpop.f32.mrb[0].mxu0
        %v1896 = vadd.f32 0.0, %v1895
        %v1897 = vpop.f32.mrb[0].mxu0
        %1898 = vmatprep.mubr.f32.mxu0 0.0
        %1899 = vmatmul.mubr.f32.gmra.mrb[0].mxu0 %v575
        %v1900 = vpop.f32.mrb[0].mxu0
        %v1901 = vadd.f32 0.0, %v1900
        %v1902 = vpop.f32.mrb[0].mxu0
        %1903 = vmatprep.mubr.f32.mxu0 0.0
        %1904 = vmatmul.mubr.f32.gmra.mrb[0].mxu0 %v580
        %v1905 = vpop.f32.mrb[0].mxu0
        %v1906 = vadd.f32 0.0, %v1905
        %v1907 = vpop.f32.mrb[0].mxu0
        %1908 = vmatprep.mubr.f32.mxu0 0.0
        %1909 = vmatmul.mubr.f32.gmra.mrb[0].mxu0 %v585
        %v1910 = vpop.f32.mrb[0].mxu0
        %v1911 = vadd.f32 0.0, %v1910
        %v1912 = vpop.f32.mrb[0].mxu0
        %1913 = vmatprep.mubr.f32.mxu0 0.0
        %1914 = vmatmul.mubr.f32.gmra.mrb[0].mxu0 %v590
        %v1915 = vpop.f32.mrb[0].mxu0
        %v1916 = vadd.f32 0.0, %v1915
        %v1917 = vpop.f32.mrb[0].mxu0
        %1918 = vmatprep.mubr.f32.mxu0 0.0
        %1919 = vmatmul.mubr.f32.gmra.mrb[0].mxu0 %v595
        %v1920 = vpop.f32.mrb[0].mxu0
        %v1921 = vadd.f32 0.0, %v1920
        %v1922 = vpop.f32.mrb[0].mxu0
        %1923 = vmatprep.mubr.f32.mxu0 0.0
        %1924 = vmatmul.mubr.f32.gmra.mrb[0].mxu0 %v600
        %v1925 = vpop.f32.mrb[0].mxu0
        %v1926 = vadd.f32 0.0, %v1925
        %v1927 = vpop.f32.mrb[0].mxu0
        %1928 = vmatprep.mubr.f32.mxu0 0.0
        %1929 = vmatmul.mubr.f32.gmra.mrb[0].mxu0 %v605
        %v1930 = vpop.f32.mrb[0].mxu0
        %v1931 = vadd.f32 0.0, %v1930
        %v1932 = vpop.f32.mrb[0].mxu0
        %1933 = vmatprep.mubr.f32.mxu0 0.0
        %1934 = vmatmul.mubr.f32.gmra.mrb[0].mxu0 %v610
        %v1935 = vpop.f32.mrb[0].mxu0
        %v1936 = vadd.f32 0.0, %v1935
        %v1937 = vpop.f32.mrb[0].mxu0
        %1938 = vmatprep.mubr.f32.mxu0 0.0
        %1939 = vmatmul.mubr.f32.gmra.mrb[0].mxu0 %v615
        %v1940 = vpop.f32.mrb[0].mxu0
        %v1941 = vadd.f32 0.0, %v1940
        %v1942 = vpop.f32.mrb[0].mxu0
        %1943 = vmatprep.mubr.f32.mxu0 0.0
        %1944 = vmatmul.mubr.f32.gmra.mrb[0].mxu0 %v620
        %v1945 = vpop.f32.mrb[0].mxu0
        %v1946 = vadd.f32 0.0, %v1945
        %v1947 = vpop.f32.mrb[0].mxu0
        %1948 = vmatprep.mubr.f32.mxu0 0.0
        %1949 = vmatmul.mubr.f32.gmra.mrb[0].mxu0 %v625
        %v1950 = vpop.f32.mrb[0].mxu0
        %v1951 = vadd.f32 0.0, %v1950
        %v1952 = vpop.f32.mrb[0].mxu0
        %1953 = vmatprep.mubr.f32.mxu0 0.0
        %1954 = vmatmul.mubr.f32.gmra.mrb[0].mxu0 %v630
        %v1955 = vpop.f32.mrb[0].mxu0
        %v1956 = vadd.f32 0.0, %v1955
        %v1957 = vpop.f32.mrb[0].mxu0
        %1958 = vdwg.mxu0
        %v1959 = vadd.f32 %v1782, %v1881
        %v1960 = vadd.f32 %v1783, %v1886
        %v1961 = vadd.f32 %v1784, %v1891
        %v1962 = vadd.f32 %v1785, %v1896
        %v1963 = vadd.f32 %v1786, %v1901
        %v1964 = vadd.f32 %v1787, %v1906
        %v1965 = vadd.f32 %v1788, %v1911
        %v1966 = vadd.f32 %v1789, %v1916
        %v1967 = vadd.f32 %v1790, %v1921
        %v1968 = vadd.f32 %v1791, %v1926
        %v1969 = vadd.f32 %v1792, %v1931
        %v1970 = vadd.f32 %v1793, %v1936
        %v1971 = vadd.f32 %v1794, %v1941
        %v1972 = vadd.f32 %v1795, %v1946
        %v1973 = vadd.f32 %v1796, %v1951
        %v1974 = vadd.f32 %v1797, %v1956
        %v1975 = vrot.slane %v625, 1
        %v1976 = vrot.slane %v630, 1
        %v1977 = vsel %vm1358, %v1975, %v1976
        %v1978 = vsel %vm1358, %v1357, %v1975
        %v1979 = vsel %vm1358, %v1976, %v1344
        %v1980 = vsel %vm1391, %v476, %v1371
        %v1981 = vsel %vm1392, %v476, %v1370
        %v1982 = vsel %vm1393, %v476, %v1369
        %v1983 = vsel %vm1394, %v476, %v1368
        %v1984 = vsel %vm1395, %v476, %v1367
        %v1985 = vsel %vm1396, %v476, %v1366
        %v1986 = vsel %vm1397, %v476, %v1365
        %v1987 = vsel %vm1398, %v476, %v1364
        %v1988 = vsel %vm1399, %v476, %v1363
        %v1989 = vsel %vm1400, %v476, %v1362
        %v1990 = vsel %vm1401, %v476, %v1361
        %v1991 = vsel %vm1402, %v476, %v1360
        %v1992 = vsel %vm1403, %v476, %v1359
        %v1993 = vsel %vm1404, %v476, %v1978
        %v1994 = vsel %vm1405, %v476, %v1977
        %v1995 = vsel %vm1406, %v476, %v1979
        %v1996 = vld [vmem:[#allocation8 + $0x280] sm:$0xff]
        %v1997 = vld [vmem:[#allocation8 + $0x288] sm:$0xff]
        %v1998 = vld [vmem:[#allocation8 + $0x290] sm:$0xff]
        %v1999 = vld [vmem:[#allocation8 + $0x298] sm:$0xff]
        %v2000 = vld [vmem:[#allocation8 + $0x2a0] sm:$0xff]
        %v2001 = vld [vmem:[#allocation8 + $0x2a8] sm:$0xff]
        %v2002 = vld [vmem:[#allocation8 + $0x2b0] sm:$0xff]
        %v2003 = vld [vmem:[#allocation8 + $0x2b8] sm:$0xff]
        %v2004 = vld [vmem:[#allocation8 + $0x2c0] sm:$0xff]
        %v2005 = vld [vmem:[#allocation8 + $0x2c8] sm:$0xff]
        %v2006 = vld [vmem:[#allocation8 + $0x2d0] sm:$0xff]
        %v2007 = vld [vmem:[#allocation8 + $0x2d8] sm:$0xff]
        %v2008 = vld [vmem:[#allocation8 + $0x2e0] sm:$0xff]
        %v2009 = vld [vmem:[#allocation8 + $0x2e8] sm:$0xff]
        %v2010 = vld [vmem:[#allocation8 + $0x2f0] sm:$0xff]
        %v2011 = vld [vmem:[#allocation8 + $0x2f8] sm:$0xff]
        %2012 = vmatprep.subr.mxu0 0.0
        %2013 = vmatpush1.msra.mxu0 %v1996
        %2014 = vmatprep.subr.mxu0 0.0
        %2015 = vmatpush1.msra.mxu0 %v1997
        %2016 = vmatprep.subr.mxu0 0.0
        %2017 = vmatpush1.msra.mxu0 %v1998
        %2018 = vmatprep.subr.mxu0 0.0
        %2019 = vmatpush1.msra.mxu0 %v1999
        %2020 = vmatprep.subr.mxu0 0.0
        %2021 = vmatpush1.msra.mxu0 %v2000
        %2022 = vmatprep.subr.mxu0 0.0
        %2023 = vmatpush1.msra.mxu0 %v2001
        %2024 = vmatprep.subr.mxu0 0.0
        %2025 = vmatpush1.msra.mxu0 %v2002
        %2026 = vmatprep.subr.mxu0 0.0
        %2027 = vmatpush1.msra.mxu0 %v2003
        %2028 = vmatprep.subr.mxu0 0.0
        %2029 = vmatpush1.msra.mxu0 %v2004
        %2030 = vmatprep.subr.mxu0 0.0
        %2031 = vmatpush1.msra.mxu0 %v2005
        %2032 = vmatprep.subr.mxu0 0.0
        %2033 = vmatpush1.msra.mxu0 %v2006
        %2034 = vmatprep.subr.mxu0 0.0
        %2035 = vmatpush1.msra.mxu0 %v2007
        %2036 = vmatprep.subr.mxu0 0.0
        %2037 = vmatpush1.msra.mxu0 %v2008
        %2038 = vmatprep.subr.mxu0 0.0
        %2039 = vmatpush1.msra.mxu0 %v2009
        %2040 = vmatprep.subr.mxu0 0.0
        %2041 = vmatpush1.msra.mxu0 %v2010
        %2042 = vmatprep.subr.mxu0 0.0
        %2043 = vmatpush1.msra.mxu0 %v2011
        %2044 = vmatprep.subr.mxu0 0.0
        %2045 = vmatpush1.msra.mxu0 0.0
        %2046 = vmatprep.subr.mxu0 0.0
        %2047 = vmatpush1.msra.mxu0 0.0
        %2048 = vmatprep.subr.mxu0 0.0
        %2049 = vmatpush1.msra.mxu0 0.0
        %2050 = vmatprep.subr.mxu0 0.0
        %2051 = vmatpush1.msra.mxu0 0.0
        %2052 = vmatprep.subr.mxu0 0.0
        %2053 = vmatpush1.msra.mxu0 0.0
        %2054 = vmatprep.subr.mxu0 0.0
        %2055 = vmatpush1.msra.mxu0 0.0
        %2056 = vmatprep.subr.mxu0 0.0
        %2057 = vmatpush1.msra.mxu0 0.0
        %2058 = vmatprep.subr.mxu0 0.0
        %2059 = vmatpush1.msra.mxu0 0.0
        %2060 = vmatprep.subr.mxu0 0.0
        %2061 = vmatpush1.msra.mxu0 0.0
        %2062 = vmatprep.subr.mxu0 0.0
        %2063 = vmatpush1.msra.mxu0 0.0
        %2064 = vmatprep.subr.mxu0 0.0
        %2065 = vmatpush1.msra.mxu0 0.0
        %2066 = vmatprep.subr.mxu0 0.0
        %2067 = vmatpush1.msra.mxu0 0.0
        %2068 = vmatprep.subr.mxu0 0.0
        %2069 = vmatpush1.msra.mxu0 0.0
        %2070 = vmatprep.subr.mxu0 0.0
        %2071 = vmatpush1.msra.mxu0 0.0
        %2072 = vmatprep.subr.mxu0 0.0
        %2073 = vmatpush1.msra.mxu0 0.0
        %2074 = vmatprep.subr.mxu0 0.0
        %2075 = vmatpush1.msra.mxu0 0.0
        %2076 = vmatprep.mubr.f32.mxu0 0.0
        %2077 = vmatmul.mubr.f32.gmra.mrb[0].mxu0 %v1980
        %v2078 = vpop.f32.mrb[0].mxu0
        %v2079 = vadd.f32 0.0, %v2078
        %v2080 = vpop.f32.mrb[0].mxu0
        %2081 = vmatprep.mubr.f32.mxu0 0.0
        %2082 = vmatmul.mubr.f32.gmra.mrb[0].mxu0 %v1981
        %v2083 = vpop.f32.mrb[0].mxu0
        %v2084 = vadd.f32 0.0, %v2083
        %v2085 = vpop.f32.mrb[0].mxu0
        %2086 = vmatprep.mubr.f32.mxu0 0.0
        %2087 = vmatmul.mubr.f32.gmra.mrb[0].mxu0 %v1982
        %v2088 = vpop.f32.mrb[0].mxu0
        %v2089 = vadd.f32 0.0, %v2088
        %v2090 = vpop.f32.mrb[0].mxu0
        %2091 = vmatprep.mubr.f32.mxu0 0.0
        %2092 = vmatmul.mubr.f32.gmra.mrb[0].mxu0 %v1983
        %v2093 = vpop.f32.mrb[0].mxu0
        %v2094 = vadd.f32 0.0, %v2093
        %v2095 = vpop.f32.mrb[0].mxu0
        %2096 = vmatprep.mubr.f32.mxu0 0.0
        %2097 = vmatmul.mubr.f32.gmra.mrb[0].mxu0 %v1984
        %v2098 = vpop.f32.mrb[0].mxu0
        %v2099 = vadd.f32 0.0, %v2098
        %v2100 = vpop.f32.mrb[0].mxu0
        %2101 = vmatprep.mubr.f32.mxu0 0.0
        %2102 = vmatmul.mubr.f32.gmra.mrb[0].mxu0 %v1985
        %v2103 = vpop.f32.mrb[0].mxu0
        %v2104 = vadd.f32 0.0, %v2103
        %v2105 = vpop.f32.mrb[0].mxu0
        %2106 = vmatprep.mubr.f32.mxu0 0.0
        %2107 = vmatmul.mubr.f32.gmra.mrb[0].mxu0 %v1986
        %v2108 = vpop.f32.mrb[0].mxu0
        %v2109 = vadd.f32 0.0, %v2108
        %v2110 = vpop.f32.mrb[0].mxu0
        %2111 = vmatprep.mubr.f32.mxu0 0.0
        %2112 = vmatmul.mubr.f32.gmra.mrb[0].mxu0 %v1987
        %v2113 = vpop.f32.mrb[0].mxu0
        %v2114 = vadd.f32 0.0, %v2113
        %v2115 = vpop.f32.mrb[0].mxu0
        %2116 = vmatprep.mubr.f32.mxu0 0.0
        %2117 = vmatmul.mubr.f32.gmra.mrb[0].mxu0 %v1988
        %v2118 = vpop.f32.mrb[0].mxu0
        %v2119 = vadd.f32 0.0, %v2118
        %v2120 = vpop.f32.mrb[0].mxu0
        %2121 = vmatprep.mubr.f32.mxu0 0.0
        %2122 = vmatmul.mubr.f32.gmra.mrb[0].mxu0 %v1989
        %v2123 = vpop.f32.mrb[0].mxu0
        %v2124 = vadd.f32 0.0, %v2123
        %v2125 = vpop.f32.mrb[0].mxu0
        %2126 = vmatprep.mubr.f32.mxu0 0.0
        %2127 = vmatmul.mubr.f32.gmra.mrb[0].mxu0 %v1990
        %v2128 = vpop.f32.mrb[0].mxu0
        %v2129 = vadd.f32 0.0, %v2128
        %v2130 = vpop.f32.mrb[0].mxu0
        %2131 = vmatprep.mubr.f32.mxu0 0.0
        %2132 = vmatmul.mubr.f32.gmra.mrb[0].mxu0 %v1991
        %v2133 = vpop.f32.mrb[0].mxu0
        %v2134 = vadd.f32 0.0, %v2133
        %v2135 = vpop.f32.mrb[0].mxu0
        %2136 = vmatprep.mubr.f32.mxu0 0.0
        %2137 = vmatmul.mubr.f32.gmra.mrb[0].mxu0 %v1992
        %v2138 = vpop.f32.mrb[0].mxu0
        %v2139 = vadd.f32 0.0, %v2138
        %v2140 = vpop.f32.mrb[0].mxu0
        %2141 = vmatprep.mubr.f32.mxu0 0.0
        %2142 = vmatmul.mubr.f32.gmra.mrb[0].mxu0 %v1993
        %v2143 = vpop.f32.mrb[0].mxu0
        %v2144 = vadd.f32 0.0, %v2143
        %v2145 = vpop.f32.mrb[0].mxu0
        %2146 = vmatprep.mubr.f32.mxu0 0.0
        %2147 = vmatmul.mubr.f32.gmra.mrb[0].mxu0 %v1994
        %v2148 = vpop.f32.mrb[0].mxu0
        %v2149 = vadd.f32 0.0, %v2148
        %v2150 = vpop.f32.mrb[0].mxu0
        %2151 = vmatprep.mubr.f32.mxu0 0.0
        %2152 = vmatmul.mubr.f32.gmra.mrb[0].mxu0 %v1995
        %v2153 = vpop.f32.mrb[0].mxu0
        %v2154 = vadd.f32 0.0, %v2153
        %v2155 = vpop.f32.mrb[0].mxu0
        %2156 = vdwg.mxu0
        %v2157 = vadd.f32 %v1959, %v2079
        %v2158 = vadd.f32 %v1960, %v2084
        %v2159 = vadd.f32 %v1961, %v2089
        %v2160 = vadd.f32 %v1962, %v2094
        %v2161 = vadd.f32 %v1963, %v2099
        %v2162 = vadd.f32 %v1964, %v2104
        %v2163 = vadd.f32 %v1965, %v2109
        %v2164 = vadd.f32 %v1966, %v2114
        %v2165 = vadd.f32 %v1967, %v2119
        %v2166 = vadd.f32 %v1968, %v2124
        %v2167 = vadd.f32 %v1969, %v2129
        %v2168 = vadd.f32 %v1970, %v2134
        %v2169 = vadd.f32 %v1971, %v2139
        %v2170 = vadd.f32 %v1972, %v2144
        %v2171 = vadd.f32 %v1973, %v2149
        %v2172 = vadd.f32 %v1974, %v2154
        %v2173 = vrot.slane %v635, 7
        %v2174 = vrot.slane %v640, 7
        %v2175 = vsel %vm923, %v2173, %v2174
        %v2176 = vsel %vm923, %v1601, %v2173
        %v2177 = vsel %vm923, %v2174, %v911
        %v2178 = vsel %vm956, %v476, %v2177
        %v2179 = vsel %vm957, %v476, %v934
        %v2180 = vsel %vm958, %v476, %v933
        %v2181 = vsel %vm959, %v476, %v932
        %v2182 = vsel %vm960, %v476, %v931
        %v2183 = vsel %vm961, %v476, %v930
        %v2184 = vsel %vm962, %v476, %v929
        %v2185 = vsel %vm963, %v476, %v928
        %v2186 = vsel %vm964, %v476, %v927
        %v2187 = vsel %vm965, %v476, %v926
        %v2188 = vsel %vm966, %v476, %v925
        %v2189 = vsel %vm967, %v476, %v924
        %v2190 = vsel %vm968, %v476, %v1603
        %v2191 = vsel %vm969, %v476, %v1602
        %v2192 = vsel %vm970, %v476, %v2176
        %v2193 = vsel %vm971, %v476, %v2175
        %v2194 = vld [vmem:[#allocation8 + $0x300] sm:$0xff]
        %v2195 = vld [vmem:[#allocation8 + $0x308] sm:$0xff]
        %v2196 = vld [vmem:[#allocation8 + $0x310] sm:$0xff]
        %v2197 = vld [vmem:[#allocation8 + $0x318] sm:$0xff]
        %v2198 = vld [vmem:[#allocation8 + $0x320] sm:$0xff]
        %v2199 = vld [vmem:[#allocation8 + $0x328] sm:$0xff]
        %v2200 = vld [vmem:[#allocation8 + $0x330] sm:$0xff]
        %v2201 = vld [vmem:[#allocation8 + $0x338] sm:$0xff]
        %v2202 = vld [vmem:[#allocation8 + $0x340] sm:$0xff]
        %v2203 = vld [vmem:[#allocation8 + $0x348] sm:$0xff]
        %v2204 = vld [vmem:[#allocation8 + $0x350] sm:$0xff]
        %v2205 = vld [vmem:[#allocation8 + $0x358] sm:$0xff]
        %v2206 = vld [vmem:[#allocation8 + $0x360] sm:$0xff]
        %v2207 = vld [vmem:[#allocation8 + $0x368] sm:$0xff]
        %v2208 = vld [vmem:[#allocation8 + $0x370] sm:$0xff]
        %v2209 = vld [vmem:[#allocation8 + $0x378] sm:$0xff]
        %2210 = vmatprep.subr.mxu0 0.0
        %2211 = vmatpush1.msra.mxu0 %v2194
        %2212 = vmatprep.subr.mxu0 0.0
        %2213 = vmatpush1.msra.mxu0 %v2195
        %2214 = vmatprep.subr.mxu0 0.0
        %2215 = vmatpush1.msra.mxu0 %v2196
        %2216 = vmatprep.subr.mxu0 0.0
        %2217 = vmatpush1.msra.mxu0 %v2197
        %2218 = vmatprep.subr.mxu0 0.0
        %2219 = vmatpush1.msra.mxu0 %v2198
        %2220 = vmatprep.subr.mxu0 0.0
        %2221 = vmatpush1.msra.mxu0 %v2199
        %2222 = vmatprep.subr.mxu0 0.0
        %2223 = vmatpush1.msra.mxu0 %v2200
        %2224 = vmatprep.subr.mxu0 0.0
        %2225 = vmatpush1.msra.mxu0 %v2201
        %2226 = vmatprep.subr.mxu0 0.0
        %2227 = vmatpush1.msra.mxu0 %v2202
        %2228 = vmatprep.subr.mxu0 0.0
        %2229 = vmatpush1.msra.mxu0 %v2203
        %2230 = vmatprep.subr.mxu0 0.0
        %2231 = vmatpush1.msra.mxu0 %v2204
        %2232 = vmatprep.subr.mxu0 0.0
        %2233 = vmatpush1.msra.mxu0 %v2205
        %2234 = vmatprep.subr.mxu0 0.0
        %2235 = vmatpush1.msra.mxu0 %v2206
        %2236 = vmatprep.subr.mxu0 0.0
        %2237 = vmatpush1.msra.mxu0 %v2207
        %2238 = vmatprep.subr.mxu0 0.0
        %2239 = vmatpush1.msra.mxu0 %v2208
        %2240 = vmatprep.subr.mxu0 0.0
        %2241 = vmatpush1.msra.mxu0 %v2209
        %2242 = vmatprep.subr.mxu0 0.0
        %2243 = vmatpush1.msra.mxu0 0.0
        %2244 = vmatprep.subr.mxu0 0.0
        %2245 = vmatpush1.msra.mxu0 0.0
        %2246 = vmatprep.subr.mxu0 0.0
        %2247 = vmatpush1.msra.mxu0 0.0
        %2248 = vmatprep.subr.mxu0 0.0
        %2249 = vmatpush1.msra.mxu0 0.0
        %2250 = vmatprep.subr.mxu0 0.0
        %2251 = vmatpush1.msra.mxu0 0.0
        %2252 = vmatprep.subr.mxu0 0.0
        %2253 = vmatpush1.msra.mxu0 0.0
        %2254 = vmatprep.subr.mxu0 0.0
        %2255 = vmatpush1.msra.mxu0 0.0
        %2256 = vmatprep.subr.mxu0 0.0
        %2257 = vmatpush1.msra.mxu0 0.0
        %2258 = vmatprep.subr.mxu0 0.0
        %2259 = vmatpush1.msra.mxu0 0.0
        %2260 = vmatprep.subr.mxu0 0.0
        %2261 = vmatpush1.msra.mxu0 0.0
        %2262 = vmatprep.subr.mxu0 0.0
        %2263 = vmatpush1.msra.mxu0 0.0
        %2264 = vmatprep.subr.mxu0 0.0
        %2265 = vmatpush1.msra.mxu0 0.0
        %2266 = vmatprep.subr.mxu0 0.0
        %2267 = vmatpush1.msra.mxu0 0.0
        %2268 = vmatprep.subr.mxu0 0.0
        %2269 = vmatpush1.msra.mxu0 0.0
        %2270 = vmatprep.subr.mxu0 0.0
        %2271 = vmatpush1.msra.mxu0 0.0
        %2272 = vmatprep.subr.mxu0 0.0
        %2273 = vmatpush1.msra.mxu0 0.0
        %2274 = vmatprep.mubr.f32.mxu0 0.0
        %2275 = vmatmul.mubr.f32.gmra.mrb[0].mxu0 %v2178
        %v2276 = vpop.f32.mrb[0].mxu0
        %v2277 = vadd.f32 0.0, %v2276
        %v2278 = vpop.f32.mrb[0].mxu0
        %2279 = vmatprep.mubr.f32.mxu0 0.0
        %2280 = vmatmul.mubr.f32.gmra.mrb[0].mxu0 %v2179
        %v2281 = vpop.f32.mrb[0].mxu0
        %v2282 = vadd.f32 0.0, %v2281
        %v2283 = vpop.f32.mrb[0].mxu0
        %2284 = vmatprep.mubr.f32.mxu0 0.0
        %2285 = vmatmul.mubr.f32.gmra.mrb[0].mxu0 %v2180
        %v2286 = vpop.f32.mrb[0].mxu0
        %v2287 = vadd.f32 0.0, %v2286
        %v2288 = vpop.f32.mrb[0].mxu0
        %2289 = vmatprep.mubr.f32.mxu0 0.0
        %2290 = vmatmul.mubr.f32.gmra.mrb[0].mxu0 %v2181
        %v2291 = vpop.f32.mrb[0].mxu0
        %v2292 = vadd.f32 0.0, %v2291
        %v2293 = vpop.f32.mrb[0].mxu0
        %2294 = vmatprep.mubr.f32.mxu0 0.0
        %2295 = vmatmul.mubr.f32.gmra.mrb[0].mxu0 %v2182
        %v2296 = vpop.f32.mrb[0].mxu0
        %v2297 = vadd.f32 0.0, %v2296
        %v2298 = vpop.f32.mrb[0].mxu0
        %2299 = vmatprep.mubr.f32.mxu0 0.0
        %2300 = vmatmul.mubr.f32.gmra.mrb[0].mxu0 %v2183
        %v2301 = vpop.f32.mrb[0].mxu0
        %v2302 = vadd.f32 0.0, %v2301
        %v2303 = vpop.f32.mrb[0].mxu0
        %2304 = vmatprep.mubr.f32.mxu0 0.0
        %2305 = vmatmul.mubr.f32.gmra.mrb[0].mxu0 %v2184
        %v2306 = vpop.f32.mrb[0].mxu0
        %v2307 = vadd.f32 0.0, %v2306
        %v2308 = vpop.f32.mrb[0].mxu0
        %2309 = vmatprep.mubr.f32.mxu0 0.0
        %2310 = vmatmul.mubr.f32.gmra.mrb[0].mxu0 %v2185
        %v2311 = vpop.f32.mrb[0].mxu0
        %v2312 = vadd.f32 0.0, %v2311
        %v2313 = vpop.f32.mrb[0].mxu0
        %2314 = vmatprep.mubr.f32.mxu0 0.0
        %2315 = vmatmul.mubr.f32.gmra.mrb[0].mxu0 %v2186
        %v2316 = vpop.f32.mrb[0].mxu0
        %v2317 = vadd.f32 0.0, %v2316
        %v2318 = vpop.f32.mrb[0].mxu0
        %2319 = vmatprep.mubr.f32.mxu0 0.0
        %2320 = vmatmul.mubr.f32.gmra.mrb[0].mxu0 %v2187
        %v2321 = vpop.f32.mrb[0].mxu0
        %v2322 = vadd.f32 0.0, %v2321
        %v2323 = vpop.f32.mrb[0].mxu0
        %2324 = vmatprep.mubr.f32.mxu0 0.0
        %2325 = vmatmul.mubr.f32.gmra.mrb[0].mxu0 %v2188
        %v2326 = vpop.f32.mrb[0].mxu0
        %v2327 = vadd.f32 0.0, %v2326
        %v2328 = vpop.f32.mrb[0].mxu0
        %2329 = vmatprep.mubr.f32.mxu0 0.0
        %2330 = vmatmul.mubr.f32.gmra.mrb[0].mxu0 %v2189
        %v2331 = vpop.f32.mrb[0].mxu0
        %v2332 = vadd.f32 0.0, %v2331
        %v2333 = vpop.f32.mrb[0].mxu0
        %2334 = vmatprep.mubr.f32.mxu0 0.0
        %2335 = vmatmul.mubr.f32.gmra.mrb[0].mxu0 %v2190
        %v2336 = vpop.f32.mrb[0].mxu0
        %v2337 = vadd.f32 0.0, %v2336
        %v2338 = vpop.f32.mrb[0].mxu0
        %2339 = vmatprep.mubr.f32.mxu0 0.0
        %2340 = vmatmul.mubr.f32.gmra.mrb[0].mxu0 %v2191
        %v2341 = vpop.f32.mrb[0].mxu0
        %v2342 = vadd.f32 0.0, %v2341
        %v2343 = vpop.f32.mrb[0].mxu0
        %2344 = vmatprep.mubr.f32.mxu0 0.0
        %2345 = vmatmul.mubr.f32.gmra.mrb[0].mxu0 %v2192
        %v2346 = vpop.f32.mrb[0].mxu0
        %v2347 = vadd.f32 0.0, %v2346
        %v2348 = vpop.f32.mrb[0].mxu0
        %2349 = vmatprep.mubr.f32.mxu0 0.0
        %2350 = vmatmul.mubr.f32.gmra.mrb[0].mxu0 %v2193
        %v2351 = vpop.f32.mrb[0].mxu0
        %v2352 = vadd.f32 0.0, %v2351
        %v2353 = vpop.f32.mrb[0].mxu0
        %2354 = vdwg.mxu0
        %v2355 = vadd.f32 %v2157, %v2277
        %v2356 = vadd.f32 %v2158, %v2282
        %v2357 = vadd.f32 %v2159, %v2287
        %v2358 = vadd.f32 %v2160, %v2292
        %v2359 = vadd.f32 %v2161, %v2297
        %v2360 = vadd.f32 %v2162, %v2302
        %v2361 = vadd.f32 %v2163, %v2307
        %v2362 = vadd.f32 %v2164, %v2312
        %v2363 = vadd.f32 %v2165, %v2317
        %v2364 = vadd.f32 %v2166, %v2322
        %v2365 = vadd.f32 %v2167, %v2327
        %v2366 = vadd.f32 %v2168, %v2332
        %v2367 = vadd.f32 %v2169, %v2337
        %v2368 = vadd.f32 %v2170, %v2342
        %v2369 = vadd.f32 %v2171, %v2347
        %v2370 = vadd.f32 %v2172, %v2352
        %v2371 = vld [vmem:[#allocation8 + $0x380] sm:$0xff]
        %v2372 = vld [vmem:[#allocation8 + $0x388] sm:$0xff]
        %v2373 = vld [vmem:[#allocation8 + $0x390] sm:$0xff]
        %v2374 = vld [vmem:[#allocation8 + $0x398] sm:$0xff]
        %v2375 = vld [vmem:[#allocation8 + $0x3a0] sm:$0xff]
        %v2376 = vld [vmem:[#allocation8 + $0x3a8] sm:$0xff]
        %v2377 = vld [vmem:[#allocation8 + $0x3b0] sm:$0xff]
        %v2378 = vld [vmem:[#allocation8 + $0x3b8] sm:$0xff]
        %v2379 = vld [vmem:[#allocation8 + $0x3c0] sm:$0xff]
        %v2380 = vld [vmem:[#allocation8 + $0x3c8] sm:$0xff]
        %v2381 = vld [vmem:[#allocation8 + $0x3d0] sm:$0xff]
        %v2382 = vld [vmem:[#allocation8 + $0x3d8] sm:$0xff]
        %v2383 = vld [vmem:[#allocation8 + $0x3e0] sm:$0xff]
        %v2384 = vld [vmem:[#allocation8 + $0x3e8] sm:$0xff]
        %v2385 = vld [vmem:[#allocation8 + $0x3f0] sm:$0xff]
        %v2386 = vld [vmem:[#allocation8 + $0x3f8] sm:$0xff]
        %2387 = vmatprep.subr.mxu0 0.0
        %2388 = vmatpush1.msra.mxu0 %v2371
        %2389 = vmatprep.subr.mxu0 0.0
        %2390 = vmatpush1.msra.mxu0 %v2372
        %2391 = vmatprep.subr.mxu0 0.0
        %2392 = vmatpush1.msra.mxu0 %v2373
        %2393 = vmatprep.subr.mxu0 0.0
        %2394 = vmatpush1.msra.mxu0 %v2374
        %2395 = vmatprep.subr.mxu0 0.0
        %2396 = vmatpush1.msra.mxu0 %v2375
        %2397 = vmatprep.subr.mxu0 0.0
        %2398 = vmatpush1.msra.mxu0 %v2376
        %2399 = vmatprep.subr.mxu0 0.0
        %2400 = vmatpush1.msra.mxu0 %v2377
        %2401 = vmatprep.subr.mxu0 0.0
        %2402 = vmatpush1.msra.mxu0 %v2378
        %2403 = vmatprep.subr.mxu0 0.0
        %2404 = vmatpush1.msra.mxu0 %v2379
        %2405 = vmatprep.subr.mxu0 0.0
        %2406 = vmatpush1.msra.mxu0 %v2380
        %2407 = vmatprep.subr.mxu0 0.0
        %2408 = vmatpush1.msra.mxu0 %v2381
        %2409 = vmatprep.subr.mxu0 0.0
        %2410 = vmatpush1.msra.mxu0 %v2382
        %2411 = vmatprep.subr.mxu0 0.0
        %2412 = vmatpush1.msra.mxu0 %v2383
        %2413 = vmatprep.subr.mxu0 0.0
        %2414 = vmatpush1.msra.mxu0 %v2384
        %2415 = vmatprep.subr.mxu0 0.0
        %2416 = vmatpush1.msra.mxu0 %v2385
        %2417 = vmatprep.subr.mxu0 0.0
        %2418 = vmatpush1.msra.mxu0 %v2386
        %2419 = vmatprep.subr.mxu0 0.0
        %2420 = vmatpush1.msra.mxu0 0.0
        %2421 = vmatprep.subr.mxu0 0.0
        %2422 = vmatpush1.msra.mxu0 0.0
        %2423 = vmatprep.subr.mxu0 0.0
        %2424 = vmatpush1.msra.mxu0 0.0
        %2425 = vmatprep.subr.mxu0 0.0
        %2426 = vmatpush1.msra.mxu0 0.0
        %2427 = vmatprep.subr.mxu0 0.0
        %2428 = vmatpush1.msra.mxu0 0.0
        %2429 = vmatprep.subr.mxu0 0.0
        %2430 = vmatpush1.msra.mxu0 0.0
        %2431 = vmatprep.subr.mxu0 0.0
        %2432 = vmatpush1.msra.mxu0 0.0
        %2433 = vmatprep.subr.mxu0 0.0
        %2434 = vmatpush1.msra.mxu0 0.0
        %2435 = vmatprep.subr.mxu0 0.0
        %2436 = vmatpush1.msra.mxu0 0.0
        %2437 = vmatprep.subr.mxu0 0.0
        %2438 = vmatpush1.msra.mxu0 0.0
        %2439 = vmatprep.subr.mxu0 0.0
        %2440 = vmatpush1.msra.mxu0 0.0
        %2441 = vmatprep.subr.mxu0 0.0
        %2442 = vmatpush1.msra.mxu0 0.0
        %2443 = vmatprep.subr.mxu0 0.0
        %2444 = vmatpush1.msra.mxu0 0.0
        %2445 = vmatprep.subr.mxu0 0.0
        %2446 = vmatpush1.msra.mxu0 0.0
        %2447 = vmatprep.subr.mxu0 0.0
        %2448 = vmatpush1.msra.mxu0 0.0
        %2449 = vmatprep.subr.mxu0 0.0
        %2450 = vmatpush1.msra.mxu0 0.0
        %2451 = vmatprep.mubr.f32.mxu0 0.0
        %2452 = vmatmul.mubr.f32.gmra.mrb[0].mxu0 %v565
        %v2453 = vpop.f32.mrb[0].mxu0
        %v2454 = vadd.f32 0.0, %v2453
        %v2455 = vpop.f32.mrb[0].mxu0
        %2456 = vmatprep.mubr.f32.mxu0 0.0
        %2457 = vmatmul.mubr.f32.gmra.mrb[0].mxu0 %v570
        %v2458 = vpop.f32.mrb[0].mxu0
        %v2459 = vadd.f32 0.0, %v2458
        %v2460 = vpop.f32.mrb[0].mxu0
        %2461 = vmatprep.mubr.f32.mxu0 0.0
        %2462 = vmatmul.mubr.f32.gmra.mrb[0].mxu0 %v575
        %v2463 = vpop.f32.mrb[0].mxu0
        %v2464 = vadd.f32 0.0, %v2463
        %v2465 = vpop.f32.mrb[0].mxu0
        %2466 = vmatprep.mubr.f32.mxu0 0.0
        %2467 = vmatmul.mubr.f32.gmra.mrb[0].mxu0 %v580
        %v2468 = vpop.f32.mrb[0].mxu0
        %v2469 = vadd.f32 0.0, %v2468
        %v2470 = vpop.f32.mrb[0].mxu0
        %2471 = vmatprep.mubr.f32.mxu0 0.0
        %2472 = vmatmul.mubr.f32.gmra.mrb[0].mxu0 %v585
        %v2473 = vpop.f32.mrb[0].mxu0
        %v2474 = vadd.f32 0.0, %v2473
        %v2475 = vpop.f32.mrb[0].mxu0
        %2476 = vmatprep.mubr.f32.mxu0 0.0
        %2477 = vmatmul.mubr.f32.gmra.mrb[0].mxu0 %v590
        %v2478 = vpop.f32.mrb[0].mxu0
        %v2479 = vadd.f32 0.0, %v2478
        %v2480 = vpop.f32.mrb[0].mxu0
        %2481 = vmatprep.mubr.f32.mxu0 0.0
        %2482 = vmatmul.mubr.f32.gmra.mrb[0].mxu0 %v595
        %v2483 = vpop.f32.mrb[0].mxu0
        %v2484 = vadd.f32 0.0, %v2483
        %v2485 = vpop.f32.mrb[0].mxu0
        %2486 = vmatprep.mubr.f32.mxu0 0.0
        %2487 = vmatmul.mubr.f32.gmra.mrb[0].mxu0 %v600
        %v2488 = vpop.f32.mrb[0].mxu0
        %v2489 = vadd.f32 0.0, %v2488
        %v2490 = vpop.f32.mrb[0].mxu0
        %2491 = vmatprep.mubr.f32.mxu0 0.0
        %2492 = vmatmul.mubr.f32.gmra.mrb[0].mxu0 %v605
        %v2493 = vpop.f32.mrb[0].mxu0
        %v2494 = vadd.f32 0.0, %v2493
        %v2495 = vpop.f32.mrb[0].mxu0
        %2496 = vmatprep.mubr.f32.mxu0 0.0
        %2497 = vmatmul.mubr.f32.gmra.mrb[0].mxu0 %v610
        %v2498 = vpop.f32.mrb[0].mxu0
        %v2499 = vadd.f32 0.0, %v2498
        %v2500 = vpop.f32.mrb[0].mxu0
        %2501 = vmatprep.mubr.f32.mxu0 0.0
        %2502 = vmatmul.mubr.f32.gmra.mrb[0].mxu0 %v615
        %v2503 = vpop.f32.mrb[0].mxu0
        %v2504 = vadd.f32 0.0, %v2503
        %v2505 = vpop.f32.mrb[0].mxu0
        %2506 = vmatprep.mubr.f32.mxu0 0.0
        %2507 = vmatmul.mubr.f32.gmra.mrb[0].mxu0 %v620
        %v2508 = vpop.f32.mrb[0].mxu0
        %v2509 = vadd.f32 0.0, %v2508
        %v2510 = vpop.f32.mrb[0].mxu0
        %2511 = vmatprep.mubr.f32.mxu0 0.0
        %2512 = vmatmul.mubr.f32.gmra.mrb[0].mxu0 %v625
        %v2513 = vpop.f32.mrb[0].mxu0
        %v2514 = vadd.f32 0.0, %v2513
        %v2515 = vpop.f32.mrb[0].mxu0
        %2516 = vmatprep.mubr.f32.mxu0 0.0
        %2517 = vmatmul.mubr.f32.gmra.mrb[0].mxu0 %v630
        %v2518 = vpop.f32.mrb[0].mxu0
        %v2519 = vadd.f32 0.0, %v2518
        %v2520 = vpop.f32.mrb[0].mxu0
        %2521 = vmatprep.mubr.f32.mxu0 0.0
        %2522 = vmatmul.mubr.f32.gmra.mrb[0].mxu0 %v635
        %v2523 = vpop.f32.mrb[0].mxu0
        %v2524 = vadd.f32 0.0, %v2523
        %v2525 = vpop.f32.mrb[0].mxu0
        %2526 = vmatprep.mubr.f32.mxu0 0.0
        %2527 = vmatmul.mubr.f32.gmra.mrb[0].mxu0 %v640
        %v2528 = vpop.f32.mrb[0].mxu0
        %v2529 = vadd.f32 0.0, %v2528
        %v2530 = vpop.f32.mrb[0].mxu0
        %2531 = vdwg.mxu0
        %v2532 = vadd.f32 %v2355, %v2454
        %v2533 = vadd.f32 %v2356, %v2459
        %v2534 = vadd.f32 %v2357, %v2464
        %v2535 = vadd.f32 %v2358, %v2469
        %v2536 = vadd.f32 %v2359, %v2474
        %v2537 = vadd.f32 %v2360, %v2479
        %v2538 = vadd.f32 %v2361, %v2484
        %v2539 = vadd.f32 %v2362, %v2489
        %v2540 = vadd.f32 %v2363, %v2494
        %v2541 = vadd.f32 %v2364, %v2499
        %v2542 = vadd.f32 %v2365, %v2504
        %v2543 = vadd.f32 %v2366, %v2509
        %v2544 = vadd.f32 %v2367, %v2514
        %v2545 = vadd.f32 %v2368, %v2519
        %v2546 = vadd.f32 %v2369, %v2524
        %v2547 = vadd.f32 %v2370, %v2529
        %v2548 = vrot.slane %v635, 1
        %v2549 = vrot.slane %v640, 1
        %v2550 = vsel %vm1358, %v2548, %v2549
        %v2551 = vsel %vm1358, %v1976, %v2548
        %v2552 = vsel %vm1358, %v2549, %v1346
        %v2553 = vsel %vm1391, %v476, %v1369
        %v2554 = vsel %vm1392, %v476, %v1368
        %v2555 = vsel %vm1393, %v476, %v1367
        %v2556 = vsel %vm1394, %v476, %v1366
        %v2557 = vsel %vm1395, %v476, %v1365
        %v2558 = vsel %vm1396, %v476, %v1364
        %v2559 = vsel %vm1397, %v476, %v1363
        %v2560 = vsel %vm1398, %v476, %v1362
        %v2561 = vsel %vm1399, %v476, %v1361
        %v2562 = vsel %vm1400, %v476, %v1360
        %v2563 = vsel %vm1401, %v476, %v1359
        %v2564 = vsel %vm1402, %v476, %v1978
        %v2565 = vsel %vm1403, %v476, %v1977
        %v2566 = vsel %vm1404, %v476, %v2551
        %v2567 = vsel %vm1405, %v476, %v2550
        %v2568 = vsel %vm1406, %v476, %v2552
        %v2569 = vld [vmem:[#allocation8 + $0x400] sm:$0xff]
        %v2570 = vld [vmem:[#allocation8 + $0x408] sm:$0xff]
        %v2571 = vld [vmem:[#allocation8 + $0x410] sm:$0xff]
        %v2572 = vld [vmem:[#allocation8 + $0x418] sm:$0xff]
        %v2573 = vld [vmem:[#allocation8 + $0x420] sm:$0xff]
        %v2574 = vld [vmem:[#allocation8 + $0x428] sm:$0xff]
        %v2575 = vld [vmem:[#allocation8 + $0x430] sm:$0xff]
        %v2576 = vld [vmem:[#allocation8 + $0x438] sm:$0xff]
        %v2577 = vld [vmem:[#allocation8 + $0x440] sm:$0xff]
        %v2578 = vld [vmem:[#allocation8 + $0x448] sm:$0xff]
        %v2579 = vld [vmem:[#allocation8 + $0x450] sm:$0xff]
        %v2580 = vld [vmem:[#allocation8 + $0x458] sm:$0xff]
        %v2581 = vld [vmem:[#allocation8 + $0x460] sm:$0xff]
        %v2582 = vld [vmem:[#allocation8 + $0x468] sm:$0xff]
        %v2583 = vld [vmem:[#allocation8 + $0x470] sm:$0xff]
        %v2584 = vld [vmem:[#allocation8 + $0x478] sm:$0xff]
        %2585 = vmatprep.subr.mxu0 0.0
        %2586 = vmatpush1.msra.mxu0 %v2569
        %2587 = vmatprep.subr.mxu0 0.0
        %2588 = vmatpush1.msra.mxu0 %v2570
        %2589 = vmatprep.subr.mxu0 0.0
        %2590 = vmatpush1.msra.mxu0 %v2571
        %2591 = vmatprep.subr.mxu0 0.0
        %2592 = vmatpush1.msra.mxu0 %v2572
        %2593 = vmatprep.subr.mxu0 0.0
        %2594 = vmatpush1.msra.mxu0 %v2573
        %2595 = vmatprep.subr.mxu0 0.0
        %2596 = vmatpush1.msra.mxu0 %v2574
        %2597 = vmatprep.subr.mxu0 0.0
        %2598 = vmatpush1.msra.mxu0 %v2575
        %2599 = vmatprep.subr.mxu0 0.0
        %2600 = vmatpush1.msra.mxu0 %v2576
        %2601 = vmatprep.subr.mxu0 0.0
        %2602 = vmatpush1.msra.mxu0 %v2577
        %2603 = vmatprep.subr.mxu0 0.0
        %2604 = vmatpush1.msra.mxu0 %v2578
        %2605 = vmatprep.subr.mxu0 0.0
        %2606 = vmatpush1.msra.mxu0 %v2579
        %2607 = vmatprep.subr.mxu0 0.0
        %2608 = vmatpush1.msra.mxu0 %v2580
        %2609 = vmatprep.subr.mxu0 0.0
        %2610 = vmatpush1.msra.mxu0 %v2581
        %2611 = vmatprep.subr.mxu0 0.0
        %2612 = vmatpush1.msra.mxu0 %v2582
        %2613 = vmatprep.subr.mxu0 0.0
        %2614 = vmatpush1.msra.mxu0 %v2583
        %2615 = vmatprep.subr.mxu0 0.0
        %2616 = vmatpush1.msra.mxu0 %v2584
        %2617 = vmatprep.subr.mxu0 0.0
        %2618 = vmatpush1.msra.mxu0 0.0
        %2619 = vmatprep.subr.mxu0 0.0
        %2620 = vmatpush1.msra.mxu0 0.0
        %2621 = vmatprep.subr.mxu0 0.0
        %2622 = vmatpush1.msra.mxu0 0.0
        %2623 = vmatprep.subr.mxu0 0.0
        %2624 = vmatpush1.msra.mxu0 0.0
        %2625 = vmatprep.subr.mxu0 0.0
        %2626 = vmatpush1.msra.mxu0 0.0
        %2627 = vmatprep.subr.mxu0 0.0
        %2628 = vmatpush1.msra.mxu0 0.0
        %2629 = vmatprep.subr.mxu0 0.0
        %2630 = vmatpush1.msra.mxu0 0.0
        %2631 = vmatprep.subr.mxu0 0.0
        %2632 = vmatpush1.msra.mxu0 0.0
        %2633 = vmatprep.subr.mxu0 0.0
        %2634 = vmatpush1.msra.mxu0 0.0
        %2635 = vmatprep.subr.mxu0 0.0
        %2636 = vmatpush1.msra.mxu0 0.0
        %2637 = vmatprep.subr.mxu0 0.0
        %2638 = vmatpush1.msra.mxu0 0.0
        %2639 = vmatprep.subr.mxu0 0.0
        %2640 = vmatpush1.msra.mxu0 0.0
        %2641 = vmatprep.subr.mxu0 0.0
        %2642 = vmatpush1.msra.mxu0 0.0
        %2643 = vmatprep.subr.mxu0 0.0
        %2644 = vmatpush1.msra.mxu0 0.0
        %2645 = vmatprep.subr.mxu0 0.0
        %2646 = vmatpush1.msra.mxu0 0.0
        %2647 = vmatprep.subr.mxu0 0.0
        %2648 = vmatpush1.msra.mxu0 0.0
        %2649 = vmatprep.mubr.f32.mxu0 0.0
        %2650 = vmatmul.mubr.f32.gmra.mrb[0].mxu0 %v2553
        %v2651 = vpop.f32.mrb[0].mxu0
        %v2652 = vadd.f32 0.0, %v2651
        %v2653 = vpop.f32.mrb[0].mxu0
        %2654 = vmatprep.mubr.f32.mxu0 0.0
        %2655 = vmatmul.mubr.f32.gmra.mrb[0].mxu0 %v2554
        %v2656 = vpop.f32.mrb[0].mxu0
        %v2657 = vadd.f32 0.0, %v2656
        %v2658 = vpop.f32.mrb[0].mxu0
        %2659 = vmatprep.mubr.f32.mxu0 0.0
        %2660 = vmatmul.mubr.f32.gmra.mrb[0].mxu0 %v2555
        %v2661 = vpop.f32.mrb[0].mxu0
        %v2662 = vadd.f32 0.0, %v2661
        %v2663 = vpop.f32.mrb[0].mxu0
        %2664 = vmatprep.mubr.f32.mxu0 0.0
        %2665 = vmatmul.mubr.f32.gmra.mrb[0].mxu0 %v2556
        %v2666 = vpop.f32.mrb[0].mxu0
        %v2667 = vadd.f32 0.0, %v2666
        %v2668 = vpop.f32.mrb[0].mxu0
        %2669 = vmatprep.mubr.f32.mxu0 0.0
        %2670 = vmatmul.mubr.f32.gmra.mrb[0].mxu0 %v2557
        %v2671 = vpop.f32.mrb[0].mxu0
        %v2672 = vadd.f32 0.0, %v2671
        %v2673 = vpop.f32.mrb[0].mxu0
        %2674 = vmatprep.mubr.f32.mxu0 0.0
        %2675 = vmatmul.mubr.f32.gmra.mrb[0].mxu0 %v2558
        %v2676 = vpop.f32.mrb[0].mxu0
        %v2677 = vadd.f32 0.0, %v2676
        %v2678 = vpop.f32.mrb[0].mxu0
        %2679 = vmatprep.mubr.f32.mxu0 0.0
        %2680 = vmatmul.mubr.f32.gmra.mrb[0].mxu0 %v2559
        %v2681 = vpop.f32.mrb[0].mxu0
        %v2682 = vadd.f32 0.0, %v2681
        %v2683 = vpop.f32.mrb[0].mxu0
        %2684 = vmatprep.mubr.f32.mxu0 0.0
        %2685 = vmatmul.mubr.f32.gmra.mrb[0].mxu0 %v2560
        %v2686 = vpop.f32.mrb[0].mxu0
        %v2687 = vadd.f32 0.0, %v2686
        %v2688 = vpop.f32.mrb[0].mxu0
        %2689 = vmatprep.mubr.f32.mxu0 0.0
        %2690 = vmatmul.mubr.f32.gmra.mrb[0].mxu0 %v2561
        %v2691 = vpop.f32.mrb[0].mxu0
        %v2692 = vadd.f32 0.0, %v2691
        %v2693 = vpop.f32.mrb[0].mxu0
        %2694 = vmatprep.mubr.f32.mxu0 0.0
        %2695 = vmatmul.mubr.f32.gmra.mrb[0].mxu0 %v2562
        %v2696 = vpop.f32.mrb[0].mxu0
        %v2697 = vadd.f32 0.0, %v2696
        %v2698 = vpop.f32.mrb[0].mxu0
        %2699 = vmatprep.mubr.f32.mxu0 0.0
        %2700 = vmatmul.mubr.f32.gmra.mrb[0].mxu0 %v2563
        %v2701 = vpop.f32.mrb[0].mxu0
        %v2702 = vadd.f32 0.0, %v2701
        %v2703 = vpop.f32.mrb[0].mxu0
        %2704 = vmatprep.mubr.f32.mxu0 0.0
        %2705 = vmatmul.mubr.f32.gmra.mrb[0].mxu0 %v2564
        %v2706 = vpop.f32.mrb[0].mxu0
        %v2707 = vadd.f32 0.0, %v2706
        %v2708 = vpop.f32.mrb[0].mxu0
        %2709 = vmatprep.mubr.f32.mxu0 0.0
        %2710 = vmatmul.mubr.f32.gmra.mrb[0].mxu0 %v2565
        %v2711 = vpop.f32.mrb[0].mxu0
        %v2712 = vadd.f32 0.0, %v2711
        %v2713 = vpop.f32.mrb[0].mxu0
        %2714 = vmatprep.mubr.f32.mxu0 0.0
        %2715 = vmatmul.mubr.f32.gmra.mrb[0].mxu0 %v2566
        %v2716 = vpop.f32.mrb[0].mxu0
        %v2717 = vadd.f32 0.0, %v2716
        %v2718 = vpop.f32.mrb[0].mxu0
        %2719 = vmatprep.mubr.f32.mxu0 0.0
        %2720 = vmatmul.mubr.f32.gmra.mrb[0].mxu0 %v2567
        %v2721 = vpop.f32.mrb[0].mxu0
        %v2722 = vadd.f32 0.0, %v2721
        %v2723 = vpop.f32.mrb[0].mxu0
        %2724 = vmatprep.mubr.f32.mxu0 0.0
        %2725 = vmatmul.mubr.f32.gmra.mrb[0].mxu0 %v2568
        %v2726 = vpop.f32.mrb[0].mxu0
        %v2727 = vadd.f32 0.0, %v2726
        %v2728 = vpop.f32.mrb[0].mxu0
        %2729 = vdwg.mxu0
        %v2730 = vadd.f32 %v2532, %v2652
        %v2731 = vadd.f32 %v2533, %v2657
        %v2732 = vadd.f32 %v2534, %v2662
        %v2733 = vadd.f32 %v2535, %v2667
        %v2734 = vadd.f32 %v2536, %v2672
        %v2735 = vadd.f32 %v2537, %v2677
        %v2736 = vadd.f32 %v2538, %v2682
        %v2737 = vadd.f32 %v2539, %v2687
        %v2738 = vadd.f32 %v2540, %v2692
        %v2739 = vadd.f32 %v2541, %v2697
        %v2740 = vadd.f32 %v2542, %v2702
        %v2741 = vadd.f32 %v2543, %v2707
        %v2742 = vadd.f32 %v2544, %v2712
        %v2743 = vadd.f32 %v2545, %v2717
        %v2744 = vadd.f32 %v2546, %v2722
        %v2745 = vadd.f32 %v2547, %v2727
        %v2746 = vld [vmem:[#allocation10] sm:$0xff]
        %v2747 = vld [vmem:[#allocation10 + $0x8] sm:$0xff]
        %v2748 = vld [vmem:[#allocation10 + $0x10] sm:$0xff]
        %v2749 = vld [vmem:[#allocation10 + $0x18] sm:$0xff]
        %v2750 = vld [vmem:[#allocation10 + $0x20] sm:$0xff]
        %v2751 = vld [vmem:[#allocation10 + $0x28] sm:$0xff]
        %v2752 = vld [vmem:[#allocation10 + $0x30] sm:$0xff]
        %v2753 = vld [vmem:[#allocation10 + $0x38] sm:$0xff]
        %v2754 = vld [vmem:[#allocation10 + $0x40] sm:$0xff]
        %v2755 = vld [vmem:[#allocation10 + $0x48] sm:$0xff]
        %v2756 = vld [vmem:[#allocation10 + $0x50] sm:$0xff]
        %v2757 = vld [vmem:[#allocation10 + $0x58] sm:$0xff]
        %v2758 = vld [vmem:[#allocation10 + $0x60] sm:$0xff]
        %v2759 = vld [vmem:[#allocation10 + $0x68] sm:$0xff]
        %v2760 = vld [vmem:[#allocation10 + $0x70] sm:$0xff]
        %v2761 = vld [vmem:[#allocation10 + $0x78] sm:$0xff]
        %v2762 = vld [vmem:[%s7] sm:$0x1]
        %v2764 = vlaneseq
        %v2765 = vshrl.u32 %v2764, 7
        %v2766 = vsub.s32 0, %v2765
        %v2767 = vrot.slane %v2762, %v2766
        %2769 = vmatprep.subr.mxu0 0.0
        %2770 = vmatpush1.msra.mxu0 %v2746
        %2771 = vmatprep.subr.mxu0 0.0
        %2772 = vmatpush1.msra.mxu0 %v2747
        %2773 = vmatprep.subr.mxu0 0.0
        %2774 = vmatpush1.msra.mxu0 %v2748
        %2775 = vmatprep.subr.mxu0 0.0
        %2776 = vmatpush1.msra.mxu0 %v2749
        %2777 = vmatprep.subr.mxu0 0.0
        %2778 = vmatpush1.msra.mxu0 %v2750
        %2779 = vmatprep.subr.mxu0 0.0
        %2780 = vmatpush1.msra.mxu0 %v2751
        %2781 = vmatprep.subr.mxu0 0.0
        %2782 = vmatpush1.msra.mxu0 %v2752
        %2783 = vmatprep.subr.mxu0 0.0
        %2784 = vmatpush1.msra.mxu0 %v2753
        %2785 = vmatprep.subr.mxu0 0.0
        %2786 = vmatpush1.msra.mxu0 %v2754
        %2787 = vmatprep.subr.mxu0 0.0
        %2788 = vmatpush1.msra.mxu0 %v2755
        %2789 = vmatprep.subr.mxu0 0.0
        %2790 = vmatpush1.msra.mxu0 %v2756
        %2791 = vmatprep.subr.mxu0 0.0
        %2792 = vmatpush1.msra.mxu0 %v2757
        %2793 = vmatprep.subr.mxu0 0.0
        %2794 = vmatpush1.msra.mxu0 %v2758
        %2795 = vmatprep.subr.mxu0 0.0
        %2796 = vmatpush1.msra.mxu0 %v2759
        %2797 = vmatprep.subr.mxu0 0.0
        %2798 = vmatpush1.msra.mxu0 %v2760
        %2799 = vmatprep.subr.mxu0 0.0
        %2800 = vmatpush1.msra.mxu0 %v2761
        %2801 = vmatprep.subr.mxu0 0.0
        %2802 = vmatpush1.msra.mxu0 0.0
        %2803 = vmatprep.subr.mxu0 0.0
        %2804 = vmatpush1.msra.mxu0 0.0
        %2805 = vmatprep.subr.mxu0 0.0
        %2806 = vmatpush1.msra.mxu0 0.0
        %2807 = vmatprep.subr.mxu0 0.0
        %2808 = vmatpush1.msra.mxu0 0.0
        %2809 = vmatprep.subr.mxu0 0.0
        %2810 = vmatpush1.msra.mxu0 0.0
        %2811 = vmatprep.subr.mxu0 0.0
        %2812 = vmatpush1.msra.mxu0 0.0
        %2813 = vmatprep.subr.mxu0 0.0
        %2814 = vmatpush1.msra.mxu0 0.0
        %2815 = vmatprep.subr.mxu0 0.0
        %2816 = vmatpush1.msra.mxu0 0.0
        %2817 = vmatprep.subr.mxu0 0.0
        %2818 = vmatpush1.msra.mxu0 0.0
        %2819 = vmatprep.subr.mxu0 0.0
        %2820 = vmatpush1.msra.mxu0 0.0
        %2821 = vmatprep.subr.mxu0 0.0
        %2822 = vmatpush1.msra.mxu0 0.0
        %2823 = vmatprep.subr.mxu0 0.0
        %2824 = vmatpush1.msra.mxu0 0.0
        %2825 = vmatprep.subr.mxu0 0.0
        %2826 = vmatpush1.msra.mxu0 0.0
        %2827 = vmatprep.subr.mxu0 0.0
        %2828 = vmatpush1.msra.mxu0 0.0
        %2829 = vmatprep.subr.mxu0 0.0
        %2830 = vmatpush1.msra.mxu0 0.0
        %2831 = vmatprep.subr.mxu0 0.0
        %2832 = vmatpush1.msra.mxu0 0.0
        %2833 = vmatprep.mubr.f32.mxu0 0.0
        %2834 = vmatmul.mubr.f32.gmra.mrb[0].mxu0 %v2730
        %v2835 = vpop.f32.mrb[0].mxu0
        %v2836 = vadd.f32 %v2767, %v2835
        %v2837 = vpop.f32.mrb[0].mxu0
        %2838 = vmatprep.mubr.f32.mxu0 0.0
        %2839 = vmatmul.mubr.f32.gmra.mrb[0].mxu0 %v2731
        %v2840 = vpop.f32.mrb[0].mxu0
        %v2841 = vadd.f32 %v2767, %v2840
        %v2842 = vpop.f32.mrb[0].mxu0
        %2843 = vmatprep.mubr.f32.mxu0 0.0
        %2844 = vmatmul.mubr.f32.gmra.mrb[0].mxu0 %v2732
        %v2845 = vpop.f32.mrb[0].mxu0
        %v2846 = vadd.f32 %v2767, %v2845
        %v2847 = vpop.f32.mrb[0].mxu0
        %2848 = vmatprep.mubr.f32.mxu0 0.0
        %2849 = vmatmul.mubr.f32.gmra.mrb[0].mxu0 %v2733
        %v2850 = vpop.f32.mrb[0].mxu0
        %v2851 = vadd.f32 %v2767, %v2850
        %v2852 = vpop.f32.mrb[0].mxu0
        %2853 = vmatprep.mubr.f32.mxu0 0.0
        %2854 = vmatmul.mubr.f32.gmra.mrb[0].mxu0 %v2734
        %v2855 = vpop.f32.mrb[0].mxu0
        %v2856 = vadd.f32 %v2767, %v2855
        %v2857 = vpop.f32.mrb[0].mxu0
        %2858 = vmatprep.mubr.f32.mxu0 0.0
        %2859 = vmatmul.mubr.f32.gmra.mrb[0].mxu0 %v2735
        %v2860 = vpop.f32.mrb[0].mxu0
        %v2861 = vadd.f32 %v2767, %v2860
        %v2862 = vpop.f32.mrb[0].mxu0
        %2863 = vmatprep.mubr.f32.mxu0 0.0
        %2864 = vmatmul.mubr.f32.gmra.mrb[0].mxu0 %v2736
        %v2865 = vpop.f32.mrb[0].mxu0
        %v2866 = vadd.f32 %v2767, %v2865
        %v2867 = vpop.f32.mrb[0].mxu0
        %2868 = vmatprep.mubr.f32.mxu0 0.0
        %2869 = vmatmul.mubr.f32.gmra.mrb[0].mxu0 %v2737
        %v2870 = vpop.f32.mrb[0].mxu0
        %v2871 = vadd.f32 %v2767, %v2870
        %v2872 = vpop.f32.mrb[0].mxu0
        %2873 = vmatprep.mubr.f32.mxu0 0.0
        %2874 = vmatmul.mubr.f32.gmra.mrb[0].mxu0 %v2738
        %v2875 = vpop.f32.mrb[0].mxu0
        %v2876 = vadd.f32 %v2767, %v2875
        %v2877 = vpop.f32.mrb[0].mxu0
        %2878 = vmatprep.mubr.f32.mxu0 0.0
        %2879 = vmatmul.mubr.f32.gmra.mrb[0].mxu0 %v2739
        %v2880 = vpop.f32.mrb[0].mxu0
        %v2881 = vadd.f32 %v2767, %v2880
        %v2882 = vpop.f32.mrb[0].mxu0
        %2883 = vmatprep.mubr.f32.mxu0 0.0
        %2884 = vmatmul.mubr.f32.gmra.mrb[0].mxu0 %v2740
        %v2885 = vpop.f32.mrb[0].mxu0
        %v2886 = vadd.f32 %v2767, %v2885
        %v2887 = vpop.f32.mrb[0].mxu0
        %2888 = vmatprep.mubr.f32.mxu0 0.0
        %2889 = vmatmul.mubr.f32.gmra.mrb[0].mxu0 %v2741
        %v2890 = vpop.f32.mrb[0].mxu0
        %v2891 = vadd.f32 %v2767, %v2890
        %v2892 = vpop.f32.mrb[0].mxu0
        %2893 = vmatprep.mubr.f32.mxu0 0.0
        %2894 = vmatmul.mubr.f32.gmra.mrb[0].mxu0 %v2742
        %v2895 = vpop.f32.mrb[0].mxu0
        %v2896 = vadd.f32 %v2767, %v2895
        %v2897 = vpop.f32.mrb[0].mxu0
        %2898 = vmatprep.mubr.f32.mxu0 0.0
        %2899 = vmatmul.mubr.f32.gmra.mrb[0].mxu0 %v2743
        %v2900 = vpop.f32.mrb[0].mxu0
        %v2901 = vadd.f32 %v2767, %v2900
        %v2902 = vpop.f32.mrb[0].mxu0
        %2903 = vmatprep.mubr.f32.mxu0 0.0
        %2904 = vmatmul.mubr.f32.gmra.mrb[0].mxu0 %v2744
        %v2905 = vpop.f32.mrb[0].mxu0
        %v2906 = vadd.f32 %v2767, %v2905
        %v2907 = vpop.f32.mrb[0].mxu0
        %2908 = vmatprep.mubr.f32.mxu0 0.0
        %2909 = vmatmul.mubr.f32.gmra.mrb[0].mxu0 %v2745
        %v2910 = vpop.f32.mrb[0].mxu0
        %v2911 = vadd.f32 %v2767, %v2910
        %v2912 = vpop.f32.mrb[0].mxu0
        %2913 = vdwg.mxu0
        %v2914 = vadd.f32 %v2836, %v437
        %v2915 = vadd.f32 %v2841, %v438
        %v2916 = vadd.f32 %v2846, %v439
        %v2917 = vadd.f32 %v2851, %v440
        %v2918 = vadd.f32 %v2856, %v441
        %v2919 = vadd.f32 %v2861, %v442
        %v2920 = vadd.f32 %v2866, %v443
        %v2921 = vadd.f32 %v2871, %v444
        %v2922 = vadd.f32 %v2876, %v445
        %v2923 = vadd.f32 %v2881, %v446
        %v2924 = vadd.f32 %v2886, %v447
        %v2925 = vadd.f32 %v2891, %v448
        %v2926 = vadd.f32 %v2896, %v449
        %v2927 = vadd.f32 %v2901, %v450
        %v2928 = vadd.f32 %v2906, %v451
        %v2929 = vadd.f32 %v2911, %v452
        %2930 = vst [vmem:[%s430] sm:$0xff] %v2914
        %2931 = vst [vmem:[%s430 + $0x8] sm:$0xff] %v2915
        %2932 = vst [vmem:[%s430 + $0x10] sm:$0xff] %v2916
        %2933 = vst [vmem:[%s430 + $0x18] sm:$0xff] %v2917
        %2934 = vst [vmem:[%s430 + $0x20] sm:$0xff] %v2918
        %2935 = vst [vmem:[%s430 + $0x28] sm:$0xff] %v2919
        %2936 = vst [vmem:[%s430 + $0x30] sm:$0xff] %v2920
        %2937 = vst [vmem:[%s430 + $0x38] sm:$0xff] %v2921
        %2938 = vst [vmem:[%s430 + $0x40] sm:$0xff] %v2922
        %2939 = vst [vmem:[%s430 + $0x48] sm:$0xff] %v2923
        %2940 = vst [vmem:[%s430 + $0x50] sm:$0xff] %v2924
        %2941 = vst [vmem:[%s430 + $0x58] sm:$0xff] %v2925
        %2942 = vst [vmem:[%s430 + $0x60] sm:$0xff] %v2926
        %2943 = vst [vmem:[%s430 + $0x68] sm:$0xff] %v2927
        %2944 = vst [vmem:[%s430 + $0x70] sm:$0xff] %v2928
        %2945 = vst [vmem:[%s430 + $0x78] sm:$0xff] %v2929
        %s2946 = sand.u32 %s235, 1
        %s2947 = scalar_lea.sflag [#allocation4], %s2946
        %s2948 = sand.u32 %s235, 1
        %s2949 = smul.addr %s2948, 128
        %s2950 = scalar_lea.vmem [#allocation11], %s2949
        // Predicated region
        $region73: #{tpu_custom_call.1} parent=51 // pred_check
          %p2951 = pneg %p245
        $region74: #{tpu_custom_call.1} parent=51 // pred_check_branch
          %2953 = sbr.rel (%p2951) target = $region76
        $region75: #{tpu_custom_call.1} parent=51 // pred_region
          %s2954 = smul.u32 16, %s34
          %s2956 = ssub.s32 2048, 2048
          %2957 = vsyncadd %s2947, %s2956
          %s2958 = smul.addr %s33, 32
          %s2959 = sadd.s32 %s2954, %s2958
          %s2960 = smul.addr %s2959, 128
          %s2961 = scalar_lea.hbm %s8, %s2960
          %s2962 = sshll.u32 %s2950, 4
          %s2963 = int_to_ptr.vmem [resolvable:$true] %s2962
          %2968 = dma.vmem_to_hbm [thread:$0]  %s2963, 2048, %s2961, %s2947, 128, 128, 8
        $region76: #{tpu_custom_call.1} parent=51 // pred_fallthru
          _
      $region52: #{tpu_custom_call.1} parent=5 // pred_fallthru
        _
      %p2969 = scmp.le.s32.totalorder 2, %s24
      // Predicated region
      $region77: #{tpu_custom_call.1} parent=5 // pred_check
        %p2970 = pneg %p2969
      $region78: #{tpu_custom_call.1} parent=5 // pred_check_branch
        %2972 = sbr.rel (%p2970) target = $region80
      $region79: #{tpu_custom_call.1} parent=5 // pred_region
        %s2973 = ssub.s32 %s24, 2
        // Predicated region
        $region81: #{tpu_custom_call.1} parent=79 // pred_check
          %p2974 = pneg %p251
        $region82: #{tpu_custom_call.1} parent=79 // pred_check_branch
          %2976 = sbr.rel (%p2974) target = $region84
        $region83: #{tpu_custom_call.1} parent=79 // pred_region
          %s2977 = sand.u32 %s236, 1
          %s2978 = scalar_lea.sflag [#allocation4], %s2977
          %s2979 = sand.u32 %s236, 1
          %s2980 = smul.addr %s2979, 128
          %s2981 = scalar_lea.vmem [#allocation11], %s2980
          %2982 = dma.done %s2978, 2048
        $region84: #{tpu_custom_call.1} parent=79 // pred_fallthru
          _
      $region80: #{tpu_custom_call.1} parent=5 // pred_fallthru
        _
    $region6: #{tpu_custom_call.1} parent=1 // loop_footer
      %s28 = sadd.s32 1, %s24
    $region7: #{tpu_custom_call.1} parent=1 // loop_footer_branch
      %23 = sbr.rel target = $region3
    $region8: #{tpu_custom_call.1} parent=1 // loop_exit
      _
    %2983 = vsyncpa [#allocation3], 1
    %s2984 = scalar_lea.sflag [#allocation3], 1
    %2985 = vsyncpa %s2984, 1
    %2986 = vsyncpa [#allocation6], 1
    %s2987 = scalar_lea.sflag [#allocation6], 1
    %2988 = vsyncpa %s2987, 1
    %2989 = vsyncpa [#allocation9], 1
    %2990 = vsyncpa [#allocation4], 1
    %s2991 = scalar_lea.sflag [#allocation4], 1
    %2992 = vsyncpa %s2991, 1

</llo_original>
